<compile_context>
chip_gen: v6e
topology: v6e:2x2x1
jax: 0.10.0
libtpu: 0.0.40
codegen_flags: <defaults>
</compile_context>

<pallas_src>
import jax
import jax.numpy as jnp
from jax.experimental import pallas as pl
from jax.experimental.pallas import tpu as pltpu

BN_EPS = 1e-5

# Fixed geometry for the 16x16 input used by this script (see __main__ note).
H_IN = 16                  # input spatial size
H1 = H_IN + 2              # 18: spatial after conv1 (1x1, padding=1); 3x3 pad=1 convs keep it
HP = H1 + 2                # 20: zero-padded grid used for the 3x3 convs
P = HP * HP                # 400: flattened padded pixel count
SLACK = HP + 1             # 21: max |flattened shift| of a 3x3 tap
BUFW = P + 2 * SLACK       # 442: activation scratch width (real image at [SLACK, SLACK+P))
N_BN = H1 * H1             # 324: pixels entering each BatchNorm
POOL_K = 10
N_POOL = POOL_K * POOL_K   # 100
K_COL = 9 * 32             # 288: im2col contraction depth


def _fused_net_kernel(xpad_ref, w1_ref, wmid_ref, w6_ref, bnp_ref, b6_ref,
                      masks_ref, out_ref, buf_a, buf_b, col):
    m_int = masks_ref[0:1, :]      # (1, P): 1 on the 18x18 real-output interior
    m_pool = masks_ref[1:2, :]     # (1, P): 1 on the 10x10 avg-pool window

    # Zero only the slack columns once (they are never overwritten and feed the
    # masked ring outputs, so they must not contain VMEM junk/NaNs).  The P
    # interior columns are fully rewritten every layer.
    zslack = jnp.zeros((32, SLACK), jnp.bfloat16)
    buf_a[:, 0:SLACK] = zslack
    buf_a[:, SLACK + P:BUFW] = zslack
    buf_b[:, 0:SLACK] = zslack
    buf_b[:, SLACK + P:BUFW] = zslack

    def bn_relu(raw, layer):
        # PyTorch training-mode BatchNorm2d over the N_BN real pixels, fused
        # into a single sweep: var = E[x^2] - mean^2 (biased).  The conv bias
        # of layers 1..5 cancels exactly under (x - batch_mean(x)), so it is
        # dropped.  Mask excludes pad ring / wrap-junk columns.
        gamma = bnp_ref[layer, 0]    # (32, 1)
        beta = bnp_ref[layer, 1]     # (32, 1)
        rm = raw * m_int
        mean = jnp.sum(rm, axis=1, keepdims=True) * (1.0 / N_BN)
        ex2 = jnp.sum(rm * raw, axis=1, keepdims=True) * (1.0 / N_BN)
        var = ex2 - mean * mean
        scale = gamma * jax.lax.rsqrt(var + BN_EPS)
        shift = beta - mean * scale
        # ReLU, then re-zero pad ring so the next conv sees exact zero padding.
        return jnp.maximum(raw * scale + shift, 0.0) * m_int

    # ---- conv1: 1x1, padding=1, Cin=3 -> three broadcast FMAs on the VPU ----
    x = xpad_ref[...]                            # (3, P) f32
    raw = w1_ref[:, 0:1] * x[0:1, :]
    raw = raw + w1_ref[:, 1:2] * x[1:2, :]
    raw = raw + w1_ref[:, 2:3] * x[2:3, :]
    buf_a[:, SLACK:SLACK + P] = bn_relu(raw, 0).astype(jnp.bfloat16)

    # ---- conv2..conv5: 3x3 pad=1 as ONE (32,288)@(288,P) bf16 MXU dot each --
    # im2col: row block 'tap' of col holds the activation shifted by that tap.
    bufs = (buf_a, buf_b)
    for l in range(4):
        src = bufs[l % 2]
        dst = bufs[(l + 1) % 2]
        for tap in range(9):
            dy, dx = divmod(tap, 3)
            start = dy * HP + dx                 # == SLACK + (dy-1)*HP + (dx-1)
            col[tap * 32:(tap + 1) * 32, :] = src[:, start:start + P]
        raw = jnp.dot(wmid_ref[l], col[...], preferred_element_type=jnp.float32)
        dst[:, SLACK:SLACK + P] = bn_relu(raw, l + 1).astype(jnp.bfloat16)

    # ---- conv6 (1x1) commuted with the 10x10/stride-14 avg-pool ----
    # avgpool(conv6(x)) == conv6(avgpool(x)) (both linear; bias passes through),
    # so do the lane-dense (10,32)@(32,P) matmul first, then a masked reduce.
    act5 = buf_a[:, SLACK:SLACK + P]             # conv5 output lives in buf_a (bf16)
    y6 = jnp.dot(w6_ref[...], act5, preferred_element_type=jnp.float32)   # (10, P)
    pooled = jnp.sum(y6 * m_pool, axis=1, keepdims=True) * (1.0 / N_POOL)
    out_ref[...] = pooled + b6_ref[...]          # (10, 1) == v17 (spatial is 1x1)


def init_params(key):
    ks = jax.random.split(key, 12)

    def w(k, shape):
        return (0.1 * jax.random.normal(k, shape)).astype(jnp.float32)

    params = {
        "conv1_w": w(ks[0], (32, 3, 1, 1)),   "conv1_b": w(ks[1], (32,)),
        "conv2_w": w(ks[2], (32, 32, 3, 3)),  "conv2_b": w(ks[3], (32,)),
        "conv3_w": w(ks[4], (32, 32, 3, 3)),  "conv3_b": w(ks[5], (32,)),
        "conv4_w": w(ks[6], (32, 32, 3, 3)),  "conv4_b": w(ks[7], (32,)),
        "conv5_w": w(ks[8], (32, 32, 3, 3)),  "conv5_b": w(ks[9], (32,)),
        "conv6_w": w(ks[10], (10, 32, 1, 1)), "conv6_b": w(ks[11], (10,)),
    }
    for i in range(1, 6):
        params[f"bn{i}_g"] = jnp.ones((32,), jnp.float32)   # BN weight init
        params[f"bn{i}_b"] = jnp.zeros((32,), jnp.float32)  # BN bias init
    return params


def pack_params(p):
    """One-time weight/param layout packing (hoisted out of the forward pass)."""
    w1 = p["conv1_w"].reshape(32, 3).astype(jnp.float32)
    # (Cout,Cin,Kh,Kw) -> (Cout,Kh,Kw,Cin) -> (Cout, 9*Cin), lane-dense per layer.
    # Column index = tap*32 + cin with tap = dy*3+dx, matching the im2col rows.
    wmid = jnp.stack([
        jnp.transpose(p[f"conv{i}_w"], (0, 2, 3, 1)).reshape(32, K_COL)
        for i in range(2, 6)
    ]).astype(jnp.bfloat16)                                        # (4, 32, 288)
    w6 = p["conv6_w"].reshape(10, 32).astype(jnp.bfloat16)
    b6 = p["conv6_b"].reshape(10, 1).astype(jnp.float32)

    # Conv biases of layers 1..5 cancel exactly under training-mode BN, so only
    # gamma/beta are shipped to the kernel.
    gamma = jnp.stack([p[f"bn{i}_g"] for i in range(1, 6)])
    beta = jnp.stack([p[f"bn{i}_b"] for i in range(1, 6)])
    bnp = jnp.stack([gamma, beta], axis=1)[..., None].astype(jnp.float32)  # (5,2,32,1)

    idx = jnp.arange(P, dtype=jnp.int32)
    ii, jj = idx // HP, idx % HP
    interior = ((ii >= 1) & (ii <= H1) & (jj >= 1) & (jj <= H1)).astype(jnp.float32)
    pool = ((ii >= 1) & (ii <= POOL_K) & (jj >= 1) & (jj <= POOL_K)).astype(jnp.float32)
    masks = jnp.stack([interior, pool])                            # (2, P)

    return dict(w1=w1, wmid=wmid, w6=w6, b6=b6, bnp=bnp, masks=masks)


@jax.jit
def model_forward(x_nchw, pk):
    # Batch must be 1 (the module's trailing .expand/broadcast only works then).
    # NCHW (1,3,16,16) -> channels-first, zero-padded 20x20, flattened (3, 400).
    xpad = jnp.pad(x_nchw[0], ((0, 0), (2, 2), (2, 2))).reshape(3, P).astype(jnp.float32)

    v17_vec = pl.pallas_call(
        _fused_net_kernel,
        out_shape=jax.ShapeDtypeStruct((10, 1), jnp.float32),
        scratch_shapes=[pltpu.VMEM((32, BUFW), jnp.bfloat16),   # ping
                        pltpu.VMEM((32, BUFW), jnp.bfloat16),   # pong
                        pltpu.VMEM((K_COL, P), jnp.bfloat16)],  # im2col
    )(xpad, pk["w1"], pk["wmid"], pk["w6"], pk["bnp"], pk["b6"], pk["masks"])

    # Tail v18..v23: a handful of ops on 10 scalars; XLA fuses them into one op.
    # TODO(synk): tail left to XLA — the needed (10,1)->(1,10) outer product is
    # a sublane<->lane transpose not worth risking inside the Mosaic kernel.
    v17 = v17_vec.reshape(1, 10, 1, 1)                              # (1,10,1,1)
    v18 = jnp.broadcast_to(v17_vec.reshape(1, 10, 1), (1, 10, 64))  # mean over H=1, expand
    v21 = jnp.clip(3.0 + v18, 0.0, 6.0)                             # clamp_min then clamp_max
    return v17 * v21 / 6.0                                          # (1, 10, 10, 64)


if __name__ == "__main__":
    key = jax.random.PRNGKey(0)
    pkey, xkey = jax.random.split(key)
    params = init_params(pkey)
    packed = pack_params(params)
    # Small input consistent with the module: NCHW, 3 input channels, 16x16.
    # Spatial 16 -> convs give 18x18 -> AvgPool2d(10, stride=14) -> 1x1 spatial,
    # which makes the trailing .expand(-1, -1, 64) well-defined (the original
    # 64x64 input makes that expand invalid in PyTorch; this file is jit_fail).
    x = jax.random.normal(xkey, (1, 3, 16, 16), dtype=jnp.float32)
    out = model_forward(x, packed)
    out = jax.block_until_ready(out)
    assert out.shape == (1, 10, 10, 64), out.shape
    assert out.dtype == jnp.float32
    print("KERNEL_OK")
</pallas_src>

<mosaic_0001>
module attributes {stable_mosaic.version = 11 : i64} {
  func.func @_fused_net_kernel(%arg0: memref<3x400xf32, #tpu.memory_space<vmem>>, %arg1: memref<32x3xf32, #tpu.memory_space<vmem>>, %arg2: memref<4x32x288xbf16, #tpu.memory_space<vmem>>, %arg3: memref<10x32xbf16, #tpu.memory_space<vmem>>, %arg4: memref<5x2x32x1xf32, #tpu.memory_space<vmem>>, %arg5: memref<10x1xf32, #tpu.memory_space<vmem>>, %arg6: memref<2x400xf32, #tpu.memory_space<vmem>>, %arg7: memref<10x1xf32, #tpu.memory_space<vmem>>, %arg8: memref<32x442xbf16, #tpu.memory_space<vmem>>, %arg9: memref<32x442xbf16, #tpu.memory_space<vmem>>, %arg10: memref<288x400xbf16, #tpu.memory_space<vmem>>) attributes {dimension_semantics = [], scalar_prefetch = 0 : i64, scratch_operands = 3 : i64, tpu.core_type = #tpu.core_type<tc>} {
    %c0 = arith.constant 0 : index
    %c0_0 = arith.constant 0 : index
    %0 = vector.load %arg6[%c0, %c0_0] : memref<2x400xf32, #tpu.memory_space<vmem>>, vector<1x400xf32>
    %c1 = arith.constant 1 : index
    %c0_1 = arith.constant 0 : index
    %1 = vector.load %arg6[%c1, %c0_1] : memref<2x400xf32, #tpu.memory_space<vmem>>, vector<1x400xf32>
    %cst = arith.constant 0.000000e+00 : bf16
    %2 = vector.broadcast %cst : bf16 to vector<32x21xbf16>
    %c0_2 = arith.constant 0 : index
    %c0_3 = arith.constant 0 : index
    %3 = vector.load %arg8[%c0_2, %c0_3] : memref<32x442xbf16, #tpu.memory_space<vmem>>, vector<32x21xbf16>
    tpu.vector_store %arg8[%c0_2, %c0_3], %2 {strides = array<i32>} : memref<32x442xbf16, #tpu.memory_space<vmem>>, vector<32x21xbf16>,
    %c0_4 = arith.constant 0 : index
    %c421 = arith.constant 421 : index
    %4 = vector.load %arg8[%c0_4, %c421] : memref<32x442xbf16, #tpu.memory_space<vmem>>, vector<32x21xbf16>
    tpu.vector_store %arg8[%c0_4, %c421], %2 {strides = array<i32>} : memref<32x442xbf16, #tpu.memory_space<vmem>>, vector<32x21xbf16>,
    %c0_5 = arith.constant 0 : index
    %c0_6 = arith.constant 0 : index
    %5 = vector.load %arg9[%c0_5, %c0_6] : memref<32x442xbf16, #tpu.memory_space<vmem>>, vector<32x21xbf16>
    tpu.vector_store %arg9[%c0_5, %c0_6], %2 {strides = array<i32>} : memref<32x442xbf16, #tpu.memory_space<vmem>>, vector<32x21xbf16>,
    %c0_7 = arith.constant 0 : index
    %c421_8 = arith.constant 421 : index
    %6 = vector.load %arg9[%c0_7, %c421_8] : memref<32x442xbf16, #tpu.memory_space<vmem>>, vector<32x21xbf16>
    tpu.vector_store %arg9[%c0_7, %c421_8], %2 {strides = array<i32>} : memref<32x442xbf16, #tpu.memory_space<vmem>>, vector<32x21xbf16>,
    %c0_9 = arith.constant 0 : index
    %c0_10 = arith.constant 0 : index
    %7 = vector.load %arg0[%c0_9, %c0_10] : memref<3x400xf32, #tpu.memory_space<vmem>>, vector<3x400xf32>
    %c0_11 = arith.constant 0 : index
    %c0_12 = arith.constant 0 : index
    %8 = vector.load %arg1[%c0_11, %c0_12] : memref<32x3xf32, #tpu.memory_space<vmem>>, vector<32x1xf32>
    %9 = vector.extract_strided_slice %7 {offsets = [0, 0], sizes = [1, 400], strides = [1, 1]} : vector<3x400xf32> to vector<1x400xf32>
    %10 = vector.broadcast %8 : vector<32x1xf32> to vector<32x400xf32>
    %11 = vector.broadcast %9 : vector<1x400xf32> to vector<32x400xf32>
    %12 = arith.mulf %10, %11 : vector<32x400xf32>
    %c0_13 = arith.constant 0 : index
    %c1_14 = arith.constant 1 : index
    %13 = vector.load %arg1[%c0_13, %c1_14] : memref<32x3xf32, #tpu.memory_space<vmem>>, vector<32x1xf32>
    %14 = vector.extract_strided_slice %7 {offsets = [1, 0], sizes = [1, 400], strides = [1, 1]} : vector<3x400xf32> to vector<1x400xf32>
    %15 = vector.broadcast %13 : vector<32x1xf32> to vector<32x400xf32>
    %16 = vector.broadcast %14 : vector<1x400xf32> to vector<32x400xf32>
    %17 = arith.mulf %15, %16 : vector<32x400xf32>
    %18 = arith.addf %12, %17 : vector<32x400xf32>
    %c0_15 = arith.constant 0 : index
    %c2 = arith.constant 2 : index
    %19 = vector.load %arg1[%c0_15, %c2] : memref<32x3xf32, #tpu.memory_space<vmem>>, vector<32x1xf32>
    %20 = vector.extract_strided_slice %7 {offsets = [2, 0], sizes = [1, 400], strides = [1, 1]} : vector<3x400xf32> to vector<1x400xf32>
    %21 = vector.broadcast %19 : vector<32x1xf32> to vector<32x400xf32>
    %22 = vector.broadcast %20 : vector<1x400xf32> to vector<32x400xf32>
    %23 = arith.mulf %21, %22 : vector<32x400xf32>
    %24 = arith.addf %18, %23 : vector<32x400xf32>
    %c0_16 = arith.constant 0 : index
    %c0_17 = arith.constant 0 : index
    %c0_18 = arith.constant 0 : index
    %c0_19 = arith.constant 0 : index
    %25 = vector.load %arg4[%c0_16, %c0_17, %c0_18, %c0_19] : memref<5x2x32x1xf32, #tpu.memory_space<vmem>>, vector<1x1x32x1xf32>
    %26 = vector.shape_cast %25 : vector<1x1x32x1xf32> to vector<32x1xf32>
    %c0_20 = arith.constant 0 : index
    %c1_21 = arith.constant 1 : index
    %c0_22 = arith.constant 0 : index
    %c0_23 = arith.constant 0 : index
    %27 = vector.load %arg4[%c0_20, %c1_21, %c0_22, %c0_23] : memref<5x2x32x1xf32, #tpu.memory_space<vmem>>, vector<1x1x32x1xf32>
    %28 = vector.shape_cast %27 : vector<1x1x32x1xf32> to vector<32x1xf32>
    %29 = vector.broadcast %0 : vector<1x400xf32> to vector<32x400xf32>
    %30 = arith.mulf %24, %29 : vector<32x400xf32>
    %cst_24 = arith.constant dense<0.000000e+00> : vector<32xf32>
    %31 = vector.multi_reduction <add>, %30, %cst_24 [1] : vector<32x400xf32> to vector<32xf32>
    %32 = vector.shape_cast %31 : vector<32xf32> to vector<32x1xf32>
    %cst_25 = arith.constant 0.00308641978 : f32
    %33 = vector.broadcast %cst_25 : f32 to vector<32x1xf32>
    %34 = arith.mulf %32, %33 : vector<32x1xf32>
    %35 = arith.mulf %30, %24 : vector<32x400xf32>
    %cst_26 = arith.constant dense<0.000000e+00> : vector<32xf32>
    %36 = vector.multi_reduction <add>, %35, %cst_26 [1] : vector<32x400xf32> to vector<32xf32>
    %37 = vector.shape_cast %36 : vector<32xf32> to vector<32x1xf32>
    %cst_27 = arith.constant 0.00308641978 : f32
    %38 = vector.broadcast %cst_27 : f32 to vector<32x1xf32>
    %39 = arith.mulf %37, %38 : vector<32x1xf32>
    %40 = arith.mulf %34, %34 : vector<32x1xf32>
    %41 = arith.subf %39, %40 : vector<32x1xf32>
    %cst_28 = arith.constant 9.99999974E-6 : f32
    %42 = vector.broadcast %cst_28 : f32 to vector<32x1xf32>
    %43 = arith.addf %41, %42 : vector<32x1xf32>
    %44 = math.rsqrt %43 : vector<32x1xf32>
    %45 = arith.mulf %26, %44 : vector<32x1xf32>
    %46 = arith.mulf %34, %45 : vector<32x1xf32>
    %47 = arith.subf %28, %46 : vector<32x1xf32>
    %48 = vector.broadcast %45 : vector<32x1xf32> to vector<32x400xf32>
    %49 = arith.mulf %24, %48 : vector<32x400xf32>
    %50 = vector.broadcast %47 : vector<32x1xf32> to vector<32x400xf32>
    %51 = arith.addf %49, %50 : vector<32x400xf32>
    %cst_29 = arith.constant 0.000000e+00 : f32
    %52 = vector.broadcast %cst_29 : f32 to vector<32x400xf32>
    %53 = arith.maximumf %51, %52 : vector<32x400xf32>
    %54 = vector.broadcast %0 : vector<1x400xf32> to vector<32x400xf32>
    %55 = arith.mulf %53, %54 : vector<32x400xf32>
    %56 = arith.truncf %55 : vector<32x400xf32> to vector<32x400xbf16>
    %c0_30 = arith.constant 0 : index
    %c21 = arith.constant 21 : index
    %57 = vector.load %arg8[%c0_30, %c21] : memref<32x442xbf16, #tpu.memory_space<vmem>>, vector<32x400xbf16>
    tpu.vector_store %arg8[%c0_30, %c21], %56 {strides = array<i32>} : memref<32x442xbf16, #tpu.memory_space<vmem>>, vector<32x400xbf16>,
    %c0_31 = arith.constant 0 : index
    %c0_32 = arith.constant 0 : index
    %58 = vector.load %arg8[%c0_31, %c0_32] : memref<32x442xbf16, #tpu.memory_space<vmem>>, vector<32x400xbf16>
    %c0_33 = arith.constant 0 : index
    %c0_34 = arith.constant 0 : index
    %59 = vector.load %arg10[%c0_33, %c0_34] : memref<288x400xbf16, #tpu.memory_space<vmem>>, vector<32x400xbf16>
    tpu.vector_store %arg10[%c0_33, %c0_34], %58 {strides = array<i32>} : memref<288x400xbf16, #tpu.memory_space<vmem>>, vector<32x400xbf16>,
    %c0_35 = arith.constant 0 : index
    %c1_36 = arith.constant 1 : index
    %60 = vector.load %arg8[%c0_35, %c1_36] : memref<32x442xbf16, #tpu.memory_space<vmem>>, vector<32x400xbf16>
    %c32 = arith.constant 32 : index
    %c0_37 = arith.constant 0 : index
    %61 = vector.load %arg10[%c32, %c0_37] : memref<288x400xbf16, #tpu.memory_space<vmem>>, vector<32x400xbf16>
    tpu.vector_store %arg10[%c32, %c0_37], %60 {strides = array<i32>} : memref<288x400xbf16, #tpu.memory_space<vmem>>, vector<32x400xbf16>,
    %c0_38 = arith.constant 0 : index
    %c2_39 = arith.constant 2 : index
    %62 = vector.load %arg8[%c0_38, %c2_39] : memref<32x442xbf16, #tpu.memory_space<vmem>>, vector<32x400xbf16>
    %c64 = arith.constant 64 : index
    %c0_40 = arith.constant 0 : index
    %63 = vector.load %arg10[%c64, %c0_40] : memref<288x400xbf16, #tpu.memory_space<vmem>>, vector<32x400xbf16>
    tpu.vector_store %arg10[%c64, %c0_40], %62 {strides = array<i32>} : memref<288x400xbf16, #tpu.memory_space<vmem>>, vector<32x400xbf16>,
    %c0_41 = arith.constant 0 : index
    %c20 = arith.constant 20 : index
    %64 = vector.load %arg8[%c0_41, %c20] : memref<32x442xbf16, #tpu.memory_space<vmem>>, vector<32x400xbf16>
    %c96 = arith.constant 96 : index
    %c0_42 = arith.constant 0 : index
    %65 = vector.load %arg10[%c96, %c0_42] : memref<288x400xbf16, #tpu.memory_space<vmem>>, vector<32x400xbf16>
    tpu.vector_store %arg10[%c96, %c0_42], %64 {strides = array<i32>} : memref<288x400xbf16, #tpu.memory_space<vmem>>, vector<32x400xbf16>,
    %c0_43 = arith.constant 0 : index
    %c21_44 = arith.constant 21 : index
    %66 = vector.load %arg8[%c0_43, %c21_44] : memref<32x442xbf16, #tpu.memory_space<vmem>>, vector<32x400xbf16>
    %c128 = arith.constant 128 : index
    %c0_45 = arith.constant 0 : index
    %67 = vector.load %arg10[%c128, %c0_45] : memref<288x400xbf16, #tpu.memory_space<vmem>>, vector<32x400xbf16>
    tpu.vector_store %arg10[%c128, %c0_45], %66 {strides = array<i32>} : memref<288x400xbf16, #tpu.memory_space<vmem>>, vector<32x400xbf16>,
    %c0_46 = arith.constant 0 : index
    %c22 = arith.constant 22 : index
    %68 = vector.load %arg8[%c0_46, %c22] : memref<32x442xbf16, #tpu.memory_space<vmem>>, vector<32x400xbf16>
    %c160 = arith.constant 160 : index
    %c0_47 = arith.constant 0 : index
    %69 = vector.load %arg10[%c160, %c0_47] : memref<288x400xbf16, #tpu.memory_space<vmem>>, vector<32x400xbf16>
    tpu.vector_store %arg10[%c160, %c0_47], %68 {strides = array<i32>} : memref<288x400xbf16, #tpu.memory_space<vmem>>, vector<32x400xbf16>,
    %c0_48 = arith.constant 0 : index
    %c40 = arith.constant 40 : index
    %70 = vector.load %arg8[%c0_48, %c40] : memref<32x442xbf16, #tpu.memory_space<vmem>>, vector<32x400xbf16>
    %c192 = arith.constant 192 : index
    %c0_49 = arith.constant 0 : index
    %71 = vector.load %arg10[%c192, %c0_49] : memref<288x400xbf16, #tpu.memory_space<vmem>>, vector<32x400xbf16>
    tpu.vector_store %arg10[%c192, %c0_49], %70 {strides = array<i32>} : memref<288x400xbf16, #tpu.memory_space<vmem>>, vector<32x400xbf16>,
    %c0_50 = arith.constant 0 : index
    %c41 = arith.constant 41 : index
    %72 = vector.load %arg8[%c0_50, %c41] : memref<32x442xbf16, #tpu.memory_space<vmem>>, vector<32x400xbf16>
    %c224 = arith.constant 224 : index
    %c0_51 = arith.constant 0 : index
    %73 = vector.load %arg10[%c224, %c0_51] : memref<288x400xbf16, #tpu.memory_space<vmem>>, vector<32x400xbf16>
    tpu.vector_store %arg10[%c224, %c0_51], %72 {strides = array<i32>} : memref<288x400xbf16, #tpu.memory_space<vmem>>, vector<32x400xbf16>,
    %c0_52 = arith.constant 0 : index
    %c42 = arith.constant 42 : index
    %74 = vector.load %arg8[%c0_52, %c42] : memref<32x442xbf16, #tpu.memory_space<vmem>>, vector<32x400xbf16>
    %c256 = arith.constant 256 : index
    %c0_53 = arith.constant 0 : index
    %75 = vector.load %arg10[%c256, %c0_53] : memref<288x400xbf16, #tpu.memory_space<vmem>>, vector<32x400xbf16>
    tpu.vector_store %arg10[%c256, %c0_53], %74 {strides = array<i32>} : memref<288x400xbf16, #tpu.memory_space<vmem>>, vector<32x400xbf16>,
    %c0_54 = arith.constant 0 : index
    %c0_55 = arith.constant 0 : index
    %c0_56 = arith.constant 0 : index
    %76 = vector.load %arg2[%c0_54, %c0_55, %c0_56] : memref<4x32x288xbf16, #tpu.memory_space<vmem>>, vector<1x32x288xbf16>
    %77 = vector.shape_cast %76 : vector<1x32x288xbf16> to vector<32x288xbf16>
    %c0_57 = arith.constant 0 : index
    %c0_58 = arith.constant 0 : index
    %78 = vector.load %arg10[%c0_57, %c0_58] : memref<288x400xbf16, #tpu.memory_space<vmem>>, vector<288x400xbf16>
    %cst_59 = arith.constant dense<0.000000e+00> : vector<32x400xf32>
    %79 = tpu.matmul %77, %78, %cst_59 {dimension_numbers = #tpu.dot_dimension_numbers<[1], [0], [0], [1], [0, 0, 1, 1], [], []>} : vector<32x288xbf16>, vector<288x400xbf16>, vector<32x400xf32> -> vector<32x400xf32>
    %c1_60 = arith.constant 1 : index
    %c0_61 = arith.constant 0 : index
    %c0_62 = arith.constant 0 : index
    %c0_63 = arith.constant 0 : index
    %80 = vector.load %arg4[%c1_60, %c0_61, %c0_62, %c0_63] : memref<5x2x32x1xf32, #tpu.memory_space<vmem>>, vector<1x1x32x1xf32>
    %81 = vector.shape_cast %80 : vector<1x1x32x1xf32> to vector<32x1xf32>
    %c1_64 = arith.constant 1 : index
    %c1_65 = arith.constant 1 : index
    %c0_66 = arith.constant 0 : index
    %c0_67 = arith.constant 0 : index
    %82 = vector.load %arg4[%c1_64, %c1_65, %c0_66, %c0_67] : memref<5x2x32x1xf32, #tpu.memory_space<vmem>>, vector<1x1x32x1xf32>
    %83 = vector.shape_cast %82 : vector<1x1x32x1xf32> to vector<32x1xf32>
    %84 = vector.broadcast %0 : vector<1x400xf32> to vector<32x400xf32>
    %85 = arith.mulf %79, %84 : vector<32x400xf32>
    %cst_68 = arith.constant dense<0.000000e+00> : vector<32xf32>
    %86 = vector.multi_reduction <add>, %85, %cst_68 [1] : vector<32x400xf32> to vector<32xf32>
    %87 = vector.shape_cast %86 : vector<32xf32> to vector<32x1xf32>
    %cst_69 = arith.constant 0.00308641978 : f32
    %88 = vector.broadcast %cst_69 : f32 to vector<32x1xf32>
    %89 = arith.mulf %87, %88 : vector<32x1xf32>
    %90 = arith.mulf %85, %79 : vector<32x400xf32>
    %cst_70 = arith.constant dense<0.000000e+00> : vector<32xf32>
    %91 = vector.multi_reduction <add>, %90, %cst_70 [1] : vector<32x400xf32> to vector<32xf32>
    %92 = vector.shape_cast %91 : vector<32xf32> to vector<32x1xf32>
    %cst_71 = arith.constant 0.00308641978 : f32
    %93 = vector.broadcast %cst_71 : f32 to vector<32x1xf32>
    %94 = arith.mulf %92, %93 : vector<32x1xf32>
    %95 = arith.mulf %89, %89 : vector<32x1xf32>
    %96 = arith.subf %94, %95 : vector<32x1xf32>
    %cst_72 = arith.constant 9.99999974E-6 : f32
    %97 = vector.broadcast %cst_72 : f32 to vector<32x1xf32>
    %98 = arith.addf %96, %97 : vector<32x1xf32>
    %99 = math.rsqrt %98 : vector<32x1xf32>
    %100 = arith.mulf %81, %99 : vector<32x1xf32>
    %101 = arith.mulf %89, %100 : vector<32x1xf32>
    %102 = arith.subf %83, %101 : vector<32x1xf32>
    %103 = vector.broadcast %100 : vector<32x1xf32> to vector<32x400xf32>
    %104 = arith.mulf %79, %103 : vector<32x400xf32>
    %105 = vector.broadcast %102 : vector<32x1xf32> to vector<32x400xf32>
    %106 = arith.addf %104, %105 : vector<32x400xf32>
    %cst_73 = arith.constant 0.000000e+00 : f32
    %107 = vector.broadcast %cst_73 : f32 to vector<32x400xf32>
    %108 = arith.maximumf %106, %107 : vector<32x400xf32>
    %109 = vector.broadcast %0 : vector<1x400xf32> to vector<32x400xf32>
    %110 = arith.mulf %108, %109 : vector<32x400xf32>
    %111 = arith.truncf %110 : vector<32x400xf32> to vector<32x400xbf16>
    %c0_74 = arith.constant 0 : index
    %c21_75 = arith.constant 21 : index
    %112 = vector.load %arg9[%c0_74, %c21_75] : memref<32x442xbf16, #tpu.memory_space<vmem>>, vector<32x400xbf16>
    tpu.vector_store %arg9[%c0_74, %c21_75], %111 {strides = array<i32>} : memref<32x442xbf16, #tpu.memory_space<vmem>>, vector<32x400xbf16>,
    %c0_76 = arith.constant 0 : index
    %c0_77 = arith.constant 0 : index
    %113 = vector.load %arg9[%c0_76, %c0_77] : memref<32x442xbf16, #tpu.memory_space<vmem>>, vector<32x400xbf16>
    %c0_78 = arith.constant 0 : index
    %c0_79 = arith.constant 0 : index
    %114 = vector.load %arg10[%c0_78, %c0_79] : memref<288x400xbf16, #tpu.memory_space<vmem>>, vector<32x400xbf16>
    tpu.vector_store %arg10[%c0_78, %c0_79], %113 {strides = array<i32>} : memref<288x400xbf16, #tpu.memory_space<vmem>>, vector<32x400xbf16>,
    %c0_80 = arith.constant 0 : index
    %c1_81 = arith.constant 1 : index
    %115 = vector.load %arg9[%c0_80, %c1_81] : memref<32x442xbf16, #tpu.memory_space<vmem>>, vector<32x400xbf16>
    %c32_82 = arith.constant 32 : index
    %c0_83 = arith.constant 0 : index
    %116 = vector.load %arg10[%c32_82, %c0_83] : memref<288x400xbf16, #tpu.memory_space<vmem>>, vector<32x400xbf16>
    tpu.vector_store %arg10[%c32_82, %c0_83], %115 {strides = array<i32>} : memref<288x400xbf16, #tpu.memory_space<vmem>>, vector<32x400xbf16>,
    %c0_84 = arith.constant 0 : index
    %c2_85 = arith.constant 2 : index
    %117 = vector.load %arg9[%c0_84, %c2_85] : memref<32x442xbf16, #tpu.memory_space<vmem>>, vector<32x400xbf16>
    %c64_86 = arith.constant 64 : index
    %c0_87 = arith.constant 0 : index
    %118 = vector.load %arg10[%c64_86, %c0_87] : memref<288x400xbf16, #tpu.memory_space<vmem>>, vector<32x400xbf16>
    tpu.vector_store %arg10[%c64_86, %c0_87], %117 {strides = array<i32>} : memref<288x400xbf16, #tpu.memory_space<vmem>>, vector<32x400xbf16>,
    %c0_88 = arith.constant 0 : index
    %c20_89 = arith.constant 20 : index
    %119 = vector.load %arg9[%c0_88, %c20_89] : memref<32x442xbf16, #tpu.memory_space<vmem>>, vector<32x400xbf16>
    %c96_90 = arith.constant 96 : index
    %c0_91 = arith.constant 0 : index
    %120 = vector.load %arg10[%c96_90, %c0_91] : memref<288x400xbf16, #tpu.memory_space<vmem>>, vector<32x400xbf16>
    tpu.vector_store %arg10[%c96_90, %c0_91], %119 {strides = array<i32>} : memref<288x400xbf16, #tpu.memory_space<vmem>>, vector<32x400xbf16>,
    %c0_92 = arith.constant 0 : index
    %c21_93 = arith.constant 21 : index
    %121 = vector.load %arg9[%c0_92, %c21_93] : memref<32x442xbf16, #tpu.memory_space<vmem>>, vector<32x400xbf16>
    %c128_94 = arith.constant 128 : index
    %c0_95 = arith.constant 0 : index
    %122 = vector.load %arg10[%c128_94, %c0_95] : memref<288x400xbf16, #tpu.memory_space<vmem>>, vector<32x400xbf16>
    tpu.vector_store %arg10[%c128_94, %c0_95], %121 {strides = array<i32>} : memref<288x400xbf16, #tpu.memory_space<vmem>>, vector<32x400xbf16>,
    %c0_96 = arith.constant 0 : index
    %c22_97 = arith.constant 22 : index
    %123 = vector.load %arg9[%c0_96, %c22_97] : memref<32x442xbf16, #tpu.memory_space<vmem>>, vector<32x400xbf16>
    %c160_98 = arith.constant 160 : index
    %c0_99 = arith.constant 0 : index
    %124 = vector.load %arg10[%c160_98, %c0_99] : memref<288x400xbf16, #tpu.memory_space<vmem>>, vector<32x400xbf16>
    tpu.vector_store %arg10[%c160_98, %c0_99], %123 {strides = array<i32>} : memref<288x400xbf16, #tpu.memory_space<vmem>>, vector<32x400xbf16>,
    %c0_100 = arith.constant 0 : index
    %c40_101 = arith.constant 40 : index
    %125 = vector.load %arg9[%c0_100, %c40_101] : memref<32x442xbf16, #tpu.memory_space<vmem>>, vector<32x400xbf16>
    %c192_102 = arith.constant 192 : index
    %c0_103 = arith.constant 0 : index
    %126 = vector.load %arg10[%c192_102, %c0_103] : memref<288x400xbf16, #tpu.memory_space<vmem>>, vector<32x400xbf16>
    tpu.vector_store %arg10[%c192_102, %c0_103], %125 {strides = array<i32>} : memref<288x400xbf16, #tpu.memory_space<vmem>>, vector<32x400xbf16>,
    %c0_104 = arith.constant 0 : index
    %c41_105 = arith.constant 41 : index
    %127 = vector.load %arg9[%c0_104, %c41_105] : memref<32x442xbf16, #tpu.memory_space<vmem>>, vector<32x400xbf16>
    %c224_106 = arith.constant 224 : index
    %c0_107 = arith.constant 0 : index
    %128 = vector.load %arg10[%c224_106, %c0_107] : memref<288x400xbf16, #tpu.memory_space<vmem>>, vector<32x400xbf16>
    tpu.vector_store %arg10[%c224_106, %c0_107], %127 {strides = array<i32>} : memref<288x400xbf16, #tpu.memory_space<vmem>>, vector<32x400xbf16>,
    %c0_108 = arith.constant 0 : index
    %c42_109 = arith.constant 42 : index
    %129 = vector.load %arg9[%c0_108, %c42_109] : memref<32x442xbf16, #tpu.memory_space<vmem>>, vector<32x400xbf16>
    %c256_110 = arith.constant 256 : index
    %c0_111 = arith.constant 0 : index
    %130 = vector.load %arg10[%c256_110, %c0_111] : memref<288x400xbf16, #tpu.memory_space<vmem>>, vector<32x400xbf16>
    tpu.vector_store %arg10[%c256_110, %c0_111], %129 {strides = array<i32>} : memref<288x400xbf16, #tpu.memory_space<vmem>>, vector<32x400xbf16>,
    %c1_112 = arith.constant 1 : index
    %c0_113 = arith.constant 0 : index
    %c0_114 = arith.constant 0 : index
    %131 = vector.load %arg2[%c1_112, %c0_113, %c0_114] : memref<4x32x288xbf16, #tpu.memory_space<vmem>>, vector<1x32x288xbf16>
    %132 = vector.shape_cast %131 : vector<1x32x288xbf16> to vector<32x288xbf16>
    %c0_115 = arith.constant 0 : index
    %c0_116 = arith.constant 0 : index
    %133 = vector.load %arg10[%c0_115, %c0_116] : memref<288x400xbf16, #tpu.memory_space<vmem>>, vector<288x400xbf16>
    %cst_117 = arith.constant dense<0.000000e+00> : vector<32x400xf32>
    %134 = tpu.matmul %132, %133, %cst_117 {dimension_numbers = #tpu.dot_dimension_numbers<[1], [0], [0], [1], [0, 0, 1, 1], [], []>} : vector<32x288xbf16>, vector<288x400xbf16>, vector<32x400xf32> -> vector<32x400xf32>
    %c2_118 = arith.constant 2 : index
    %c0_119 = arith.constant 0 : index
    %c0_120 = arith.constant 0 : index
    %c0_121 = arith.constant 0 : index
    %135 = vector.load %arg4[%c2_118, %c0_119, %c0_120, %c0_121] : memref<5x2x32x1xf32, #tpu.memory_space<vmem>>, vector<1x1x32x1xf32>
    %136 = vector.shape_cast %135 : vector<1x1x32x1xf32> to vector<32x1xf32>
    %c2_122 = arith.constant 2 : index
    %c1_123 = arith.constant 1 : index
    %c0_124 = arith.constant 0 : index
    %c0_125 = arith.constant 0 : index
    %137 = vector.load %arg4[%c2_122, %c1_123, %c0_124, %c0_125] : memref<5x2x32x1xf32, #tpu.memory_space<vmem>>, vector<1x1x32x1xf32>
    %138 = vector.shape_cast %137 : vector<1x1x32x1xf32> to vector<32x1xf32>
    %139 = vector.broadcast %0 : vector<1x400xf32> to vector<32x400xf32>
    %140 = arith.mulf %134, %139 : vector<32x400xf32>
    %cst_126 = arith.constant dense<0.000000e+00> : vector<32xf32>
    %141 = vector.multi_reduction <add>, %140, %cst_126 [1] : vector<32x400xf32> to vector<32xf32>
    %142 = vector.shape_cast %141 : vector<32xf32> to vector<32x1xf32>
    %cst_127 = arith.constant 0.00308641978 : f32
    %143 = vector.broadcast %cst_127 : f32 to vector<32x1xf32>
    %144 = arith.mulf %142, %143 : vector<32x1xf32>
    %145 = arith.mulf %140, %134 : vector<32x400xf32>
    %cst_128 = arith.constant dense<0.000000e+00> : vector<32xf32>
    %146 = vector.multi_reduction <add>, %145, %cst_128 [1] : vector<32x400xf32> to vector<32xf32>
    %147 = vector.shape_cast %146 : vector<32xf32> to vector<32x1xf32>
    %cst_129 = arith.constant 0.00308641978 : f32
    %148 = vector.broadcast %cst_129 : f32 to vector<32x1xf32>
    %149 = arith.mulf %147, %148 : vector<32x1xf32>
    %150 = arith.mulf %144, %144 : vector<32x1xf32>
    %151 = arith.subf %149, %150 : vector<32x1xf32>
    %cst_130 = arith.constant 9.99999974E-6 : f32
    %152 = vector.broadcast %cst_130 : f32 to vector<32x1xf32>
    %153 = arith.addf %151, %152 : vector<32x1xf32>
    %154 = math.rsqrt %153 : vector<32x1xf32>
    %155 = arith.mulf %136, %154 : vector<32x1xf32>
    %156 = arith.mulf %144, %155 : vector<32x1xf32>
    %157 = arith.subf %138, %156 : vector<32x1xf32>
    %158 = vector.broadcast %155 : vector<32x1xf32> to vector<32x400xf32>
    %159 = arith.mulf %134, %158 : vector<32x400xf32>
    %160 = vector.broadcast %157 : vector<32x1xf32> to vector<32x400xf32>
    %161 = arith.addf %159, %160 : vector<32x400xf32>
    %cst_131 = arith.constant 0.000000e+00 : f32
    %162 = vector.broadcast %cst_131 : f32 to vector<32x400xf32>
    %163 = arith.maximumf %161, %162 : vector<32x400xf32>
    %164 = vector.broadcast %0 : vector<1x400xf32> to vector<32x400xf32>
    %165 = arith.mulf %163, %164 : vector<32x400xf32>
    %166 = arith.truncf %165 : vector<32x400xf32> to vector<32x400xbf16>
    %c0_132 = arith.constant 0 : index
    %c21_133 = arith.constant 21 : index
    %167 = vector.load %arg8[%c0_132, %c21_133] : memref<32x442xbf16, #tpu.memory_space<vmem>>, vector<32x400xbf16>
    tpu.vector_store %arg8[%c0_132, %c21_133], %166 {strides = array<i32>} : memref<32x442xbf16, #tpu.memory_space<vmem>>, vector<32x400xbf16>,
    %c0_134 = arith.constant 0 : index
    %c0_135 = arith.constant 0 : index
    %168 = vector.load %arg8[%c0_134, %c0_135] : memref<32x442xbf16, #tpu.memory_space<vmem>>, vector<32x400xbf16>
    %c0_136 = arith.constant 0 : index
    %c0_137 = arith.constant 0 : index
    %169 = vector.load %arg10[%c0_136, %c0_137] : memref<288x400xbf16, #tpu.memory_space<vmem>>, vector<32x400xbf16>
    tpu.vector_store %arg10[%c0_136, %c0_137], %168 {strides = array<i32>} : memref<288x400xbf16, #tpu.memory_space<vmem>>, vector<32x400xbf16>,
    %c0_138 = arith.constant 0 : index
    %c1_139 = arith.constant 1 : index
    %170 = vector.load %arg8[%c0_138, %c1_139] : memref<32x442xbf16, #tpu.memory_space<vmem>>, vector<32x400xbf16>
    %c32_140 = arith.constant 32 : index
    %c0_141 = arith.constant 0 : index
    %171 = vector.load %arg10[%c32_140, %c0_141] : memref<288x400xbf16, #tpu.memory_space<vmem>>, vector<32x400xbf16>
    tpu.vector_store %arg10[%c32_140, %c0_141], %170 {strides = array<i32>} : memref<288x400xbf16, #tpu.memory_space<vmem>>, vector<32x400xbf16>,
    %c0_142 = arith.constant 0 : index
    %c2_143 = arith.constant 2 : index
    %172 = vector.load %arg8[%c0_142, %c2_143] : memref<32x442xbf16, #tpu.memory_space<vmem>>, vector<32x400xbf16>
    %c64_144 = arith.constant 64 : index
    %c0_145 = arith.constant 0 : index
    %173 = vector.load %arg10[%c64_144, %c0_145] : memref<288x400xbf16, #tpu.memory_space<vmem>>, vector<32x400xbf16>
    tpu.vector_store %arg10[%c64_144, %c0_145], %172 {strides = array<i32>} : memref<288x400xbf16, #tpu.memory_space<vmem>>, vector<32x400xbf16>,
    %c0_146 = arith.constant 0 : index
    %c20_147 = arith.constant 20 : index
    %174 = vector.load %arg8[%c0_146, %c20_147] : memref<32x442xbf16, #tpu.memory_space<vmem>>, vector<32x400xbf16>
    %c96_148 = arith.constant 96 : index
    %c0_149 = arith.constant 0 : index
    %175 = vector.load %arg10[%c96_148, %c0_149] : memref<288x400xbf16, #tpu.memory_space<vmem>>, vector<32x400xbf16>
    tpu.vector_store %arg10[%c96_148, %c0_149], %174 {strides = array<i32>} : memref<288x400xbf16, #tpu.memory_space<vmem>>, vector<32x400xbf16>,
    %c0_150 = arith.constant 0 : index
    %c21_151 = arith.constant 21 : index
    %176 = vector.load %arg8[%c0_150, %c21_151] : memref<32x442xbf16, #tpu.memory_space<vmem>>, vector<32x400xbf16>
    %c128_152 = arith.constant 128 : index
    %c0_153 = arith.constant 0 : index
    %177 = vector.load %arg10[%c128_152, %c0_153] : memref<288x400xbf16, #tpu.memory_space<vmem>>, vector<32x400xbf16>
    tpu.vector_store %arg10[%c128_152, %c0_153], %176 {strides = array<i32>} : memref<288x400xbf16, #tpu.memory_space<vmem>>, vector<32x400xbf16>,
    %c0_154 = arith.constant 0 : index
    %c22_155 = arith.constant 22 : index
    %178 = vector.load %arg8[%c0_154, %c22_155] : memref<32x442xbf16, #tpu.memory_space<vmem>>, vector<32x400xbf16>
    %c160_156 = arith.constant 160 : index
    %c0_157 = arith.constant 0 : index
    %179 = vector.load %arg10[%c160_156, %c0_157] : memref<288x400xbf16, #tpu.memory_space<vmem>>, vector<32x400xbf16>
    tpu.vector_store %arg10[%c160_156, %c0_157], %178 {strides = array<i32>} : memref<288x400xbf16, #tpu.memory_space<vmem>>, vector<32x400xbf16>,
    %c0_158 = arith.constant 0 : index
    %c40_159 = arith.constant 40 : index
    %180 = vector.load %arg8[%c0_158, %c40_159] : memref<32x442xbf16, #tpu.memory_space<vmem>>, vector<32x400xbf16>
    %c192_160 = arith.constant 192 : index
    %c0_161 = arith.constant 0 : index
    %181 = vector.load %arg10[%c192_160, %c0_161] : memref<288x400xbf16, #tpu.memory_space<vmem>>, vector<32x400xbf16>
    tpu.vector_store %arg10[%c192_160, %c0_161], %180 {strides = array<i32>} : memref<288x400xbf16, #tpu.memory_space<vmem>>, vector<32x400xbf16>,
    %c0_162 = arith.constant 0 : index
    %c41_163 = arith.constant 41 : index
    %182 = vector.load %arg8[%c0_162, %c41_163] : memref<32x442xbf16, #tpu.memory_space<vmem>>, vector<32x400xbf16>
    %c224_164 = arith.constant 224 : index
    %c0_165 = arith.constant 0 : index
    %183 = vector.load %arg10[%c224_164, %c0_165] : memref<288x400xbf16, #tpu.memory_space<vmem>>, vector<32x400xbf16>
    tpu.vector_store %arg10[%c224_164, %c0_165], %182 {strides = array<i32>} : memref<288x400xbf16, #tpu.memory_space<vmem>>, vector<32x400xbf16>,
    %c0_166 = arith.constant 0 : index
    %c42_167 = arith.constant 42 : index
    %184 = vector.load %arg8[%c0_166, %c42_167] : memref<32x442xbf16, #tpu.memory_space<vmem>>, vector<32x400xbf16>
    %c256_168 = arith.constant 256 : index
    %c0_169 = arith.constant 0 : index
    %185 = vector.load %arg10[%c256_168, %c0_169] : memref<288x400xbf16, #tpu.memory_space<vmem>>, vector<32x400xbf16>
    tpu.vector_store %arg10[%c256_168, %c0_169], %184 {strides = array<i32>} : memref<288x400xbf16, #tpu.memory_space<vmem>>, vector<32x400xbf16>,
    %c2_170 = arith.constant 2 : index
    %c0_171 = arith.constant 0 : index
    %c0_172 = arith.constant 0 : index
    %186 = vector.load %arg2[%c2_170, %c0_171, %c0_172] : memref<4x32x288xbf16, #tpu.memory_space<vmem>>, vector<1x32x288xbf16>
    %187 = vector.shape_cast %186 : vector<1x32x288xbf16> to vector<32x288xbf16>
    %c0_173 = arith.constant 0 : index
    %c0_174 = arith.constant 0 : index
    %188 = vector.load %arg10[%c0_173, %c0_174] : memref<288x400xbf16, #tpu.memory_space<vmem>>, vector<288x400xbf16>
    %cst_175 = arith.constant dense<0.000000e+00> : vector<32x400xf32>
    %189 = tpu.matmul %187, %188, %cst_175 {dimension_numbers = #tpu.dot_dimension_numbers<[1], [0], [0], [1], [0, 0, 1, 1], [], []>} : vector<32x288xbf16>, vector<288x400xbf16>, vector<32x400xf32> -> vector<32x400xf32>
    %c3 = arith.constant 3 : index
    %c0_176 = arith.constant 0 : index
    %c0_177 = arith.constant 0 : index
    %c0_178 = arith.constant 0 : index
    %190 = vector.load %arg4[%c3, %c0_176, %c0_177, %c0_178] : memref<5x2x32x1xf32, #tpu.memory_space<vmem>>, vector<1x1x32x1xf32>
    %191 = vector.shape_cast %190 : vector<1x1x32x1xf32> to vector<32x1xf32>
    %c3_179 = arith.constant 3 : index
    %c1_180 = arith.constant 1 : index
    %c0_181 = arith.constant 0 : index
    %c0_182 = arith.constant 0 : index
    %192 = vector.load %arg4[%c3_179, %c1_180, %c0_181, %c0_182] : memref<5x2x32x1xf32, #tpu.memory_space<vmem>>, vector<1x1x32x1xf32>
    %193 = vector.shape_cast %192 : vector<1x1x32x1xf32> to vector<32x1xf32>
    %194 = vector.broadcast %0 : vector<1x400xf32> to vector<32x400xf32>
    %195 = arith.mulf %189, %194 : vector<32x400xf32>
    %cst_183 = arith.constant dense<0.000000e+00> : vector<32xf32>
    %196 = vector.multi_reduction <add>, %195, %cst_183 [1] : vector<32x400xf32> to vector<32xf32>
    %197 = vector.shape_cast %196 : vector<32xf32> to vector<32x1xf32>
    %cst_184 = arith.constant 0.00308641978 : f32
    %198 = vector.broadcast %cst_184 : f32 to vector<32x1xf32>
    %199 = arith.mulf %197, %198 : vector<32x1xf32>
    %200 = arith.mulf %195, %189 : vector<32x400xf32>
    %cst_185 = arith.constant dense<0.000000e+00> : vector<32xf32>
    %201 = vector.multi_reduction <add>, %200, %cst_185 [1] : vector<32x400xf32> to vector<32xf32>
    %202 = vector.shape_cast %201 : vector<32xf32> to vector<32x1xf32>
    %cst_186 = arith.constant 0.00308641978 : f32
    %203 = vector.broadcast %cst_186 : f32 to vector<32x1xf32>
    %204 = arith.mulf %202, %203 : vector<32x1xf32>
    %205 = arith.mulf %199, %199 : vector<32x1xf32>
    %206 = arith.subf %204, %205 : vector<32x1xf32>
    %cst_187 = arith.constant 9.99999974E-6 : f32
    %207 = vector.broadcast %cst_187 : f32 to vector<32x1xf32>
    %208 = arith.addf %206, %207 : vector<32x1xf32>
    %209 = math.rsqrt %208 : vector<32x1xf32>
    %210 = arith.mulf %191, %209 : vector<32x1xf32>
    %211 = arith.mulf %199, %210 : vector<32x1xf32>
    %212 = arith.subf %193, %211 : vector<32x1xf32>
    %213 = vector.broadcast %210 : vector<32x1xf32> to vector<32x400xf32>
    %214 = arith.mulf %189, %213 : vector<32x400xf32>
    %215 = vector.broadcast %212 : vector<32x1xf32> to vector<32x400xf32>
    %216 = arith.addf %214, %215 : vector<32x400xf32>
    %cst_188 = arith.constant 0.000000e+00 : f32
    %217 = vector.broadcast %cst_188 : f32 to vector<32x400xf32>
    %218 = arith.maximumf %216, %217 : vector<32x400xf32>
    %219 = vector.broadcast %0 : vector<1x400xf32> to vector<32x400xf32>
    %220 = arith.mulf %218, %219 : vector<32x400xf32>
    %221 = arith.truncf %220 : vector<32x400xf32> to vector<32x400xbf16>
    %c0_189 = arith.constant 0 : index
    %c21_190 = arith.constant 21 : index
    %222 = vector.load %arg9[%c0_189, %c21_190] : memref<32x442xbf16, #tpu.memory_space<vmem>>, vector<32x400xbf16>
    tpu.vector_store %arg9[%c0_189, %c21_190], %221 {strides = array<i32>} : memref<32x442xbf16, #tpu.memory_space<vmem>>, vector<32x400xbf16>,
    %c0_191 = arith.constant 0 : index
    %c0_192 = arith.constant 0 : index
    %223 = vector.load %arg9[%c0_191, %c0_192] : memref<32x442xbf16, #tpu.memory_space<vmem>>, vector<32x400xbf16>
    %c0_193 = arith.constant 0 : index
    %c0_194 = arith.constant 0 : index
    %224 = vector.load %arg10[%c0_193, %c0_194] : memref<288x400xbf16, #tpu.memory_space<vmem>>, vector<32x400xbf16>
    tpu.vector_store %arg10[%c0_193, %c0_194], %223 {strides = array<i32>} : memref<288x400xbf16, #tpu.memory_space<vmem>>, vector<32x400xbf16>,
    %c0_195 = arith.constant 0 : index
    %c1_196 = arith.constant 1 : index
    %225 = vector.load %arg9[%c0_195, %c1_196] : memref<32x442xbf16, #tpu.memory_space<vmem>>, vector<32x400xbf16>
    %c32_197 = arith.constant 32 : index
    %c0_198 = arith.constant 0 : index
    %226 = vector.load %arg10[%c32_197, %c0_198] : memref<288x400xbf16, #tpu.memory_space<vmem>>, vector<32x400xbf16>
    tpu.vector_store %arg10[%c32_197, %c0_198], %225 {strides = array<i32>} : memref<288x400xbf16, #tpu.memory_space<vmem>>, vector<32x400xbf16>,
    %c0_199 = arith.constant 0 : index
    %c2_200 = arith.constant 2 : index
    %227 = vector.load %arg9[%c0_199, %c2_200] : memref<32x442xbf16, #tpu.memory_space<vmem>>, vector<32x400xbf16>
    %c64_201 = arith.constant 64 : index
    %c0_202 = arith.constant 0 : index
    %228 = vector.load %arg10[%c64_201, %c0_202] : memref<288x400xbf16, #tpu.memory_space<vmem>>, vector<32x400xbf16>
    tpu.vector_store %arg10[%c64_201, %c0_202], %227 {strides = array<i32>} : memref<288x400xbf16, #tpu.memory_space<vmem>>, vector<32x400xbf16>,
    %c0_203 = arith.constant 0 : index
    %c20_204 = arith.constant 20 : index
    %229 = vector.load %arg9[%c0_203, %c20_204] : memref<32x442xbf16, #tpu.memory_space<vmem>>, vector<32x400xbf16>
    %c96_205 = arith.constant 96 : index
    %c0_206 = arith.constant 0 : index
    %230 = vector.load %arg10[%c96_205, %c0_206] : memref<288x400xbf16, #tpu.memory_space<vmem>>, vector<32x400xbf16>
    tpu.vector_store %arg10[%c96_205, %c0_206], %229 {strides = array<i32>} : memref<288x400xbf16, #tpu.memory_space<vmem>>, vector<32x400xbf16>,
    %c0_207 = arith.constant 0 : index
    %c21_208 = arith.constant 21 : index
    %231 = vector.load %arg9[%c0_207, %c21_208] : memref<32x442xbf16, #tpu.memory_space<vmem>>, vector<32x400xbf16>
    %c128_209 = arith.constant 128 : index
    %c0_210 = arith.constant 0 : index
    %232 = vector.load %arg10[%c128_209, %c0_210] : memref<288x400xbf16, #tpu.memory_space<vmem>>, vector<32x400xbf16>
    tpu.vector_store %arg10[%c128_209, %c0_210], %231 {strides = array<i32>} : memref<288x400xbf16, #tpu.memory_space<vmem>>, vector<32x400xbf16>,
    %c0_211 = arith.constant 0 : index
    %c22_212 = arith.constant 22 : index
    %233 = vector.load %arg9[%c0_211, %c22_212] : memref<32x442xbf16, #tpu.memory_space<vmem>>, vector<32x400xbf16>
    %c160_213 = arith.constant 160 : index
    %c0_214 = arith.constant 0 : index
    %234 = vector.load %arg10[%c160_213, %c0_214] : memref<288x400xbf16, #tpu.memory_space<vmem>>, vector<32x400xbf16>
    tpu.vector_store %arg10[%c160_213, %c0_214], %233 {strides = array<i32>} : memref<288x400xbf16, #tpu.memory_space<vmem>>, vector<32x400xbf16>,
    %c0_215 = arith.constant 0 : index
    %c40_216 = arith.constant 40 : index
    %235 = vector.load %arg9[%c0_215, %c40_216] : memref<32x442xbf16, #tpu.memory_space<vmem>>, vector<32x400xbf16>
    %c192_217 = arith.constant 192 : index
    %c0_218 = arith.constant 0 : index
    %236 = vector.load %arg10[%c192_217, %c0_218] : memref<288x400xbf16, #tpu.memory_space<vmem>>, vector<32x400xbf16>
    tpu.vector_store %arg10[%c192_217, %c0_218], %235 {strides = array<i32>} : memref<288x400xbf16, #tpu.memory_space<vmem>>, vector<32x400xbf16>,
    %c0_219 = arith.constant 0 : index
    %c41_220 = arith.constant 41 : index
    %237 = vector.load %arg9[%c0_219, %c41_220] : memref<32x442xbf16, #tpu.memory_space<vmem>>, vector<32x400xbf16>
    %c224_221 = arith.constant 224 : index
    %c0_222 = arith.constant 0 : index
    %238 = vector.load %arg10[%c224_221, %c0_222] : memref<288x400xbf16, #tpu.memory_space<vmem>>, vector<32x400xbf16>
    tpu.vector_store %arg10[%c224_221, %c0_222], %237 {strides = array<i32>} : memref<288x400xbf16, #tpu.memory_space<vmem>>, vector<32x400xbf16>,
    %c0_223 = arith.constant 0 : index
    %c42_224 = arith.constant 42 : index
    %239 = vector.load %arg9[%c0_223, %c42_224] : memref<32x442xbf16, #tpu.memory_space<vmem>>, vector<32x400xbf16>
    %c256_225 = arith.constant 256 : index
    %c0_226 = arith.constant 0 : index
    %240 = vector.load %arg10[%c256_225, %c0_226] : memref<288x400xbf16, #tpu.memory_space<vmem>>, vector<32x400xbf16>
    tpu.vector_store %arg10[%c256_225, %c0_226], %239 {strides = array<i32>} : memref<288x400xbf16, #tpu.memory_space<vmem>>, vector<32x400xbf16>,
    %c3_227 = arith.constant 3 : index
    %c0_228 = arith.constant 0 : index
    %c0_229 = arith.constant 0 : index
    %241 = vector.load %arg2[%c3_227, %c0_228, %c0_229] : memref<4x32x288xbf16, #tpu.memory_space<vmem>>, vector<1x32x288xbf16>
    %242 = vector.shape_cast %241 : vector<1x32x288xbf16> to vector<32x288xbf16>
    %c0_230 = arith.constant 0 : index
    %c0_231 = arith.constant 0 : index
    %243 = vector.load %arg10[%c0_230, %c0_231] : memref<288x400xbf16, #tpu.memory_space<vmem>>, vector<288x400xbf16>
    %cst_232 = arith.constant dense<0.000000e+00> : vector<32x400xf32>
    %244 = tpu.matmul %242, %243, %cst_232 {dimension_numbers = #tpu.dot_dimension_numbers<[1], [0], [0], [1], [0, 0, 1, 1], [], []>} : vector<32x288xbf16>, vector<288x400xbf16>, vector<32x400xf32> -> vector<32x400xf32>
    %c4 = arith.constant 4 : index
    %c0_233 = arith.constant 0 : index
    %c0_234 = arith.constant 0 : index
    %c0_235 = arith.constant 0 : index
    %245 = vector.load %arg4[%c4, %c0_233, %c0_234, %c0_235] : memref<5x2x32x1xf32, #tpu.memory_space<vmem>>, vector<1x1x32x1xf32>
    %246 = vector.shape_cast %245 : vector<1x1x32x1xf32> to vector<32x1xf32>
    %c4_236 = arith.constant 4 : index
    %c1_237 = arith.constant 1 : index
    %c0_238 = arith.constant 0 : index
    %c0_239 = arith.constant 0 : index
    %247 = vector.load %arg4[%c4_236, %c1_237, %c0_238, %c0_239] : memref<5x2x32x1xf32, #tpu.memory_space<vmem>>, vector<1x1x32x1xf32>
    %248 = vector.shape_cast %247 : vector<1x1x32x1xf32> to vector<32x1xf32>
    %249 = vector.broadcast %0 : vector<1x400xf32> to vector<32x400xf32>
    %250 = arith.mulf %244, %249 : vector<32x400xf32>
    %cst_240 = arith.constant dense<0.000000e+00> : vector<32xf32>
    %251 = vector.multi_reduction <add>, %250, %cst_240 [1] : vector<32x400xf32> to vector<32xf32>
    %252 = vector.shape_cast %251 : vector<32xf32> to vector<32x1xf32>
    %cst_241 = arith.constant 0.00308641978 : f32
    %253 = vector.broadcast %cst_241 : f32 to vector<32x1xf32>
    %254 = arith.mulf %252, %253 : vector<32x1xf32>
    %255 = arith.mulf %250, %244 : vector<32x400xf32>
    %cst_242 = arith.constant dense<0.000000e+00> : vector<32xf32>
    %256 = vector.multi_reduction <add>, %255, %cst_242 [1] : vector<32x400xf32> to vector<32xf32>
    %257 = vector.shape_cast %256 : vector<32xf32> to vector<32x1xf32>
    %cst_243 = arith.constant 0.00308641978 : f32
    %258 = vector.broadcast %cst_243 : f32 to vector<32x1xf32>
    %259 = arith.mulf %257, %258 : vector<32x1xf32>
    %260 = arith.mulf %254, %254 : vector<32x1xf32>
    %261 = arith.subf %259, %260 : vector<32x1xf32>
    %cst_244 = arith.constant 9.99999974E-6 : f32
    %262 = vector.broadcast %cst_244 : f32 to vector<32x1xf32>
    %263 = arith.addf %261, %262 : vector<32x1xf32>
    %264 = math.rsqrt %263 : vector<32x1xf32>
    %265 = arith.mulf %246, %264 : vector<32x1xf32>
    %266 = arith.mulf %254, %265 : vector<32x1xf32>
    %267 = arith.subf %248, %266 : vector<32x1xf32>
    %268 = vector.broadcast %265 : vector<32x1xf32> to vector<32x400xf32>
    %269 = arith.mulf %244, %268 : vector<32x400xf32>
    %270 = vector.broadcast %267 : vector<32x1xf32> to vector<32x400xf32>
    %271 = arith.addf %269, %270 : vector<32x400xf32>
    %cst_245 = arith.constant 0.000000e+00 : f32
    %272 = vector.broadcast %cst_245 : f32 to vector<32x400xf32>
    %273 = arith.maximumf %271, %272 : vector<32x400xf32>
    %274 = vector.broadcast %0 : vector<1x400xf32> to vector<32x400xf32>
    %275 = arith.mulf %273, %274 : vector<32x400xf32>
    %276 = arith.truncf %275 : vector<32x400xf32> to vector<32x400xbf16>
    %c0_246 = arith.constant 0 : index
    %c21_247 = arith.constant 21 : index
    %277 = vector.load %arg8[%c0_246, %c21_247] : memref<32x442xbf16, #tpu.memory_space<vmem>>, vector<32x400xbf16>
    tpu.vector_store %arg8[%c0_246, %c21_247], %276 {strides = array<i32>} : memref<32x442xbf16, #tpu.memory_space<vmem>>, vector<32x400xbf16>,
    %c0_248 = arith.constant 0 : index
    %c21_249 = arith.constant 21 : index
    %278 = vector.load %arg8[%c0_248, %c21_249] : memref<32x442xbf16, #tpu.memory_space<vmem>>, vector<32x400xbf16>
    %c0_250 = arith.constant 0 : index
    %c0_251 = arith.constant 0 : index
    %279 = vector.load %arg3[%c0_250, %c0_251] : memref<10x32xbf16, #tpu.memory_space<vmem>>, vector<10x32xbf16>
    %cst_252 = arith.constant dense<0.000000e+00> : vector<10x400xf32>
    %280 = tpu.matmul %279, %278, %cst_252 {dimension_numbers = #tpu.dot_dimension_numbers<[1], [0], [0], [1], [0, 0, 1, 1], [], []>} : vector<10x32xbf16>, vector<32x400xbf16>, vector<10x400xf32> -> vector<10x400xf32>
    %281 = vector.broadcast %1 : vector<1x400xf32> to vector<10x400xf32>
    %282 = arith.mulf %280, %281 : vector<10x400xf32>
    %cst_253 = arith.constant dense<0.000000e+00> : vector<10xf32>
    %283 = vector.multi_reduction <add>, %282, %cst_253 [1] : vector<10x400xf32> to vector<10xf32>
    %284 = vector.shape_cast %283 : vector<10xf32> to vector<10x1xf32>
    %cst_254 = arith.constant 0.00999999977 : f32
    %285 = vector.broadcast %cst_254 : f32 to vector<10x1xf32>
    %286 = arith.mulf %284, %285 : vector<10x1xf32>
    %c0_255 = arith.constant 0 : index
    %c0_256 = arith.constant 0 : index
    %287 = vector.load %arg5[%c0_255, %c0_256] : memref<10x1xf32, #tpu.memory_space<vmem>>, vector<10x1xf32>
    %288 = arith.addf %286, %287 : vector<10x1xf32>
    %c0_257 = arith.constant 0 : index
    %c0_258 = arith.constant 0 : index
    %289 = vector.load %arg7[%c0_257, %c0_258] : memref<10x1xf32, #tpu.memory_space<vmem>>, vector<10x1xf32>
    tpu.vector_store %arg7[%c0_257, %c0_258], %288 {strides = array<i32>} : memref<10x1xf32, #tpu.memory_space<vmem>>, vector<10x1xf32>,
    return
  }
}

</mosaic_0001>

<llo_original>
// kernel: model_forward.1
$region0: #{model_forward.1}
  #allocation0 [shape = 'u32[]', space=smem, size = 0x4, offset = 0x4, fixed_abs, tag = 'smem constant byte address 0x4 - core index']
  #allocation1 [shape = 'u32[144,128]{1,0:T(1,128)}', space=vmem, size = 0x12000, scoped, tag = 'internal scratch']
  #allocation2 [shape = 'bf16[32,442]{1,0:T(8,128)(2,1)}', space=vmem, size = 0x8000, scoped, tag = 'scratch operand']
  #allocation3 [shape = 'bf16[32,442]{1,0:T(8,128)(2,1)}', space=vmem, size = 0x8000, scoped, tag = 'scratch operand']
  #allocation4 [shape = 'bf16[288,400]{1,0:T(8,128)(2,1)}', space=vmem, size = 0x48000, scoped, tag = 'scratch operand']
  %s0 = inlined_call_operand.vmem [shape: f32[3,400], index: 0, kind: input, shape index: {}]
  %s1 = inlined_call_operand.vmem [shape: f32[32,3], index: 1, kind: input, shape index: {}]
  %s2 = inlined_call_operand.vmem [shape: bf16[4,32,288], index: 2, kind: input, shape index: {}]
  %s3 = inlined_call_operand.vmem [shape: bf16[10,32], index: 3, kind: input, shape index: {}]
  %s4 = inlined_call_operand.vmem [shape: f32[5,2,32,1], index: 4, kind: input, shape index: {}]
  %s5 = inlined_call_operand.vmem [shape: f32[10,1], index: 5, kind: input, shape index: {}]
  %s6 = inlined_call_operand.vmem [shape: f32[2,400], index: 6, kind: input, shape index: {}]
  %s7 = inlined_call_operand.vmem [shape: f32[10,1], index: 7, kind: output, shape index: {}]
  %s8 = sld [smem:[#allocation0]]
  $region38: #{model_forward.1} parent=0
    _
  %s10 = ssub.s32 1, %s8
  %s11 = scalar_select 0, %s10, %s8
  // Predicated region
  $region2: #{model_forward.1} parent=0 // pred_check
    _
  $region3: #{model_forward.1} parent=0 // pred_check_branch
    %13 = sbr.rel (0) target = $region5
  $region4: #{model_forward.1} parent=0 // pred_region
    _
  $region5: #{model_forward.1} parent=0 // pred_fallthru
    _
  // Predicated region
  $region6: #{model_forward.1} parent=0 // pred_check
    _
  $region7: #{model_forward.1} parent=0 // pred_check_branch
    %15 = sbr.rel (0) target = $region9
  $region8: #{model_forward.1} parent=0 // pred_region
    _
  $region9: #{model_forward.1} parent=0 // pred_fallthru
    _
  // Predicated region
  $region10: #{model_forward.1} parent=0 // pred_check
    _
  $region11: #{model_forward.1} parent=0 // pred_check_branch
    %17 = sbr.rel (0) target = $region13
  $region12: #{model_forward.1} parent=0 // pred_region
    _
  $region13: #{model_forward.1} parent=0 // pred_fallthru
    _
  // Predicated region
  $region14: #{model_forward.1} parent=0 // pred_check
    _
  $region15: #{model_forward.1} parent=0 // pred_check_branch
    %19 = sbr.rel (0) target = $region17
  $region16: #{model_forward.1} parent=0 // pred_region
    _
  $region17: #{model_forward.1} parent=0 // pred_fallthru
    _
  // Predicated region
  $region18: #{model_forward.1} parent=0 // pred_check
    _
  $region19: #{model_forward.1} parent=0 // pred_check_branch
    %21 = sbr.rel (0) target = $region21
  $region20: #{model_forward.1} parent=0 // pred_region
    _
  $region21: #{model_forward.1} parent=0 // pred_fallthru
    _
  // Predicated region
  $region22: #{model_forward.1} parent=0 // pred_check
    _
  $region23: #{model_forward.1} parent=0 // pred_check_branch
    %23 = sbr.rel (0) target = $region25
  $region24: #{model_forward.1} parent=0 // pred_region
    _
  $region25: #{model_forward.1} parent=0 // pred_fallthru
    _
  // Predicated region
  $region26: #{model_forward.1} parent=0 // pred_check
    _
  $region27: #{model_forward.1} parent=0 // pred_check_branch
    %25 = sbr.rel (0) target = $region29
  $region28: #{model_forward.1} parent=0 // pred_region
    _
  $region29: #{model_forward.1} parent=0 // pred_fallthru
    _
  %v27 = vld [vmem:[%s6] ss:$2 sm:$0xf]
  %s28 = scalar_lea.vmem %s6, 1
  %v29 = vld [vmem:[%s28] ss:$2 sm:$0xf]
  %vm30 = vcmask 166912
  %31 = vst.msk [vmem:[#allocation2] sm:$0xf] %vm30, 0
  %32 = vst.msk [vmem:[#allocation2 + $0x10] sm:$0xf] %vm30, 0
  %33 = vst.msk [vmem:[#allocation2 + $0x20] sm:$0xf] %vm30, 0
  %34 = vst.msk [vmem:[#allocation2 + $0x30] sm:$0xf] %vm30, 0
  %vm35 = vcmask 470312
  %36 = vst.msk [vmem:[#allocation2 + $0xc] sm:$0xf] %vm35, 0
  %37 = vst.msk [vmem:[#allocation2 + $0x1c] sm:$0xf] %vm35, 0
  %38 = vst.msk [vmem:[#allocation2 + $0x2c] sm:$0xf] %vm35, 0
  %39 = vst.msk [vmem:[#allocation2 + $0x3c] sm:$0xf] %vm35, 0
  %40 = vst.msk [vmem:[#allocation3] sm:$0xf] %vm30, 0
  %41 = vst.msk [vmem:[#allocation3 + $0x10] sm:$0xf] %vm30, 0
  %42 = vst.msk [vmem:[#allocation3 + $0x20] sm:$0xf] %vm30, 0
  %43 = vst.msk [vmem:[#allocation3 + $0x30] sm:$0xf] %vm30, 0
  %44 = vst.msk [vmem:[#allocation3 + $0xc] sm:$0xf] %vm35, 0
  %45 = vst.msk [vmem:[#allocation3 + $0x1c] sm:$0xf] %vm35, 0
  %46 = vst.msk [vmem:[#allocation3 + $0x2c] sm:$0xf] %vm35, 0
  %47 = vst.msk [vmem:[#allocation3 + $0x3c] sm:$0xf] %vm35, 0
  %v48 = vld [vmem:[%s0] sm:$0x77]
  %v49 = vld [vmem:[%s0 + $0x8] sm:$0x77]
  %v50 = vld [vmem:[%s1] sm:$0xff]
  %v51 = vld [vmem:[%s1 + $0x8] sm:$0xff]
  %v52 = vld [vmem:[%s1 + $0x10] sm:$0xff]
  %v53 = vld [vmem:[%s1 + $0x18] sm:$0xff]
  %55 = vset.pattern.permute.xlu0 0
  %56 = vperm.xlu0 %55, %v50
  %v57 = vpop.permute.xlu0 %56
  %60 = vset.pattern.permute.xlu0 0
  %61 = vperm.xlu0 %60, %v51
  %v62 = vpop.permute.xlu0 %61
  %65 = vset.pattern.permute.xlu0 0
  %66 = vperm.xlu0 %65, %v52
  %v67 = vpop.permute.xlu0 %66
  %70 = vset.pattern.permute.xlu0 0
  %71 = vperm.xlu0 %70, %v53
  %v72 = vpop.permute.xlu0 %71
  %v76 = vlaneseq
  %v77 = vshrl.u32 %v76, 7
  %v78 = vsub.s32 0, %v77
  %v79 = vrot.slane %v48, %v78
  %v80 = vlaneseq
  %v81 = vshrl.u32 %v80, 7
  %v82 = vsub.s32 4, %v81
  %v83 = vrot.slane %v48, %v82
  %v84 = vlaneseq
  %v85 = vshrl.u32 %v84, 7
  %v86 = vsub.s32 0, %v85
  %v87 = vrot.slane %v49, %v86
  %v88 = vlaneseq
  %v89 = vshrl.u32 %v88, 7
  %v90 = vsub.s32 4, %v89
  %v91 = vrot.slane %v49, %v90
  %v96 = vlaneseq
  %v97 = vshrl.u32 %v96, 7
  %v98 = vsub.s32 0, %v97
  %v99 = vrot.slane %v79, %v98
  %v100 = vlaneseq
  %v101 = vshrl.u32 %v100, 7
  %v102 = vsub.s32 0, %v101
  %v103 = vrot.slane %v83, %v102
  %v104 = vlaneseq
  %v105 = vshrl.u32 %v104, 7
  %v106 = vsub.s32 0, %v105
  %v107 = vrot.slane %v87, %v106
  %v108 = vlaneseq
  %v109 = vshrl.u32 %v108, 7
  %v110 = vsub.s32 0, %v109
  %v111 = vrot.slane %v91, %v110
  %v112 = vmul.f32 %v57, %v99
  %v113 = vmul.f32 %v57, %v103
  %v114 = vmul.f32 %v57, %v107
  %v115 = vmul.f32 %v57, %v111
  %v116 = vmul.f32 %v62, %v99
  %v117 = vmul.f32 %v62, %v103
  %v118 = vmul.f32 %v62, %v107
  %v119 = vmul.f32 %v62, %v111
  %v120 = vmul.f32 %v67, %v99
  %v121 = vmul.f32 %v67, %v103
  %v122 = vmul.f32 %v67, %v107
  %v123 = vmul.f32 %v67, %v111
  %v124 = vmul.f32 %v72, %v99
  %v125 = vmul.f32 %v72, %v103
  %v126 = vmul.f32 %v72, %v107
  %v127 = vmul.f32 %v72, %v111
  %128 = vset.pattern.permute.xlu0 1
  %129 = vperm.xlu0 %128, %v50
  %v130 = vpop.permute.xlu0 %129
  %132 = vset.pattern.permute.xlu0 1
  %133 = vperm.xlu0 %132, %v51
  %v134 = vpop.permute.xlu0 %133
  %136 = vset.pattern.permute.xlu0 1
  %137 = vperm.xlu0 %136, %v52
  %v138 = vpop.permute.xlu0 %137
  %140 = vset.pattern.permute.xlu0 1
  %141 = vperm.xlu0 %140, %v53
  %v142 = vpop.permute.xlu0 %141
  %v144 = vlaneseq
  %v145 = vshrl.u32 %v144, 7
  %v146 = vsub.s32 1, %v145
  %v147 = vrot.slane %v48, %v146
  %v148 = vlaneseq
  %v149 = vshrl.u32 %v148, 7
  %v150 = vsub.s32 5, %v149
  %v151 = vrot.slane %v48, %v150
  %v152 = vlaneseq
  %v153 = vshrl.u32 %v152, 7
  %v154 = vsub.s32 1, %v153
  %v155 = vrot.slane %v49, %v154
  %v156 = vlaneseq
  %v157 = vshrl.u32 %v156, 7
  %v158 = vsub.s32 5, %v157
  %v159 = vrot.slane %v49, %v158
  %v164 = vlaneseq
  %v165 = vshrl.u32 %v164, 7
  %v166 = vsub.s32 1, %v165
  %v167 = vrot.slane %v147, %v166
  %v168 = vlaneseq
  %v169 = vshrl.u32 %v168, 7
  %v170 = vsub.s32 1, %v169
  %v171 = vrot.slane %v151, %v170
  %v172 = vlaneseq
  %v173 = vshrl.u32 %v172, 7
  %v174 = vsub.s32 1, %v173
  %v175 = vrot.slane %v155, %v174
  %v176 = vlaneseq
  %v177 = vshrl.u32 %v176, 7
  %v178 = vsub.s32 1, %v177
  %v179 = vrot.slane %v159, %v178
  %v180 = vmul.f32 %v130, %v167
  %v181 = vmul.f32 %v130, %v171
  %v182 = vmul.f32 %v130, %v175
  %v183 = vmul.f32 %v130, %v179
  %v184 = vmul.f32 %v134, %v167
  %v185 = vmul.f32 %v134, %v171
  %v186 = vmul.f32 %v134, %v175
  %v187 = vmul.f32 %v134, %v179
  %v188 = vmul.f32 %v138, %v167
  %v189 = vmul.f32 %v138, %v171
  %v190 = vmul.f32 %v138, %v175
  %v191 = vmul.f32 %v138, %v179
  %v192 = vmul.f32 %v142, %v167
  %v193 = vmul.f32 %v142, %v171
  %v194 = vmul.f32 %v142, %v175
  %v195 = vmul.f32 %v142, %v179
  %v196 = vadd.f32 %v112, %v180
  %v197 = vadd.f32 %v113, %v181
  %v198 = vadd.f32 %v114, %v182
  %v199 = vadd.f32 %v115, %v183
  %v200 = vadd.f32 %v116, %v184
  %v201 = vadd.f32 %v117, %v185
  %v202 = vadd.f32 %v118, %v186
  %v203 = vadd.f32 %v119, %v187
  %v204 = vadd.f32 %v120, %v188
  %v205 = vadd.f32 %v121, %v189
  %v206 = vadd.f32 %v122, %v190
  %v207 = vadd.f32 %v123, %v191
  %v208 = vadd.f32 %v124, %v192
  %v209 = vadd.f32 %v125, %v193
  %v210 = vadd.f32 %v126, %v194
  %v211 = vadd.f32 %v127, %v195
  %212 = vset.pattern.permute.xlu0 2
  %213 = vperm.xlu0 %212, %v50
  %v214 = vpop.permute.xlu0 %213
  %216 = vset.pattern.permute.xlu0 2
  %217 = vperm.xlu0 %216, %v51
  %v218 = vpop.permute.xlu0 %217
  %220 = vset.pattern.permute.xlu0 2
  %221 = vperm.xlu0 %220, %v52
  %v222 = vpop.permute.xlu0 %221
  %224 = vset.pattern.permute.xlu0 2
  %225 = vperm.xlu0 %224, %v53
  %v226 = vpop.permute.xlu0 %225
  %v228 = vlaneseq
  %v229 = vshrl.u32 %v228, 7
  %v230 = vsub.s32 2, %v229
  %v231 = vrot.slane %v48, %v230
  %v232 = vlaneseq
  %v233 = vshrl.u32 %v232, 7
  %v234 = vsub.s32 6, %v233
  %v235 = vrot.slane %v48, %v234
  %v236 = vlaneseq
  %v237 = vshrl.u32 %v236, 7
  %v238 = vsub.s32 2, %v237
  %v239 = vrot.slane %v49, %v238
  %v240 = vlaneseq
  %v241 = vshrl.u32 %v240, 7
  %v242 = vsub.s32 6, %v241
  %v243 = vrot.slane %v49, %v242
  %v248 = vlaneseq
  %v249 = vshrl.u32 %v248, 7
  %v250 = vsub.s32 2, %v249
  %v251 = vrot.slane %v231, %v250
  %v252 = vlaneseq
  %v253 = vshrl.u32 %v252, 7
  %v254 = vsub.s32 2, %v253
  %v255 = vrot.slane %v235, %v254
  %v256 = vlaneseq
  %v257 = vshrl.u32 %v256, 7
  %v258 = vsub.s32 2, %v257
  %v259 = vrot.slane %v239, %v258
  %v260 = vlaneseq
  %v261 = vshrl.u32 %v260, 7
  %v262 = vsub.s32 2, %v261
  %v263 = vrot.slane %v243, %v262
  %v264 = vmul.f32 %v214, %v251
  %v265 = vmul.f32 %v214, %v255
  %v266 = vmul.f32 %v214, %v259
  %v267 = vmul.f32 %v214, %v263
  %v268 = vmul.f32 %v218, %v251
  %v269 = vmul.f32 %v218, %v255
  %v270 = vmul.f32 %v218, %v259
  %v271 = vmul.f32 %v218, %v263
  %v272 = vmul.f32 %v222, %v251
  %v273 = vmul.f32 %v222, %v255
  %v274 = vmul.f32 %v222, %v259
  %v275 = vmul.f32 %v222, %v263
  %v276 = vmul.f32 %v226, %v251
  %v277 = vmul.f32 %v226, %v255
  %v278 = vmul.f32 %v226, %v259
  %v279 = vmul.f32 %v226, %v263
  %v280 = vadd.f32 %v196, %v264
  %v281 = vadd.f32 %v197, %v265
  %v282 = vadd.f32 %v198, %v266
  %v283 = vadd.f32 %v199, %v267
  %v284 = vadd.f32 %v200, %v268
  %v285 = vadd.f32 %v201, %v269
  %v286 = vadd.f32 %v202, %v270
  %v287 = vadd.f32 %v203, %v271
  %v288 = vadd.f32 %v204, %v272
  %v289 = vadd.f32 %v205, %v273
  %v290 = vadd.f32 %v206, %v274
  %v291 = vadd.f32 %v207, %v275
  %v292 = vadd.f32 %v208, %v276
  %v293 = vadd.f32 %v209, %v277
  %v294 = vadd.f32 %v210, %v278
  %v295 = vadd.f32 %v211, %v279
  %v296 = vld [vmem:[%s4] sm:$0xff]
  %v297 = vld [vmem:[%s4 + $0x8] sm:$0xff]
  %v298 = vld [vmem:[%s4 + $0x10] sm:$0xff]
  %v299 = vld [vmem:[%s4 + $0x18] sm:$0xff]
  %s300 = scalar_lea.vmem %s4, 32
  %v301 = vld [vmem:[%s300] sm:$0xff]
  %v302 = vld [vmem:[%s300 + $0x8] sm:$0xff]
  %v303 = vld [vmem:[%s300 + $0x10] sm:$0xff]
  %v304 = vld [vmem:[%s300 + $0x18] sm:$0xff]
  %v306 = vlaneseq
  %v307 = vshrl.u32 %v306, 7
  %v308 = vsub.s32 0, %v307
  %v309 = vrot.slane %v27, %v308
  %v310 = vlaneseq
  %v311 = vshrl.u32 %v310, 7
  %v312 = vsub.s32 1, %v311
  %v313 = vrot.slane %v27, %v312
  %v314 = vlaneseq
  %v315 = vshrl.u32 %v314, 7
  %v316 = vsub.s32 2, %v315
  %v317 = vrot.slane %v27, %v316
  %v318 = vlaneseq
  %v319 = vshrl.u32 %v318, 7
  %v320 = vsub.s32 3, %v319
  %v321 = vrot.slane %v27, %v320
  %v326 = vmul.f32 %v280, %v309
  %v327 = vmul.f32 %v281, %v313
  %v328 = vmul.f32 %v282, %v317
  %v329 = vmul.f32 %v283, %v321
  %v330 = vmul.f32 %v284, %v309
  %v331 = vmul.f32 %v285, %v313
  %v332 = vmul.f32 %v286, %v317
  %v333 = vmul.f32 %v287, %v321
  %v334 = vmul.f32 %v288, %v309
  %v335 = vmul.f32 %v289, %v313
  %v336 = vmul.f32 %v290, %v317
  %v337 = vmul.f32 %v291, %v321
  %v338 = vmul.f32 %v292, %v309
  %v339 = vmul.f32 %v293, %v313
  %v340 = vmul.f32 %v294, %v317
  %v341 = vmul.f32 %v295, %v321
  %v342 = vadd.f32 %v326, %v327
  %v343 = vadd.f32 %v342, %v328
  %vm344 = vcmask 130048
  %v345 = vsel %vm344, %v329, 0.0
  %v346 = vadd.f32 %v343, %v345
  %347 = vadd.xlane.f32.xlu0 %v346
  %v348 = vpop.xlane.xlu0 %347
  %v349 = vadd.f32 %v330, %v331
  %v350 = vadd.f32 %v349, %v332
  %v351 = vsel %vm344, %v333, 0.0
  %v352 = vadd.f32 %v350, %v351
  %353 = vadd.xlane.f32.xlu0 %v352
  %v354 = vpop.xlane.xlu0 %353
  %v355 = vadd.f32 %v334, %v335
  %v356 = vadd.f32 %v355, %v336
  %v357 = vsel %vm344, %v337, 0.0
  %v358 = vadd.f32 %v356, %v357
  %359 = vadd.xlane.f32.xlu0 %v358
  %v360 = vpop.xlane.xlu0 %359
  %v361 = vadd.f32 %v338, %v339
  %v362 = vadd.f32 %v361, %v340
  %v363 = vsel %vm344, %v341, 0.0
  %v364 = vadd.f32 %v362, %v363
  %365 = vadd.xlane.f32.xlu0 %v364
  %v366 = vpop.xlane.xlu0 %365
  %v367 = vmul.f32 %v348, 0.0030864198
  %v368 = vmul.f32 %v354, 0.0030864198
  %v369 = vmul.f32 %v360, 0.0030864198
  %v370 = vmul.f32 %v366, 0.0030864198
  %v371 = vmul.f32 %v326, %v280
  %v372 = vmul.f32 %v327, %v281
  %v373 = vmul.f32 %v328, %v282
  %v374 = vmul.f32 %v329, %v283
  %v375 = vmul.f32 %v330, %v284
  %v376 = vmul.f32 %v331, %v285
  %v377 = vmul.f32 %v332, %v286
  %v378 = vmul.f32 %v333, %v287
  %v379 = vmul.f32 %v334, %v288
  %v380 = vmul.f32 %v335, %v289
  %v381 = vmul.f32 %v336, %v290
  %v382 = vmul.f32 %v337, %v291
  %v383 = vmul.f32 %v338, %v292
  %v384 = vmul.f32 %v339, %v293
  %v385 = vmul.f32 %v340, %v294
  %v386 = vmul.f32 %v341, %v295
  %v387 = vadd.f32 %v371, %v372
  %v388 = vadd.f32 %v387, %v373
  %v389 = vsel %vm344, %v374, 0.0
  %v390 = vadd.f32 %v388, %v389
  %391 = vadd.xlane.f32.xlu0 %v390
  %v392 = vpop.xlane.xlu0 %391
  %v393 = vadd.f32 %v375, %v376
  %v394 = vadd.f32 %v393, %v377
  %v395 = vsel %vm344, %v378, 0.0
  %v396 = vadd.f32 %v394, %v395
  %397 = vadd.xlane.f32.xlu0 %v396
  %v398 = vpop.xlane.xlu0 %397
  %v399 = vadd.f32 %v379, %v380
  %v400 = vadd.f32 %v399, %v381
  %v401 = vsel %vm344, %v382, 0.0
  %v402 = vadd.f32 %v400, %v401
  %403 = vadd.xlane.f32.xlu0 %v402
  %v404 = vpop.xlane.xlu0 %403
  %v405 = vadd.f32 %v383, %v384
  %v406 = vadd.f32 %v405, %v385
  %v407 = vsel %vm344, %v386, 0.0
  %v408 = vadd.f32 %v406, %v407
  %409 = vadd.xlane.f32.xlu0 %v408
  %v410 = vpop.xlane.xlu0 %409
  %v411 = vmul.f32 %v392, 0.0030864198
  %v412 = vmul.f32 %v398, 0.0030864198
  %v413 = vmul.f32 %v404, 0.0030864198
  %v414 = vmul.f32 %v410, 0.0030864198
  %v415 = vmul.f32 %v367, %v367
  %v416 = vmul.f32 %v368, %v368
  %v417 = vmul.f32 %v369, %v369
  %v418 = vmul.f32 %v370, %v370
  %v419 = vsub.f32 %v411, %v415
  %v420 = vsub.f32 %v412, %v416
  %v421 = vsub.f32 %v413, %v417
  %v422 = vsub.f32 %v414, %v418
  %v423 = vadd.f32 %v419, 1e-05
  %v424 = vadd.f32 %v420, 1e-05
  %v425 = vadd.f32 %v421, 1e-05
  %v426 = vadd.f32 %v422, 1e-05
  %v427 = vrsqrt.pop %v423
  %v428 = vrsqrt.pop %v424
  %v429 = vrsqrt.pop %v425
  %v430 = vrsqrt.pop %v426
  %v431 = vmul.f32 %v296, %v427
  %v432 = vmul.f32 %v297, %v428
  %v433 = vmul.f32 %v298, %v429
  %v434 = vmul.f32 %v299, %v430
  %v435 = vmul.f32 %v367, %v431
  %v436 = vmul.f32 %v368, %v432
  %v437 = vmul.f32 %v369, %v433
  %v438 = vmul.f32 %v370, %v434
  %v439 = vsub.f32 %v301, %v435
  %v440 = vsub.f32 %v302, %v436
  %v441 = vsub.f32 %v303, %v437
  %v442 = vsub.f32 %v304, %v438
  %444 = vset.pattern.permute.xlu0 0
  %445 = vperm.xlu0 %444, %v431
  %v446 = vpop.permute.xlu0 %445
  %449 = vset.pattern.permute.xlu0 0
  %450 = vperm.xlu0 %449, %v432
  %v451 = vpop.permute.xlu0 %450
  %454 = vset.pattern.permute.xlu0 0
  %455 = vperm.xlu0 %454, %v433
  %v456 = vpop.permute.xlu0 %455
  %459 = vset.pattern.permute.xlu0 0
  %460 = vperm.xlu0 %459, %v434
  %v461 = vpop.permute.xlu0 %460
  %v463 = vmul.f32 %v280, %v446
  %v464 = vmul.f32 %v281, %v446
  %v465 = vmul.f32 %v282, %v446
  %v466 = vmul.f32 %v283, %v446
  %v467 = vmul.f32 %v284, %v451
  %v468 = vmul.f32 %v285, %v451
  %v469 = vmul.f32 %v286, %v451
  %v470 = vmul.f32 %v287, %v451
  %v471 = vmul.f32 %v288, %v456
  %v472 = vmul.f32 %v289, %v456
  %v473 = vmul.f32 %v290, %v456
  %v474 = vmul.f32 %v291, %v456
  %v475 = vmul.f32 %v292, %v461
  %v476 = vmul.f32 %v293, %v461
  %v477 = vmul.f32 %v294, %v461
  %v478 = vmul.f32 %v295, %v461
  %480 = vset.pattern.permute.xlu0 0
  %481 = vperm.xlu0 %480, %v439
  %v482 = vpop.permute.xlu0 %481
  %485 = vset.pattern.permute.xlu0 0
  %486 = vperm.xlu0 %485, %v440
  %v487 = vpop.permute.xlu0 %486
  %490 = vset.pattern.permute.xlu0 0
  %491 = vperm.xlu0 %490, %v441
  %v492 = vpop.permute.xlu0 %491
  %495 = vset.pattern.permute.xlu0 0
  %496 = vperm.xlu0 %495, %v442
  %v497 = vpop.permute.xlu0 %496
  %v499 = vadd.f32 %v463, %v482
  %v500 = vadd.f32 %v464, %v482
  %v501 = vadd.f32 %v465, %v482
  %v502 = vadd.f32 %v466, %v482
  %v503 = vadd.f32 %v467, %v487
  %v504 = vadd.f32 %v468, %v487
  %v505 = vadd.f32 %v469, %v487
  %v506 = vadd.f32 %v470, %v487
  %v507 = vadd.f32 %v471, %v492
  %v508 = vadd.f32 %v472, %v492
  %v509 = vadd.f32 %v473, %v492
  %v510 = vadd.f32 %v474, %v492
  %v511 = vadd.f32 %v475, %v497
  %v512 = vadd.f32 %v476, %v497
  %v513 = vadd.f32 %v477, %v497
  %v514 = vadd.f32 %v478, %v497
  %v515 = vmax.f32 %v499, 0.0
  %v516 = vmax.f32 %v500, 0.0
  %v517 = vmax.f32 %v501, 0.0
  %v518 = vmax.f32 %v502, 0.0
  %v519 = vmax.f32 %v503, 0.0
  %v520 = vmax.f32 %v504, 0.0
  %v521 = vmax.f32 %v505, 0.0
  %v522 = vmax.f32 %v506, 0.0
  %v523 = vmax.f32 %v507, 0.0
  %v524 = vmax.f32 %v508, 0.0
  %v525 = vmax.f32 %v509, 0.0
  %v526 = vmax.f32 %v510, 0.0
  %v527 = vmax.f32 %v511, 0.0
  %v528 = vmax.f32 %v512, 0.0
  %v529 = vmax.f32 %v513, 0.0
  %v530 = vmax.f32 %v514, 0.0
  %v531 = vmul.f32 %v515, %v309
  %v532 = vmul.f32 %v516, %v313
  %v533 = vmul.f32 %v517, %v317
  %v534 = vmul.f32 %v518, %v321
  %v535 = vmul.f32 %v519, %v309
  %v536 = vmul.f32 %v520, %v313
  %v537 = vmul.f32 %v521, %v317
  %v538 = vmul.f32 %v522, %v321
  %v539 = vmul.f32 %v523, %v309
  %v540 = vmul.f32 %v524, %v313
  %v541 = vmul.f32 %v525, %v317
  %v542 = vmul.f32 %v526, %v321
  %v543 = vmul.f32 %v527, %v309
  %v544 = vmul.f32 %v528, %v313
  %v545 = vmul.f32 %v529, %v317
  %v546 = vmul.f32 %v530, %v321
  %v547 = vpack.c.bf16 %v535, %v531
  %v548 = vpack.c.bf16 %v536, %v532
  %v549 = vpack.c.bf16 %v537, %v533
  %v550 = vpack.c.bf16 %v538, %v534
  %v551 = vpack.c.bf16 %v543, %v539
  %v552 = vpack.c.bf16 %v544, %v540
  %v553 = vpack.c.bf16 %v545, %v541
  %v554 = vpack.c.bf16 %v546, %v542
  %v563 = vunpack.c.l.b16 %v547
  %v564 = vunpack.c.l.b16 %v548
  %v565 = vunpack.c.l.b16 %v549
  %v566 = vunpack.c.l.b16 %v550
  %v567 = vunpack.c.h.b16 %v547
  %v568 = vunpack.c.h.b16 %v548
  %v569 = vunpack.c.h.b16 %v549
  %v570 = vunpack.c.h.b16 %v550
  %v571 = vunpack.c.l.b16 %v551
  %v572 = vunpack.c.l.b16 %v552
  %v573 = vunpack.c.l.b16 %v553
  %v574 = vunpack.c.l.b16 %v554
  %v575 = vunpack.c.h.b16 %v551
  %v576 = vunpack.c.h.b16 %v552
  %v577 = vunpack.c.h.b16 %v553
  %v578 = vunpack.c.h.b16 %v554
  %v579 = vpack.c.b16 %v564, %v563
  %v580 = vpack.c.b16 %v566, %v565
  %v581 = vpack.c.b16 %v568, %v567
  %v582 = vpack.c.b16 %v570, %v569
  %v583 = vpack.c.b16 %v572, %v571
  %v584 = vpack.c.b16 %v574, %v573
  %v585 = vpack.c.b16 %v576, %v575
  %v586 = vpack.c.b16 %v578, %v577
  %587 = vrot.lane.b32.xlu0 %v579, 21
  %v588 = vpop.permute.xlu0 %587
  %589 = vrot.lane.b32.xlu0 %v580, 21
  %v590 = vpop.permute.xlu0 %589
  %591 = vrot.lane.b32.xlu0 %v581, 21
  %v592 = vpop.permute.xlu0 %591
  %593 = vrot.lane.b32.xlu0 %v582, 21
  %v594 = vpop.permute.xlu0 %593
  %595 = vrot.lane.b32.xlu0 %v583, 21
  %v596 = vpop.permute.xlu0 %595
  %597 = vrot.lane.b32.xlu0 %v584, 21
  %v598 = vpop.permute.xlu0 %597
  %599 = vrot.lane.b32.xlu0 %v585, 21
  %v600 = vpop.permute.xlu0 %599
  %601 = vrot.lane.b32.xlu0 %v586, 21
  %v602 = vpop.permute.xlu0 %601
  %v603 = vrot.slane %v588, 4
  %v604 = vrot.slane %v590, 4
  %v605 = vrot.slane %v592, 4
  %v606 = vrot.slane %v594, 4
  %v607 = vrot.slane %v596, 4
  %v608 = vrot.slane %v598, 4
  %v609 = vrot.slane %v600, 4
  %v610 = vrot.slane %v602, 4
  %vm611 = vcmask 171008
  %v612 = vsel %vm611, %v603, %v588
  %vm613 = vcmask 1043456
  %v614 = vsel %vm613, %v603, %v604
  %v615 = vsel %vm611, %v614, %v590
  %v616 = vsel %vm611, %v605, %v592
  %v617 = vsel %vm613, %v605, %v606
  %v618 = vsel %vm611, %v617, %v594
  %v619 = vsel %vm611, %v607, %v596
  %v620 = vsel %vm613, %v607, %v608
  %v621 = vsel %vm611, %v620, %v598
  %v622 = vsel %vm611, %v609, %v600
  %v623 = vsel %vm613, %v609, %v610
  %v624 = vsel %vm611, %v623, %v602
  %vm633 = vcmask 1043624
  %vm634 = vcmask 1047556
  %vm635 = vmor %vm634, %vm633
  %636 = vst.msk [vmem:[#allocation2] sm:$0xff] %vm635, %v612
  %vm637 = vcmask 1043456
  %vm638 = vcmask 302084
  %vm639 = vmor %vm638, %vm637
  %640 = vst.msk [vmem:[#allocation2 + $0x8] sm:$0xff] %vm639, %v615
  %641 = vst.msk [vmem:[#allocation2 + $0x10] sm:$0xff] %vm635, %v616
  %642 = vst.msk [vmem:[#allocation2 + $0x18] sm:$0xff] %vm639, %v618
  %643 = vst.msk [vmem:[#allocation2 + $0x20] sm:$0xff] %vm635, %v619
  %644 = vst.msk [vmem:[#allocation2 + $0x28] sm:$0xff] %vm639, %v621
  %645 = vst.msk [vmem:[#allocation2 + $0x30] sm:$0xff] %vm635, %v622
  %646 = vst.msk [vmem:[#allocation2 + $0x38] sm:$0xff] %vm639, %v624
  %v647 = vld [vmem:[#allocation2] sm:$0xff]
  %v648 = vld [vmem:[#allocation2 + $0x8] sm:$0xff]
  %v649 = vld [vmem:[#allocation2 + $0x10] sm:$0xff]
  %v650 = vld [vmem:[#allocation2 + $0x18] sm:$0xff]
  %v651 = vld [vmem:[#allocation2 + $0x20] sm:$0xff]
  %v652 = vld [vmem:[#allocation2 + $0x28] sm:$0xff]
  %v653 = vld [vmem:[#allocation2 + $0x30] sm:$0xff]
  %v654 = vld [vmem:[#allocation2 + $0x38] sm:$0xff]
  %655 = vst [vmem:[#allocation4] sm:$0xff] %v647
  %vm656 = vcmask 130052
  %vm657 = vmor %vm656, %vm637
  %658 = vst.msk [vmem:[#allocation4 + $0x8] sm:$0xff] %vm657, %v648
  %659 = vst [vmem:[#allocation4 + $0x10] sm:$0xff] %v649
  %660 = vst.msk [vmem:[#allocation4 + $0x18] sm:$0xff] %vm657, %v650
  %661 = vst [vmem:[#allocation4 + $0x20] sm:$0xff] %v651
  %662 = vst.msk [vmem:[#allocation4 + $0x28] sm:$0xff] %vm657, %v652
  %663 = vst [vmem:[#allocation4 + $0x30] sm:$0xff] %v653
  %664 = vst.msk [vmem:[#allocation4 + $0x38] sm:$0xff] %vm657, %v654
  %v665 = vld [vmem:[#allocation2] sm:$0xff]
  %v666 = vld [vmem:[#allocation2 + $0x8] sm:$0xff]
  %v667 = vld [vmem:[#allocation2 + $0x10] sm:$0xff]
  %v668 = vld [vmem:[#allocation2 + $0x18] sm:$0xff]
  %v669 = vld [vmem:[#allocation2 + $0x20] sm:$0xff]
  %v670 = vld [vmem:[#allocation2 + $0x28] sm:$0xff]
  %v671 = vld [vmem:[#allocation2 + $0x30] sm:$0xff]
  %v672 = vld [vmem:[#allocation2 + $0x38] sm:$0xff]
  %681 = vrot.lane.b32.xlu0 %v665, 127
  %v682 = vpop.permute.xlu0 %681
  %683 = vrot.lane.b32.xlu0 %v666, 127
  %v684 = vpop.permute.xlu0 %683
  %685 = vrot.lane.b32.xlu0 %v667, 127
  %v686 = vpop.permute.xlu0 %685
  %687 = vrot.lane.b32.xlu0 %v668, 127
  %v688 = vpop.permute.xlu0 %687
  %689 = vrot.lane.b32.xlu0 %v669, 127
  %v690 = vpop.permute.xlu0 %689
  %691 = vrot.lane.b32.xlu0 %v670, 127
  %v692 = vpop.permute.xlu0 %691
  %693 = vrot.lane.b32.xlu0 %v671, 127
  %v694 = vpop.permute.xlu0 %693
  %695 = vrot.lane.b32.xlu0 %v672, 127
  %v696 = vpop.permute.xlu0 %695
  %v697 = vrot.slane %v682, 4
  %v698 = vrot.slane %v684, 4
  %v699 = vrot.slane %v686, 4
  %v700 = vrot.slane %v688, 4
  %v701 = vrot.slane %v690, 4
  %v702 = vrot.slane %v692, 4
  %v703 = vrot.slane %v694, 4
  %v704 = vrot.slane %v696, 4
  %v705 = vsel %vm613, %v697, %v698
  %vm706 = vcmask 1039360
  %v707 = vsel %vm706, %v682, %v705
  %v708 = vsel %vm706, %v684, %v698
  %v709 = vsel %vm613, %v699, %v700
  %v710 = vsel %vm706, %v686, %v709
  %v711 = vsel %vm706, %v688, %v700
  %v712 = vsel %vm613, %v701, %v702
  %v713 = vsel %vm706, %v690, %v712
  %v714 = vsel %vm706, %v692, %v702
  %v715 = vsel %vm613, %v703, %v704
  %v716 = vsel %vm706, %v694, %v715
  %v717 = vsel %vm706, %v696, %v704
  %726 = vst [vmem:[#allocation4 + $0x40] sm:$0xff] %v707
  %727 = vst.msk [vmem:[#allocation4 + $0x48] sm:$0xff] %vm657, %v708
  %728 = vst [vmem:[#allocation4 + $0x50] sm:$0xff] %v710
  %729 = vst.msk [vmem:[#allocation4 + $0x58] sm:$0xff] %vm657, %v711
  %730 = vst [vmem:[#allocation4 + $0x60] sm:$0xff] %v713
  %731 = vst.msk [vmem:[#allocation4 + $0x68] sm:$0xff] %vm657, %v714
  %732 = vst [vmem:[#allocation4 + $0x70] sm:$0xff] %v716
  %733 = vst.msk [vmem:[#allocation4 + $0x78] sm:$0xff] %vm657, %v717
  %v734 = vld [vmem:[#allocation2] sm:$0xff]
  %v735 = vld [vmem:[#allocation2 + $0x8] sm:$0xff]
  %v736 = vld [vmem:[#allocation2 + $0x10] sm:$0xff]
  %v737 = vld [vmem:[#allocation2 + $0x18] sm:$0xff]
  %v738 = vld [vmem:[#allocation2 + $0x20] sm:$0xff]
  %v739 = vld [vmem:[#allocation2 + $0x28] sm:$0xff]
  %v740 = vld [vmem:[#allocation2 + $0x30] sm:$0xff]
  %v741 = vld [vmem:[#allocation2 + $0x38] sm:$0xff]
  %750 = vrot.lane.b32.xlu0 %v734, 126
  %v751 = vpop.permute.xlu0 %750
  %752 = vrot.lane.b32.xlu0 %v735, 126
  %v753 = vpop.permute.xlu0 %752
  %754 = vrot.lane.b32.xlu0 %v736, 126
  %v755 = vpop.permute.xlu0 %754
  %756 = vrot.lane.b32.xlu0 %v737, 126
  %v757 = vpop.permute.xlu0 %756
  %758 = vrot.lane.b32.xlu0 %v738, 126
  %v759 = vpop.permute.xlu0 %758
  %760 = vrot.lane.b32.xlu0 %v739, 126
  %v761 = vpop.permute.xlu0 %760
  %762 = vrot.lane.b32.xlu0 %v740, 126
  %v763 = vpop.permute.xlu0 %762
  %764 = vrot.lane.b32.xlu0 %v741, 126
  %v765 = vpop.permute.xlu0 %764
  %v766 = vrot.slane %v751, 4
  %v767 = vrot.slane %v753, 4
  %v768 = vrot.slane %v755, 4
  %v769 = vrot.slane %v757, 4
  %v770 = vrot.slane %v759, 4
  %v771 = vrot.slane %v761, 4
  %v772 = vrot.slane %v763, 4
  %v773 = vrot.slane %v765, 4
  %v774 = vsel %vm613, %v766, %v767
  %vm775 = vcmask 1031168
  %v776 = vsel %vm775, %v751, %v774
  %v777 = vsel %vm775, %v753, %v767
  %v778 = vsel %vm613, %v768, %v769
  %v779 = vsel %vm775, %v755, %v778
  %v780 = vsel %vm775, %v757, %v769
  %v781 = vsel %vm613, %v770, %v771
  %v782 = vsel %vm775, %v759, %v781
  %v783 = vsel %vm775, %v761, %v771
  %v784 = vsel %vm613, %v772, %v773
  %v785 = vsel %vm775, %v763, %v784
  %v786 = vsel %vm775, %v765, %v773
  %795 = vst [vmem:[#allocation4 + $0x80] sm:$0xff] %v776
  %796 = vst.msk [vmem:[#allocation4 + $0x88] sm:$0xff] %vm657, %v777
  %797 = vst [vmem:[#allocation4 + $0x90] sm:$0xff] %v779
  %798 = vst.msk [vmem:[#allocation4 + $0x98] sm:$0xff] %vm657, %v780
  %799 = vst [vmem:[#allocation4 + $0xa0] sm:$0xff] %v782
  %800 = vst.msk [vmem:[#allocation4 + $0xa8] sm:$0xff] %vm657, %v783
  %801 = vst [vmem:[#allocation4 + $0xb0] sm:$0xff] %v785
  %802 = vst.msk [vmem:[#allocation4 + $0xb8] sm:$0xff] %vm657, %v786
  %v803 = vld [vmem:[#allocation2] sm:$0xff]
  %v804 = vld [vmem:[#allocation2 + $0x8] sm:$0xff]
  %v805 = vld [vmem:[#allocation2 + $0x10] sm:$0xff]
  %v806 = vld [vmem:[#allocation2 + $0x18] sm:$0xff]
  %v807 = vld [vmem:[#allocation2 + $0x20] sm:$0xff]
  %v808 = vld [vmem:[#allocation2 + $0x28] sm:$0xff]
  %v809 = vld [vmem:[#allocation2 + $0x30] sm:$0xff]
  %v810 = vld [vmem:[#allocation2 + $0x38] sm:$0xff]
  %819 = vrot.lane.b32.xlu0 %v803, 108
  %v820 = vpop.permute.xlu0 %819
  %821 = vrot.lane.b32.xlu0 %v804, 108
  %v822 = vpop.permute.xlu0 %821
  %823 = vrot.lane.b32.xlu0 %v805, 108
  %v824 = vpop.permute.xlu0 %823
  %825 = vrot.lane.b32.xlu0 %v806, 108
  %v826 = vpop.permute.xlu0 %825
  %827 = vrot.lane.b32.xlu0 %v807, 108
  %v828 = vpop.permute.xlu0 %827
  %829 = vrot.lane.b32.xlu0 %v808, 108
  %v830 = vpop.permute.xlu0 %829
  %831 = vrot.lane.b32.xlu0 %v809, 108
  %v832 = vpop.permute.xlu0 %831
  %833 = vrot.lane.b32.xlu0 %v810, 108
  %v834 = vpop.permute.xlu0 %833
  %v835 = vrot.slane %v820, 4
  %v836 = vrot.slane %v822, 4
  %v837 = vrot.slane %v824, 4
  %v838 = vrot.slane %v826, 4
  %v839 = vrot.slane %v828, 4
  %v840 = vrot.slane %v830, 4
  %v841 = vrot.slane %v832, 4
  %v842 = vrot.slane %v834, 4
  %v843 = vsel %vm613, %v835, %v836
  %vm844 = vcmask 883712
  %v845 = vsel %vm844, %v820, %v843
  %v846 = vsel %vm844, %v822, %v836
  %v847 = vsel %vm613, %v837, %v838
  %v848 = vsel %vm844, %v824, %v847
  %v849 = vsel %vm844, %v826, %v838
  %v850 = vsel %vm613, %v839, %v840
  %v851 = vsel %vm844, %v828, %v850
  %v852 = vsel %vm844, %v830, %v840
  %v853 = vsel %vm613, %v841, %v842
  %v854 = vsel %vm844, %v832, %v853
  %v855 = vsel %vm844, %v834, %v842
  %864 = vst [vmem:[#allocation4 + $0xc0] sm:$0xff] %v845
  %865 = vst.msk [vmem:[#allocation4 + $0xc8] sm:$0xff] %vm657, %v846
  %866 = vst [vmem:[#allocation4 + $0xd0] sm:$0xff] %v848
  %867 = vst.msk [vmem:[#allocation4 + $0xd8] sm:$0xff] %vm657, %v849
  %868 = vst [vmem:[#allocation4 + $0xe0] sm:$0xff] %v851
  %869 = vst.msk [vmem:[#allocation4 + $0xe8] sm:$0xff] %vm657, %v852
  %870 = vst [vmem:[#allocation4 + $0xf0] sm:$0xff] %v854
  %871 = vst.msk [vmem:[#allocation4 + $0xf8] sm:$0xff] %vm657, %v855
  %v872 = vld [vmem:[#allocation2] sm:$0xff]
  %v873 = vld [vmem:[#allocation2 + $0x8] sm:$0xff]
  %v874 = vld [vmem:[#allocation2 + $0x10] sm:$0xff]
  %v875 = vld [vmem:[#allocation2 + $0x18] sm:$0xff]
  %v876 = vld [vmem:[#allocation2 + $0x20] sm:$0xff]
  %v877 = vld [vmem:[#allocation2 + $0x28] sm:$0xff]
  %v878 = vld [vmem:[#allocation2 + $0x30] sm:$0xff]
  %v879 = vld [vmem:[#allocation2 + $0x38] sm:$0xff]
  %888 = vrot.lane.b32.xlu0 %v872, 107
  %v889 = vpop.permute.xlu0 %888
  %890 = vrot.lane.b32.xlu0 %v873, 107
  %v891 = vpop.permute.xlu0 %890
  %892 = vrot.lane.b32.xlu0 %v874, 107
  %v893 = vpop.permute.xlu0 %892
  %894 = vrot.lane.b32.xlu0 %v875, 107
  %v895 = vpop.permute.xlu0 %894
  %896 = vrot.lane.b32.xlu0 %v876, 107
  %v897 = vpop.permute.xlu0 %896
  %898 = vrot.lane.b32.xlu0 %v877, 107
  %v899 = vpop.permute.xlu0 %898
  %900 = vrot.lane.b32.xlu0 %v878, 107
  %v901 = vpop.permute.xlu0 %900
  %902 = vrot.lane.b32.xlu0 %v879, 107
  %v903 = vpop.permute.xlu0 %902
  %v904 = vrot.slane %v889, 4
  %v905 = vrot.slane %v891, 4
  %v906 = vrot.slane %v893, 4
  %v907 = vrot.slane %v895, 4
  %v908 = vrot.slane %v897, 4
  %v909 = vrot.slane %v899, 4
  %v910 = vrot.slane %v901, 4
  %v911 = vrot.slane %v903, 4
  %v912 = vsel %vm613, %v904, %v905
  %vm913 = vcmask 875520
  %v914 = vsel %vm913, %v889, %v912
  %v915 = vsel %vm913, %v891, %v905
  %v916 = vsel %vm613, %v906, %v907
  %v917 = vsel %vm913, %v893, %v916
  %v918 = vsel %vm913, %v895, %v907
  %v919 = vsel %vm613, %v908, %v909
  %v920 = vsel %vm913, %v897, %v919
  %v921 = vsel %vm913, %v899, %v909
  %v922 = vsel %vm613, %v910, %v911
  %v923 = vsel %vm913, %v901, %v922
  %v924 = vsel %vm913, %v903, %v911
  %933 = vst [vmem:[#allocation4 + $0x100] sm:$0xff] %v914
  %934 = vst.msk [vmem:[#allocation4 + $0x108] sm:$0xff] %vm657, %v915
  %935 = vst [vmem:[#allocation4 + $0x110] sm:$0xff] %v917
  %936 = vst.msk [vmem:[#allocation4 + $0x118] sm:$0xff] %vm657, %v918
  %937 = vst [vmem:[#allocation4 + $0x120] sm:$0xff] %v920
  %938 = vst.msk [vmem:[#allocation4 + $0x128] sm:$0xff] %vm657, %v921
  %939 = vst [vmem:[#allocation4 + $0x130] sm:$0xff] %v923
  %940 = vst.msk [vmem:[#allocation4 + $0x138] sm:$0xff] %vm657, %v924
  %v941 = vld [vmem:[#allocation2] sm:$0xff]
  %v942 = vld [vmem:[#allocation2 + $0x8] sm:$0xff]
  %v943 = vld [vmem:[#allocation2 + $0x10] sm:$0xff]
  %v944 = vld [vmem:[#allocation2 + $0x18] sm:$0xff]
  %v945 = vld [vmem:[#allocation2 + $0x20] sm:$0xff]
  %v946 = vld [vmem:[#allocation2 + $0x28] sm:$0xff]
  %v947 = vld [vmem:[#allocation2 + $0x30] sm:$0xff]
  %v948 = vld [vmem:[#allocation2 + $0x38] sm:$0xff]
  %957 = vrot.lane.b32.xlu0 %v941, 106
  %v958 = vpop.permute.xlu0 %957
  %959 = vrot.lane.b32.xlu0 %v942, 106
  %v960 = vpop.permute.xlu0 %959
  %961 = vrot.lane.b32.xlu0 %v943, 106
  %v962 = vpop.permute.xlu0 %961
  %963 = vrot.lane.b32.xlu0 %v944, 106
  %v964 = vpop.permute.xlu0 %963
  %965 = vrot.lane.b32.xlu0 %v945, 106
  %v966 = vpop.permute.xlu0 %965
  %967 = vrot.lane.b32.xlu0 %v946, 106
  %v968 = vpop.permute.xlu0 %967
  %969 = vrot.lane.b32.xlu0 %v947, 106
  %v970 = vpop.permute.xlu0 %969
  %971 = vrot.lane.b32.xlu0 %v948, 106
  %v972 = vpop.permute.xlu0 %971
  %v973 = vrot.slane %v958, 4
  %v974 = vrot.slane %v960, 4
  %v975 = vrot.slane %v962, 4
  %v976 = vrot.slane %v964, 4
  %v977 = vrot.slane %v966, 4
  %v978 = vrot.slane %v968, 4
  %v979 = vrot.slane %v970, 4
  %v980 = vrot.slane %v972, 4
  %v981 = vsel %vm613, %v973, %v974
  %vm982 = vcmask 867328
  %v983 = vsel %vm982, %v958, %v981
  %v984 = vsel %vm982, %v960, %v974
  %v985 = vsel %vm613, %v975, %v976
  %v986 = vsel %vm982, %v962, %v985
  %v987 = vsel %vm982, %v964, %v976
  %v988 = vsel %vm613, %v977, %v978
  %v989 = vsel %vm982, %v966, %v988
  %v990 = vsel %vm982, %v968, %v978
  %v991 = vsel %vm613, %v979, %v980
  %v992 = vsel %vm982, %v970, %v991
  %v993 = vsel %vm982, %v972, %v980
  %1002 = vst [vmem:[#allocation4 + $0x140] sm:$0xff] %v983
  %1003 = vst.msk [vmem:[#allocation4 + $0x148] sm:$0xff] %vm657, %v984
  %1004 = vst [vmem:[#allocation4 + $0x150] sm:$0xff] %v986
  %1005 = vst.msk [vmem:[#allocation4 + $0x158] sm:$0xff] %vm657, %v987
  %1006 = vst [vmem:[#allocation4 + $0x160] sm:$0xff] %v989
  %1007 = vst.msk [vmem:[#allocation4 + $0x168] sm:$0xff] %vm657, %v990
  %1008 = vst [vmem:[#allocation4 + $0x170] sm:$0xff] %v992
  %1009 = vst.msk [vmem:[#allocation4 + $0x178] sm:$0xff] %vm657, %v993
  %v1010 = vld [vmem:[#allocation2] sm:$0xff]
  %v1011 = vld [vmem:[#allocation2 + $0x8] sm:$0xff]
  %v1012 = vld [vmem:[#allocation2 + $0x10] sm:$0xff]
  %v1013 = vld [vmem:[#allocation2 + $0x18] sm:$0xff]
  %v1014 = vld [vmem:[#allocation2 + $0x20] sm:$0xff]
  %v1015 = vld [vmem:[#allocation2 + $0x28] sm:$0xff]
  %v1016 = vld [vmem:[#allocation2 + $0x30] sm:$0xff]
  %v1017 = vld [vmem:[#allocation2 + $0x38] sm:$0xff]
  %1026 = vrot.lane.b32.xlu0 %v1010, 88
  %v1027 = vpop.permute.xlu0 %1026
  %1028 = vrot.lane.b32.xlu0 %v1011, 88
  %v1029 = vpop.permute.xlu0 %1028
  %1030 = vrot.lane.b32.xlu0 %v1012, 88
  %v1031 = vpop.permute.xlu0 %1030
  %1032 = vrot.lane.b32.xlu0 %v1013, 88
  %v1033 = vpop.permute.xlu0 %1032
  %1034 = vrot.lane.b32.xlu0 %v1014, 88
  %v1035 = vpop.permute.xlu0 %1034
  %1036 = vrot.lane.b32.xlu0 %v1015, 88
  %v1037 = vpop.permute.xlu0 %1036
  %1038 = vrot.lane.b32.xlu0 %v1016, 88
  %v1039 = vpop.permute.xlu0 %1038
  %1040 = vrot.lane.b32.xlu0 %v1017, 88
  %v1041 = vpop.permute.xlu0 %1040
  %v1042 = vrot.slane %v1027, 4
  %v1043 = vrot.slane %v1029, 4
  %v1044 = vrot.slane %v1031, 4
  %v1045 = vrot.slane %v1033, 4
  %v1046 = vrot.slane %v1035, 4
  %v1047 = vrot.slane %v1037, 4
  %v1048 = vrot.slane %v1039, 4
  %v1049 = vrot.slane %v1041, 4
  %v1050 = vsel %vm613, %v1042, %v1043
  %vm1051 = vcmask 719872
  %v1052 = vsel %vm1051, %v1027, %v1050
  %v1053 = vsel %vm1051, %v1029, %v1043
  %v1054 = vsel %vm613, %v1044, %v1045
  %v1055 = vsel %vm1051, %v1031, %v1054
  %v1056 = vsel %vm1051, %v1033, %v1045
  %v1057 = vsel %vm613, %v1046, %v1047
  %v1058 = vsel %vm1051, %v1035, %v1057
  %v1059 = vsel %vm1051, %v1037, %v1047
  %v1060 = vsel %vm613, %v1048, %v1049
  %v1061 = vsel %vm1051, %v1039, %v1060
  %v1062 = vsel %vm1051, %v1041, %v1049
  %1071 = vst [vmem:[#allocation4 + $0x180] sm:$0xff] %v1052
  %1072 = vst.msk [vmem:[#allocation4 + $0x188] sm:$0xff] %vm657, %v1053
  %1073 = vst [vmem:[#allocation4 + $0x190] sm:$0xff] %v1055
  %1074 = vst.msk [vmem:[#allocation4 + $0x198] sm:$0xff] %vm657, %v1056
  %1075 = vst [vmem:[#allocation4 + $0x1a0] sm:$0xff] %v1058
  %1076 = vst.msk [vmem:[#allocation4 + $0x1a8] sm:$0xff] %vm657, %v1059
  %1077 = vst [vmem:[#allocation4 + $0x1b0] sm:$0xff] %v1061
  %1078 = vst.msk [vmem:[#allocation4 + $0x1b8] sm:$0xff] %vm657, %v1062
  %v1079 = vld [vmem:[#allocation2] sm:$0xff]
  %v1080 = vld [vmem:[#allocation2 + $0x8] sm:$0xff]
  %v1081 = vld [vmem:[#allocation2 + $0x10] sm:$0xff]
  %v1082 = vld [vmem:[#allocation2 + $0x18] sm:$0xff]
  %v1083 = vld [vmem:[#allocation2 + $0x20] sm:$0xff]
  %v1084 = vld [vmem:[#allocation2 + $0x28] sm:$0xff]
  %v1085 = vld [vmem:[#allocation2 + $0x30] sm:$0xff]
  %v1086 = vld [vmem:[#allocation2 + $0x38] sm:$0xff]
  %1095 = vrot.lane.b32.xlu0 %v1079, 87
  %v1096 = vpop.permute.xlu0 %1095
  %1097 = vrot.lane.b32.xlu0 %v1080, 87
  %v1098 = vpop.permute.xlu0 %1097
  %1099 = vrot.lane.b32.xlu0 %v1081, 87
  %v1100 = vpop.permute.xlu0 %1099
  %1101 = vrot.lane.b32.xlu0 %v1082, 87
  %v1102 = vpop.permute.xlu0 %1101
  %1103 = vrot.lane.b32.xlu0 %v1083, 87
  %v1104 = vpop.permute.xlu0 %1103
  %1105 = vrot.lane.b32.xlu0 %v1084, 87
  %v1106 = vpop.permute.xlu0 %1105
  %1107 = vrot.lane.b32.xlu0 %v1085, 87
  %v1108 = vpop.permute.xlu0 %1107
  %1109 = vrot.lane.b32.xlu0 %v1086, 87
  %v1110 = vpop.permute.xlu0 %1109
  %v1111 = vrot.slane %v1096, 4
  %v1112 = vrot.slane %v1098, 4
  %v1113 = vrot.slane %v1100, 4
  %v1114 = vrot.slane %v1102, 4
  %v1115 = vrot.slane %v1104, 4
  %v1116 = vrot.slane %v1106, 4
  %v1117 = vrot.slane %v1108, 4
  %v1118 = vrot.slane %v1110, 4
  %v1119 = vsel %vm613, %v1111, %v1112
  %vm1120 = vcmask 711680
  %v1121 = vsel %vm1120, %v1096, %v1119
  %v1122 = vsel %vm1120, %v1098, %v1112
  %v1123 = vsel %vm613, %v1113, %v1114
  %v1124 = vsel %vm1120, %v1100, %v1123
  %v1125 = vsel %vm1120, %v1102, %v1114
  %v1126 = vsel %vm613, %v1115, %v1116
  %v1127 = vsel %vm1120, %v1104, %v1126
  %v1128 = vsel %vm1120, %v1106, %v1116
  %v1129 = vsel %vm613, %v1117, %v1118
  %v1130 = vsel %vm1120, %v1108, %v1129
  %v1131 = vsel %vm1120, %v1110, %v1118
  %1140 = vst [vmem:[#allocation4 + $0x1c0] sm:$0xff] %v1121
  %1141 = vst.msk [vmem:[#allocation4 + $0x1c8] sm:$0xff] %vm657, %v1122
  %1142 = vst [vmem:[#allocation4 + $0x1d0] sm:$0xff] %v1124
  %1143 = vst.msk [vmem:[#allocation4 + $0x1d8] sm:$0xff] %vm657, %v1125
  %1144 = vst [vmem:[#allocation4 + $0x1e0] sm:$0xff] %v1127
  %1145 = vst.msk [vmem:[#allocation4 + $0x1e8] sm:$0xff] %vm657, %v1128
  %1146 = vst [vmem:[#allocation4 + $0x1f0] sm:$0xff] %v1130
  %1147 = vst.msk [vmem:[#allocation4 + $0x1f8] sm:$0xff] %vm657, %v1131
  %v1148 = vld [vmem:[#allocation2] sm:$0xff]
  %v1149 = vld [vmem:[#allocation2 + $0x8] sm:$0xff]
  %v1150 = vld [vmem:[#allocation2 + $0x10] sm:$0xff]
  %v1151 = vld [vmem:[#allocation2 + $0x18] sm:$0xff]
  %v1152 = vld [vmem:[#allocation2 + $0x20] sm:$0xff]
  %v1153 = vld [vmem:[#allocation2 + $0x28] sm:$0xff]
  %v1154 = vld [vmem:[#allocation2 + $0x30] sm:$0xff]
  %v1155 = vld [vmem:[#allocation2 + $0x38] sm:$0xff]
  %1164 = vrot.lane.b32.xlu0 %v1148, 86
  %v1165 = vpop.permute.xlu0 %1164
  %1166 = vrot.lane.b32.xlu0 %v1149, 86
  %v1167 = vpop.permute.xlu0 %1166
  %1168 = vrot.lane.b32.xlu0 %v1150, 86
  %v1169 = vpop.permute.xlu0 %1168
  %1170 = vrot.lane.b32.xlu0 %v1151, 86
  %v1171 = vpop.permute.xlu0 %1170
  %1172 = vrot.lane.b32.xlu0 %v1152, 86
  %v1173 = vpop.permute.xlu0 %1172
  %1174 = vrot.lane.b32.xlu0 %v1153, 86
  %v1175 = vpop.permute.xlu0 %1174
  %1176 = vrot.lane.b32.xlu0 %v1154, 86
  %v1177 = vpop.permute.xlu0 %1176
  %1178 = vrot.lane.b32.xlu0 %v1155, 86
  %v1179 = vpop.permute.xlu0 %1178
  %v1180 = vrot.slane %v1165, 4
  %v1181 = vrot.slane %v1167, 4
  %v1182 = vrot.slane %v1169, 4
  %v1183 = vrot.slane %v1171, 4
  %v1184 = vrot.slane %v1173, 4
  %v1185 = vrot.slane %v1175, 4
  %v1186 = vrot.slane %v1177, 4
  %v1187 = vrot.slane %v1179, 4
  %v1188 = vsel %vm613, %v1180, %v1181
  %vm1189 = vcmask 703488
  %v1190 = vsel %vm1189, %v1165, %v1188
  %v1191 = vsel %vm1189, %v1167, %v1181
  %v1192 = vsel %vm613, %v1182, %v1183
  %v1193 = vsel %vm1189, %v1169, %v1192
  %v1194 = vsel %vm1189, %v1171, %v1183
  %v1195 = vsel %vm613, %v1184, %v1185
  %v1196 = vsel %vm1189, %v1173, %v1195
  %v1197 = vsel %vm1189, %v1175, %v1185
  %v1198 = vsel %vm613, %v1186, %v1187
  %v1199 = vsel %vm1189, %v1177, %v1198
  %v1200 = vsel %vm1189, %v1179, %v1187
  %1209 = vst [vmem:[#allocation4 + $0x200] sm:$0xff] %v1190
  %1210 = vst.msk [vmem:[#allocation4 + $0x208] sm:$0xff] %vm657, %v1191
  %1211 = vst [vmem:[#allocation4 + $0x210] sm:$0xff] %v1193
  %1212 = vst.msk [vmem:[#allocation4 + $0x218] sm:$0xff] %vm657, %v1194
  %1213 = vst [vmem:[#allocation4 + $0x220] sm:$0xff] %v1196
  %1214 = vst.msk [vmem:[#allocation4 + $0x228] sm:$0xff] %vm657, %v1197
  %1215 = vst [vmem:[#allocation4 + $0x230] sm:$0xff] %v1199
  %1216 = vst.msk [vmem:[#allocation4 + $0x238] sm:$0xff] %vm657, %v1200
  %v1217 = vld [vmem:[%s2] sm:$0xff]
  %v1218 = vld [vmem:[%s2 + $0x8] sm:$0xf]
  %v1219 = vld [vmem:[%s2 + $0xc] sm:$0xff]
  %v1220 = vld [vmem:[%s2 + $0x14] sm:$0xf]
  %v1221 = vld [vmem:[%s2 + $0x18] sm:$0xff]
  %v1222 = vld [vmem:[%s2 + $0x20] sm:$0xf]
  %v1223 = vld [vmem:[%s2 + $0x24] sm:$0xff]
  %v1224 = vld [vmem:[%s2 + $0x2c] sm:$0xf]
  %v1225 = vld [vmem:[#allocation4] sm:$0xff]
  %v1226 = vld [vmem:[#allocation4 + $0x8] sm:$0xff]
  %v1227 = vld [vmem:[#allocation4 + $0x10] sm:$0xff]
  %v1228 = vld [vmem:[#allocation4 + $0x18] sm:$0xff]
  %v1229 = vld [vmem:[#allocation4 + $0x20] sm:$0xff]
  %v1230 = vld [vmem:[#allocation4 + $0x28] sm:$0xff]
  %v1231 = vld [vmem:[#allocation4 + $0x30] sm:$0xff]
  %v1232 = vld [vmem:[#allocation4 + $0x38] sm:$0xff]
  %v1233 = vld [vmem:[#allocation4 + $0x40] sm:$0xff]
  %v1234 = vld [vmem:[#allocation4 + $0x48] sm:$0xff]
  %v1235 = vld [vmem:[#allocation4 + $0x50] sm:$0xff]
  %v1236 = vld [vmem:[#allocation4 + $0x58] sm:$0xff]
  %v1237 = vld [vmem:[#allocation4 + $0x60] sm:$0xff]
  %v1238 = vld [vmem:[#allocation4 + $0x68] sm:$0xff]
  %v1239 = vld [vmem:[#allocation4 + $0x70] sm:$0xff]
  %v1240 = vld [vmem:[#allocation4 + $0x78] sm:$0xff]
  %v1241 = vld [vmem:[#allocation4 + $0x80] sm:$0xff]
  %v1242 = vld [vmem:[#allocation4 + $0x88] sm:$0xff]
  %v1243 = vld [vmem:[#allocation4 + $0x90] sm:$0xff]
  %v1244 = vld [vmem:[#allocation4 + $0x98] sm:$0xff]
  %v1245 = vld [vmem:[#allocation4 + $0xa0] sm:$0xff]
  %v1246 = vld [vmem:[#allocation4 + $0xa8] sm:$0xff]
  %v1247 = vld [vmem:[#allocation4 + $0xb0] sm:$0xff]
  %v1248 = vld [vmem:[#allocation4 + $0xb8] sm:$0xff]
  %v1249 = vld [vmem:[#allocation4 + $0xc0] sm:$0xff]
  %v1250 = vld [vmem:[#allocation4 + $0xc8] sm:$0xff]
  %v1251 = vld [vmem:[#allocation4 + $0xd0] sm:$0xff]
  %v1252 = vld [vmem:[#allocation4 + $0xd8] sm:$0xff]
  %v1253 = vld [vmem:[#allocation4 + $0xe0] sm:$0xff]
  %v1254 = vld [vmem:[#allocation4 + $0xe8] sm:$0xff]
  %v1255 = vld [vmem:[#allocation4 + $0xf0] sm:$0xff]
  %v1256 = vld [vmem:[#allocation4 + $0xf8] sm:$0xff]
  %v1257 = vld [vmem:[#allocation4 + $0x100] sm:$0xff]
  %v1258 = vld [vmem:[#allocation4 + $0x108] sm:$0xff]
  %v1259 = vld [vmem:[#allocation4 + $0x110] sm:$0xff]
  %v1260 = vld [vmem:[#allocation4 + $0x118] sm:$0xff]
  %v1261 = vld [vmem:[#allocation4 + $0x120] sm:$0xff]
  %v1262 = vld [vmem:[#allocation4 + $0x128] sm:$0xff]
  %v1263 = vld [vmem:[#allocation4 + $0x130] sm:$0xff]
  %v1264 = vld [vmem:[#allocation4 + $0x138] sm:$0xff]
  %v1265 = vld [vmem:[#allocation4 + $0x140] sm:$0xff]
  %v1266 = vld [vmem:[#allocation4 + $0x148] sm:$0xff]
  %v1267 = vld [vmem:[#allocation4 + $0x150] sm:$0xff]
  %v1268 = vld [vmem:[#allocation4 + $0x158] sm:$0xff]
  %v1269 = vld [vmem:[#allocation4 + $0x160] sm:$0xff]
  %v1270 = vld [vmem:[#allocation4 + $0x168] sm:$0xff]
  %v1271 = vld [vmem:[#allocation4 + $0x170] sm:$0xff]
  %v1272 = vld [vmem:[#allocation4 + $0x178] sm:$0xff]
  %v1273 = vld [vmem:[#allocation4 + $0x180] sm:$0xff]
  %v1274 = vld [vmem:[#allocation4 + $0x188] sm:$0xff]
  %v1275 = vld [vmem:[#allocation4 + $0x190] sm:$0xff]
  %v1276 = vld [vmem:[#allocation4 + $0x198] sm:$0xff]
  %v1277 = vld [vmem:[#allocation4 + $0x1a0] sm:$0xff]
  %v1278 = vld [vmem:[#allocation4 + $0x1a8] sm:$0xff]
  %v1279 = vld [vmem:[#allocation4 + $0x1b0] sm:$0xff]
  %v1280 = vld [vmem:[#allocation4 + $0x1b8] sm:$0xff]
  %v1281 = vld [vmem:[#allocation4 + $0x1c0] sm:$0xff]
  %v1282 = vld [vmem:[#allocation4 + $0x1c8] sm:$0xff]
  %v1283 = vld [vmem:[#allocation4 + $0x1d0] sm:$0xff]
  %v1284 = vld [vmem:[#allocation4 + $0x1d8] sm:$0xff]
  %v1285 = vld [vmem:[#allocation4 + $0x1e0] sm:$0xff]
  %v1286 = vld [vmem:[#allocation4 + $0x1e8] sm:$0xff]
  %v1287 = vld [vmem:[#allocation4 + $0x1f0] sm:$0xff]
  %v1288 = vld [vmem:[#allocation4 + $0x1f8] sm:$0xff]
  %v1289 = vld [vmem:[#allocation4 + $0x200] sm:$0xff]
  %v1290 = vld [vmem:[#allocation4 + $0x208] sm:$0xff]
  %v1291 = vld [vmem:[#allocation4 + $0x210] sm:$0xff]
  %v1292 = vld [vmem:[#allocation4 + $0x218] sm:$0xff]
  %v1293 = vld [vmem:[#allocation4 + $0x220] sm:$0xff]
  %v1294 = vld [vmem:[#allocation4 + $0x228] sm:$0xff]
  %v1295 = vld [vmem:[#allocation4 + $0x230] sm:$0xff]
  %v1296 = vld [vmem:[#allocation4 + $0x238] sm:$0xff]
  %v1305 = vunpack.c.l.b16 %v1217
  %v1306 = vunpack.c.h.b16 %v1217
  %v1307 = vunpack.c.l.b16 %v1218
  %v1308 = vunpack.c.l.b16 %v1219
  %v1309 = vunpack.c.h.b16 %v1219
  %v1310 = vunpack.c.l.b16 %v1220
  %v1311 = vunpack.c.l.b16 %v1221
  %v1312 = vunpack.c.h.b16 %v1221
  %v1313 = vunpack.c.l.b16 %v1222
  %v1314 = vunpack.c.l.b16 %v1223
  %v1315 = vunpack.c.h.b16 %v1223
  %v1316 = vunpack.c.l.b16 %v1224
  %v1317 = vpack.c.b16 %v1308, %v1305
  %v1318 = vpack.c.b16 %v1309, %v1306
  %v1319 = vpack.c.b16 %v1310, %v1307
  %v1320 = vpack.c.b16 %v1314, %v1311
  %v1321 = vpack.c.b16 %v1315, %v1312
  %v1322 = vpack.c.b16 %v1316, %v1313
  %v1399 = vunpack.c.l.b16 %v1225
  %v1400 = vunpack.c.h.b16 %v1225
  %v1401 = vunpack.c.l.b16 %v1226
  %v1402 = vunpack.c.h.b16 %v1226
  %v1403 = vunpack.c.l.b16 %v1227
  %v1404 = vunpack.c.h.b16 %v1227
  %v1405 = vunpack.c.l.b16 %v1228
  %v1406 = vunpack.c.h.b16 %v1228
  %v1407 = vunpack.c.l.b16 %v1229
  %v1408 = vunpack.c.h.b16 %v1229
  %v1409 = vunpack.c.l.b16 %v1230
  %v1410 = vunpack.c.h.b16 %v1230
  %v1411 = vunpack.c.l.b16 %v1231
  %v1412 = vunpack.c.h.b16 %v1231
  %v1413 = vunpack.c.l.b16 %v1232
  %v1414 = vunpack.c.h.b16 %v1232
  %v1415 = vunpack.c.l.b16 %v1233
  %v1416 = vunpack.c.h.b16 %v1233
  %v1417 = vunpack.c.l.b16 %v1234
  %v1418 = vunpack.c.h.b16 %v1234
  %v1419 = vunpack.c.l.b16 %v1235
  %v1420 = vunpack.c.h.b16 %v1235
  %v1421 = vunpack.c.l.b16 %v1236
  %v1422 = vunpack.c.h.b16 %v1236
  %v1423 = vunpack.c.l.b16 %v1237
  %v1424 = vunpack.c.h.b16 %v1237
  %v1425 = vunpack.c.l.b16 %v1238
  %v1426 = vunpack.c.h.b16 %v1238
  %v1427 = vunpack.c.l.b16 %v1239
  %v1428 = vunpack.c.h.b16 %v1239
  %v1429 = vunpack.c.l.b16 %v1240
  %v1430 = vunpack.c.h.b16 %v1240
  %v1431 = vunpack.c.l.b16 %v1241
  %v1432 = vunpack.c.h.b16 %v1241
  %v1433 = vunpack.c.l.b16 %v1242
  %v1434 = vunpack.c.h.b16 %v1242
  %v1435 = vunpack.c.l.b16 %v1243
  %v1436 = vunpack.c.h.b16 %v1243
  %v1437 = vunpack.c.l.b16 %v1244
  %v1438 = vunpack.c.h.b16 %v1244
  %v1439 = vunpack.c.l.b16 %v1245
  %v1440 = vunpack.c.h.b16 %v1245
  %v1441 = vunpack.c.l.b16 %v1246
  %v1442 = vunpack.c.h.b16 %v1246
  %v1443 = vunpack.c.l.b16 %v1247
  %v1444 = vunpack.c.h.b16 %v1247
  %v1445 = vunpack.c.l.b16 %v1248
  %v1446 = vunpack.c.h.b16 %v1248
  %v1447 = vunpack.c.l.b16 %v1249
  %v1448 = vunpack.c.h.b16 %v1249
  %v1449 = vunpack.c.l.b16 %v1250
  %v1450 = vunpack.c.h.b16 %v1250
  %v1451 = vunpack.c.l.b16 %v1251
  %v1452 = vunpack.c.h.b16 %v1251
  %v1453 = vunpack.c.l.b16 %v1252
  %v1454 = vunpack.c.h.b16 %v1252
  %v1455 = vunpack.c.l.b16 %v1253
  %v1456 = vunpack.c.h.b16 %v1253
  %v1457 = vunpack.c.l.b16 %v1254
  %v1458 = vunpack.c.h.b16 %v1254
  %v1459 = vunpack.c.l.b16 %v1255
  %v1460 = vunpack.c.h.b16 %v1255
  %v1461 = vunpack.c.l.b16 %v1256
  %v1462 = vunpack.c.h.b16 %v1256
  %v1463 = vunpack.c.l.b16 %v1257
  %v1464 = vunpack.c.h.b16 %v1257
  %v1465 = vunpack.c.l.b16 %v1258
  %v1466 = vunpack.c.h.b16 %v1258
  %v1467 = vunpack.c.l.b16 %v1259
  %v1468 = vunpack.c.h.b16 %v1259
  %v1469 = vunpack.c.l.b16 %v1260
  %v1470 = vunpack.c.h.b16 %v1260
  %v1471 = vunpack.c.l.b16 %v1261
  %v1472 = vunpack.c.h.b16 %v1261
  %v1473 = vunpack.c.l.b16 %v1262
  %v1474 = vunpack.c.h.b16 %v1262
  %v1475 = vunpack.c.l.b16 %v1263
  %v1476 = vunpack.c.h.b16 %v1263
  %v1477 = vunpack.c.l.b16 %v1264
  %v1478 = vunpack.c.h.b16 %v1264
  %v1479 = vunpack.c.l.b16 %v1265
  %v1480 = vunpack.c.h.b16 %v1265
  %v1481 = vunpack.c.l.b16 %v1266
  %v1482 = vunpack.c.h.b16 %v1266
  %v1483 = vunpack.c.l.b16 %v1267
  %v1484 = vunpack.c.h.b16 %v1267
  %v1485 = vunpack.c.l.b16 %v1268
  %v1486 = vunpack.c.h.b16 %v1268
  %v1487 = vunpack.c.l.b16 %v1269
  %v1488 = vunpack.c.h.b16 %v1269
  %v1489 = vunpack.c.l.b16 %v1270
  %v1490 = vunpack.c.h.b16 %v1270
  %v1491 = vunpack.c.l.b16 %v1271
  %v1492 = vunpack.c.h.b16 %v1271
  %v1493 = vunpack.c.l.b16 %v1272
  %v1494 = vunpack.c.h.b16 %v1272
  %v1495 = vunpack.c.l.b16 %v1273
  %v1496 = vunpack.c.h.b16 %v1273
  %v1497 = vunpack.c.l.b16 %v1274
  %v1498 = vunpack.c.h.b16 %v1274
  %v1499 = vunpack.c.l.b16 %v1275
  %v1500 = vunpack.c.h.b16 %v1275
  %v1501 = vunpack.c.l.b16 %v1276
  %v1502 = vunpack.c.h.b16 %v1276
  %v1503 = vunpack.c.l.b16 %v1277
  %v1504 = vunpack.c.h.b16 %v1277
  %v1505 = vunpack.c.l.b16 %v1278
  %v1506 = vunpack.c.h.b16 %v1278
  %v1507 = vunpack.c.l.b16 %v1279
  %v1508 = vunpack.c.h.b16 %v1279
  %v1509 = vunpack.c.l.b16 %v1280
  %v1510 = vunpack.c.h.b16 %v1280
  %v1511 = vunpack.c.l.b16 %v1281
  %v1512 = vunpack.c.h.b16 %v1281
  %v1513 = vunpack.c.l.b16 %v1282
  %v1514 = vunpack.c.h.b16 %v1282
  %v1515 = vunpack.c.l.b16 %v1283
  %v1516 = vunpack.c.h.b16 %v1283
  %v1517 = vunpack.c.l.b16 %v1284
  %v1518 = vunpack.c.h.b16 %v1284
  %v1519 = vunpack.c.l.b16 %v1285
  %v1520 = vunpack.c.h.b16 %v1285
  %v1521 = vunpack.c.l.b16 %v1286
  %v1522 = vunpack.c.h.b16 %v1286
  %v1523 = vunpack.c.l.b16 %v1287
  %v1524 = vunpack.c.h.b16 %v1287
  %v1525 = vunpack.c.l.b16 %v1288
  %v1526 = vunpack.c.h.b16 %v1288
  %v1527 = vunpack.c.l.b16 %v1289
  %v1528 = vunpack.c.h.b16 %v1289
  %v1529 = vunpack.c.l.b16 %v1290
  %v1530 = vunpack.c.h.b16 %v1290
  %v1531 = vunpack.c.l.b16 %v1291
  %v1532 = vunpack.c.h.b16 %v1291
  %v1533 = vunpack.c.l.b16 %v1292
  %v1534 = vunpack.c.h.b16 %v1292
  %v1535 = vunpack.c.l.b16 %v1293
  %v1536 = vunpack.c.h.b16 %v1293
  %v1537 = vunpack.c.l.b16 %v1294
  %v1538 = vunpack.c.h.b16 %v1294
  %v1539 = vunpack.c.l.b16 %v1295
  %v1540 = vunpack.c.h.b16 %v1295
  %v1541 = vunpack.c.l.b16 %v1296
  %v1542 = vunpack.c.h.b16 %v1296
  %v1543 = vpack.c.b16 %v1403, %v1399
  %v1544 = vpack.c.b16 %v1404, %v1400
  %v1545 = vpack.c.b16 %v1405, %v1401
  %v1546 = vpack.c.b16 %v1406, %v1402
  %v1547 = vpack.c.b16 %v1411, %v1407
  %v1548 = vpack.c.b16 %v1412, %v1408
  %v1549 = vpack.c.b16 %v1413, %v1409
  %v1550 = vpack.c.b16 %v1414, %v1410
  %v1551 = vpack.c.b16 %v1419, %v1415
  %v1552 = vpack.c.b16 %v1420, %v1416
  %v1553 = vpack.c.b16 %v1421, %v1417
  %v1554 = vpack.c.b16 %v1422, %v1418
  %v1555 = vpack.c.b16 %v1427, %v1423
  %v1556 = vpack.c.b16 %v1428, %v1424
  %v1557 = vpack.c.b16 %v1429, %v1425
  %v1558 = vpack.c.b16 %v1430, %v1426
  %v1559 = vpack.c.b16 %v1435, %v1431
  %v1560 = vpack.c.b16 %v1436, %v1432
  %v1561 = vpack.c.b16 %v1437, %v1433
  %v1562 = vpack.c.b16 %v1438, %v1434
  %v1563 = vpack.c.b16 %v1443, %v1439
  %v1564 = vpack.c.b16 %v1444, %v1440
  %v1565 = vpack.c.b16 %v1445, %v1441
  %v1566 = vpack.c.b16 %v1446, %v1442
  %v1567 = vpack.c.b16 %v1451, %v1447
  %v1568 = vpack.c.b16 %v1452, %v1448
  %v1569 = vpack.c.b16 %v1453, %v1449
  %v1570 = vpack.c.b16 %v1454, %v1450
  %v1571 = vpack.c.b16 %v1459, %v1455
  %v1572 = vpack.c.b16 %v1460, %v1456
  %v1573 = vpack.c.b16 %v1461, %v1457
  %v1574 = vpack.c.b16 %v1462, %v1458
  %v1575 = vpack.c.b16 %v1467, %v1463
  %v1576 = vpack.c.b16 %v1468, %v1464
  %v1577 = vpack.c.b16 %v1469, %v1465
  %v1578 = vpack.c.b16 %v1470, %v1466
  %v1579 = vpack.c.b16 %v1475, %v1471
  %v1580 = vpack.c.b16 %v1476, %v1472
  %v1581 = vpack.c.b16 %v1477, %v1473
  %v1582 = vpack.c.b16 %v1478, %v1474
  %v1583 = vpack.c.b16 %v1483, %v1479
  %v1584 = vpack.c.b16 %v1484, %v1480
  %v1585 = vpack.c.b16 %v1485, %v1481
  %v1586 = vpack.c.b16 %v1486, %v1482
  %v1587 = vpack.c.b16 %v1491, %v1487
  %v1588 = vpack.c.b16 %v1492, %v1488
  %v1589 = vpack.c.b16 %v1493, %v1489
  %v1590 = vpack.c.b16 %v1494, %v1490
  %v1591 = vpack.c.b16 %v1499, %v1495
  %v1592 = vpack.c.b16 %v1500, %v1496
  %v1593 = vpack.c.b16 %v1501, %v1497
  %v1594 = vpack.c.b16 %v1502, %v1498
  %v1595 = vpack.c.b16 %v1507, %v1503
  %v1596 = vpack.c.b16 %v1508, %v1504
  %v1597 = vpack.c.b16 %v1509, %v1505
  %v1598 = vpack.c.b16 %v1510, %v1506
  %v1599 = vpack.c.b16 %v1515, %v1511
  %v1600 = vpack.c.b16 %v1516, %v1512
  %v1601 = vpack.c.b16 %v1517, %v1513
  %v1602 = vpack.c.b16 %v1518, %v1514
  %v1603 = vpack.c.b16 %v1523, %v1519
  %v1604 = vpack.c.b16 %v1524, %v1520
  %v1605 = vpack.c.b16 %v1525, %v1521
  %v1606 = vpack.c.b16 %v1526, %v1522
  %v1607 = vpack.c.b16 %v1531, %v1527
  %v1608 = vpack.c.b16 %v1532, %v1528
  %v1609 = vpack.c.b16 %v1533, %v1529
  %v1610 = vpack.c.b16 %v1534, %v1530
  %v1611 = vpack.c.b16 %v1539, %v1535
  %v1612 = vpack.c.b16 %v1540, %v1536
  %v1613 = vpack.c.b16 %v1541, %v1537
  %v1614 = vpack.c.b16 %v1542, %v1538
  %vm1687 = vcmask 261120
  %v1689 = vsel %vm1687, %v1319, 0
  %v1692 = vsel %vm1687, %v1322, 0
  %1694 = vmatprep.subr.bf16.mxu0 %v1572
  %1695 = vmatpush1.bf16.msra.mxu0 %v1571
  %1696 = vmatprep.subr.bf16.mxu0 %v1568
  %1697 = vmatpush1.bf16.msra.mxu0 %v1567
  %1698 = vmatprep.subr.bf16.mxu0 %v1564
  %1699 = vmatpush1.bf16.msra.mxu0 %v1563
  %1700 = vmatprep.subr.bf16.mxu0 %v1560
  %1701 = vmatpush1.bf16.msra.mxu0 %v1559
  %1702 = vmatprep.subr.bf16.mxu0 %v1556
  %1703 = vmatpush1.bf16.msra.mxu0 %v1555
  %1704 = vmatprep.subr.bf16.mxu0 %v1552
  %1705 = vmatpush1.bf16.msra.mxu0 %v1551
  %1706 = vmatprep.subr.bf16.mxu0 %v1548
  %1707 = vmatpush1.bf16.msra.mxu0 %v1547
  %1708 = vmatprep.subr.bf16.mxu0 %v1544
  %1709 = vmatpush1.bf16.msra.mxu0 %v1543
  %1710 = vmatprep.subr.bf16.mxu0 %v1604
  %1711 = vmatpush2.bf16.msra.mxu0 %v1603
  %1712 = vmatprep.subr.bf16.mxu0 %v1600
  %1713 = vmatpush2.bf16.msra.mxu0 %v1599
  %1714 = vmatprep.subr.bf16.mxu0 %v1596
  %1715 = vmatpush2.bf16.msra.mxu0 %v1595
  %1716 = vmatprep.subr.bf16.mxu0 %v1592
  %1717 = vmatpush2.bf16.msra.mxu0 %v1591
  %1718 = vmatprep.subr.bf16.mxu0 %v1588
  %1719 = vmatpush2.bf16.msra.mxu0 %v1587
  %1720 = vmatprep.subr.bf16.mxu0 %v1584
  %1721 = vmatpush2.bf16.msra.mxu0 %v1583
  %1722 = vmatprep.subr.bf16.mxu0 %v1580
  %1723 = vmatpush2.bf16.msra.mxu0 %v1579
  %1724 = vmatprep.subr.bf16.mxu0 %v1576
  %1725 = vmatpush2.bf16.msra.mxu0 %v1575
  %1726 = vmatprep.mubr.bf16.mxu0 %v1318
  %1727 = vmatmul.mubr.bf16.gmra.mxu0 %v1317
  %v1728 = vpop.f32.mrf.mxu0
  %v1729 = vadd.f32 0.0, %v1728
  %v1730 = vpop.f32.mrf.mxu0
  %v1731 = vadd.f32 0.0, %v1730
  %v1732 = vpop.f32.mrf.mxu0
  %v1733 = vadd.f32 0.0, %v1732
  %v1734 = vpop.f32.mrf.mxu0
  %v1735 = vadd.f32 0.0, %v1734
  %1736 = vmatprep.mubr.bf16.mxu0 %v1321
  %1737 = vmatmul.mubr.bf16.gmra.mxu0 %v1320
  %v1738 = vpop.f32.mrf.mxu0
  %v1739 = vadd.f32 0.0, %v1738
  %v1740 = vpop.f32.mrf.mxu0
  %v1741 = vadd.f32 0.0, %v1740
  %v1742 = vpop.f32.mrf.mxu0
  %v1743 = vadd.f32 0.0, %v1742
  %v1744 = vpop.f32.mrf.mxu0
  %v1745 = vadd.f32 0.0, %v1744
  %1746 = vdwg.mxu0
  %1747 = vmatprep.subr.bf16.mxu0 0
  %1748 = vmatpush1.bf16.msra.mxu0 0
  %1749 = vmatprep.subr.bf16.mxu0 0
  %1750 = vmatpush1.bf16.msra.mxu0 0
  %1751 = vmatprep.subr.bf16.mxu0 0
  %1752 = vmatpush1.bf16.msra.mxu0 0
  %1753 = vmatprep.subr.bf16.mxu0 0
  %1754 = vmatpush1.bf16.msra.mxu0 0
  %1755 = vmatprep.subr.bf16.mxu0 0
  %1756 = vmatpush1.bf16.msra.mxu0 0
  %1757 = vmatprep.subr.bf16.mxu0 0
  %1758 = vmatpush1.bf16.msra.mxu0 0
  %1759 = vmatprep.subr.bf16.mxu0 %v1612
  %1760 = vmatpush1.bf16.msra.mxu0 %v1611
  %1761 = vmatprep.subr.bf16.mxu0 %v1608
  %1762 = vmatpush1.bf16.msra.mxu0 %v1607
  %1763 = vmatprep.subr.bf16.mxu0 0
  %1764 = vmatpush2.bf16.msra.mxu0 0
  %1765 = vmatprep.subr.bf16.mxu0 0
  %1766 = vmatpush2.bf16.msra.mxu0 0
  %1767 = vmatprep.subr.bf16.mxu0 0
  %1768 = vmatpush2.bf16.msra.mxu0 0
  %1769 = vmatprep.subr.bf16.mxu0 0
  %1770 = vmatpush2.bf16.msra.mxu0 0
  %1771 = vmatprep.subr.bf16.mxu0 0
  %1772 = vmatpush2.bf16.msra.mxu0 0
  %1773 = vmatprep.subr.bf16.mxu0 0
  %1774 = vmatpush2.bf16.msra.mxu0 0
  %1775 = vmatprep.subr.bf16.mxu0 0
  %1776 = vmatpush2.bf16.msra.mxu0 0
  %1777 = vmatprep.subr.bf16.mxu0 0
  %1778 = vmatpush2.bf16.msra.mxu0 0
  %1779 = vmatprep.mubr.bf16.mxu0 0
  %1780 = vmatmul.mubr.bf16.gmra.mxu0 %v1689
  %v1781 = vpop.f32.mrf.mxu0
  %v1782 = vadd.f32 %v1729, %v1781
  %v1783 = vpop.f32.mrf.mxu0
  %v1784 = vadd.f32 %v1731, %v1783
  %v1785 = vpop.f32.mrf.mxu0
  %v1786 = vadd.f32 %v1733, %v1785
  %v1787 = vpop.f32.mrf.mxu0
  %v1788 = vadd.f32 %v1735, %v1787
  %1789 = vmatprep.mubr.bf16.mxu0 0
  %1790 = vmatmul.mubr.bf16.gmra.mxu0 %v1692
  %v1791 = vpop.f32.mrf.mxu0
  %v1792 = vadd.f32 %v1739, %v1791
  %v1793 = vpop.f32.mrf.mxu0
  %v1794 = vadd.f32 %v1741, %v1793
  %v1795 = vpop.f32.mrf.mxu0
  %v1796 = vadd.f32 %v1743, %v1795
  %v1797 = vpop.f32.mrf.mxu0
  %v1798 = vadd.f32 %v1745, %v1797
  %1799 = vdwg.mxu0
  %1800 = vmatprep.subr.bf16.mxu0 %v1574
  %1801 = vmatpush1.bf16.msra.mxu0 %v1573
  %1802 = vmatprep.subr.bf16.mxu0 %v1570
  %1803 = vmatpush1.bf16.msra.mxu0 %v1569
  %1804 = vmatprep.subr.bf16.mxu0 %v1566
  %1805 = vmatpush1.bf16.msra.mxu0 %v1565
  %1806 = vmatprep.subr.bf16.mxu0 %v1562
  %1807 = vmatpush1.bf16.msra.mxu0 %v1561
  %1808 = vmatprep.subr.bf16.mxu0 %v1558
  %1809 = vmatpush1.bf16.msra.mxu0 %v1557
  %1810 = vmatprep.subr.bf16.mxu0 %v1554
  %1811 = vmatpush1.bf16.msra.mxu0 %v1553
  %1812 = vmatprep.subr.bf16.mxu0 %v1550
  %1813 = vmatpush1.bf16.msra.mxu0 %v1549
  %1814 = vmatprep.subr.bf16.mxu0 %v1546
  %1815 = vmatpush1.bf16.msra.mxu0 %v1545
  %1816 = vmatprep.subr.bf16.mxu0 %v1606
  %1817 = vmatpush2.bf16.msra.mxu0 %v1605
  %1818 = vmatprep.subr.bf16.mxu0 %v1602
  %1819 = vmatpush2.bf16.msra.mxu0 %v1601
  %1820 = vmatprep.subr.bf16.mxu0 %v1598
  %1821 = vmatpush2.bf16.msra.mxu0 %v1597
  %1822 = vmatprep.subr.bf16.mxu0 %v1594
  %1823 = vmatpush2.bf16.msra.mxu0 %v1593
  %1824 = vmatprep.subr.bf16.mxu0 %v1590
  %1825 = vmatpush2.bf16.msra.mxu0 %v1589
  %1826 = vmatprep.subr.bf16.mxu0 %v1586
  %1827 = vmatpush2.bf16.msra.mxu0 %v1585
  %1828 = vmatprep.subr.bf16.mxu0 %v1582
  %1829 = vmatpush2.bf16.msra.mxu0 %v1581
  %1830 = vmatprep.subr.bf16.mxu0 %v1578
  %1831 = vmatpush2.bf16.msra.mxu0 %v1577
  %1832 = vmatprep.mubr.bf16.mxu0 %v1318
  %1833 = vmatmul.mubr.bf16.gmra.mxu0 %v1317
  %v1834 = vpop.f32.mrf.mxu0
  %v1835 = vadd.f32 0.0, %v1834
  %v1836 = vpop.f32.mrf.mxu0
  %v1837 = vadd.f32 0.0, %v1836
  %v1838 = vpop.f32.mrf.mxu0
  %v1839 = vadd.f32 0.0, %v1838
  %v1840 = vpop.f32.mrf.mxu0
  %v1841 = vadd.f32 0.0, %v1840
  %1842 = vmatprep.mubr.bf16.mxu0 %v1321
  %1843 = vmatmul.mubr.bf16.gmra.mxu0 %v1320
  %v1844 = vpop.f32.mrf.mxu0
  %v1845 = vadd.f32 0.0, %v1844
  %v1846 = vpop.f32.mrf.mxu0
  %v1847 = vadd.f32 0.0, %v1846
  %v1848 = vpop.f32.mrf.mxu0
  %v1849 = vadd.f32 0.0, %v1848
  %v1850 = vpop.f32.mrf.mxu0
  %v1851 = vadd.f32 0.0, %v1850
  %1852 = vdwg.mxu0
  %1853 = vmatprep.subr.bf16.mxu0 0
  %1854 = vmatpush1.bf16.msra.mxu0 0
  %1855 = vmatprep.subr.bf16.mxu0 0
  %1856 = vmatpush1.bf16.msra.mxu0 0
  %1857 = vmatprep.subr.bf16.mxu0 0
  %1858 = vmatpush1.bf16.msra.mxu0 0
  %1859 = vmatprep.subr.bf16.mxu0 0
  %1860 = vmatpush1.bf16.msra.mxu0 0
  %1861 = vmatprep.subr.bf16.mxu0 0
  %1862 = vmatpush1.bf16.msra.mxu0 0
  %1863 = vmatprep.subr.bf16.mxu0 0
  %1864 = vmatpush1.bf16.msra.mxu0 0
  %1865 = vmatprep.subr.bf16.mxu0 %v1614
  %1866 = vmatpush1.bf16.msra.mxu0 %v1613
  %1867 = vmatprep.subr.bf16.mxu0 %v1610
  %1868 = vmatpush1.bf16.msra.mxu0 %v1609
  %1869 = vmatprep.subr.bf16.mxu0 0
  %1870 = vmatpush2.bf16.msra.mxu0 0
  %1871 = vmatprep.subr.bf16.mxu0 0
  %1872 = vmatpush2.bf16.msra.mxu0 0
  %1873 = vmatprep.subr.bf16.mxu0 0
  %1874 = vmatpush2.bf16.msra.mxu0 0
  %1875 = vmatprep.subr.bf16.mxu0 0
  %1876 = vmatpush2.bf16.msra.mxu0 0
  %1877 = vmatprep.subr.bf16.mxu0 0
  %1878 = vmatpush2.bf16.msra.mxu0 0
  %1879 = vmatprep.subr.bf16.mxu0 0
  %1880 = vmatpush2.bf16.msra.mxu0 0
  %1881 = vmatprep.subr.bf16.mxu0 0
  %1882 = vmatpush2.bf16.msra.mxu0 0
  %1883 = vmatprep.subr.bf16.mxu0 0
  %1884 = vmatpush2.bf16.msra.mxu0 0
  %1885 = vmatprep.mubr.bf16.mxu0 0
  %1886 = vmatmul.mubr.bf16.gmra.mxu0 %v1689
  %v1887 = vpop.f32.mrf.mxu0
  %v1888 = vadd.f32 %v1835, %v1887
  %v1889 = vpop.f32.mrf.mxu0
  %v1890 = vadd.f32 %v1837, %v1889
  %v1891 = vpop.f32.mrf.mxu0
  %v1892 = vadd.f32 %v1839, %v1891
  %v1893 = vpop.f32.mrf.mxu0
  %v1894 = vadd.f32 %v1841, %v1893
  %1895 = vmatprep.mubr.bf16.mxu0 0
  %1896 = vmatmul.mubr.bf16.gmra.mxu0 %v1692
  %v1897 = vpop.f32.mrf.mxu0
  %v1898 = vadd.f32 %v1845, %v1897
  %v1899 = vpop.f32.mrf.mxu0
  %v1900 = vadd.f32 %v1847, %v1899
  %v1901 = vpop.f32.mrf.mxu0
  %v1902 = vadd.f32 %v1849, %v1901
  %v1903 = vpop.f32.mrf.mxu0
  %v1904 = vadd.f32 %v1851, %v1903
  %1905 = vdwg.mxu0
  %s1906 = scalar_lea.vmem %s4, 64
  %v1907 = vld [vmem:[%s1906] sm:$0xff]
  %v1908 = vld [vmem:[%s1906 + $0x8] sm:$0xff]
  %v1909 = vld [vmem:[%s1906 + $0x10] sm:$0xff]
  %v1910 = vld [vmem:[%s1906 + $0x18] sm:$0xff]
  %s1911 = scalar_lea.vmem %s4, 96
  %v1912 = vld [vmem:[%s1911] sm:$0xff]
  %v1913 = vld [vmem:[%s1911 + $0x8] sm:$0xff]
  %v1914 = vld [vmem:[%s1911 + $0x10] sm:$0xff]
  %v1915 = vld [vmem:[%s1911 + $0x18] sm:$0xff]
  %v1916 = vmul.f32 %v1782, %v309
  %v1917 = vmul.f32 %v1784, %v313
  %v1918 = vmul.f32 %v1888, %v317
  %v1919 = vmul.f32 %v1890, %v321
  %v1920 = vmul.f32 %v1786, %v309
  %v1921 = vmul.f32 %v1788, %v313
  %v1922 = vmul.f32 %v1892, %v317
  %v1923 = vmul.f32 %v1894, %v321
  %v1924 = vmul.f32 %v1792, %v309
  %v1925 = vmul.f32 %v1794, %v313
  %v1926 = vmul.f32 %v1898, %v317
  %v1927 = vmul.f32 %v1900, %v321
  %v1928 = vmul.f32 %v1796, %v309
  %v1929 = vmul.f32 %v1798, %v313
  %v1930 = vmul.f32 %v1902, %v317
  %v1931 = vmul.f32 %v1904, %v321
  %v1932 = vadd.f32 %v1916, %v1917
  %v1933 = vadd.f32 %v1932, %v1918
  %v1934 = vsel %vm344, %v1919, 0.0
  %v1935 = vadd.f32 %v1933, %v1934
  %1936 = vadd.xlane.f32.xlu0 %v1935
  %v1937 = vpop.xlane.xlu0 %1936
  %v1938 = vadd.f32 %v1920, %v1921
  %v1939 = vadd.f32 %v1938, %v1922
  %v1940 = vsel %vm344, %v1923, 0.0
  %v1941 = vadd.f32 %v1939, %v1940
  %1942 = vadd.xlane.f32.xlu0 %v1941
  %v1943 = vpop.xlane.xlu0 %1942
  %v1944 = vadd.f32 %v1924, %v1925
  %v1945 = vadd.f32 %v1944, %v1926
  %v1946 = vsel %vm344, %v1927, 0.0
  %v1947 = vadd.f32 %v1945, %v1946
  %1948 = vadd.xlane.f32.xlu0 %v1947
  %v1949 = vpop.xlane.xlu0 %1948
  %v1950 = vadd.f32 %v1928, %v1929
  %v1951 = vadd.f32 %v1950, %v1930
  %v1952 = vsel %vm344, %v1931, 0.0
  %v1953 = vadd.f32 %v1951, %v1952
  %1954 = vadd.xlane.f32.xlu0 %v1953
  %v1955 = vpop.xlane.xlu0 %1954
  %v1956 = vmul.f32 %v1937, 0.0030864198
  %v1957 = vmul.f32 %v1943, 0.0030864198
  %v1958 = vmul.f32 %v1949, 0.0030864198
  %v1959 = vmul.f32 %v1955, 0.0030864198
  %v1960 = vmul.f32 %v1916, %v1782
  %v1961 = vmul.f32 %v1917, %v1784
  %v1962 = vmul.f32 %v1918, %v1888
  %v1963 = vmul.f32 %v1919, %v1890
  %v1964 = vmul.f32 %v1920, %v1786
  %v1965 = vmul.f32 %v1921, %v1788
  %v1966 = vmul.f32 %v1922, %v1892
  %v1967 = vmul.f32 %v1923, %v1894
  %v1968 = vmul.f32 %v1924, %v1792
  %v1969 = vmul.f32 %v1925, %v1794
  %v1970 = vmul.f32 %v1926, %v1898
  %v1971 = vmul.f32 %v1927, %v1900
  %v1972 = vmul.f32 %v1928, %v1796
  %v1973 = vmul.f32 %v1929, %v1798
  %v1974 = vmul.f32 %v1930, %v1902
  %v1975 = vmul.f32 %v1931, %v1904
  %v1976 = vadd.f32 %v1960, %v1961
  %v1977 = vadd.f32 %v1976, %v1962
  %v1978 = vsel %vm344, %v1963, 0.0
  %v1979 = vadd.f32 %v1977, %v1978
  %1980 = vadd.xlane.f32.xlu0 %v1979
  %v1981 = vpop.xlane.xlu0 %1980
  %v1982 = vadd.f32 %v1964, %v1965
  %v1983 = vadd.f32 %v1982, %v1966
  %v1984 = vsel %vm344, %v1967, 0.0
  %v1985 = vadd.f32 %v1983, %v1984
  %1986 = vadd.xlane.f32.xlu0 %v1985
  %v1987 = vpop.xlane.xlu0 %1986
  %v1988 = vadd.f32 %v1968, %v1969
  %v1989 = vadd.f32 %v1988, %v1970
  %v1990 = vsel %vm344, %v1971, 0.0
  %v1991 = vadd.f32 %v1989, %v1990
  %1992 = vadd.xlane.f32.xlu0 %v1991
  %v1993 = vpop.xlane.xlu0 %1992
  %v1994 = vadd.f32 %v1972, %v1973
  %v1995 = vadd.f32 %v1994, %v1974
  %v1996 = vsel %vm344, %v1975, 0.0
  %v1997 = vadd.f32 %v1995, %v1996
  %1998 = vadd.xlane.f32.xlu0 %v1997
  %v1999 = vpop.xlane.xlu0 %1998
  %v2000 = vmul.f32 %v1981, 0.0030864198
  %v2001 = vmul.f32 %v1987, 0.0030864198
  %v2002 = vmul.f32 %v1993, 0.0030864198
  %v2003 = vmul.f32 %v1999, 0.0030864198
  %v2004 = vmul.f32 %v1956, %v1956
  %v2005 = vmul.f32 %v1957, %v1957
  %v2006 = vmul.f32 %v1958, %v1958
  %v2007 = vmul.f32 %v1959, %v1959
  %v2008 = vsub.f32 %v2000, %v2004
  %v2009 = vsub.f32 %v2001, %v2005
  %v2010 = vsub.f32 %v2002, %v2006
  %v2011 = vsub.f32 %v2003, %v2007
  %v2012 = vadd.f32 %v2008, 1e-05
  %v2013 = vadd.f32 %v2009, 1e-05
  %v2014 = vadd.f32 %v2010, 1e-05
  %v2015 = vadd.f32 %v2011, 1e-05
  %v2016 = vrsqrt.pop %v2012
  %v2017 = vrsqrt.pop %v2013
  %v2018 = vrsqrt.pop %v2014
  %v2019 = vrsqrt.pop %v2015
  %v2020 = vmul.f32 %v1907, %v2016
  %v2021 = vmul.f32 %v1908, %v2017
  %v2022 = vmul.f32 %v1909, %v2018
  %v2023 = vmul.f32 %v1910, %v2019
  %v2024 = vmul.f32 %v1956, %v2020
  %v2025 = vmul.f32 %v1957, %v2021
  %v2026 = vmul.f32 %v1958, %v2022
  %v2027 = vmul.f32 %v1959, %v2023
  %v2028 = vsub.f32 %v1912, %v2024
  %v2029 = vsub.f32 %v1913, %v2025
  %v2030 = vsub.f32 %v1914, %v2026
  %v2031 = vsub.f32 %v1915, %v2027
  %2033 = vset.pattern.permute.xlu0 0
  %2034 = vperm.xlu0 %2033, %v2020
  %v2035 = vpop.permute.xlu0 %2034
  %2038 = vset.pattern.permute.xlu0 0
  %2039 = vperm.xlu0 %2038, %v2021
  %v2040 = vpop.permute.xlu0 %2039
  %2043 = vset.pattern.permute.xlu0 0
  %2044 = vperm.xlu0 %2043, %v2022
  %v2045 = vpop.permute.xlu0 %2044
  %2048 = vset.pattern.permute.xlu0 0
  %2049 = vperm.xlu0 %2048, %v2023
  %v2050 = vpop.permute.xlu0 %2049
  %v2052 = vmul.f32 %v1782, %v2035
  %v2053 = vmul.f32 %v1784, %v2035
  %v2054 = vmul.f32 %v1888, %v2035
  %v2055 = vmul.f32 %v1890, %v2035
  %v2056 = vmul.f32 %v1786, %v2040
  %v2057 = vmul.f32 %v1788, %v2040
  %v2058 = vmul.f32 %v1892, %v2040
  %v2059 = vmul.f32 %v1894, %v2040
  %v2060 = vmul.f32 %v1792, %v2045
  %v2061 = vmul.f32 %v1794, %v2045
  %v2062 = vmul.f32 %v1898, %v2045
  %v2063 = vmul.f32 %v1900, %v2045
  %v2064 = vmul.f32 %v1796, %v2050
  %v2065 = vmul.f32 %v1798, %v2050
  %v2066 = vmul.f32 %v1902, %v2050
  %v2067 = vmul.f32 %v1904, %v2050
  %2069 = vset.pattern.permute.xlu0 0
  %2070 = vperm.xlu0 %2069, %v2028
  %v2071 = vpop.permute.xlu0 %2070
  %2074 = vset.pattern.permute.xlu0 0
  %2075 = vperm.xlu0 %2074, %v2029
  %v2076 = vpop.permute.xlu0 %2075
  %2079 = vset.pattern.permute.xlu0 0
  %2080 = vperm.xlu0 %2079, %v2030
  %v2081 = vpop.permute.xlu0 %2080
  %2084 = vset.pattern.permute.xlu0 0
  %2085 = vperm.xlu0 %2084, %v2031
  %v2086 = vpop.permute.xlu0 %2085
  %v2088 = vadd.f32 %v2052, %v2071
  %v2089 = vadd.f32 %v2053, %v2071
  %v2090 = vadd.f32 %v2054, %v2071
  %v2091 = vadd.f32 %v2055, %v2071
  %v2092 = vadd.f32 %v2056, %v2076
  %v2093 = vadd.f32 %v2057, %v2076
  %v2094 = vadd.f32 %v2058, %v2076
  %v2095 = vadd.f32 %v2059, %v2076
  %v2096 = vadd.f32 %v2060, %v2081
  %v2097 = vadd.f32 %v2061, %v2081
  %v2098 = vadd.f32 %v2062, %v2081
  %v2099 = vadd.f32 %v2063, %v2081
  %v2100 = vadd.f32 %v2064, %v2086
  %v2101 = vadd.f32 %v2065, %v2086
  %v2102 = vadd.f32 %v2066, %v2086
  %v2103 = vadd.f32 %v2067, %v2086
  %v2104 = vmax.f32 %v2088, 0.0
  %v2105 = vmax.f32 %v2089, 0.0
  %v2106 = vmax.f32 %v2090, 0.0
  %v2107 = vmax.f32 %v2091, 0.0
  %v2108 = vmax.f32 %v2092, 0.0
  %v2109 = vmax.f32 %v2093, 0.0
  %v2110 = vmax.f32 %v2094, 0.0
  %v2111 = vmax.f32 %v2095, 0.0
  %v2112 = vmax.f32 %v2096, 0.0
  %v2113 = vmax.f32 %v2097, 0.0
  %v2114 = vmax.f32 %v2098, 0.0
  %v2115 = vmax.f32 %v2099, 0.0
  %v2116 = vmax.f32 %v2100, 0.0
  %v2117 = vmax.f32 %v2101, 0.0
  %v2118 = vmax.f32 %v2102, 0.0
  %v2119 = vmax.f32 %v2103, 0.0
  %v2120 = vmul.f32 %v2104, %v309
  %v2121 = vmul.f32 %v2105, %v313
  %v2122 = vmul.f32 %v2106, %v317
  %v2123 = vmul.f32 %v2107, %v321
  %v2124 = vmul.f32 %v2108, %v309
  %v2125 = vmul.f32 %v2109, %v313
  %v2126 = vmul.f32 %v2110, %v317
  %v2127 = vmul.f32 %v2111, %v321
  %v2128 = vmul.f32 %v2112, %v309
  %v2129 = vmul.f32 %v2113, %v313
  %v2130 = vmul.f32 %v2114, %v317
  %v2131 = vmul.f32 %v2115, %v321
  %v2132 = vmul.f32 %v2116, %v309
  %v2133 = vmul.f32 %v2117, %v313
  %v2134 = vmul.f32 %v2118, %v317
  %v2135 = vmul.f32 %v2119, %v321
  %v2136 = vpack.c.bf16 %v2124, %v2120
  %v2137 = vpack.c.bf16 %v2125, %v2121
  %v2138 = vpack.c.bf16 %v2126, %v2122
  %v2139 = vpack.c.bf16 %v2127, %v2123
  %v2140 = vpack.c.bf16 %v2132, %v2128
  %v2141 = vpack.c.bf16 %v2133, %v2129
  %v2142 = vpack.c.bf16 %v2134, %v2130
  %v2143 = vpack.c.bf16 %v2135, %v2131
  %v2152 = vunpack.c.l.b16 %v2136
  %v2153 = vunpack.c.l.b16 %v2137
  %v2154 = vunpack.c.l.b16 %v2138
  %v2155 = vunpack.c.l.b16 %v2139
  %v2156 = vunpack.c.h.b16 %v2136
  %v2157 = vunpack.c.h.b16 %v2137
  %v2158 = vunpack.c.h.b16 %v2138
  %v2159 = vunpack.c.h.b16 %v2139
  %v2160 = vunpack.c.l.b16 %v2140
  %v2161 = vunpack.c.l.b16 %v2141
  %v2162 = vunpack.c.l.b16 %v2142
  %v2163 = vunpack.c.l.b16 %v2143
  %v2164 = vunpack.c.h.b16 %v2140
  %v2165 = vunpack.c.h.b16 %v2141
  %v2166 = vunpack.c.h.b16 %v2142
  %v2167 = vunpack.c.h.b16 %v2143
  %v2168 = vpack.c.b16 %v2153, %v2152
  %v2169 = vpack.c.b16 %v2155, %v2154
  %v2170 = vpack.c.b16 %v2157, %v2156
  %v2171 = vpack.c.b16 %v2159, %v2158
  %v2172 = vpack.c.b16 %v2161, %v2160
  %v2173 = vpack.c.b16 %v2163, %v2162
  %v2174 = vpack.c.b16 %v2165, %v2164
  %v2175 = vpack.c.b16 %v2167, %v2166
  %2176 = vrot.lane.b32.xlu0 %v2168, 21
  %v2177 = vpop.permute.xlu0 %2176
  %2178 = vrot.lane.b32.xlu0 %v2169, 21
  %v2179 = vpop.permute.xlu0 %2178
  %2180 = vrot.lane.b32.xlu0 %v2170, 21
  %v2181 = vpop.permute.xlu0 %2180
  %2182 = vrot.lane.b32.xlu0 %v2171, 21
  %v2183 = vpop.permute.xlu0 %2182
  %2184 = vrot.lane.b32.xlu0 %v2172, 21
  %v2185 = vpop.permute.xlu0 %2184
  %2186 = vrot.lane.b32.xlu0 %v2173, 21
  %v2187 = vpop.permute.xlu0 %2186
  %2188 = vrot.lane.b32.xlu0 %v2174, 21
  %v2189 = vpop.permute.xlu0 %2188
  %2190 = vrot.lane.b32.xlu0 %v2175, 21
  %v2191 = vpop.permute.xlu0 %2190
  %v2192 = vrot.slane %v2177, 4
  %v2193 = vrot.slane %v2179, 4
  %v2194 = vrot.slane %v2181, 4
  %v2195 = vrot.slane %v2183, 4
  %v2196 = vrot.slane %v2185, 4
  %v2197 = vrot.slane %v2187, 4
  %v2198 = vrot.slane %v2189, 4
  %v2199 = vrot.slane %v2191, 4
  %v2200 = vsel %vm611, %v2192, %v2177
  %v2201 = vsel %vm613, %v2192, %v2193
  %v2202 = vsel %vm611, %v2201, %v2179
  %v2203 = vsel %vm611, %v2194, %v2181
  %v2204 = vsel %vm613, %v2194, %v2195
  %v2205 = vsel %vm611, %v2204, %v2183
  %v2206 = vsel %vm611, %v2196, %v2185
  %v2207 = vsel %vm613, %v2196, %v2197
  %v2208 = vsel %vm611, %v2207, %v2187
  %v2209 = vsel %vm611, %v2198, %v2189
  %v2210 = vsel %vm613, %v2198, %v2199
  %v2211 = vsel %vm611, %v2210, %v2191
  %2220 = vst.msk [vmem:[#allocation3] sm:$0xff] %vm635, %v2200
  %2221 = vst.msk [vmem:[#allocation3 + $0x8] sm:$0xff] %vm639, %v2202
  %2222 = vst.msk [vmem:[#allocation3 + $0x10] sm:$0xff] %vm635, %v2203
  %2223 = vst.msk [vmem:[#allocation3 + $0x18] sm:$0xff] %vm639, %v2205
  %2224 = vst.msk [vmem:[#allocation3 + $0x20] sm:$0xff] %vm635, %v2206
  %2225 = vst.msk [vmem:[#allocation3 + $0x28] sm:$0xff] %vm639, %v2208
  %2226 = vst.msk [vmem:[#allocation3 + $0x30] sm:$0xff] %vm635, %v2209
  %2227 = vst.msk [vmem:[#allocation3 + $0x38] sm:$0xff] %vm639, %v2211
  %v2228 = vld [vmem:[#allocation3] sm:$0xff]
  %v2229 = vld [vmem:[#allocation3 + $0x8] sm:$0xff]
  %v2230 = vld [vmem:[#allocation3 + $0x10] sm:$0xff]
  %v2231 = vld [vmem:[#allocation3 + $0x18] sm:$0xff]
  %v2232 = vld [vmem:[#allocation3 + $0x20] sm:$0xff]
  %v2233 = vld [vmem:[#allocation3 + $0x28] sm:$0xff]
  %v2234 = vld [vmem:[#allocation3 + $0x30] sm:$0xff]
  %v2235 = vld [vmem:[#allocation3 + $0x38] sm:$0xff]
  %2236 = vst [vmem:[#allocation4] sm:$0xff] %v2228
  %2237 = vst.msk [vmem:[#allocation4 + $0x8] sm:$0xff] %vm657, %v2229
  %2238 = vst [vmem:[#allocation4 + $0x10] sm:$0xff] %v2230
  %2239 = vst.msk [vmem:[#allocation4 + $0x18] sm:$0xff] %vm657, %v2231
  %2240 = vst [vmem:[#allocation4 + $0x20] sm:$0xff] %v2232
  %2241 = vst.msk [vmem:[#allocation4 + $0x28] sm:$0xff] %vm657, %v2233
  %2242 = vst [vmem:[#allocation4 + $0x30] sm:$0xff] %v2234
  %2243 = vst.msk [vmem:[#allocation4 + $0x38] sm:$0xff] %vm657, %v2235
  %v2244 = vld [vmem:[#allocation3] sm:$0xff]
  %v2245 = vld [vmem:[#allocation3 + $0x8] sm:$0xff]
  %v2246 = vld [vmem:[#allocation3 + $0x10] sm:$0xff]
  %v2247 = vld [vmem:[#allocation3 + $0x18] sm:$0xff]
  %v2248 = vld [vmem:[#allocation3 + $0x20] sm:$0xff]
  %v2249 = vld [vmem:[#allocation3 + $0x28] sm:$0xff]
  %v2250 = vld [vmem:[#allocation3 + $0x30] sm:$0xff]
  %v2251 = vld [vmem:[#allocation3 + $0x38] sm:$0xff]
  %2260 = vrot.lane.b32.xlu0 %v2244, 127
  %v2261 = vpop.permute.xlu0 %2260
  %2262 = vrot.lane.b32.xlu0 %v2245, 127
  %v2263 = vpop.permute.xlu0 %2262
  %2264 = vrot.lane.b32.xlu0 %v2246, 127
  %v2265 = vpop.permute.xlu0 %2264
  %2266 = vrot.lane.b32.xlu0 %v2247, 127
  %v2267 = vpop.permute.xlu0 %2266
  %2268 = vrot.lane.b32.xlu0 %v2248, 127
  %v2269 = vpop.permute.xlu0 %2268
  %2270 = vrot.lane.b32.xlu0 %v2249, 127
  %v2271 = vpop.permute.xlu0 %2270
  %2272 = vrot.lane.b32.xlu0 %v2250, 127
  %v2273 = vpop.permute.xlu0 %2272
  %2274 = vrot.lane.b32.xlu0 %v2251, 127
  %v2275 = vpop.permute.xlu0 %2274
  %v2276 = vrot.slane %v2261, 4
  %v2277 = vrot.slane %v2263, 4
  %v2278 = vrot.slane %v2265, 4
  %v2279 = vrot.slane %v2267, 4
  %v2280 = vrot.slane %v2269, 4
  %v2281 = vrot.slane %v2271, 4
  %v2282 = vrot.slane %v2273, 4
  %v2283 = vrot.slane %v2275, 4
  %v2284 = vsel %vm613, %v2276, %v2277
  %v2285 = vsel %vm706, %v2261, %v2284
  %v2286 = vsel %vm706, %v2263, %v2277
  %v2287 = vsel %vm613, %v2278, %v2279
  %v2288 = vsel %vm706, %v2265, %v2287
  %v2289 = vsel %vm706, %v2267, %v2279
  %v2290 = vsel %vm613, %v2280, %v2281
  %v2291 = vsel %vm706, %v2269, %v2290
  %v2292 = vsel %vm706, %v2271, %v2281
  %v2293 = vsel %vm613, %v2282, %v2283
  %v2294 = vsel %vm706, %v2273, %v2293
  %v2295 = vsel %vm706, %v2275, %v2283
  %2304 = vst [vmem:[#allocation4 + $0x40] sm:$0xff] %v2285
  %2305 = vst.msk [vmem:[#allocation4 + $0x48] sm:$0xff] %vm657, %v2286
  %2306 = vst [vmem:[#allocation4 + $0x50] sm:$0xff] %v2288
  %2307 = vst.msk [vmem:[#allocation4 + $0x58] sm:$0xff] %vm657, %v2289
  %2308 = vst [vmem:[#allocation4 + $0x60] sm:$0xff] %v2291
  %2309 = vst.msk [vmem:[#allocation4 + $0x68] sm:$0xff] %vm657, %v2292
  %2310 = vst [vmem:[#allocation4 + $0x70] sm:$0xff] %v2294
  %2311 = vst.msk [vmem:[#allocation4 + $0x78] sm:$0xff] %vm657, %v2295
  %v2312 = vld [vmem:[#allocation3] sm:$0xff]
  %v2313 = vld [vmem:[#allocation3 + $0x8] sm:$0xff]
  %v2314 = vld [vmem:[#allocation3 + $0x10] sm:$0xff]
  %v2315 = vld [vmem:[#allocation3 + $0x18] sm:$0xff]
  %v2316 = vld [vmem:[#allocation3 + $0x20] sm:$0xff]
  %v2317 = vld [vmem:[#allocation3 + $0x28] sm:$0xff]
  %v2318 = vld [vmem:[#allocation3 + $0x30] sm:$0xff]
  %v2319 = vld [vmem:[#allocation3 + $0x38] sm:$0xff]
  %2328 = vrot.lane.b32.xlu0 %v2312, 126
  %v2329 = vpop.permute.xlu0 %2328
  %2330 = vrot.lane.b32.xlu0 %v2313, 126
  %v2331 = vpop.permute.xlu0 %2330
  %2332 = vrot.lane.b32.xlu0 %v2314, 126
  %v2333 = vpop.permute.xlu0 %2332
  %2334 = vrot.lane.b32.xlu0 %v2315, 126
  %v2335 = vpop.permute.xlu0 %2334
  %2336 = vrot.lane.b32.xlu0 %v2316, 126
  %v2337 = vpop.permute.xlu0 %2336
  %2338 = vrot.lane.b32.xlu0 %v2317, 126
  %v2339 = vpop.permute.xlu0 %2338
  %2340 = vrot.lane.b32.xlu0 %v2318, 126
  %v2341 = vpop.permute.xlu0 %2340
  %2342 = vrot.lane.b32.xlu0 %v2319, 126
  %v2343 = vpop.permute.xlu0 %2342
  %v2344 = vrot.slane %v2329, 4
  %v2345 = vrot.slane %v2331, 4
  %v2346 = vrot.slane %v2333, 4
  %v2347 = vrot.slane %v2335, 4
  %v2348 = vrot.slane %v2337, 4
  %v2349 = vrot.slane %v2339, 4
  %v2350 = vrot.slane %v2341, 4
  %v2351 = vrot.slane %v2343, 4
  %v2352 = vsel %vm613, %v2344, %v2345
  %v2353 = vsel %vm775, %v2329, %v2352
  %v2354 = vsel %vm775, %v2331, %v2345
  %v2355 = vsel %vm613, %v2346, %v2347
  %v2356 = vsel %vm775, %v2333, %v2355
  %v2357 = vsel %vm775, %v2335, %v2347
  %v2358 = vsel %vm613, %v2348, %v2349
  %v2359 = vsel %vm775, %v2337, %v2358
  %v2360 = vsel %vm775, %v2339, %v2349
  %v2361 = vsel %vm613, %v2350, %v2351
  %v2362 = vsel %vm775, %v2341, %v2361
  %v2363 = vsel %vm775, %v2343, %v2351
  %2372 = vst [vmem:[#allocation4 + $0x80] sm:$0xff] %v2353
  %2373 = vst.msk [vmem:[#allocation4 + $0x88] sm:$0xff] %vm657, %v2354
  %2374 = vst [vmem:[#allocation4 + $0x90] sm:$0xff] %v2356
  %2375 = vst.msk [vmem:[#allocation4 + $0x98] sm:$0xff] %vm657, %v2357
  %2376 = vst [vmem:[#allocation4 + $0xa0] sm:$0xff] %v2359
  %2377 = vst.msk [vmem:[#allocation4 + $0xa8] sm:$0xff] %vm657, %v2360
  %2378 = vst [vmem:[#allocation4 + $0xb0] sm:$0xff] %v2362
  %2379 = vst.msk [vmem:[#allocation4 + $0xb8] sm:$0xff] %vm657, %v2363
  %v2380 = vld [vmem:[#allocation3] sm:$0xff]
  %v2381 = vld [vmem:[#allocation3 + $0x8] sm:$0xff]
  %v2382 = vld [vmem:[#allocation3 + $0x10] sm:$0xff]
  %v2383 = vld [vmem:[#allocation3 + $0x18] sm:$0xff]
  %v2384 = vld [vmem:[#allocation3 + $0x20] sm:$0xff]
  %v2385 = vld [vmem:[#allocation3 + $0x28] sm:$0xff]
  %v2386 = vld [vmem:[#allocation3 + $0x30] sm:$0xff]
  %v2387 = vld [vmem:[#allocation3 + $0x38] sm:$0xff]
  %2396 = vrot.lane.b32.xlu0 %v2380, 108
  %v2397 = vpop.permute.xlu0 %2396
  %2398 = vrot.lane.b32.xlu0 %v2381, 108
  %v2399 = vpop.permute.xlu0 %2398
  %2400 = vrot.lane.b32.xlu0 %v2382, 108
  %v2401 = vpop.permute.xlu0 %2400
  %2402 = vrot.lane.b32.xlu0 %v2383, 108
  %v2403 = vpop.permute.xlu0 %2402
  %2404 = vrot.lane.b32.xlu0 %v2384, 108
  %v2405 = vpop.permute.xlu0 %2404
  %2406 = vrot.lane.b32.xlu0 %v2385, 108
  %v2407 = vpop.permute.xlu0 %2406
  %2408 = vrot.lane.b32.xlu0 %v2386, 108
  %v2409 = vpop.permute.xlu0 %2408
  %2410 = vrot.lane.b32.xlu0 %v2387, 108
  %v2411 = vpop.permute.xlu0 %2410
  %v2412 = vrot.slane %v2397, 4
  %v2413 = vrot.slane %v2399, 4
  %v2414 = vrot.slane %v2401, 4
  %v2415 = vrot.slane %v2403, 4
  %v2416 = vrot.slane %v2405, 4
  %v2417 = vrot.slane %v2407, 4
  %v2418 = vrot.slane %v2409, 4
  %v2419 = vrot.slane %v2411, 4
  %v2420 = vsel %vm613, %v2412, %v2413
  %v2421 = vsel %vm844, %v2397, %v2420
  %v2422 = vsel %vm844, %v2399, %v2413
  %v2423 = vsel %vm613, %v2414, %v2415
  %v2424 = vsel %vm844, %v2401, %v2423
  %v2425 = vsel %vm844, %v2403, %v2415
  %v2426 = vsel %vm613, %v2416, %v2417
  %v2427 = vsel %vm844, %v2405, %v2426
  %v2428 = vsel %vm844, %v2407, %v2417
  %v2429 = vsel %vm613, %v2418, %v2419
  %v2430 = vsel %vm844, %v2409, %v2429
  %v2431 = vsel %vm844, %v2411, %v2419
  %2440 = vst [vmem:[#allocation4 + $0xc0] sm:$0xff] %v2421
  %2441 = vst.msk [vmem:[#allocation4 + $0xc8] sm:$0xff] %vm657, %v2422
  %2442 = vst [vmem:[#allocation4 + $0xd0] sm:$0xff] %v2424
  %2443 = vst.msk [vmem:[#allocation4 + $0xd8] sm:$0xff] %vm657, %v2425
  %2444 = vst [vmem:[#allocation4 + $0xe0] sm:$0xff] %v2427
  %2445 = vst.msk [vmem:[#allocation4 + $0xe8] sm:$0xff] %vm657, %v2428
  %2446 = vst [vmem:[#allocation4 + $0xf0] sm:$0xff] %v2430
  %2447 = vst.msk [vmem:[#allocation4 + $0xf8] sm:$0xff] %vm657, %v2431
  %v2448 = vld [vmem:[#allocation3] sm:$0xff]
  %v2449 = vld [vmem:[#allocation3 + $0x8] sm:$0xff]
  %v2450 = vld [vmem:[#allocation3 + $0x10] sm:$0xff]
  %v2451 = vld [vmem:[#allocation3 + $0x18] sm:$0xff]
  %v2452 = vld [vmem:[#allocation3 + $0x20] sm:$0xff]
  %v2453 = vld [vmem:[#allocation3 + $0x28] sm:$0xff]
  %v2454 = vld [vmem:[#allocation3 + $0x30] sm:$0xff]
  %v2455 = vld [vmem:[#allocation3 + $0x38] sm:$0xff]
  %2464 = vrot.lane.b32.xlu0 %v2448, 107
  %v2465 = vpop.permute.xlu0 %2464
  %2466 = vrot.lane.b32.xlu0 %v2449, 107
  %v2467 = vpop.permute.xlu0 %2466
  %2468 = vrot.lane.b32.xlu0 %v2450, 107
  %v2469 = vpop.permute.xlu0 %2468
  %2470 = vrot.lane.b32.xlu0 %v2451, 107
  %v2471 = vpop.permute.xlu0 %2470
  %2472 = vrot.lane.b32.xlu0 %v2452, 107
  %v2473 = vpop.permute.xlu0 %2472
  %2474 = vrot.lane.b32.xlu0 %v2453, 107
  %v2475 = vpop.permute.xlu0 %2474
  %2476 = vrot.lane.b32.xlu0 %v2454, 107
  %v2477 = vpop.permute.xlu0 %2476
  %2478 = vrot.lane.b32.xlu0 %v2455, 107
  %v2479 = vpop.permute.xlu0 %2478
  %v2480 = vrot.slane %v2465, 4
  %v2481 = vrot.slane %v2467, 4
  %v2482 = vrot.slane %v2469, 4
  %v2483 = vrot.slane %v2471, 4
  %v2484 = vrot.slane %v2473, 4
  %v2485 = vrot.slane %v2475, 4
  %v2486 = vrot.slane %v2477, 4
  %v2487 = vrot.slane %v2479, 4
  %v2488 = vsel %vm613, %v2480, %v2481
  %v2489 = vsel %vm913, %v2465, %v2488
  %v2490 = vsel %vm913, %v2467, %v2481
  %v2491 = vsel %vm613, %v2482, %v2483
  %v2492 = vsel %vm913, %v2469, %v2491
  %v2493 = vsel %vm913, %v2471, %v2483
  %v2494 = vsel %vm613, %v2484, %v2485
  %v2495 = vsel %vm913, %v2473, %v2494
  %v2496 = vsel %vm913, %v2475, %v2485
  %v2497 = vsel %vm613, %v2486, %v2487
  %v2498 = vsel %vm913, %v2477, %v2497
  %v2499 = vsel %vm913, %v2479, %v2487
  %2508 = vst [vmem:[#allocation4 + $0x100] sm:$0xff] %v2489
  %2509 = vst.msk [vmem:[#allocation4 + $0x108] sm:$0xff] %vm657, %v2490
  %2510 = vst [vmem:[#allocation4 + $0x110] sm:$0xff] %v2492
  %2511 = vst.msk [vmem:[#allocation4 + $0x118] sm:$0xff] %vm657, %v2493
  %2512 = vst [vmem:[#allocation4 + $0x120] sm:$0xff] %v2495
  %2513 = vst.msk [vmem:[#allocation4 + $0x128] sm:$0xff] %vm657, %v2496
  %2514 = vst [vmem:[#allocation4 + $0x130] sm:$0xff] %v2498
  %2515 = vst.msk [vmem:[#allocation4 + $0x138] sm:$0xff] %vm657, %v2499
  %v2516 = vld [vmem:[#allocation3] sm:$0xff]
  %v2517 = vld [vmem:[#allocation3 + $0x8] sm:$0xff]
  %v2518 = vld [vmem:[#allocation3 + $0x10] sm:$0xff]
  %v2519 = vld [vmem:[#allocation3 + $0x18] sm:$0xff]
  %v2520 = vld [vmem:[#allocation3 + $0x20] sm:$0xff]
  %v2521 = vld [vmem:[#allocation3 + $0x28] sm:$0xff]
  %v2522 = vld [vmem:[#allocation3 + $0x30] sm:$0xff]
  %v2523 = vld [vmem:[#allocation3 + $0x38] sm:$0xff]
  %2532 = vrot.lane.b32.xlu0 %v2516, 106
  %v2533 = vpop.permute.xlu0 %2532
  %2534 = vrot.lane.b32.xlu0 %v2517, 106
  %v2535 = vpop.permute.xlu0 %2534
  %2536 = vrot.lane.b32.xlu0 %v2518, 106
  %v2537 = vpop.permute.xlu0 %2536
  %2538 = vrot.lane.b32.xlu0 %v2519, 106
  %v2539 = vpop.permute.xlu0 %2538
  %2540 = vrot.lane.b32.xlu0 %v2520, 106
  %v2541 = vpop.permute.xlu0 %2540
  %2542 = vrot.lane.b32.xlu0 %v2521, 106
  %v2543 = vpop.permute.xlu0 %2542
  %2544 = vrot.lane.b32.xlu0 %v2522, 106
  %v2545 = vpop.permute.xlu0 %2544
  %2546 = vrot.lane.b32.xlu0 %v2523, 106
  %v2547 = vpop.permute.xlu0 %2546
  %v2548 = vrot.slane %v2533, 4
  %v2549 = vrot.slane %v2535, 4
  %v2550 = vrot.slane %v2537, 4
  %v2551 = vrot.slane %v2539, 4
  %v2552 = vrot.slane %v2541, 4
  %v2553 = vrot.slane %v2543, 4
  %v2554 = vrot.slane %v2545, 4
  %v2555 = vrot.slane %v2547, 4
  %v2556 = vsel %vm613, %v2548, %v2549
  %v2557 = vsel %vm982, %v2533, %v2556
  %v2558 = vsel %vm982, %v2535, %v2549
  %v2559 = vsel %vm613, %v2550, %v2551
  %v2560 = vsel %vm982, %v2537, %v2559
  %v2561 = vsel %vm982, %v2539, %v2551
  %v2562 = vsel %vm613, %v2552, %v2553
  %v2563 = vsel %vm982, %v2541, %v2562
  %v2564 = vsel %vm982, %v2543, %v2553
  %v2565 = vsel %vm613, %v2554, %v2555
  %v2566 = vsel %vm982, %v2545, %v2565
  %v2567 = vsel %vm982, %v2547, %v2555
  %2576 = vst [vmem:[#allocation4 + $0x140] sm:$0xff] %v2557
  %2577 = vst.msk [vmem:[#allocation4 + $0x148] sm:$0xff] %vm657, %v2558
  %2578 = vst [vmem:[#allocation4 + $0x150] sm:$0xff] %v2560
  %2579 = vst.msk [vmem:[#allocation4 + $0x158] sm:$0xff] %vm657, %v2561
  %2580 = vst [vmem:[#allocation4 + $0x160] sm:$0xff] %v2563
  %2581 = vst.msk [vmem:[#allocation4 + $0x168] sm:$0xff] %vm657, %v2564
  %2582 = vst [vmem:[#allocation4 + $0x170] sm:$0xff] %v2566
  %2583 = vst.msk [vmem:[#allocation4 + $0x178] sm:$0xff] %vm657, %v2567
  %v2584 = vld [vmem:[#allocation3] sm:$0xff]
  %v2585 = vld [vmem:[#allocation3 + $0x8] sm:$0xff]
  %v2586 = vld [vmem:[#allocation3 + $0x10] sm:$0xff]
  %v2587 = vld [vmem:[#allocation3 + $0x18] sm:$0xff]
  %v2588 = vld [vmem:[#allocation3 + $0x20] sm:$0xff]
  %v2589 = vld [vmem:[#allocation3 + $0x28] sm:$0xff]
  %v2590 = vld [vmem:[#allocation3 + $0x30] sm:$0xff]
  %v2591 = vld [vmem:[#allocation3 + $0x38] sm:$0xff]
  %2600 = vrot.lane.b32.xlu0 %v2584, 88
  %v2601 = vpop.permute.xlu0 %2600
  %2602 = vrot.lane.b32.xlu0 %v2585, 88
  %v2603 = vpop.permute.xlu0 %2602
  %2604 = vrot.lane.b32.xlu0 %v2586, 88
  %v2605 = vpop.permute.xlu0 %2604
  %2606 = vrot.lane.b32.xlu0 %v2587, 88
  %v2607 = vpop.permute.xlu0 %2606
  %2608 = vrot.lane.b32.xlu0 %v2588, 88
  %v2609 = vpop.permute.xlu0 %2608
  %2610 = vrot.lane.b32.xlu0 %v2589, 88
  %v2611 = vpop.permute.xlu0 %2610
  %2612 = vrot.lane.b32.xlu0 %v2590, 88
  %v2613 = vpop.permute.xlu0 %2612
  %2614 = vrot.lane.b32.xlu0 %v2591, 88
  %v2615 = vpop.permute.xlu0 %2614
  %v2616 = vrot.slane %v2601, 4
  %v2617 = vrot.slane %v2603, 4
  %v2618 = vrot.slane %v2605, 4
  %v2619 = vrot.slane %v2607, 4
  %v2620 = vrot.slane %v2609, 4
  %v2621 = vrot.slane %v2611, 4
  %v2622 = vrot.slane %v2613, 4
  %v2623 = vrot.slane %v2615, 4
  %v2624 = vsel %vm613, %v2616, %v2617
  %v2625 = vsel %vm1051, %v2601, %v2624
  %v2626 = vsel %vm1051, %v2603, %v2617
  %v2627 = vsel %vm613, %v2618, %v2619
  %v2628 = vsel %vm1051, %v2605, %v2627
  %v2629 = vsel %vm1051, %v2607, %v2619
  %v2630 = vsel %vm613, %v2620, %v2621
  %v2631 = vsel %vm1051, %v2609, %v2630
  %v2632 = vsel %vm1051, %v2611, %v2621
  %v2633 = vsel %vm613, %v2622, %v2623
  %v2634 = vsel %vm1051, %v2613, %v2633
  %v2635 = vsel %vm1051, %v2615, %v2623
  %2644 = vst [vmem:[#allocation4 + $0x180] sm:$0xff] %v2625
  %2645 = vst.msk [vmem:[#allocation4 + $0x188] sm:$0xff] %vm657, %v2626
  %2646 = vst [vmem:[#allocation4 + $0x190] sm:$0xff] %v2628
  %2647 = vst.msk [vmem:[#allocation4 + $0x198] sm:$0xff] %vm657, %v2629
  %2648 = vst [vmem:[#allocation4 + $0x1a0] sm:$0xff] %v2631
  %2649 = vst.msk [vmem:[#allocation4 + $0x1a8] sm:$0xff] %vm657, %v2632
  %2650 = vst [vmem:[#allocation4 + $0x1b0] sm:$0xff] %v2634
  %2651 = vst.msk [vmem:[#allocation4 + $0x1b8] sm:$0xff] %vm657, %v2635
  %v2652 = vld [vmem:[#allocation3] sm:$0xff]
  %v2653 = vld [vmem:[#allocation3 + $0x8] sm:$0xff]
  %v2654 = vld [vmem:[#allocation3 + $0x10] sm:$0xff]
  %v2655 = vld [vmem:[#allocation3 + $0x18] sm:$0xff]
  %v2656 = vld [vmem:[#allocation3 + $0x20] sm:$0xff]
  %v2657 = vld [vmem:[#allocation3 + $0x28] sm:$0xff]
  %v2658 = vld [vmem:[#allocation3 + $0x30] sm:$0xff]
  %v2659 = vld [vmem:[#allocation3 + $0x38] sm:$0xff]
  %2668 = vrot.lane.b32.xlu0 %v2652, 87
  %v2669 = vpop.permute.xlu0 %2668
  %2670 = vrot.lane.b32.xlu0 %v2653, 87
  %v2671 = vpop.permute.xlu0 %2670
  %2672 = vrot.lane.b32.xlu0 %v2654, 87
  %v2673 = vpop.permute.xlu0 %2672
  %2674 = vrot.lane.b32.xlu0 %v2655, 87
  %v2675 = vpop.permute.xlu0 %2674
  %2676 = vrot.lane.b32.xlu0 %v2656, 87
  %v2677 = vpop.permute.xlu0 %2676
  %2678 = vrot.lane.b32.xlu0 %v2657, 87
  %v2679 = vpop.permute.xlu0 %2678
  %2680 = vrot.lane.b32.xlu0 %v2658, 87
  %v2681 = vpop.permute.xlu0 %2680
  %2682 = vrot.lane.b32.xlu0 %v2659, 87
  %v2683 = vpop.permute.xlu0 %2682
  %v2684 = vrot.slane %v2669, 4
  %v2685 = vrot.slane %v2671, 4
  %v2686 = vrot.slane %v2673, 4
  %v2687 = vrot.slane %v2675, 4
  %v2688 = vrot.slane %v2677, 4
  %v2689 = vrot.slane %v2679, 4
  %v2690 = vrot.slane %v2681, 4
  %v2691 = vrot.slane %v2683, 4
  %v2692 = vsel %vm613, %v2684, %v2685
  %v2693 = vsel %vm1120, %v2669, %v2692
  %v2694 = vsel %vm1120, %v2671, %v2685
  %v2695 = vsel %vm613, %v2686, %v2687
  %v2696 = vsel %vm1120, %v2673, %v2695
  %v2697 = vsel %vm1120, %v2675, %v2687
  %v2698 = vsel %vm613, %v2688, %v2689
  %v2699 = vsel %vm1120, %v2677, %v2698
  %v2700 = vsel %vm1120, %v2679, %v2689
  %v2701 = vsel %vm613, %v2690, %v2691
  %v2702 = vsel %vm1120, %v2681, %v2701
  %v2703 = vsel %vm1120, %v2683, %v2691
  %2712 = vst [vmem:[#allocation4 + $0x1c0] sm:$0xff] %v2693
  %2713 = vst.msk [vmem:[#allocation4 + $0x1c8] sm:$0xff] %vm657, %v2694
  %2714 = vst [vmem:[#allocation4 + $0x1d0] sm:$0xff] %v2696
  %2715 = vst.msk [vmem:[#allocation4 + $0x1d8] sm:$0xff] %vm657, %v2697
  %2716 = vst [vmem:[#allocation4 + $0x1e0] sm:$0xff] %v2699
  %2717 = vst.msk [vmem:[#allocation4 + $0x1e8] sm:$0xff] %vm657, %v2700
  %2718 = vst [vmem:[#allocation4 + $0x1f0] sm:$0xff] %v2702
  %2719 = vst.msk [vmem:[#allocation4 + $0x1f8] sm:$0xff] %vm657, %v2703
  %v2720 = vld [vmem:[#allocation3] sm:$0xff]
  %v2721 = vld [vmem:[#allocation3 + $0x8] sm:$0xff]
  %v2722 = vld [vmem:[#allocation3 + $0x10] sm:$0xff]
  %v2723 = vld [vmem:[#allocation3 + $0x18] sm:$0xff]
  %v2724 = vld [vmem:[#allocation3 + $0x20] sm:$0xff]
  %v2725 = vld [vmem:[#allocation3 + $0x28] sm:$0xff]
  %v2726 = vld [vmem:[#allocation3 + $0x30] sm:$0xff]
  %v2727 = vld [vmem:[#allocation3 + $0x38] sm:$0xff]
  %2736 = vrot.lane.b32.xlu0 %v2720, 86
  %v2737 = vpop.permute.xlu0 %2736
  %2738 = vrot.lane.b32.xlu0 %v2721, 86
  %v2739 = vpop.permute.xlu0 %2738
  %2740 = vrot.lane.b32.xlu0 %v2722, 86
  %v2741 = vpop.permute.xlu0 %2740
  %2742 = vrot.lane.b32.xlu0 %v2723, 86
  %v2743 = vpop.permute.xlu0 %2742
  %2744 = vrot.lane.b32.xlu0 %v2724, 86
  %v2745 = vpop.permute.xlu0 %2744
  %2746 = vrot.lane.b32.xlu0 %v2725, 86
  %v2747 = vpop.permute.xlu0 %2746
  %2748 = vrot.lane.b32.xlu0 %v2726, 86
  %v2749 = vpop.permute.xlu0 %2748
  %2750 = vrot.lane.b32.xlu0 %v2727, 86
  %v2751 = vpop.permute.xlu0 %2750
  %v2752 = vrot.slane %v2737, 4
  %v2753 = vrot.slane %v2739, 4
  %v2754 = vrot.slane %v2741, 4
  %v2755 = vrot.slane %v2743, 4
  %v2756 = vrot.slane %v2745, 4
  %v2757 = vrot.slane %v2747, 4
  %v2758 = vrot.slane %v2749, 4
  %v2759 = vrot.slane %v2751, 4
  %v2760 = vsel %vm613, %v2752, %v2753
  %v2761 = vsel %vm1189, %v2737, %v2760
  %v2762 = vsel %vm1189, %v2739, %v2753
  %v2763 = vsel %vm613, %v2754, %v2755
  %v2764 = vsel %vm1189, %v2741, %v2763
  %v2765 = vsel %vm1189, %v2743, %v2755
  %v2766 = vsel %vm613, %v2756, %v2757
  %v2767 = vsel %vm1189, %v2745, %v2766
  %v2768 = vsel %vm1189, %v2747, %v2757
  %v2769 = vsel %vm613, %v2758, %v2759
  %v2770 = vsel %vm1189, %v2749, %v2769
  %v2771 = vsel %vm1189, %v2751, %v2759
  %2780 = vst [vmem:[#allocation4 + $0x200] sm:$0xff] %v2761
  %2781 = vst.msk [vmem:[#allocation4 + $0x208] sm:$0xff] %vm657, %v2762
  %2782 = vst [vmem:[#allocation4 + $0x210] sm:$0xff] %v2764
  %2783 = vst.msk [vmem:[#allocation4 + $0x218] sm:$0xff] %vm657, %v2765
  %2784 = vst [vmem:[#allocation4 + $0x220] sm:$0xff] %v2767
  %2785 = vst.msk [vmem:[#allocation4 + $0x228] sm:$0xff] %vm657, %v2768
  %2786 = vst [vmem:[#allocation4 + $0x230] sm:$0xff] %v2770
  %2787 = vst.msk [vmem:[#allocation4 + $0x238] sm:$0xff] %vm657, %v2771
  %s2788 = scalar_lea.vmem %s2, 48
  %v2789 = vld [vmem:[%s2788] sm:$0xff]
  %v2790 = vld [vmem:[%s2788 + $0x8] sm:$0xf]
  %v2791 = vld [vmem:[%s2788 + $0xc] sm:$0xff]
  %v2792 = vld [vmem:[%s2788 + $0x14] sm:$0xf]
  %v2793 = vld [vmem:[%s2788 + $0x18] sm:$0xff]
  %v2794 = vld [vmem:[%s2788 + $0x20] sm:$0xf]
  %v2795 = vld [vmem:[%s2788 + $0x24] sm:$0xff]
  %v2796 = vld [vmem:[%s2788 + $0x2c] sm:$0xf]
  %v2797 = vld [vmem:[#allocation4] sm:$0xff]
  %v2798 = vld [vmem:[#allocation4 + $0x8] sm:$0xff]
  %v2799 = vld [vmem:[#allocation4 + $0x10] sm:$0xff]
  %v2800 = vld [vmem:[#allocation4 + $0x18] sm:$0xff]
  %v2801 = vld [vmem:[#allocation4 + $0x20] sm:$0xff]
  %v2802 = vld [vmem:[#allocation4 + $0x28] sm:$0xff]
  %v2803 = vld [vmem:[#allocation4 + $0x30] sm:$0xff]
  %v2804 = vld [vmem:[#allocation4 + $0x38] sm:$0xff]
  %v2805 = vld [vmem:[#allocation4 + $0x40] sm:$0xff]
  %v2806 = vld [vmem:[#allocation4 + $0x48] sm:$0xff]
  %v2807 = vld [vmem:[#allocation4 + $0x50] sm:$0xff]
  %v2808 = vld [vmem:[#allocation4 + $0x58] sm:$0xff]
  %v2809 = vld [vmem:[#allocation4 + $0x60] sm:$0xff]
  %v2810 = vld [vmem:[#allocation4 + $0x68] sm:$0xff]
  %v2811 = vld [vmem:[#allocation4 + $0x70] sm:$0xff]
  %v2812 = vld [vmem:[#allocation4 + $0x78] sm:$0xff]
  %v2813 = vld [vmem:[#allocation4 + $0x80] sm:$0xff]
  %v2814 = vld [vmem:[#allocation4 + $0x88] sm:$0xff]
  %v2815 = vld [vmem:[#allocation4 + $0x90] sm:$0xff]
  %v2816 = vld [vmem:[#allocation4 + $0x98] sm:$0xff]
  %v2817 = vld [vmem:[#allocation4 + $0xa0] sm:$0xff]
  %v2818 = vld [vmem:[#allocation4 + $0xa8] sm:$0xff]
  %v2819 = vld [vmem:[#allocation4 + $0xb0] sm:$0xff]
  %v2820 = vld [vmem:[#allocation4 + $0xb8] sm:$0xff]
  %v2821 = vld [vmem:[#allocation4 + $0xc0] sm:$0xff]
  %v2822 = vld [vmem:[#allocation4 + $0xc8] sm:$0xff]
  %v2823 = vld [vmem:[#allocation4 + $0xd0] sm:$0xff]
  %v2824 = vld [vmem:[#allocation4 + $0xd8] sm:$0xff]
  %v2825 = vld [vmem:[#allocation4 + $0xe0] sm:$0xff]
  %v2826 = vld [vmem:[#allocation4 + $0xe8] sm:$0xff]
  %v2827 = vld [vmem:[#allocation4 + $0xf0] sm:$0xff]
  %v2828 = vld [vmem:[#allocation4 + $0xf8] sm:$0xff]
  %v2829 = vld [vmem:[#allocation4 + $0x100] sm:$0xff]
  %v2830 = vld [vmem:[#allocation4 + $0x108] sm:$0xff]
  %v2831 = vld [vmem:[#allocation4 + $0x110] sm:$0xff]
  %v2832 = vld [vmem:[#allocation4 + $0x118] sm:$0xff]
  %v2833 = vld [vmem:[#allocation4 + $0x120] sm:$0xff]
  %v2834 = vld [vmem:[#allocation4 + $0x128] sm:$0xff]
  %v2835 = vld [vmem:[#allocation4 + $0x130] sm:$0xff]
  %v2836 = vld [vmem:[#allocation4 + $0x138] sm:$0xff]
  %v2837 = vld [vmem:[#allocation4 + $0x140] sm:$0xff]
  %v2838 = vld [vmem:[#allocation4 + $0x148] sm:$0xff]
  %v2839 = vld [vmem:[#allocation4 + $0x150] sm:$0xff]
  %v2840 = vld [vmem:[#allocation4 + $0x158] sm:$0xff]
  %v2841 = vld [vmem:[#allocation4 + $0x160] sm:$0xff]
  %v2842 = vld [vmem:[#allocation4 + $0x168] sm:$0xff]
  %v2843 = vld [vmem:[#allocation4 + $0x170] sm:$0xff]
  %v2844 = vld [vmem:[#allocation4 + $0x178] sm:$0xff]
  %v2845 = vld [vmem:[#allocation4 + $0x180] sm:$0xff]
  %v2846 = vld [vmem:[#allocation4 + $0x188] sm:$0xff]
  %v2847 = vld [vmem:[#allocation4 + $0x190] sm:$0xff]
  %v2848 = vld [vmem:[#allocation4 + $0x198] sm:$0xff]
  %v2849 = vld [vmem:[#allocation4 + $0x1a0] sm:$0xff]
  %v2850 = vld [vmem:[#allocation4 + $0x1a8] sm:$0xff]
  %v2851 = vld [vmem:[#allocation4 + $0x1b0] sm:$0xff]
  %v2852 = vld [vmem:[#allocation4 + $0x1b8] sm:$0xff]
  %v2853 = vld [vmem:[#allocation4 + $0x1c0] sm:$0xff]
  %v2854 = vld [vmem:[#allocation4 + $0x1c8] sm:$0xff]
  %v2855 = vld [vmem:[#allocation4 + $0x1d0] sm:$0xff]
  %v2856 = vld [vmem:[#allocation4 + $0x1d8] sm:$0xff]
  %v2857 = vld [vmem:[#allocation4 + $0x1e0] sm:$0xff]
  %v2858 = vld [vmem:[#allocation4 + $0x1e8] sm:$0xff]
  %v2859 = vld [vmem:[#allocation4 + $0x1f0] sm:$0xff]
  %v2860 = vld [vmem:[#allocation4 + $0x1f8] sm:$0xff]
  %v2861 = vld [vmem:[#allocation4 + $0x200] sm:$0xff]
  %v2862 = vld [vmem:[#allocation4 + $0x208] sm:$0xff]
  %v2863 = vld [vmem:[#allocation4 + $0x210] sm:$0xff]
  %v2864 = vld [vmem:[#allocation4 + $0x218] sm:$0xff]
  %v2865 = vld [vmem:[#allocation4 + $0x220] sm:$0xff]
  %v2866 = vld [vmem:[#allocation4 + $0x228] sm:$0xff]
  %v2867 = vld [vmem:[#allocation4 + $0x230] sm:$0xff]
  %v2868 = vld [vmem:[#allocation4 + $0x238] sm:$0xff]
  %v2877 = vunpack.c.l.b16 %v2789
  %v2878 = vunpack.c.h.b16 %v2789
  %v2879 = vunpack.c.l.b16 %v2790
  %v2880 = vunpack.c.l.b16 %v2791
  %v2881 = vunpack.c.h.b16 %v2791
  %v2882 = vunpack.c.l.b16 %v2792
  %v2883 = vunpack.c.l.b16 %v2793
  %v2884 = vunpack.c.h.b16 %v2793
  %v2885 = vunpack.c.l.b16 %v2794
  %v2886 = vunpack.c.l.b16 %v2795
  %v2887 = vunpack.c.h.b16 %v2795
  %v2888 = vunpack.c.l.b16 %v2796
  %v2889 = vpack.c.b16 %v2880, %v2877
  %v2890 = vpack.c.b16 %v2881, %v2878
  %v2891 = vpack.c.b16 %v2882, %v2879
  %v2892 = vpack.c.b16 %v2886, %v2883
  %v2893 = vpack.c.b16 %v2887, %v2884
  %v2894 = vpack.c.b16 %v2888, %v2885
  %v2971 = vunpack.c.l.b16 %v2797
  %v2972 = vunpack.c.h.b16 %v2797
  %v2973 = vunpack.c.l.b16 %v2798
  %v2974 = vunpack.c.h.b16 %v2798
  %v2975 = vunpack.c.l.b16 %v2799
  %v2976 = vunpack.c.h.b16 %v2799
  %v2977 = vunpack.c.l.b16 %v2800
  %v2978 = vunpack.c.h.b16 %v2800
  %v2979 = vunpack.c.l.b16 %v2801
  %v2980 = vunpack.c.h.b16 %v2801
  %v2981 = vunpack.c.l.b16 %v2802
  %v2982 = vunpack.c.h.b16 %v2802
  %v2983 = vunpack.c.l.b16 %v2803
  %v2984 = vunpack.c.h.b16 %v2803
  %v2985 = vunpack.c.l.b16 %v2804
  %v2986 = vunpack.c.h.b16 %v2804
  %v2987 = vunpack.c.l.b16 %v2805
  %v2988 = vunpack.c.h.b16 %v2805
  %v2989 = vunpack.c.l.b16 %v2806
  %v2990 = vunpack.c.h.b16 %v2806
  %v2991 = vunpack.c.l.b16 %v2807
  %v2992 = vunpack.c.h.b16 %v2807
  %v2993 = vunpack.c.l.b16 %v2808
  %v2994 = vunpack.c.h.b16 %v2808
  %v2995 = vunpack.c.l.b16 %v2809
  %v2996 = vunpack.c.h.b16 %v2809
  %v2997 = vunpack.c.l.b16 %v2810
  %v2998 = vunpack.c.h.b16 %v2810
  %v2999 = vunpack.c.l.b16 %v2811
  %v3000 = vunpack.c.h.b16 %v2811
  %v3001 = vunpack.c.l.b16 %v2812
  %v3002 = vunpack.c.h.b16 %v2812
  %v3003 = vunpack.c.l.b16 %v2813
  %v3004 = vunpack.c.h.b16 %v2813
  %v3005 = vunpack.c.l.b16 %v2814
  %v3006 = vunpack.c.h.b16 %v2814
  %v3007 = vunpack.c.l.b16 %v2815
  %v3008 = vunpack.c.h.b16 %v2815
  %v3009 = vunpack.c.l.b16 %v2816
  %v3010 = vunpack.c.h.b16 %v2816
  %v3011 = vunpack.c.l.b16 %v2817
  %v3012 = vunpack.c.h.b16 %v2817
  %v3013 = vunpack.c.l.b16 %v2818
  %v3014 = vunpack.c.h.b16 %v2818
  %v3015 = vunpack.c.l.b16 %v2819
  %v3016 = vunpack.c.h.b16 %v2819
  %v3017 = vunpack.c.l.b16 %v2820
  %v3018 = vunpack.c.h.b16 %v2820
  %v3019 = vunpack.c.l.b16 %v2821
  %v3020 = vunpack.c.h.b16 %v2821
  %v3021 = vunpack.c.l.b16 %v2822
  %v3022 = vunpack.c.h.b16 %v2822
  %v3023 = vunpack.c.l.b16 %v2823
  %v3024 = vunpack.c.h.b16 %v2823
  %v3025 = vunpack.c.l.b16 %v2824
  %v3026 = vunpack.c.h.b16 %v2824
  %v3027 = vunpack.c.l.b16 %v2825
  %v3028 = vunpack.c.h.b16 %v2825
  %v3029 = vunpack.c.l.b16 %v2826
  %v3030 = vunpack.c.h.b16 %v2826
  %v3031 = vunpack.c.l.b16 %v2827
  %v3032 = vunpack.c.h.b16 %v2827
  %v3033 = vunpack.c.l.b16 %v2828
  %v3034 = vunpack.c.h.b16 %v2828
  %v3035 = vunpack.c.l.b16 %v2829
  %v3036 = vunpack.c.h.b16 %v2829
  %v3037 = vunpack.c.l.b16 %v2830
  %v3038 = vunpack.c.h.b16 %v2830
  %v3039 = vunpack.c.l.b16 %v2831
  %v3040 = vunpack.c.h.b16 %v2831
  %v3041 = vunpack.c.l.b16 %v2832
  %v3042 = vunpack.c.h.b16 %v2832
  %v3043 = vunpack.c.l.b16 %v2833
  %v3044 = vunpack.c.h.b16 %v2833
  %v3045 = vunpack.c.l.b16 %v2834
  %v3046 = vunpack.c.h.b16 %v2834
  %v3047 = vunpack.c.l.b16 %v2835
  %v3048 = vunpack.c.h.b16 %v2835
  %v3049 = vunpack.c.l.b16 %v2836
  %v3050 = vunpack.c.h.b16 %v2836
  %v3051 = vunpack.c.l.b16 %v2837
  %v3052 = vunpack.c.h.b16 %v2837
  %v3053 = vunpack.c.l.b16 %v2838
  %v3054 = vunpack.c.h.b16 %v2838
  %v3055 = vunpack.c.l.b16 %v2839
  %v3056 = vunpack.c.h.b16 %v2839
  %v3057 = vunpack.c.l.b16 %v2840
  %v3058 = vunpack.c.h.b16 %v2840
  %v3059 = vunpack.c.l.b16 %v2841
  %v3060 = vunpack.c.h.b16 %v2841
  %v3061 = vunpack.c.l.b16 %v2842
  %v3062 = vunpack.c.h.b16 %v2842
  %v3063 = vunpack.c.l.b16 %v2843
  %v3064 = vunpack.c.h.b16 %v2843
  %v3065 = vunpack.c.l.b16 %v2844
  %v3066 = vunpack.c.h.b16 %v2844
  %v3067 = vunpack.c.l.b16 %v2845
  %v3068 = vunpack.c.h.b16 %v2845
  %v3069 = vunpack.c.l.b16 %v2846
  %v3070 = vunpack.c.h.b16 %v2846
  %v3071 = vunpack.c.l.b16 %v2847
  %v3072 = vunpack.c.h.b16 %v2847
  %v3073 = vunpack.c.l.b16 %v2848
  %v3074 = vunpack.c.h.b16 %v2848
  %v3075 = vunpack.c.l.b16 %v2849
  %v3076 = vunpack.c.h.b16 %v2849
  %v3077 = vunpack.c.l.b16 %v2850
  %v3078 = vunpack.c.h.b16 %v2850
  %v3079 = vunpack.c.l.b16 %v2851
  %v3080 = vunpack.c.h.b16 %v2851
  %v3081 = vunpack.c.l.b16 %v2852
  %v3082 = vunpack.c.h.b16 %v2852
  %v3083 = vunpack.c.l.b16 %v2853
  %v3084 = vunpack.c.h.b16 %v2853
  %v3085 = vunpack.c.l.b16 %v2854
  %v3086 = vunpack.c.h.b16 %v2854
  %v3087 = vunpack.c.l.b16 %v2855
  %v3088 = vunpack.c.h.b16 %v2855
  %v3089 = vunpack.c.l.b16 %v2856
  %v3090 = vunpack.c.h.b16 %v2856
  %v3091 = vunpack.c.l.b16 %v2857
  %v3092 = vunpack.c.h.b16 %v2857
  %v3093 = vunpack.c.l.b16 %v2858
  %v3094 = vunpack.c.h.b16 %v2858
  %v3095 = vunpack.c.l.b16 %v2859
  %v3096 = vunpack.c.h.b16 %v2859
  %v3097 = vunpack.c.l.b16 %v2860
  %v3098 = vunpack.c.h.b16 %v2860
  %v3099 = vunpack.c.l.b16 %v2861
  %v3100 = vunpack.c.h.b16 %v2861
  %v3101 = vunpack.c.l.b16 %v2862
  %v3102 = vunpack.c.h.b16 %v2862
  %v3103 = vunpack.c.l.b16 %v2863
  %v3104 = vunpack.c.h.b16 %v2863
  %v3105 = vunpack.c.l.b16 %v2864
  %v3106 = vunpack.c.h.b16 %v2864
  %v3107 = vunpack.c.l.b16 %v2865
  %v3108 = vunpack.c.h.b16 %v2865
  %v3109 = vunpack.c.l.b16 %v2866
  %v3110 = vunpack.c.h.b16 %v2866
  %v3111 = vunpack.c.l.b16 %v2867
  %v3112 = vunpack.c.h.b16 %v2867
  %v3113 = vunpack.c.l.b16 %v2868
  %v3114 = vunpack.c.h.b16 %v2868
  %v3115 = vpack.c.b16 %v2975, %v2971
  %v3116 = vpack.c.b16 %v2976, %v2972
  %v3117 = vpack.c.b16 %v2977, %v2973
  %v3118 = vpack.c.b16 %v2978, %v2974
  %v3119 = vpack.c.b16 %v2983, %v2979
  %v3120 = vpack.c.b16 %v2984, %v2980
  %v3121 = vpack.c.b16 %v2985, %v2981
  %v3122 = vpack.c.b16 %v2986, %v2982
  %v3123 = vpack.c.b16 %v2991, %v2987
  %v3124 = vpack.c.b16 %v2992, %v2988
  %v3125 = vpack.c.b16 %v2993, %v2989
  %v3126 = vpack.c.b16 %v2994, %v2990
  %v3127 = vpack.c.b16 %v2999, %v2995
  %v3128 = vpack.c.b16 %v3000, %v2996
  %v3129 = vpack.c.b16 %v3001, %v2997
  %v3130 = vpack.c.b16 %v3002, %v2998
  %v3131 = vpack.c.b16 %v3007, %v3003
  %v3132 = vpack.c.b16 %v3008, %v3004
  %v3133 = vpack.c.b16 %v3009, %v3005
  %v3134 = vpack.c.b16 %v3010, %v3006
  %v3135 = vpack.c.b16 %v3015, %v3011
  %v3136 = vpack.c.b16 %v3016, %v3012
  %v3137 = vpack.c.b16 %v3017, %v3013
  %v3138 = vpack.c.b16 %v3018, %v3014
  %v3139 = vpack.c.b16 %v3023, %v3019
  %v3140 = vpack.c.b16 %v3024, %v3020
  %v3141 = vpack.c.b16 %v3025, %v3021
  %v3142 = vpack.c.b16 %v3026, %v3022
  %v3143 = vpack.c.b16 %v3031, %v3027
  %v3144 = vpack.c.b16 %v3032, %v3028
  %v3145 = vpack.c.b16 %v3033, %v3029
  %v3146 = vpack.c.b16 %v3034, %v3030
  %v3147 = vpack.c.b16 %v3039, %v3035
  %v3148 = vpack.c.b16 %v3040, %v3036
  %v3149 = vpack.c.b16 %v3041, %v3037
  %v3150 = vpack.c.b16 %v3042, %v3038
  %v3151 = vpack.c.b16 %v3047, %v3043
  %v3152 = vpack.c.b16 %v3048, %v3044
  %v3153 = vpack.c.b16 %v3049, %v3045
  %v3154 = vpack.c.b16 %v3050, %v3046
  %v3155 = vpack.c.b16 %v3055, %v3051
  %v3156 = vpack.c.b16 %v3056, %v3052
  %v3157 = vpack.c.b16 %v3057, %v3053
  %v3158 = vpack.c.b16 %v3058, %v3054
  %v3159 = vpack.c.b16 %v3063, %v3059
  %v3160 = vpack.c.b16 %v3064, %v3060
  %v3161 = vpack.c.b16 %v3065, %v3061
  %v3162 = vpack.c.b16 %v3066, %v3062
  %v3163 = vpack.c.b16 %v3071, %v3067
  %v3164 = vpack.c.b16 %v3072, %v3068
  %v3165 = vpack.c.b16 %v3073, %v3069
  %v3166 = vpack.c.b16 %v3074, %v3070
  %v3167 = vpack.c.b16 %v3079, %v3075
  %v3168 = vpack.c.b16 %v3080, %v3076
  %v3169 = vpack.c.b16 %v3081, %v3077
  %v3170 = vpack.c.b16 %v3082, %v3078
  %v3171 = vpack.c.b16 %v3087, %v3083
  %v3172 = vpack.c.b16 %v3088, %v3084
  %v3173 = vpack.c.b16 %v3089, %v3085
  %v3174 = vpack.c.b16 %v3090, %v3086
  %v3175 = vpack.c.b16 %v3095, %v3091
  %v3176 = vpack.c.b16 %v3096, %v3092
  %v3177 = vpack.c.b16 %v3097, %v3093
  %v3178 = vpack.c.b16 %v3098, %v3094
  %v3179 = vpack.c.b16 %v3103, %v3099
  %v3180 = vpack.c.b16 %v3104, %v3100
  %v3181 = vpack.c.b16 %v3105, %v3101
  %v3182 = vpack.c.b16 %v3106, %v3102
  %v3183 = vpack.c.b16 %v3111, %v3107
  %v3184 = vpack.c.b16 %v3112, %v3108
  %v3185 = vpack.c.b16 %v3113, %v3109
  %v3186 = vpack.c.b16 %v3114, %v3110
  %v3260 = vsel %vm1687, %v2891, 0
  %v3263 = vsel %vm1687, %v2894, 0
  %3265 = vmatprep.subr.bf16.mxu0 %v3144
  %3266 = vmatpush1.bf16.msra.mxu0 %v3143
  %3267 = vmatprep.subr.bf16.mxu0 %v3140
  %3268 = vmatpush1.bf16.msra.mxu0 %v3139
  %3269 = vmatprep.subr.bf16.mxu0 %v3136
  %3270 = vmatpush1.bf16.msra.mxu0 %v3135
  %3271 = vmatprep.subr.bf16.mxu0 %v3132
  %3272 = vmatpush1.bf16.msra.mxu0 %v3131
  %3273 = vmatprep.subr.bf16.mxu0 %v3128
  %3274 = vmatpush1.bf16.msra.mxu0 %v3127
  %3275 = vmatprep.subr.bf16.mxu0 %v3124
  %3276 = vmatpush1.bf16.msra.mxu0 %v3123
  %3277 = vmatprep.subr.bf16.mxu0 %v3120
  %3278 = vmatpush1.bf16.msra.mxu0 %v3119
  %3279 = vmatprep.subr.bf16.mxu0 %v3116
  %3280 = vmatpush1.bf16.msra.mxu0 %v3115
  %3281 = vmatprep.subr.bf16.mxu0 %v3176
  %3282 = vmatpush2.bf16.msra.mxu0 %v3175
  %3283 = vmatprep.subr.bf16.mxu0 %v3172
  %3284 = vmatpush2.bf16.msra.mxu0 %v3171
  %3285 = vmatprep.subr.bf16.mxu0 %v3168
  %3286 = vmatpush2.bf16.msra.mxu0 %v3167
  %3287 = vmatprep.subr.bf16.mxu0 %v3164
  %3288 = vmatpush2.bf16.msra.mxu0 %v3163
  %3289 = vmatprep.subr.bf16.mxu0 %v3160
  %3290 = vmatpush2.bf16.msra.mxu0 %v3159
  %3291 = vmatprep.subr.bf16.mxu0 %v3156
  %3292 = vmatpush2.bf16.msra.mxu0 %v3155
  %3293 = vmatprep.subr.bf16.mxu0 %v3152
  %3294 = vmatpush2.bf16.msra.mxu0 %v3151
  %3295 = vmatprep.subr.bf16.mxu0 %v3148
  %3296 = vmatpush2.bf16.msra.mxu0 %v3147
  %3297 = vmatprep.mubr.bf16.mxu0 %v2890
  %3298 = vmatmul.mubr.bf16.gmra.mxu0 %v2889
  %v3299 = vpop.f32.mrf.mxu0
  %v3300 = vadd.f32 0.0, %v3299
  %v3301 = vpop.f32.mrf.mxu0
  %v3302 = vadd.f32 0.0, %v3301
  %v3303 = vpop.f32.mrf.mxu0
  %v3304 = vadd.f32 0.0, %v3303
  %v3305 = vpop.f32.mrf.mxu0
  %v3306 = vadd.f32 0.0, %v3305
  %3307 = vmatprep.mubr.bf16.mxu0 %v2893
  %3308 = vmatmul.mubr.bf16.gmra.mxu0 %v2892
  %v3309 = vpop.f32.mrf.mxu0
  %v3310 = vadd.f32 0.0, %v3309
  %v3311 = vpop.f32.mrf.mxu0
  %v3312 = vadd.f32 0.0, %v3311
  %v3313 = vpop.f32.mrf.mxu0
  %v3314 = vadd.f32 0.0, %v3313
  %v3315 = vpop.f32.mrf.mxu0
  %v3316 = vadd.f32 0.0, %v3315
  %3317 = vdwg.mxu0
  %3318 = vmatprep.subr.bf16.mxu0 0
  %3319 = vmatpush1.bf16.msra.mxu0 0
  %3320 = vmatprep.subr.bf16.mxu0 0
  %3321 = vmatpush1.bf16.msra.mxu0 0
  %3322 = vmatprep.subr.bf16.mxu0 0
  %3323 = vmatpush1.bf16.msra.mxu0 0
  %3324 = vmatprep.subr.bf16.mxu0 0
  %3325 = vmatpush1.bf16.msra.mxu0 0
  %3326 = vmatprep.subr.bf16.mxu0 0
  %3327 = vmatpush1.bf16.msra.mxu0 0
  %3328 = vmatprep.subr.bf16.mxu0 0
  %3329 = vmatpush1.bf16.msra.mxu0 0
  %3330 = vmatprep.subr.bf16.mxu0 %v3184
  %3331 = vmatpush1.bf16.msra.mxu0 %v3183
  %3332 = vmatprep.subr.bf16.mxu0 %v3180
  %3333 = vmatpush1.bf16.msra.mxu0 %v3179
  %3334 = vmatprep.subr.bf16.mxu0 0
  %3335 = vmatpush2.bf16.msra.mxu0 0
  %3336 = vmatprep.subr.bf16.mxu0 0
  %3337 = vmatpush2.bf16.msra.mxu0 0
  %3338 = vmatprep.subr.bf16.mxu0 0
  %3339 = vmatpush2.bf16.msra.mxu0 0
  %3340 = vmatprep.subr.bf16.mxu0 0
  %3341 = vmatpush2.bf16.msra.mxu0 0
  %3342 = vmatprep.subr.bf16.mxu0 0
  %3343 = vmatpush2.bf16.msra.mxu0 0
  %3344 = vmatprep.subr.bf16.mxu0 0
  %3345 = vmatpush2.bf16.msra.mxu0 0
  %3346 = vmatprep.subr.bf16.mxu0 0
  %3347 = vmatpush2.bf16.msra.mxu0 0
  %3348 = vmatprep.subr.bf16.mxu0 0
  %3349 = vmatpush2.bf16.msra.mxu0 0
  %3350 = vmatprep.mubr.bf16.mxu0 0
  %3351 = vmatmul.mubr.bf16.gmra.mxu0 %v3260
  %v3352 = vpop.f32.mrf.mxu0
  %v3353 = vadd.f32 %v3300, %v3352
  %v3354 = vpop.f32.mrf.mxu0
  %v3355 = vadd.f32 %v3302, %v3354
  %v3356 = vpop.f32.mrf.mxu0
  %v3357 = vadd.f32 %v3304, %v3356
  %v3358 = vpop.f32.mrf.mxu0
  %v3359 = vadd.f32 %v3306, %v3358
  %3360 = vmatprep.mubr.bf16.mxu0 0
  %3361 = vmatmul.mubr.bf16.gmra.mxu0 %v3263
  %v3362 = vpop.f32.mrf.mxu0
  %v3363 = vadd.f32 %v3310, %v3362
  %v3364 = vpop.f32.mrf.mxu0
  %v3365 = vadd.f32 %v3312, %v3364
  %v3366 = vpop.f32.mrf.mxu0
  %v3367 = vadd.f32 %v3314, %v3366
  %v3368 = vpop.f32.mrf.mxu0
  %v3369 = vadd.f32 %v3316, %v3368
  %3370 = vdwg.mxu0
  %3371 = vmatprep.subr.bf16.mxu0 %v3146
  %3372 = vmatpush1.bf16.msra.mxu0 %v3145
  %3373 = vmatprep.subr.bf16.mxu0 %v3142
  %3374 = vmatpush1.bf16.msra.mxu0 %v3141
  %3375 = vmatprep.subr.bf16.mxu0 %v3138
  %3376 = vmatpush1.bf16.msra.mxu0 %v3137
  %3377 = vmatprep.subr.bf16.mxu0 %v3134
  %3378 = vmatpush1.bf16.msra.mxu0 %v3133
  %3379 = vmatprep.subr.bf16.mxu0 %v3130
  %3380 = vmatpush1.bf16.msra.mxu0 %v3129
  %3381 = vmatprep.subr.bf16.mxu0 %v3126
  %3382 = vmatpush1.bf16.msra.mxu0 %v3125
  %3383 = vmatprep.subr.bf16.mxu0 %v3122
  %3384 = vmatpush1.bf16.msra.mxu0 %v3121
  %3385 = vmatprep.subr.bf16.mxu0 %v3118
  %3386 = vmatpush1.bf16.msra.mxu0 %v3117
  %3387 = vmatprep.subr.bf16.mxu0 %v3178
  %3388 = vmatpush2.bf16.msra.mxu0 %v3177
  %3389 = vmatprep.subr.bf16.mxu0 %v3174
  %3390 = vmatpush2.bf16.msra.mxu0 %v3173
  %3391 = vmatprep.subr.bf16.mxu0 %v3170
  %3392 = vmatpush2.bf16.msra.mxu0 %v3169
  %3393 = vmatprep.subr.bf16.mxu0 %v3166
  %3394 = vmatpush2.bf16.msra.mxu0 %v3165
  %3395 = vmatprep.subr.bf16.mxu0 %v3162
  %3396 = vmatpush2.bf16.msra.mxu0 %v3161
  %3397 = vmatprep.subr.bf16.mxu0 %v3158
  %3398 = vmatpush2.bf16.msra.mxu0 %v3157
  %3399 = vmatprep.subr.bf16.mxu0 %v3154
  %3400 = vmatpush2.bf16.msra.mxu0 %v3153
  %3401 = vmatprep.subr.bf16.mxu0 %v3150
  %3402 = vmatpush2.bf16.msra.mxu0 %v3149
  %3403 = vmatprep.mubr.bf16.mxu0 %v2890
  %3404 = vmatmul.mubr.bf16.gmra.mxu0 %v2889
  %v3405 = vpop.f32.mrf.mxu0
  %v3406 = vadd.f32 0.0, %v3405
  %v3407 = vpop.f32.mrf.mxu0
  %v3408 = vadd.f32 0.0, %v3407
  %v3409 = vpop.f32.mrf.mxu0
  %v3410 = vadd.f32 0.0, %v3409
  %v3411 = vpop.f32.mrf.mxu0
  %v3412 = vadd.f32 0.0, %v3411
  %3413 = vmatprep.mubr.bf16.mxu0 %v2893
  %3414 = vmatmul.mubr.bf16.gmra.mxu0 %v2892
  %v3415 = vpop.f32.mrf.mxu0
  %v3416 = vadd.f32 0.0, %v3415
  %v3417 = vpop.f32.mrf.mxu0
  %v3418 = vadd.f32 0.0, %v3417
  %v3419 = vpop.f32.mrf.mxu0
  %v3420 = vadd.f32 0.0, %v3419
  %v3421 = vpop.f32.mrf.mxu0
  %v3422 = vadd.f32 0.0, %v3421
  %3423 = vdwg.mxu0
  %3424 = vmatprep.subr.bf16.mxu0 0
  %3425 = vmatpush1.bf16.msra.mxu0 0
  %3426 = vmatprep.subr.bf16.mxu0 0
  %3427 = vmatpush1.bf16.msra.mxu0 0
  %3428 = vmatprep.subr.bf16.mxu0 0
  %3429 = vmatpush1.bf16.msra.mxu0 0
  %3430 = vmatprep.subr.bf16.mxu0 0
  %3431 = vmatpush1.bf16.msra.mxu0 0
  %3432 = vmatprep.subr.bf16.mxu0 0
  %3433 = vmatpush1.bf16.msra.mxu0 0
  %3434 = vmatprep.subr.bf16.mxu0 0
  %3435 = vmatpush1.bf16.msra.mxu0 0
  %3436 = vmatprep.subr.bf16.mxu0 %v3186
  %3437 = vmatpush1.bf16.msra.mxu0 %v3185
  %3438 = vmatprep.subr.bf16.mxu0 %v3182
  %3439 = vmatpush1.bf16.msra.mxu0 %v3181
  %3440 = vmatprep.subr.bf16.mxu0 0
  %3441 = vmatpush2.bf16.msra.mxu0 0
  %3442 = vmatprep.subr.bf16.mxu0 0
  %3443 = vmatpush2.bf16.msra.mxu0 0
  %3444 = vmatprep.subr.bf16.mxu0 0
  %3445 = vmatpush2.bf16.msra.mxu0 0
  %3446 = vmatprep.subr.bf16.mxu0 0
  %3447 = vmatpush2.bf16.msra.mxu0 0
  %3448 = vmatprep.subr.bf16.mxu0 0
  %3449 = vmatpush2.bf16.msra.mxu0 0
  %3450 = vmatprep.subr.bf16.mxu0 0
  %3451 = vmatpush2.bf16.msra.mxu0 0
  %3452 = vmatprep.subr.bf16.mxu0 0
  %3453 = vmatpush2.bf16.msra.mxu0 0
  %3454 = vmatprep.subr.bf16.mxu0 0
  %3455 = vmatpush2.bf16.msra.mxu0 0
  %3456 = vmatprep.mubr.bf16.mxu0 0
  %3457 = vmatmul.mubr.bf16.gmra.mxu0 %v3260
  %v3458 = vpop.f32.mrf.mxu0
  %v3459 = vadd.f32 %v3406, %v3458
  %v3460 = vpop.f32.mrf.mxu0
  %v3461 = vadd.f32 %v3408, %v3460
  %v3462 = vpop.f32.mrf.mxu0
  %v3463 = vadd.f32 %v3410, %v3462
  %v3464 = vpop.f32.mrf.mxu0
  %v3465 = vadd.f32 %v3412, %v3464
  %3466 = vmatprep.mubr.bf16.mxu0 0
  %3467 = vmatmul.mubr.bf16.gmra.mxu0 %v3263
  %v3468 = vpop.f32.mrf.mxu0
  %v3469 = vadd.f32 %v3416, %v3468
  %v3470 = vpop.f32.mrf.mxu0
  %v3471 = vadd.f32 %v3418, %v3470
  %v3472 = vpop.f32.mrf.mxu0
  %v3473 = vadd.f32 %v3420, %v3472
  %v3474 = vpop.f32.mrf.mxu0
  %v3475 = vadd.f32 %v3422, %v3474
  %3476 = vdwg.mxu0
  %s3477 = scalar_lea.vmem %s4, 128
  %v3478 = vld [vmem:[%s3477] sm:$0xff]
  %v3479 = vld [vmem:[%s3477 + $0x8] sm:$0xff]
  %v3480 = vld [vmem:[%s3477 + $0x10] sm:$0xff]
  %v3481 = vld [vmem:[%s3477 + $0x18] sm:$0xff]
  %s3482 = scalar_lea.vmem %s4, 160
  %v3483 = vld [vmem:[%s3482] sm:$0xff]
  %v3484 = vld [vmem:[%s3482 + $0x8] sm:$0xff]
  %v3485 = vld [vmem:[%s3482 + $0x10] sm:$0xff]
  %v3486 = vld [vmem:[%s3482 + $0x18] sm:$0xff]
  %v3487 = vmul.f32 %v3353, %v309
  %v3488 = vmul.f32 %v3355, %v313
  %v3489 = vmul.f32 %v3459, %v317
  %v3490 = vmul.f32 %v3461, %v321
  %v3491 = vmul.f32 %v3357, %v309
  %v3492 = vmul.f32 %v3359, %v313
  %v3493 = vmul.f32 %v3463, %v317
  %v3494 = vmul.f32 %v3465, %v321
  %v3495 = vmul.f32 %v3363, %v309
  %v3496 = vmul.f32 %v3365, %v313
  %v3497 = vmul.f32 %v3469, %v317
  %v3498 = vmul.f32 %v3471, %v321
  %v3499 = vmul.f32 %v3367, %v309
  %v3500 = vmul.f32 %v3369, %v313
  %v3501 = vmul.f32 %v3473, %v317
  %v3502 = vmul.f32 %v3475, %v321
  %v3503 = vadd.f32 %v3487, %v3488
  %v3504 = vadd.f32 %v3503, %v3489
  %v3505 = vsel %vm344, %v3490, 0.0
  %v3506 = vadd.f32 %v3504, %v3505
  %3507 = vadd.xlane.f32.xlu0 %v3506
  %v3508 = vpop.xlane.xlu0 %3507
  %v3509 = vadd.f32 %v3491, %v3492
  %v3510 = vadd.f32 %v3509, %v3493
  %v3511 = vsel %vm344, %v3494, 0.0
  %v3512 = vadd.f32 %v3510, %v3511
  %3513 = vadd.xlane.f32.xlu0 %v3512
  %v3514 = vpop.xlane.xlu0 %3513
  %v3515 = vadd.f32 %v3495, %v3496
  %v3516 = vadd.f32 %v3515, %v3497
  %v3517 = vsel %vm344, %v3498, 0.0
  %v3518 = vadd.f32 %v3516, %v3517
  %3519 = vadd.xlane.f32.xlu0 %v3518
  %v3520 = vpop.xlane.xlu0 %3519
  %v3521 = vadd.f32 %v3499, %v3500
  %v3522 = vadd.f32 %v3521, %v3501
  %v3523 = vsel %vm344, %v3502, 0.0
  %v3524 = vadd.f32 %v3522, %v3523
  %3525 = vadd.xlane.f32.xlu0 %v3524
  %v3526 = vpop.xlane.xlu0 %3525
  %v3527 = vmul.f32 %v3508, 0.0030864198
  %v3528 = vmul.f32 %v3514, 0.0030864198
  %v3529 = vmul.f32 %v3520, 0.0030864198
  %v3530 = vmul.f32 %v3526, 0.0030864198
  %v3531 = vmul.f32 %v3487, %v3353
  %v3532 = vmul.f32 %v3488, %v3355
  %v3533 = vmul.f32 %v3489, %v3459
  %v3534 = vmul.f32 %v3490, %v3461
  %v3535 = vmul.f32 %v3491, %v3357
  %v3536 = vmul.f32 %v3492, %v3359
  %v3537 = vmul.f32 %v3493, %v3463
  %v3538 = vmul.f32 %v3494, %v3465
  %v3539 = vmul.f32 %v3495, %v3363
  %v3540 = vmul.f32 %v3496, %v3365
  %v3541 = vmul.f32 %v3497, %v3469
  %v3542 = vmul.f32 %v3498, %v3471
  %v3543 = vmul.f32 %v3499, %v3367
  %v3544 = vmul.f32 %v3500, %v3369
  %v3545 = vmul.f32 %v3501, %v3473
  %v3546 = vmul.f32 %v3502, %v3475
  %v3547 = vadd.f32 %v3531, %v3532
  %v3548 = vadd.f32 %v3547, %v3533
  %v3549 = vsel %vm344, %v3534, 0.0
  %v3550 = vadd.f32 %v3548, %v3549
  %3551 = vadd.xlane.f32.xlu0 %v3550
  %v3552 = vpop.xlane.xlu0 %3551
  %v3553 = vadd.f32 %v3535, %v3536
  %v3554 = vadd.f32 %v3553, %v3537
  %v3555 = vsel %vm344, %v3538, 0.0
  %v3556 = vadd.f32 %v3554, %v3555
  %3557 = vadd.xlane.f32.xlu0 %v3556
  %v3558 = vpop.xlane.xlu0 %3557
  %v3559 = vadd.f32 %v3539, %v3540
  %v3560 = vadd.f32 %v3559, %v3541
  %v3561 = vsel %vm344, %v3542, 0.0
  %v3562 = vadd.f32 %v3560, %v3561
  %3563 = vadd.xlane.f32.xlu0 %v3562
  %v3564 = vpop.xlane.xlu0 %3563
  %v3565 = vadd.f32 %v3543, %v3544
  %v3566 = vadd.f32 %v3565, %v3545
  %v3567 = vsel %vm344, %v3546, 0.0
  %v3568 = vadd.f32 %v3566, %v3567
  %3569 = vadd.xlane.f32.xlu0 %v3568
  %v3570 = vpop.xlane.xlu0 %3569
  %v3571 = vmul.f32 %v3552, 0.0030864198
  %v3572 = vmul.f32 %v3558, 0.0030864198
  %v3573 = vmul.f32 %v3564, 0.0030864198
  %v3574 = vmul.f32 %v3570, 0.0030864198
  %v3575 = vmul.f32 %v3527, %v3527
  %v3576 = vmul.f32 %v3528, %v3528
  %v3577 = vmul.f32 %v3529, %v3529
  %v3578 = vmul.f32 %v3530, %v3530
  %v3579 = vsub.f32 %v3571, %v3575
  %v3580 = vsub.f32 %v3572, %v3576
  %v3581 = vsub.f32 %v3573, %v3577
  %v3582 = vsub.f32 %v3574, %v3578
  %v3583 = vadd.f32 %v3579, 1e-05
  %v3584 = vadd.f32 %v3580, 1e-05
  %v3585 = vadd.f32 %v3581, 1e-05
  %v3586 = vadd.f32 %v3582, 1e-05
  %v3587 = vrsqrt.pop %v3583
  %v3588 = vrsqrt.pop %v3584
  %v3589 = vrsqrt.pop %v3585
  %v3590 = vrsqrt.pop %v3586
  %v3591 = vmul.f32 %v3478, %v3587
  %v3592 = vmul.f32 %v3479, %v3588
  %v3593 = vmul.f32 %v3480, %v3589
  %v3594 = vmul.f32 %v3481, %v3590
  %v3595 = vmul.f32 %v3527, %v3591
  %v3596 = vmul.f32 %v3528, %v3592
  %v3597 = vmul.f32 %v3529, %v3593
  %v3598 = vmul.f32 %v3530, %v3594
  %v3599 = vsub.f32 %v3483, %v3595
  %v3600 = vsub.f32 %v3484, %v3596
  %v3601 = vsub.f32 %v3485, %v3597
  %v3602 = vsub.f32 %v3486, %v3598
  %3604 = vset.pattern.permute.xlu0 0
  %3605 = vperm.xlu0 %3604, %v3591
  %v3606 = vpop.permute.xlu0 %3605
  %3609 = vset.pattern.permute.xlu0 0
  %3610 = vperm.xlu0 %3609, %v3592
  %v3611 = vpop.permute.xlu0 %3610
  %3614 = vset.pattern.permute.xlu0 0
  %3615 = vperm.xlu0 %3614, %v3593
  %v3616 = vpop.permute.xlu0 %3615
  %3619 = vset.pattern.permute.xlu0 0
  %3620 = vperm.xlu0 %3619, %v3594
  %v3621 = vpop.permute.xlu0 %3620
  %v3623 = vmul.f32 %v3353, %v3606
  %v3624 = vmul.f32 %v3355, %v3606
  %v3625 = vmul.f32 %v3459, %v3606
  %v3626 = vmul.f32 %v3461, %v3606
  %v3627 = vmul.f32 %v3357, %v3611
  %v3628 = vmul.f32 %v3359, %v3611
  %v3629 = vmul.f32 %v3463, %v3611
  %v3630 = vmul.f32 %v3465, %v3611
  %v3631 = vmul.f32 %v3363, %v3616
  %v3632 = vmul.f32 %v3365, %v3616
  %v3633 = vmul.f32 %v3469, %v3616
  %v3634 = vmul.f32 %v3471, %v3616
  %v3635 = vmul.f32 %v3367, %v3621
  %v3636 = vmul.f32 %v3369, %v3621
  %v3637 = vmul.f32 %v3473, %v3621
  %v3638 = vmul.f32 %v3475, %v3621
  %3640 = vset.pattern.permute.xlu0 0
  %3641 = vperm.xlu0 %3640, %v3599
  %v3642 = vpop.permute.xlu0 %3641
  %3645 = vset.pattern.permute.xlu0 0
  %3646 = vperm.xlu0 %3645, %v3600
  %v3647 = vpop.permute.xlu0 %3646
  %3650 = vset.pattern.permute.xlu0 0
  %3651 = vperm.xlu0 %3650, %v3601
  %v3652 = vpop.permute.xlu0 %3651
  %3655 = vset.pattern.permute.xlu0 0
  %3656 = vperm.xlu0 %3655, %v3602
  %v3657 = vpop.permute.xlu0 %3656
  %v3659 = vadd.f32 %v3623, %v3642
  %v3660 = vadd.f32 %v3624, %v3642
  %v3661 = vadd.f32 %v3625, %v3642
  %v3662 = vadd.f32 %v3626, %v3642
  %v3663 = vadd.f32 %v3627, %v3647
  %v3664 = vadd.f32 %v3628, %v3647
  %v3665 = vadd.f32 %v3629, %v3647
  %v3666 = vadd.f32 %v3630, %v3647
  %v3667 = vadd.f32 %v3631, %v3652
  %v3668 = vadd.f32 %v3632, %v3652
  %v3669 = vadd.f32 %v3633, %v3652
  %v3670 = vadd.f32 %v3634, %v3652
  %v3671 = vadd.f32 %v3635, %v3657
  %v3672 = vadd.f32 %v3636, %v3657
  %v3673 = vadd.f32 %v3637, %v3657
  %v3674 = vadd.f32 %v3638, %v3657
  %v3675 = vmax.f32 %v3659, 0.0
  %v3676 = vmax.f32 %v3660, 0.0
  %v3677 = vmax.f32 %v3661, 0.0
  %v3678 = vmax.f32 %v3662, 0.0
  %v3679 = vmax.f32 %v3663, 0.0
  %v3680 = vmax.f32 %v3664, 0.0
  %v3681 = vmax.f32 %v3665, 0.0
  %v3682 = vmax.f32 %v3666, 0.0
  %v3683 = vmax.f32 %v3667, 0.0
  %v3684 = vmax.f32 %v3668, 0.0
  %v3685 = vmax.f32 %v3669, 0.0
  %v3686 = vmax.f32 %v3670, 0.0
  %v3687 = vmax.f32 %v3671, 0.0
  %v3688 = vmax.f32 %v3672, 0.0
  %v3689 = vmax.f32 %v3673, 0.0
  %v3690 = vmax.f32 %v3674, 0.0
  %v3691 = vmul.f32 %v3675, %v309
  %v3692 = vmul.f32 %v3676, %v313
  %v3693 = vmul.f32 %v3677, %v317
  %v3694 = vmul.f32 %v3678, %v321
  %v3695 = vmul.f32 %v3679, %v309
  %v3696 = vmul.f32 %v3680, %v313
  %v3697 = vmul.f32 %v3681, %v317
  %v3698 = vmul.f32 %v3682, %v321
  %v3699 = vmul.f32 %v3683, %v309
  %v3700 = vmul.f32 %v3684, %v313
  %v3701 = vmul.f32 %v3685, %v317
  %v3702 = vmul.f32 %v3686, %v321
  %v3703 = vmul.f32 %v3687, %v309
  %v3704 = vmul.f32 %v3688, %v313
  %v3705 = vmul.f32 %v3689, %v317
  %v3706 = vmul.f32 %v3690, %v321
  %v3707 = vpack.c.bf16 %v3695, %v3691
  %v3708 = vpack.c.bf16 %v3696, %v3692
  %v3709 = vpack.c.bf16 %v3697, %v3693
  %v3710 = vpack.c.bf16 %v3698, %v3694
  %v3711 = vpack.c.bf16 %v3703, %v3699
  %v3712 = vpack.c.bf16 %v3704, %v3700
  %v3713 = vpack.c.bf16 %v3705, %v3701
  %v3714 = vpack.c.bf16 %v3706, %v3702
  %v3723 = vunpack.c.l.b16 %v3707
  %v3724 = vunpack.c.l.b16 %v3708
  %v3725 = vunpack.c.l.b16 %v3709
  %v3726 = vunpack.c.l.b16 %v3710
  %v3727 = vunpack.c.h.b16 %v3707
  %v3728 = vunpack.c.h.b16 %v3708
  %v3729 = vunpack.c.h.b16 %v3709
  %v3730 = vunpack.c.h.b16 %v3710
  %v3731 = vunpack.c.l.b16 %v3711
  %v3732 = vunpack.c.l.b16 %v3712
  %v3733 = vunpack.c.l.b16 %v3713
  %v3734 = vunpack.c.l.b16 %v3714
  %v3735 = vunpack.c.h.b16 %v3711
  %v3736 = vunpack.c.h.b16 %v3712
  %v3737 = vunpack.c.h.b16 %v3713
  %v3738 = vunpack.c.h.b16 %v3714
  %v3739 = vpack.c.b16 %v3724, %v3723
  %v3740 = vpack.c.b16 %v3726, %v3725
  %v3741 = vpack.c.b16 %v3728, %v3727
  %v3742 = vpack.c.b16 %v3730, %v3729
  %v3743 = vpack.c.b16 %v3732, %v3731
  %v3744 = vpack.c.b16 %v3734, %v3733
  %v3745 = vpack.c.b16 %v3736, %v3735
  %v3746 = vpack.c.b16 %v3738, %v3737
  %3747 = vrot.lane.b32.xlu0 %v3739, 21
  %v3748 = vpop.permute.xlu0 %3747
  %3749 = vrot.lane.b32.xlu0 %v3740, 21
  %v3750 = vpop.permute.xlu0 %3749
  %3751 = vrot.lane.b32.xlu0 %v3741, 21
  %v3752 = vpop.permute.xlu0 %3751
  %3753 = vrot.lane.b32.xlu0 %v3742, 21
  %v3754 = vpop.permute.xlu0 %3753
  %3755 = vrot.lane.b32.xlu0 %v3743, 21
  %v3756 = vpop.permute.xlu0 %3755
  %3757 = vrot.lane.b32.xlu0 %v3744, 21
  %v3758 = vpop.permute.xlu0 %3757
  %3759 = vrot.lane.b32.xlu0 %v3745, 21
  %v3760 = vpop.permute.xlu0 %3759
  %3761 = vrot.lane.b32.xlu0 %v3746, 21
  %v3762 = vpop.permute.xlu0 %3761
  %v3763 = vrot.slane %v3748, 4
  %v3764 = vrot.slane %v3750, 4
  %v3765 = vrot.slane %v3752, 4
  %v3766 = vrot.slane %v3754, 4
  %v3767 = vrot.slane %v3756, 4
  %v3768 = vrot.slane %v3758, 4
  %v3769 = vrot.slane %v3760, 4
  %v3770 = vrot.slane %v3762, 4
  %v3771 = vsel %vm611, %v3763, %v3748
  %v3772 = vsel %vm613, %v3763, %v3764
  %v3773 = vsel %vm611, %v3772, %v3750
  %v3774 = vsel %vm611, %v3765, %v3752
  %v3775 = vsel %vm613, %v3765, %v3766
  %v3776 = vsel %vm611, %v3775, %v3754
  %v3777 = vsel %vm611, %v3767, %v3756
  %v3778 = vsel %vm613, %v3767, %v3768
  %v3779 = vsel %vm611, %v3778, %v3758
  %v3780 = vsel %vm611, %v3769, %v3760
  %v3781 = vsel %vm613, %v3769, %v3770
  %v3782 = vsel %vm611, %v3781, %v3762
  %3791 = vst.msk [vmem:[#allocation2] sm:$0xff] %vm635, %v3771
  %3792 = vst.msk [vmem:[#allocation2 + $0x8] sm:$0xff] %vm639, %v3773
  %3793 = vst.msk [vmem:[#allocation2 + $0x10] sm:$0xff] %vm635, %v3774
  %3794 = vst.msk [vmem:[#allocation2 + $0x18] sm:$0xff] %vm639, %v3776
  %3795 = vst.msk [vmem:[#allocation2 + $0x20] sm:$0xff] %vm635, %v3777
  %3796 = vst.msk [vmem:[#allocation2 + $0x28] sm:$0xff] %vm639, %v3779
  %3797 = vst.msk [vmem:[#allocation2 + $0x30] sm:$0xff] %vm635, %v3780
  %3798 = vst.msk [vmem:[#allocation2 + $0x38] sm:$0xff] %vm639, %v3782
  %v3799 = vld [vmem:[#allocation2] sm:$0xff]
  %v3800 = vld [vmem:[#allocation2 + $0x8] sm:$0xff]
  %v3801 = vld [vmem:[#allocation2 + $0x10] sm:$0xff]
  %v3802 = vld [vmem:[#allocation2 + $0x18] sm:$0xff]
  %v3803 = vld [vmem:[#allocation2 + $0x20] sm:$0xff]
  %v3804 = vld [vmem:[#allocation2 + $0x28] sm:$0xff]
  %v3805 = vld [vmem:[#allocation2 + $0x30] sm:$0xff]
  %v3806 = vld [vmem:[#allocation2 + $0x38] sm:$0xff]
  %3807 = vst [vmem:[#allocation4] sm:$0xff] %v3799
  %3808 = vst.msk [vmem:[#allocation4 + $0x8] sm:$0xff] %vm657, %v3800
  %3809 = vst [vmem:[#allocation4 + $0x10] sm:$0xff] %v3801
  %3810 = vst.msk [vmem:[#allocation4 + $0x18] sm:$0xff] %vm657, %v3802
  %3811 = vst [vmem:[#allocation4 + $0x20] sm:$0xff] %v3803
  %3812 = vst.msk [vmem:[#allocation4 + $0x28] sm:$0xff] %vm657, %v3804
  %3813 = vst [vmem:[#allocation4 + $0x30] sm:$0xff] %v3805
  %3814 = vst.msk [vmem:[#allocation4 + $0x38] sm:$0xff] %vm657, %v3806
  %v3815 = vld [vmem:[#allocation2] sm:$0xff]
  %v3816 = vld [vmem:[#allocation2 + $0x8] sm:$0xff]
  %v3817 = vld [vmem:[#allocation2 + $0x10] sm:$0xff]
  %v3818 = vld [vmem:[#allocation2 + $0x18] sm:$0xff]
  %v3819 = vld [vmem:[#allocation2 + $0x20] sm:$0xff]
  %v3820 = vld [vmem:[#allocation2 + $0x28] sm:$0xff]
  %v3821 = vld [vmem:[#allocation2 + $0x30] sm:$0xff]
  %v3822 = vld [vmem:[#allocation2 + $0x38] sm:$0xff]
  %3831 = vrot.lane.b32.xlu0 %v3815, 127
  %v3832 = vpop.permute.xlu0 %3831
  %3833 = vrot.lane.b32.xlu0 %v3816, 127
  %v3834 = vpop.permute.xlu0 %3833
  %3835 = vrot.lane.b32.xlu0 %v3817, 127
  %v3836 = vpop.permute.xlu0 %3835
  %3837 = vrot.lane.b32.xlu0 %v3818, 127
  %v3838 = vpop.permute.xlu0 %3837
  %3839 = vrot.lane.b32.xlu0 %v3819, 127
  %v3840 = vpop.permute.xlu0 %3839
  %3841 = vrot.lane.b32.xlu0 %v3820, 127
  %v3842 = vpop.permute.xlu0 %3841
  %3843 = vrot.lane.b32.xlu0 %v3821, 127
  %v3844 = vpop.permute.xlu0 %3843
  %3845 = vrot.lane.b32.xlu0 %v3822, 127
  %v3846 = vpop.permute.xlu0 %3845
  %v3847 = vrot.slane %v3832, 4
  %v3848 = vrot.slane %v3834, 4
  %v3849 = vrot.slane %v3836, 4
  %v3850 = vrot.slane %v3838, 4
  %v3851 = vrot.slane %v3840, 4
  %v3852 = vrot.slane %v3842, 4
  %v3853 = vrot.slane %v3844, 4
  %v3854 = vrot.slane %v3846, 4
  %v3855 = vsel %vm613, %v3847, %v3848
  %v3856 = vsel %vm706, %v3832, %v3855
  %v3857 = vsel %vm706, %v3834, %v3848
  %v3858 = vsel %vm613, %v3849, %v3850
  %v3859 = vsel %vm706, %v3836, %v3858
  %v3860 = vsel %vm706, %v3838, %v3850
  %v3861 = vsel %vm613, %v3851, %v3852
  %v3862 = vsel %vm706, %v3840, %v3861
  %v3863 = vsel %vm706, %v3842, %v3852
  %v3864 = vsel %vm613, %v3853, %v3854
  %v3865 = vsel %vm706, %v3844, %v3864
  %v3866 = vsel %vm706, %v3846, %v3854
  %3875 = vst [vmem:[#allocation4 + $0x40] sm:$0xff] %v3856
  %3876 = vst.msk [vmem:[#allocation4 + $0x48] sm:$0xff] %vm657, %v3857
  %3877 = vst [vmem:[#allocation4 + $0x50] sm:$0xff] %v3859
  %3878 = vst.msk [vmem:[#allocation4 + $0x58] sm:$0xff] %vm657, %v3860
  %3879 = vst [vmem:[#allocation4 + $0x60] sm:$0xff] %v3862
  %3880 = vst.msk [vmem:[#allocation4 + $0x68] sm:$0xff] %vm657, %v3863
  %3881 = vst [vmem:[#allocation4 + $0x70] sm:$0xff] %v3865
  %3882 = vst.msk [vmem:[#allocation4 + $0x78] sm:$0xff] %vm657, %v3866
  %v3883 = vld [vmem:[#allocation2] sm:$0xff]
  %v3884 = vld [vmem:[#allocation2 + $0x8] sm:$0xff]
  %v3885 = vld [vmem:[#allocation2 + $0x10] sm:$0xff]
  %v3886 = vld [vmem:[#allocation2 + $0x18] sm:$0xff]
  %v3887 = vld [vmem:[#allocation2 + $0x20] sm:$0xff]
  %v3888 = vld [vmem:[#allocation2 + $0x28] sm:$0xff]
  %v3889 = vld [vmem:[#allocation2 + $0x30] sm:$0xff]
  %v3890 = vld [vmem:[#allocation2 + $0x38] sm:$0xff]
  %3899 = vrot.lane.b32.xlu0 %v3883, 126
  %v3900 = vpop.permute.xlu0 %3899
  %3901 = vrot.lane.b32.xlu0 %v3884, 126
  %v3902 = vpop.permute.xlu0 %3901
  %3903 = vrot.lane.b32.xlu0 %v3885, 126
  %v3904 = vpop.permute.xlu0 %3903
  %3905 = vrot.lane.b32.xlu0 %v3886, 126
  %v3906 = vpop.permute.xlu0 %3905
  %3907 = vrot.lane.b32.xlu0 %v3887, 126
  %v3908 = vpop.permute.xlu0 %3907
  %3909 = vrot.lane.b32.xlu0 %v3888, 126
  %v3910 = vpop.permute.xlu0 %3909
  %3911 = vrot.lane.b32.xlu0 %v3889, 126
  %v3912 = vpop.permute.xlu0 %3911
  %3913 = vrot.lane.b32.xlu0 %v3890, 126
  %v3914 = vpop.permute.xlu0 %3913
  %v3915 = vrot.slane %v3900, 4
  %v3916 = vrot.slane %v3902, 4
  %v3917 = vrot.slane %v3904, 4
  %v3918 = vrot.slane %v3906, 4
  %v3919 = vrot.slane %v3908, 4
  %v3920 = vrot.slane %v3910, 4
  %v3921 = vrot.slane %v3912, 4
  %v3922 = vrot.slane %v3914, 4
  %v3923 = vsel %vm613, %v3915, %v3916
  %v3924 = vsel %vm775, %v3900, %v3923
  %v3925 = vsel %vm775, %v3902, %v3916
  %v3926 = vsel %vm613, %v3917, %v3918
  %v3927 = vsel %vm775, %v3904, %v3926
  %v3928 = vsel %vm775, %v3906, %v3918
  %v3929 = vsel %vm613, %v3919, %v3920
  %v3930 = vsel %vm775, %v3908, %v3929
  %v3931 = vsel %vm775, %v3910, %v3920
  %v3932 = vsel %vm613, %v3921, %v3922
  %v3933 = vsel %vm775, %v3912, %v3932
  %v3934 = vsel %vm775, %v3914, %v3922
  %3943 = vst [vmem:[#allocation4 + $0x80] sm:$0xff] %v3924
  %3944 = vst.msk [vmem:[#allocation4 + $0x88] sm:$0xff] %vm657, %v3925
  %3945 = vst [vmem:[#allocation4 + $0x90] sm:$0xff] %v3927
  %3946 = vst.msk [vmem:[#allocation4 + $0x98] sm:$0xff] %vm657, %v3928
  %3947 = vst [vmem:[#allocation4 + $0xa0] sm:$0xff] %v3930
  %3948 = vst.msk [vmem:[#allocation4 + $0xa8] sm:$0xff] %vm657, %v3931
  %3949 = vst [vmem:[#allocation4 + $0xb0] sm:$0xff] %v3933
  %3950 = vst.msk [vmem:[#allocation4 + $0xb8] sm:$0xff] %vm657, %v3934
  %v3951 = vld [vmem:[#allocation2] sm:$0xff]
  %v3952 = vld [vmem:[#allocation2 + $0x8] sm:$0xff]
  %v3953 = vld [vmem:[#allocation2 + $0x10] sm:$0xff]
  %v3954 = vld [vmem:[#allocation2 + $0x18] sm:$0xff]
  %v3955 = vld [vmem:[#allocation2 + $0x20] sm:$0xff]
  %v3956 = vld [vmem:[#allocation2 + $0x28] sm:$0xff]
  %v3957 = vld [vmem:[#allocation2 + $0x30] sm:$0xff]
  %v3958 = vld [vmem:[#allocation2 + $0x38] sm:$0xff]
  %3967 = vrot.lane.b32.xlu0 %v3951, 108
  %v3968 = vpop.permute.xlu0 %3967
  %3969 = vrot.lane.b32.xlu0 %v3952, 108
  %v3970 = vpop.permute.xlu0 %3969
  %3971 = vrot.lane.b32.xlu0 %v3953, 108
  %v3972 = vpop.permute.xlu0 %3971
  %3973 = vrot.lane.b32.xlu0 %v3954, 108
  %v3974 = vpop.permute.xlu0 %3973
  %3975 = vrot.lane.b32.xlu0 %v3955, 108
  %v3976 = vpop.permute.xlu0 %3975
  %3977 = vrot.lane.b32.xlu0 %v3956, 108
  %v3978 = vpop.permute.xlu0 %3977
  %3979 = vrot.lane.b32.xlu0 %v3957, 108
  %v3980 = vpop.permute.xlu0 %3979
  %3981 = vrot.lane.b32.xlu0 %v3958, 108
  %v3982 = vpop.permute.xlu0 %3981
  %v3983 = vrot.slane %v3968, 4
  %v3984 = vrot.slane %v3970, 4
  %v3985 = vrot.slane %v3972, 4
  %v3986 = vrot.slane %v3974, 4
  %v3987 = vrot.slane %v3976, 4
  %v3988 = vrot.slane %v3978, 4
  %v3989 = vrot.slane %v3980, 4
  %v3990 = vrot.slane %v3982, 4
  %v3991 = vsel %vm613, %v3983, %v3984
  %v3992 = vsel %vm844, %v3968, %v3991
  %v3993 = vsel %vm844, %v3970, %v3984
  %v3994 = vsel %vm613, %v3985, %v3986
  %v3995 = vsel %vm844, %v3972, %v3994
  %v3996 = vsel %vm844, %v3974, %v3986
  %v3997 = vsel %vm613, %v3987, %v3988
  %v3998 = vsel %vm844, %v3976, %v3997
  %v3999 = vsel %vm844, %v3978, %v3988
  %v4000 = vsel %vm613, %v3989, %v3990
  %v4001 = vsel %vm844, %v3980, %v4000
  %v4002 = vsel %vm844, %v3982, %v3990
  %4011 = vst [vmem:[#allocation4 + $0xc0] sm:$0xff] %v3992
  %4012 = vst.msk [vmem:[#allocation4 + $0xc8] sm:$0xff] %vm657, %v3993
  %4013 = vst [vmem:[#allocation4 + $0xd0] sm:$0xff] %v3995
  %4014 = vst.msk [vmem:[#allocation4 + $0xd8] sm:$0xff] %vm657, %v3996
  %4015 = vst [vmem:[#allocation4 + $0xe0] sm:$0xff] %v3998
  %4016 = vst.msk [vmem:[#allocation4 + $0xe8] sm:$0xff] %vm657, %v3999
  %4017 = vst [vmem:[#allocation4 + $0xf0] sm:$0xff] %v4001
  %4018 = vst.msk [vmem:[#allocation4 + $0xf8] sm:$0xff] %vm657, %v4002
  %v4019 = vld [vmem:[#allocation2] sm:$0xff]
  %v4020 = vld [vmem:[#allocation2 + $0x8] sm:$0xff]
  %v4021 = vld [vmem:[#allocation2 + $0x10] sm:$0xff]
  %v4022 = vld [vmem:[#allocation2 + $0x18] sm:$0xff]
  %v4023 = vld [vmem:[#allocation2 + $0x20] sm:$0xff]
  %v4024 = vld [vmem:[#allocation2 + $0x28] sm:$0xff]
  %v4025 = vld [vmem:[#allocation2 + $0x30] sm:$0xff]
  %v4026 = vld [vmem:[#allocation2 + $0x38] sm:$0xff]
  %4035 = vrot.lane.b32.xlu0 %v4019, 107
  %v4036 = vpop.permute.xlu0 %4035
  %4037 = vrot.lane.b32.xlu0 %v4020, 107
  %v4038 = vpop.permute.xlu0 %4037
  %4039 = vrot.lane.b32.xlu0 %v4021, 107
  %v4040 = vpop.permute.xlu0 %4039
  %4041 = vrot.lane.b32.xlu0 %v4022, 107
  %v4042 = vpop.permute.xlu0 %4041
  %4043 = vrot.lane.b32.xlu0 %v4023, 107
  %v4044 = vpop.permute.xlu0 %4043
  %4045 = vrot.lane.b32.xlu0 %v4024, 107
  %v4046 = vpop.permute.xlu0 %4045
  %4047 = vrot.lane.b32.xlu0 %v4025, 107
  %v4048 = vpop.permute.xlu0 %4047
  %4049 = vrot.lane.b32.xlu0 %v4026, 107
  %v4050 = vpop.permute.xlu0 %4049
  %v4051 = vrot.slane %v4036, 4
  %v4052 = vrot.slane %v4038, 4
  %v4053 = vrot.slane %v4040, 4
  %v4054 = vrot.slane %v4042, 4
  %v4055 = vrot.slane %v4044, 4
  %v4056 = vrot.slane %v4046, 4
  %v4057 = vrot.slane %v4048, 4
  %v4058 = vrot.slane %v4050, 4
  %v4059 = vsel %vm613, %v4051, %v4052
  %v4060 = vsel %vm913, %v4036, %v4059
  %v4061 = vsel %vm913, %v4038, %v4052
  %v4062 = vsel %vm613, %v4053, %v4054
  %v4063 = vsel %vm913, %v4040, %v4062
  %v4064 = vsel %vm913, %v4042, %v4054
  %v4065 = vsel %vm613, %v4055, %v4056
  %v4066 = vsel %vm913, %v4044, %v4065
  %v4067 = vsel %vm913, %v4046, %v4056
  %v4068 = vsel %vm613, %v4057, %v4058
  %v4069 = vsel %vm913, %v4048, %v4068
  %v4070 = vsel %vm913, %v4050, %v4058
  %4079 = vst [vmem:[#allocation4 + $0x100] sm:$0xff] %v4060
  %4080 = vst.msk [vmem:[#allocation4 + $0x108] sm:$0xff] %vm657, %v4061
  %4081 = vst [vmem:[#allocation4 + $0x110] sm:$0xff] %v4063
  %4082 = vst.msk [vmem:[#allocation4 + $0x118] sm:$0xff] %vm657, %v4064
  %4083 = vst [vmem:[#allocation4 + $0x120] sm:$0xff] %v4066
  %4084 = vst.msk [vmem:[#allocation4 + $0x128] sm:$0xff] %vm657, %v4067
  %4085 = vst [vmem:[#allocation4 + $0x130] sm:$0xff] %v4069
  %4086 = vst.msk [vmem:[#allocation4 + $0x138] sm:$0xff] %vm657, %v4070
  %v4087 = vld [vmem:[#allocation2] sm:$0xff]
  %v4088 = vld [vmem:[#allocation2 + $0x8] sm:$0xff]
  %v4089 = vld [vmem:[#allocation2 + $0x10] sm:$0xff]
  %v4090 = vld [vmem:[#allocation2 + $0x18] sm:$0xff]
  %v4091 = vld [vmem:[#allocation2 + $0x20] sm:$0xff]
  %v4092 = vld [vmem:[#allocation2 + $0x28] sm:$0xff]
  %v4093 = vld [vmem:[#allocation2 + $0x30] sm:$0xff]
  %v4094 = vld [vmem:[#allocation2 + $0x38] sm:$0xff]
  %4103 = vrot.lane.b32.xlu0 %v4087, 106
  %v4104 = vpop.permute.xlu0 %4103
  %4105 = vrot.lane.b32.xlu0 %v4088, 106
  %v4106 = vpop.permute.xlu0 %4105
  %4107 = vrot.lane.b32.xlu0 %v4089, 106
  %v4108 = vpop.permute.xlu0 %4107
  %4109 = vrot.lane.b32.xlu0 %v4090, 106
  %v4110 = vpop.permute.xlu0 %4109
  %4111 = vrot.lane.b32.xlu0 %v4091, 106
  %v4112 = vpop.permute.xlu0 %4111
  %4113 = vrot.lane.b32.xlu0 %v4092, 106
  %v4114 = vpop.permute.xlu0 %4113
  %4115 = vrot.lane.b32.xlu0 %v4093, 106
  %v4116 = vpop.permute.xlu0 %4115
  %4117 = vrot.lane.b32.xlu0 %v4094, 106
  %v4118 = vpop.permute.xlu0 %4117
  %v4119 = vrot.slane %v4104, 4
  %v4120 = vrot.slane %v4106, 4
  %v4121 = vrot.slane %v4108, 4
  %v4122 = vrot.slane %v4110, 4
  %v4123 = vrot.slane %v4112, 4
  %v4124 = vrot.slane %v4114, 4
  %v4125 = vrot.slane %v4116, 4
  %v4126 = vrot.slane %v4118, 4
  %v4127 = vsel %vm613, %v4119, %v4120
  %v4128 = vsel %vm982, %v4104, %v4127
  %v4129 = vsel %vm982, %v4106, %v4120
  %v4130 = vsel %vm613, %v4121, %v4122
  %v4131 = vsel %vm982, %v4108, %v4130
  %v4132 = vsel %vm982, %v4110, %v4122
  %v4133 = vsel %vm613, %v4123, %v4124
  %v4134 = vsel %vm982, %v4112, %v4133
  %v4135 = vsel %vm982, %v4114, %v4124
  %v4136 = vsel %vm613, %v4125, %v4126
  %v4137 = vsel %vm982, %v4116, %v4136
  %v4138 = vsel %vm982, %v4118, %v4126
  %4147 = vst [vmem:[#allocation4 + $0x140] sm:$0xff] %v4128
  %4148 = vst.msk [vmem:[#allocation4 + $0x148] sm:$0xff] %vm657, %v4129
  %4149 = vst [vmem:[#allocation4 + $0x150] sm:$0xff] %v4131
  %4150 = vst.msk [vmem:[#allocation4 + $0x158] sm:$0xff] %vm657, %v4132
  %4151 = vst [vmem:[#allocation4 + $0x160] sm:$0xff] %v4134
  %4152 = vst.msk [vmem:[#allocation4 + $0x168] sm:$0xff] %vm657, %v4135
  %4153 = vst [vmem:[#allocation4 + $0x170] sm:$0xff] %v4137
  %4154 = vst.msk [vmem:[#allocation4 + $0x178] sm:$0xff] %vm657, %v4138
  %v4155 = vld [vmem:[#allocation2] sm:$0xff]
  %v4156 = vld [vmem:[#allocation2 + $0x8] sm:$0xff]
  %v4157 = vld [vmem:[#allocation2 + $0x10] sm:$0xff]
  %v4158 = vld [vmem:[#allocation2 + $0x18] sm:$0xff]
  %v4159 = vld [vmem:[#allocation2 + $0x20] sm:$0xff]
  %v4160 = vld [vmem:[#allocation2 + $0x28] sm:$0xff]
  %v4161 = vld [vmem:[#allocation2 + $0x30] sm:$0xff]
  %v4162 = vld [vmem:[#allocation2 + $0x38] sm:$0xff]
  %4171 = vrot.lane.b32.xlu0 %v4155, 88
  %v4172 = vpop.permute.xlu0 %4171
  %4173 = vrot.lane.b32.xlu0 %v4156, 88
  %v4174 = vpop.permute.xlu0 %4173
  %4175 = vrot.lane.b32.xlu0 %v4157, 88
  %v4176 = vpop.permute.xlu0 %4175
  %4177 = vrot.lane.b32.xlu0 %v4158, 88
  %v4178 = vpop.permute.xlu0 %4177
  %4179 = vrot.lane.b32.xlu0 %v4159, 88
  %v4180 = vpop.permute.xlu0 %4179
  %4181 = vrot.lane.b32.xlu0 %v4160, 88
  %v4182 = vpop.permute.xlu0 %4181
  %4183 = vrot.lane.b32.xlu0 %v4161, 88
  %v4184 = vpop.permute.xlu0 %4183
  %4185 = vrot.lane.b32.xlu0 %v4162, 88
  %v4186 = vpop.permute.xlu0 %4185
  %v4187 = vrot.slane %v4172, 4
  %v4188 = vrot.slane %v4174, 4
  %v4189 = vrot.slane %v4176, 4
  %v4190 = vrot.slane %v4178, 4
  %v4191 = vrot.slane %v4180, 4
  %v4192 = vrot.slane %v4182, 4
  %v4193 = vrot.slane %v4184, 4
  %v4194 = vrot.slane %v4186, 4
  %v4195 = vsel %vm613, %v4187, %v4188
  %v4196 = vsel %vm1051, %v4172, %v4195
  %v4197 = vsel %vm1051, %v4174, %v4188
  %v4198 = vsel %vm613, %v4189, %v4190
  %v4199 = vsel %vm1051, %v4176, %v4198
  %v4200 = vsel %vm1051, %v4178, %v4190
  %v4201 = vsel %vm613, %v4191, %v4192
  %v4202 = vsel %vm1051, %v4180, %v4201
  %v4203 = vsel %vm1051, %v4182, %v4192
  %v4204 = vsel %vm613, %v4193, %v4194
  %v4205 = vsel %vm1051, %v4184, %v4204
  %v4206 = vsel %vm1051, %v4186, %v4194
  %4215 = vst [vmem:[#allocation4 + $0x180] sm:$0xff] %v4196
  %4216 = vst.msk [vmem:[#allocation4 + $0x188] sm:$0xff] %vm657, %v4197
  %4217 = vst [vmem:[#allocation4 + $0x190] sm:$0xff] %v4199
  %4218 = vst.msk [vmem:[#allocation4 + $0x198] sm:$0xff] %vm657, %v4200
  %4219 = vst [vmem:[#allocation4 + $0x1a0] sm:$0xff] %v4202
  %4220 = vst.msk [vmem:[#allocation4 + $0x1a8] sm:$0xff] %vm657, %v4203
  %4221 = vst [vmem:[#allocation4 + $0x1b0] sm:$0xff] %v4205
  %4222 = vst.msk [vmem:[#allocation4 + $0x1b8] sm:$0xff] %vm657, %v4206
  %v4223 = vld [vmem:[#allocation2] sm:$0xff]
  %v4224 = vld [vmem:[#allocation2 + $0x8] sm:$0xff]
  %v4225 = vld [vmem:[#allocation2 + $0x10] sm:$0xff]
  %v4226 = vld [vmem:[#allocation2 + $0x18] sm:$0xff]
  %v4227 = vld [vmem:[#allocation2 + $0x20] sm:$0xff]
  %v4228 = vld [vmem:[#allocation2 + $0x28] sm:$0xff]
  %v4229 = vld [vmem:[#allocation2 + $0x30] sm:$0xff]
  %v4230 = vld [vmem:[#allocation2 + $0x38] sm:$0xff]
  %4239 = vrot.lane.b32.xlu0 %v4223, 87
  %v4240 = vpop.permute.xlu0 %4239
  %4241 = vrot.lane.b32.xlu0 %v4224, 87
  %v4242 = vpop.permute.xlu0 %4241
  %4243 = vrot.lane.b32.xlu0 %v4225, 87
  %v4244 = vpop.permute.xlu0 %4243
  %4245 = vrot.lane.b32.xlu0 %v4226, 87
  %v4246 = vpop.permute.xlu0 %4245
  %4247 = vrot.lane.b32.xlu0 %v4227, 87
  %v4248 = vpop.permute.xlu0 %4247
  %4249 = vrot.lane.b32.xlu0 %v4228, 87
  %v4250 = vpop.permute.xlu0 %4249
  %4251 = vrot.lane.b32.xlu0 %v4229, 87
  %v4252 = vpop.permute.xlu0 %4251
  %4253 = vrot.lane.b32.xlu0 %v4230, 87
  %v4254 = vpop.permute.xlu0 %4253
  %v4255 = vrot.slane %v4240, 4
  %v4256 = vrot.slane %v4242, 4
  %v4257 = vrot.slane %v4244, 4
  %v4258 = vrot.slane %v4246, 4
  %v4259 = vrot.slane %v4248, 4
  %v4260 = vrot.slane %v4250, 4
  %v4261 = vrot.slane %v4252, 4
  %v4262 = vrot.slane %v4254, 4
  %v4263 = vsel %vm613, %v4255, %v4256
  %v4264 = vsel %vm1120, %v4240, %v4263
  %v4265 = vsel %vm1120, %v4242, %v4256
  %v4266 = vsel %vm613, %v4257, %v4258
  %v4267 = vsel %vm1120, %v4244, %v4266
  %v4268 = vsel %vm1120, %v4246, %v4258
  %v4269 = vsel %vm613, %v4259, %v4260
  %v4270 = vsel %vm1120, %v4248, %v4269
  %v4271 = vsel %vm1120, %v4250, %v4260
  %v4272 = vsel %vm613, %v4261, %v4262
  %v4273 = vsel %vm1120, %v4252, %v4272
  %v4274 = vsel %vm1120, %v4254, %v4262
  %4283 = vst [vmem:[#allocation4 + $0x1c0] sm:$0xff] %v4264
  %4284 = vst.msk [vmem:[#allocation4 + $0x1c8] sm:$0xff] %vm657, %v4265
  %4285 = vst [vmem:[#allocation4 + $0x1d0] sm:$0xff] %v4267
  %4286 = vst.msk [vmem:[#allocation4 + $0x1d8] sm:$0xff] %vm657, %v4268
  %4287 = vst [vmem:[#allocation4 + $0x1e0] sm:$0xff] %v4270
  %4288 = vst.msk [vmem:[#allocation4 + $0x1e8] sm:$0xff] %vm657, %v4271
  %4289 = vst [vmem:[#allocation4 + $0x1f0] sm:$0xff] %v4273
  %4290 = vst.msk [vmem:[#allocation4 + $0x1f8] sm:$0xff] %vm657, %v4274
  %v4291 = vld [vmem:[#allocation2] sm:$0xff]
  %v4292 = vld [vmem:[#allocation2 + $0x8] sm:$0xff]
  %v4293 = vld [vmem:[#allocation2 + $0x10] sm:$0xff]
  %v4294 = vld [vmem:[#allocation2 + $0x18] sm:$0xff]
  %v4295 = vld [vmem:[#allocation2 + $0x20] sm:$0xff]
  %v4296 = vld [vmem:[#allocation2 + $0x28] sm:$0xff]
  %v4297 = vld [vmem:[#allocation2 + $0x30] sm:$0xff]
  %v4298 = vld [vmem:[#allocation2 + $0x38] sm:$0xff]
  %4307 = vrot.lane.b32.xlu0 %v4291, 86
  %v4308 = vpop.permute.xlu0 %4307
  %4309 = vrot.lane.b32.xlu0 %v4292, 86
  %v4310 = vpop.permute.xlu0 %4309
  %4311 = vrot.lane.b32.xlu0 %v4293, 86
  %v4312 = vpop.permute.xlu0 %4311
  %4313 = vrot.lane.b32.xlu0 %v4294, 86
  %v4314 = vpop.permute.xlu0 %4313
  %4315 = vrot.lane.b32.xlu0 %v4295, 86
  %v4316 = vpop.permute.xlu0 %4315
  %4317 = vrot.lane.b32.xlu0 %v4296, 86
  %v4318 = vpop.permute.xlu0 %4317
  %4319 = vrot.lane.b32.xlu0 %v4297, 86
  %v4320 = vpop.permute.xlu0 %4319
  %4321 = vrot.lane.b32.xlu0 %v4298, 86
  %v4322 = vpop.permute.xlu0 %4321
  %v4323 = vrot.slane %v4308, 4
  %v4324 = vrot.slane %v4310, 4
  %v4325 = vrot.slane %v4312, 4
  %v4326 = vrot.slane %v4314, 4
  %v4327 = vrot.slane %v4316, 4
  %v4328 = vrot.slane %v4318, 4
  %v4329 = vrot.slane %v4320, 4
  %v4330 = vrot.slane %v4322, 4
  %v4331 = vsel %vm613, %v4323, %v4324
  %v4332 = vsel %vm1189, %v4308, %v4331
  %v4333 = vsel %vm1189, %v4310, %v4324
  %v4334 = vsel %vm613, %v4325, %v4326
  %v4335 = vsel %vm1189, %v4312, %v4334
  %v4336 = vsel %vm1189, %v4314, %v4326
  %v4337 = vsel %vm613, %v4327, %v4328
  %v4338 = vsel %vm1189, %v4316, %v4337
  %v4339 = vsel %vm1189, %v4318, %v4328
  %v4340 = vsel %vm613, %v4329, %v4330
  %v4341 = vsel %vm1189, %v4320, %v4340
  %v4342 = vsel %vm1189, %v4322, %v4330
  %4351 = vst [vmem:[#allocation4 + $0x200] sm:$0xff] %v4332
  %4352 = vst.msk [vmem:[#allocation4 + $0x208] sm:$0xff] %vm657, %v4333
  %4353 = vst [vmem:[#allocation4 + $0x210] sm:$0xff] %v4335
  %4354 = vst.msk [vmem:[#allocation4 + $0x218] sm:$0xff] %vm657, %v4336
  %4355 = vst [vmem:[#allocation4 + $0x220] sm:$0xff] %v4338
  %4356 = vst.msk [vmem:[#allocation4 + $0x228] sm:$0xff] %vm657, %v4339
  %4357 = vst [vmem:[#allocation4 + $0x230] sm:$0xff] %v4341
  %4358 = vst.msk [vmem:[#allocation4 + $0x238] sm:$0xff] %vm657, %v4342
  %s4359 = scalar_lea.vmem %s2, 96
  %v4360 = vld [vmem:[%s4359] sm:$0xff]
  %v4361 = vld [vmem:[%s4359 + $0x8] sm:$0xf]
  %v4362 = vld [vmem:[%s4359 + $0xc] sm:$0xff]
  %v4363 = vld [vmem:[%s4359 + $0x14] sm:$0xf]
  %v4364 = vld [vmem:[%s4359 + $0x18] sm:$0xff]
  %v4365 = vld [vmem:[%s4359 + $0x20] sm:$0xf]
  %v4366 = vld [vmem:[%s4359 + $0x24] sm:$0xff]
  %v4367 = vld [vmem:[%s4359 + $0x2c] sm:$0xf]
  %v4368 = vld [vmem:[#allocation4] sm:$0xff]
  %v4369 = vld [vmem:[#allocation4 + $0x8] sm:$0xff]
  %v4370 = vld [vmem:[#allocation4 + $0x10] sm:$0xff]
  %v4371 = vld [vmem:[#allocation4 + $0x18] sm:$0xff]
  %v4372 = vld [vmem:[#allocation4 + $0x20] sm:$0xff]
  %v4373 = vld [vmem:[#allocation4 + $0x28] sm:$0xff]
  %v4374 = vld [vmem:[#allocation4 + $0x30] sm:$0xff]
  %v4375 = vld [vmem:[#allocation4 + $0x38] sm:$0xff]
  %v4376 = vld [vmem:[#allocation4 + $0x40] sm:$0xff]
  %v4377 = vld [vmem:[#allocation4 + $0x48] sm:$0xff]
  %v4378 = vld [vmem:[#allocation4 + $0x50] sm:$0xff]
  %v4379 = vld [vmem:[#allocation4 + $0x58] sm:$0xff]
  %v4380 = vld [vmem:[#allocation4 + $0x60] sm:$0xff]
  %v4381 = vld [vmem:[#allocation4 + $0x68] sm:$0xff]
  %v4382 = vld [vmem:[#allocation4 + $0x70] sm:$0xff]
  %v4383 = vld [vmem:[#allocation4 + $0x78] sm:$0xff]
  %v4384 = vld [vmem:[#allocation4 + $0x80] sm:$0xff]
  %v4385 = vld [vmem:[#allocation4 + $0x88] sm:$0xff]
  %v4386 = vld [vmem:[#allocation4 + $0x90] sm:$0xff]
  %v4387 = vld [vmem:[#allocation4 + $0x98] sm:$0xff]
  %v4388 = vld [vmem:[#allocation4 + $0xa0] sm:$0xff]
  %v4389 = vld [vmem:[#allocation4 + $0xa8] sm:$0xff]
  %v4390 = vld [vmem:[#allocation4 + $0xb0] sm:$0xff]
  %v4391 = vld [vmem:[#allocation4 + $0xb8] sm:$0xff]
  %v4392 = vld [vmem:[#allocation4 + $0xc0] sm:$0xff]
  %v4393 = vld [vmem:[#allocation4 + $0xc8] sm:$0xff]
  %v4394 = vld [vmem:[#allocation4 + $0xd0] sm:$0xff]
  %v4395 = vld [vmem:[#allocation4 + $0xd8] sm:$0xff]
  %v4396 = vld [vmem:[#allocation4 + $0xe0] sm:$0xff]
  %v4397 = vld [vmem:[#allocation4 + $0xe8] sm:$0xff]
  %v4398 = vld [vmem:[#allocation4 + $0xf0] sm:$0xff]
  %v4399 = vld [vmem:[#allocation4 + $0xf8] sm:$0xff]
  %v4400 = vld [vmem:[#allocation4 + $0x100] sm:$0xff]
  %v4401 = vld [vmem:[#allocation4 + $0x108] sm:$0xff]
  %v4402 = vld [vmem:[#allocation4 + $0x110] sm:$0xff]
  %v4403 = vld [vmem:[#allocation4 + $0x118] sm:$0xff]
  %v4404 = vld [vmem:[#allocation4 + $0x120] sm:$0xff]
  %v4405 = vld [vmem:[#allocation4 + $0x128] sm:$0xff]
  %v4406 = vld [vmem:[#allocation4 + $0x130] sm:$0xff]
  %v4407 = vld [vmem:[#allocation4 + $0x138] sm:$0xff]
  %v4408 = vld [vmem:[#allocation4 + $0x140] sm:$0xff]
  %v4409 = vld [vmem:[#allocation4 + $0x148] sm:$0xff]
  %v4410 = vld [vmem:[#allocation4 + $0x150] sm:$0xff]
  %v4411 = vld [vmem:[#allocation4 + $0x158] sm:$0xff]
  %v4412 = vld [vmem:[#allocation4 + $0x160] sm:$0xff]
  %v4413 = vld [vmem:[#allocation4 + $0x168] sm:$0xff]
  %v4414 = vld [vmem:[#allocation4 + $0x170] sm:$0xff]
  %v4415 = vld [vmem:[#allocation4 + $0x178] sm:$0xff]
  %v4416 = vld [vmem:[#allocation4 + $0x180] sm:$0xff]
  %v4417 = vld [vmem:[#allocation4 + $0x188] sm:$0xff]
  %v4418 = vld [vmem:[#allocation4 + $0x190] sm:$0xff]
  %v4419 = vld [vmem:[#allocation4 + $0x198] sm:$0xff]
  %v4420 = vld [vmem:[#allocation4 + $0x1a0] sm:$0xff]
  %v4421 = vld [vmem:[#allocation4 + $0x1a8] sm:$0xff]
  %v4422 = vld [vmem:[#allocation4 + $0x1b0] sm:$0xff]
  %v4423 = vld [vmem:[#allocation4 + $0x1b8] sm:$0xff]
  %v4424 = vld [vmem:[#allocation4 + $0x1c0] sm:$0xff]
  %v4425 = vld [vmem:[#allocation4 + $0x1c8] sm:$0xff]
  %v4426 = vld [vmem:[#allocation4 + $0x1d0] sm:$0xff]
  %v4427 = vld [vmem:[#allocation4 + $0x1d8] sm:$0xff]
  %v4428 = vld [vmem:[#allocation4 + $0x1e0] sm:$0xff]
  %v4429 = vld [vmem:[#allocation4 + $0x1e8] sm:$0xff]
  %v4430 = vld [vmem:[#allocation4 + $0x1f0] sm:$0xff]
  %v4431 = vld [vmem:[#allocation4 + $0x1f8] sm:$0xff]
  %v4432 = vld [vmem:[#allocation4 + $0x200] sm:$0xff]
  %v4433 = vld [vmem:[#allocation4 + $0x208] sm:$0xff]
  %v4434 = vld [vmem:[#allocation4 + $0x210] sm:$0xff]
  %v4435 = vld [vmem:[#allocation4 + $0x218] sm:$0xff]
  %v4436 = vld [vmem:[#allocation4 + $0x220] sm:$0xff]
  %v4437 = vld [vmem:[#allocation4 + $0x228] sm:$0xff]
  %v4438 = vld [vmem:[#allocation4 + $0x230] sm:$0xff]
  %v4439 = vld [vmem:[#allocation4 + $0x238] sm:$0xff]
  %v4448 = vunpack.c.l.b16 %v4360
  %v4449 = vunpack.c.h.b16 %v4360
  %v4450 = vunpack.c.l.b16 %v4361
  %v4451 = vunpack.c.l.b16 %v4362
  %v4452 = vunpack.c.h.b16 %v4362
  %v4453 = vunpack.c.l.b16 %v4363
  %v4454 = vunpack.c.l.b16 %v4364
  %v4455 = vunpack.c.h.b16 %v4364
  %v4456 = vunpack.c.l.b16 %v4365
  %v4457 = vunpack.c.l.b16 %v4366
  %v4458 = vunpack.c.h.b16 %v4366
  %v4459 = vunpack.c.l.b16 %v4367
  %v4460 = vpack.c.b16 %v4451, %v4448
  %v4461 = vpack.c.b16 %v4452, %v4449
  %v4462 = vpack.c.b16 %v4453, %v4450
  %v4463 = vpack.c.b16 %v4457, %v4454
  %v4464 = vpack.c.b16 %v4458, %v4455
  %v4465 = vpack.c.b16 %v4459, %v4456
  %v4542 = vunpack.c.l.b16 %v4368
  %v4543 = vunpack.c.h.b16 %v4368
  %v4544 = vunpack.c.l.b16 %v4369
  %v4545 = vunpack.c.h.b16 %v4369
  %v4546 = vunpack.c.l.b16 %v4370
  %v4547 = vunpack.c.h.b16 %v4370
  %v4548 = vunpack.c.l.b16 %v4371
  %v4549 = vunpack.c.h.b16 %v4371
  %v4550 = vunpack.c.l.b16 %v4372
  %v4551 = vunpack.c.h.b16 %v4372
  %v4552 = vunpack.c.l.b16 %v4373
  %v4553 = vunpack.c.h.b16 %v4373
  %v4554 = vunpack.c.l.b16 %v4374
  %v4555 = vunpack.c.h.b16 %v4374
  %v4556 = vunpack.c.l.b16 %v4375
  %v4557 = vunpack.c.h.b16 %v4375
  %v4558 = vunpack.c.l.b16 %v4376
  %v4559 = vunpack.c.h.b16 %v4376
  %v4560 = vunpack.c.l.b16 %v4377
  %v4561 = vunpack.c.h.b16 %v4377
  %v4562 = vunpack.c.l.b16 %v4378
  %v4563 = vunpack.c.h.b16 %v4378
  %v4564 = vunpack.c.l.b16 %v4379
  %v4565 = vunpack.c.h.b16 %v4379
  %v4566 = vunpack.c.l.b16 %v4380
  %v4567 = vunpack.c.h.b16 %v4380
  %v4568 = vunpack.c.l.b16 %v4381
  %v4569 = vunpack.c.h.b16 %v4381
  %v4570 = vunpack.c.l.b16 %v4382
  %v4571 = vunpack.c.h.b16 %v4382
  %v4572 = vunpack.c.l.b16 %v4383
  %v4573 = vunpack.c.h.b16 %v4383
  %v4574 = vunpack.c.l.b16 %v4384
  %v4575 = vunpack.c.h.b16 %v4384
  %v4576 = vunpack.c.l.b16 %v4385
  %v4577 = vunpack.c.h.b16 %v4385
  %v4578 = vunpack.c.l.b16 %v4386
  %v4579 = vunpack.c.h.b16 %v4386
  %v4580 = vunpack.c.l.b16 %v4387
  %v4581 = vunpack.c.h.b16 %v4387
  %v4582 = vunpack.c.l.b16 %v4388
  %v4583 = vunpack.c.h.b16 %v4388
  %v4584 = vunpack.c.l.b16 %v4389
  %v4585 = vunpack.c.h.b16 %v4389
  %v4586 = vunpack.c.l.b16 %v4390
  %v4587 = vunpack.c.h.b16 %v4390
  %v4588 = vunpack.c.l.b16 %v4391
  %v4589 = vunpack.c.h.b16 %v4391
  %v4590 = vunpack.c.l.b16 %v4392
  %v4591 = vunpack.c.h.b16 %v4392
  %v4592 = vunpack.c.l.b16 %v4393
  %v4593 = vunpack.c.h.b16 %v4393
  %v4594 = vunpack.c.l.b16 %v4394
  %v4595 = vunpack.c.h.b16 %v4394
  %v4596 = vunpack.c.l.b16 %v4395
  %v4597 = vunpack.c.h.b16 %v4395
  %v4598 = vunpack.c.l.b16 %v4396
  %v4599 = vunpack.c.h.b16 %v4396
  %v4600 = vunpack.c.l.b16 %v4397
  %v4601 = vunpack.c.h.b16 %v4397
  %v4602 = vunpack.c.l.b16 %v4398
  %v4603 = vunpack.c.h.b16 %v4398
  %v4604 = vunpack.c.l.b16 %v4399
  %v4605 = vunpack.c.h.b16 %v4399
  %v4606 = vunpack.c.l.b16 %v4400
  %v4607 = vunpack.c.h.b16 %v4400
  %v4608 = vunpack.c.l.b16 %v4401
  %v4609 = vunpack.c.h.b16 %v4401
  %v4610 = vunpack.c.l.b16 %v4402
  %v4611 = vunpack.c.h.b16 %v4402
  %v4612 = vunpack.c.l.b16 %v4403
  %v4613 = vunpack.c.h.b16 %v4403
  %v4614 = vunpack.c.l.b16 %v4404
  %v4615 = vunpack.c.h.b16 %v4404
  %v4616 = vunpack.c.l.b16 %v4405
  %v4617 = vunpack.c.h.b16 %v4405
  %v4618 = vunpack.c.l.b16 %v4406
  %v4619 = vunpack.c.h.b16 %v4406
  %v4620 = vunpack.c.l.b16 %v4407
  %v4621 = vunpack.c.h.b16 %v4407
  %v4622 = vunpack.c.l.b16 %v4408
  %v4623 = vunpack.c.h.b16 %v4408
  %v4624 = vunpack.c.l.b16 %v4409
  %v4625 = vunpack.c.h.b16 %v4409
  %v4626 = vunpack.c.l.b16 %v4410
  %v4627 = vunpack.c.h.b16 %v4410
  %v4628 = vunpack.c.l.b16 %v4411
  %v4629 = vunpack.c.h.b16 %v4411
  %v4630 = vunpack.c.l.b16 %v4412
  %v4631 = vunpack.c.h.b16 %v4412
  %v4632 = vunpack.c.l.b16 %v4413
  %v4633 = vunpack.c.h.b16 %v4413
  %v4634 = vunpack.c.l.b16 %v4414
  %v4635 = vunpack.c.h.b16 %v4414
  %v4636 = vunpack.c.l.b16 %v4415
  %v4637 = vunpack.c.h.b16 %v4415
  %v4638 = vunpack.c.l.b16 %v4416
  %v4639 = vunpack.c.h.b16 %v4416
  %v4640 = vunpack.c.l.b16 %v4417
  %v4641 = vunpack.c.h.b16 %v4417
  %v4642 = vunpack.c.l.b16 %v4418
  %v4643 = vunpack.c.h.b16 %v4418
  %v4644 = vunpack.c.l.b16 %v4419
  %v4645 = vunpack.c.h.b16 %v4419
  %v4646 = vunpack.c.l.b16 %v4420
  %v4647 = vunpack.c.h.b16 %v4420
  %v4648 = vunpack.c.l.b16 %v4421
  %v4649 = vunpack.c.h.b16 %v4421
  %v4650 = vunpack.c.l.b16 %v4422
  %v4651 = vunpack.c.h.b16 %v4422
  %v4652 = vunpack.c.l.b16 %v4423
  %v4653 = vunpack.c.h.b16 %v4423
  %v4654 = vunpack.c.l.b16 %v4424
  %v4655 = vunpack.c.h.b16 %v4424
  %v4656 = vunpack.c.l.b16 %v4425
  %v4657 = vunpack.c.h.b16 %v4425
  %v4658 = vunpack.c.l.b16 %v4426
  %v4659 = vunpack.c.h.b16 %v4426
  %v4660 = vunpack.c.l.b16 %v4427
  %v4661 = vunpack.c.h.b16 %v4427
  %v4662 = vunpack.c.l.b16 %v4428
  %v4663 = vunpack.c.h.b16 %v4428
  %v4664 = vunpack.c.l.b16 %v4429
  %v4665 = vunpack.c.h.b16 %v4429
  %v4666 = vunpack.c.l.b16 %v4430
  %v4667 = vunpack.c.h.b16 %v4430
  %v4668 = vunpack.c.l.b16 %v4431
  %v4669 = vunpack.c.h.b16 %v4431
  %v4670 = vunpack.c.l.b16 %v4432
  %v4671 = vunpack.c.h.b16 %v4432
  %v4672 = vunpack.c.l.b16 %v4433
  %v4673 = vunpack.c.h.b16 %v4433
  %v4674 = vunpack.c.l.b16 %v4434
  %v4675 = vunpack.c.h.b16 %v4434
  %v4676 = vunpack.c.l.b16 %v4435
  %v4677 = vunpack.c.h.b16 %v4435
  %v4678 = vunpack.c.l.b16 %v4436
  %v4679 = vunpack.c.h.b16 %v4436
  %v4680 = vunpack.c.l.b16 %v4437
  %v4681 = vunpack.c.h.b16 %v4437
  %v4682 = vunpack.c.l.b16 %v4438
  %v4683 = vunpack.c.h.b16 %v4438
  %v4684 = vunpack.c.l.b16 %v4439
  %v4685 = vunpack.c.h.b16 %v4439
  %v4686 = vpack.c.b16 %v4546, %v4542
  %v4687 = vpack.c.b16 %v4547, %v4543
  %v4688 = vpack.c.b16 %v4548, %v4544
  %v4689 = vpack.c.b16 %v4549, %v4545
  %v4690 = vpack.c.b16 %v4554, %v4550
  %v4691 = vpack.c.b16 %v4555, %v4551
  %v4692 = vpack.c.b16 %v4556, %v4552
  %v4693 = vpack.c.b16 %v4557, %v4553
  %v4694 = vpack.c.b16 %v4562, %v4558
  %v4695 = vpack.c.b16 %v4563, %v4559
  %v4696 = vpack.c.b16 %v4564, %v4560
  %v4697 = vpack.c.b16 %v4565, %v4561
  %v4698 = vpack.c.b16 %v4570, %v4566
  %v4699 = vpack.c.b16 %v4571, %v4567
  %v4700 = vpack.c.b16 %v4572, %v4568
  %v4701 = vpack.c.b16 %v4573, %v4569
  %v4702 = vpack.c.b16 %v4578, %v4574
  %v4703 = vpack.c.b16 %v4579, %v4575
  %v4704 = vpack.c.b16 %v4580, %v4576
  %v4705 = vpack.c.b16 %v4581, %v4577
  %v4706 = vpack.c.b16 %v4586, %v4582
  %v4707 = vpack.c.b16 %v4587, %v4583
  %v4708 = vpack.c.b16 %v4588, %v4584
  %v4709 = vpack.c.b16 %v4589, %v4585
  %v4710 = vpack.c.b16 %v4594, %v4590
  %v4711 = vpack.c.b16 %v4595, %v4591
  %v4712 = vpack.c.b16 %v4596, %v4592
  %v4713 = vpack.c.b16 %v4597, %v4593
  %v4714 = vpack.c.b16 %v4602, %v4598
  %v4715 = vpack.c.b16 %v4603, %v4599
  %v4716 = vpack.c.b16 %v4604, %v4600
  %v4717 = vpack.c.b16 %v4605, %v4601
  %v4718 = vpack.c.b16 %v4610, %v4606
  %v4719 = vpack.c.b16 %v4611, %v4607
  %v4720 = vpack.c.b16 %v4612, %v4608
  %v4721 = vpack.c.b16 %v4613, %v4609
  %v4722 = vpack.c.b16 %v4618, %v4614
  %v4723 = vpack.c.b16 %v4619, %v4615
  %v4724 = vpack.c.b16 %v4620, %v4616
  %v4725 = vpack.c.b16 %v4621, %v4617
  %v4726 = vpack.c.b16 %v4626, %v4622
  %v4727 = vpack.c.b16 %v4627, %v4623
  %v4728 = vpack.c.b16 %v4628, %v4624
  %v4729 = vpack.c.b16 %v4629, %v4625
  %v4730 = vpack.c.b16 %v4634, %v4630
  %v4731 = vpack.c.b16 %v4635, %v4631
  %v4732 = vpack.c.b16 %v4636, %v4632
  %v4733 = vpack.c.b16 %v4637, %v4633
  %v4734 = vpack.c.b16 %v4642, %v4638
  %v4735 = vpack.c.b16 %v4643, %v4639
  %v4736 = vpack.c.b16 %v4644, %v4640
  %v4737 = vpack.c.b16 %v4645, %v4641
  %v4738 = vpack.c.b16 %v4650, %v4646
  %v4739 = vpack.c.b16 %v4651, %v4647
  %v4740 = vpack.c.b16 %v4652, %v4648
  %v4741 = vpack.c.b16 %v4653, %v4649
  %v4742 = vpack.c.b16 %v4658, %v4654
  %v4743 = vpack.c.b16 %v4659, %v4655
  %v4744 = vpack.c.b16 %v4660, %v4656
  %v4745 = vpack.c.b16 %v4661, %v4657
  %v4746 = vpack.c.b16 %v4666, %v4662
  %v4747 = vpack.c.b16 %v4667, %v4663
  %v4748 = vpack.c.b16 %v4668, %v4664
  %v4749 = vpack.c.b16 %v4669, %v4665
  %v4750 = vpack.c.b16 %v4674, %v4670
  %v4751 = vpack.c.b16 %v4675, %v4671
  %v4752 = vpack.c.b16 %v4676, %v4672
  %v4753 = vpack.c.b16 %v4677, %v4673
  %v4754 = vpack.c.b16 %v4682, %v4678
  %v4755 = vpack.c.b16 %v4683, %v4679
  %v4756 = vpack.c.b16 %v4684, %v4680
  %v4757 = vpack.c.b16 %v4685, %v4681
  %v4831 = vsel %vm1687, %v4462, 0
  %v4834 = vsel %vm1687, %v4465, 0
  %4836 = vmatprep.subr.bf16.mxu0 %v4715
  %4837 = vmatpush1.bf16.msra.mxu0 %v4714
  %4838 = vmatprep.subr.bf16.mxu0 %v4711
  %4839 = vmatpush1.bf16.msra.mxu0 %v4710
  %4840 = vmatprep.subr.bf16.mxu0 %v4707
  %4841 = vmatpush1.bf16.msra.mxu0 %v4706
  %4842 = vmatprep.subr.bf16.mxu0 %v4703
  %4843 = vmatpush1.bf16.msra.mxu0 %v4702
  %4844 = vmatprep.subr.bf16.mxu0 %v4699
  %4845 = vmatpush1.bf16.msra.mxu0 %v4698
  %4846 = vmatprep.subr.bf16.mxu0 %v4695
  %4847 = vmatpush1.bf16.msra.mxu0 %v4694
  %4848 = vmatprep.subr.bf16.mxu0 %v4691
  %4849 = vmatpush1.bf16.msra.mxu0 %v4690
  %4850 = vmatprep.subr.bf16.mxu0 %v4687
  %4851 = vmatpush1.bf16.msra.mxu0 %v4686
  %4852 = vmatprep.subr.bf16.mxu0 %v4747
  %4853 = vmatpush2.bf16.msra.mxu0 %v4746
  %4854 = vmatprep.subr.bf16.mxu0 %v4743
  %4855 = vmatpush2.bf16.msra.mxu0 %v4742
  %4856 = vmatprep.subr.bf16.mxu0 %v4739
  %4857 = vmatpush2.bf16.msra.mxu0 %v4738
  %4858 = vmatprep.subr.bf16.mxu0 %v4735
  %4859 = vmatpush2.bf16.msra.mxu0 %v4734
  %4860 = vmatprep.subr.bf16.mxu0 %v4731
  %4861 = vmatpush2.bf16.msra.mxu0 %v4730
  %4862 = vmatprep.subr.bf16.mxu0 %v4727
  %4863 = vmatpush2.bf16.msra.mxu0 %v4726
  %4864 = vmatprep.subr.bf16.mxu0 %v4723
  %4865 = vmatpush2.bf16.msra.mxu0 %v4722
  %4866 = vmatprep.subr.bf16.mxu0 %v4719
  %4867 = vmatpush2.bf16.msra.mxu0 %v4718
  %4868 = vmatprep.mubr.bf16.mxu0 %v4461
  %4869 = vmatmul.mubr.bf16.gmra.mxu0 %v4460
  %v4870 = vpop.f32.mrf.mxu0
  %v4871 = vadd.f32 0.0, %v4870
  %v4872 = vpop.f32.mrf.mxu0
  %v4873 = vadd.f32 0.0, %v4872
  %v4874 = vpop.f32.mrf.mxu0
  %v4875 = vadd.f32 0.0, %v4874
  %v4876 = vpop.f32.mrf.mxu0
  %v4877 = vadd.f32 0.0, %v4876
  %4878 = vmatprep.mubr.bf16.mxu0 %v4464
  %4879 = vmatmul.mubr.bf16.gmra.mxu0 %v4463
  %v4880 = vpop.f32.mrf.mxu0
  %v4881 = vadd.f32 0.0, %v4880
  %v4882 = vpop.f32.mrf.mxu0
  %v4883 = vadd.f32 0.0, %v4882
  %v4884 = vpop.f32.mrf.mxu0
  %v4885 = vadd.f32 0.0, %v4884
  %v4886 = vpop.f32.mrf.mxu0
  %v4887 = vadd.f32 0.0, %v4886
  %4888 = vdwg.mxu0
  %4889 = vmatprep.subr.bf16.mxu0 0
  %4890 = vmatpush1.bf16.msra.mxu0 0
  %4891 = vmatprep.subr.bf16.mxu0 0
  %4892 = vmatpush1.bf16.msra.mxu0 0
  %4893 = vmatprep.subr.bf16.mxu0 0
  %4894 = vmatpush1.bf16.msra.mxu0 0
  %4895 = vmatprep.subr.bf16.mxu0 0
  %4896 = vmatpush1.bf16.msra.mxu0 0
  %4897 = vmatprep.subr.bf16.mxu0 0
  %4898 = vmatpush1.bf16.msra.mxu0 0
  %4899 = vmatprep.subr.bf16.mxu0 0
  %4900 = vmatpush1.bf16.msra.mxu0 0
  %4901 = vmatprep.subr.bf16.mxu0 %v4755
  %4902 = vmatpush1.bf16.msra.mxu0 %v4754
  %4903 = vmatprep.subr.bf16.mxu0 %v4751
  %4904 = vmatpush1.bf16.msra.mxu0 %v4750
  %4905 = vmatprep.subr.bf16.mxu0 0
  %4906 = vmatpush2.bf16.msra.mxu0 0
  %4907 = vmatprep.subr.bf16.mxu0 0
  %4908 = vmatpush2.bf16.msra.mxu0 0
  %4909 = vmatprep.subr.bf16.mxu0 0
  %4910 = vmatpush2.bf16.msra.mxu0 0
  %4911 = vmatprep.subr.bf16.mxu0 0
  %4912 = vmatpush2.bf16.msra.mxu0 0
  %4913 = vmatprep.subr.bf16.mxu0 0
  %4914 = vmatpush2.bf16.msra.mxu0 0
  %4915 = vmatprep.subr.bf16.mxu0 0
  %4916 = vmatpush2.bf16.msra.mxu0 0
  %4917 = vmatprep.subr.bf16.mxu0 0
  %4918 = vmatpush2.bf16.msra.mxu0 0
  %4919 = vmatprep.subr.bf16.mxu0 0
  %4920 = vmatpush2.bf16.msra.mxu0 0
  %4921 = vmatprep.mubr.bf16.mxu0 0
  %4922 = vmatmul.mubr.bf16.gmra.mxu0 %v4831
  %v4923 = vpop.f32.mrf.mxu0
  %v4924 = vadd.f32 %v4871, %v4923
  %v4925 = vpop.f32.mrf.mxu0
  %v4926 = vadd.f32 %v4873, %v4925
  %v4927 = vpop.f32.mrf.mxu0
  %v4928 = vadd.f32 %v4875, %v4927
  %v4929 = vpop.f32.mrf.mxu0
  %v4930 = vadd.f32 %v4877, %v4929
  %4931 = vmatprep.mubr.bf16.mxu0 0
  %4932 = vmatmul.mubr.bf16.gmra.mxu0 %v4834
  %v4933 = vpop.f32.mrf.mxu0
  %v4934 = vadd.f32 %v4881, %v4933
  %v4935 = vpop.f32.mrf.mxu0
  %v4936 = vadd.f32 %v4883, %v4935
  %v4937 = vpop.f32.mrf.mxu0
  %v4938 = vadd.f32 %v4885, %v4937
  %v4939 = vpop.f32.mrf.mxu0
  %v4940 = vadd.f32 %v4887, %v4939
  %4941 = vdwg.mxu0
  %4942 = vmatprep.subr.bf16.mxu0 %v4717
  %4943 = vmatpush1.bf16.msra.mxu0 %v4716
  %4944 = vmatprep.subr.bf16.mxu0 %v4713
  %4945 = vmatpush1.bf16.msra.mxu0 %v4712
  %4946 = vmatprep.subr.bf16.mxu0 %v4709
  %4947 = vmatpush1.bf16.msra.mxu0 %v4708
  %4948 = vmatprep.subr.bf16.mxu0 %v4705
  %4949 = vmatpush1.bf16.msra.mxu0 %v4704
  %4950 = vmatprep.subr.bf16.mxu0 %v4701
  %4951 = vmatpush1.bf16.msra.mxu0 %v4700
  %4952 = vmatprep.subr.bf16.mxu0 %v4697
  %4953 = vmatpush1.bf16.msra.mxu0 %v4696
  %4954 = vmatprep.subr.bf16.mxu0 %v4693
  %4955 = vmatpush1.bf16.msra.mxu0 %v4692
  %4956 = vmatprep.subr.bf16.mxu0 %v4689
  %4957 = vmatpush1.bf16.msra.mxu0 %v4688
  %4958 = vmatprep.subr.bf16.mxu0 %v4749
  %4959 = vmatpush2.bf16.msra.mxu0 %v4748
  %4960 = vmatprep.subr.bf16.mxu0 %v4745
  %4961 = vmatpush2.bf16.msra.mxu0 %v4744
  %4962 = vmatprep.subr.bf16.mxu0 %v4741
  %4963 = vmatpush2.bf16.msra.mxu0 %v4740
  %4964 = vmatprep.subr.bf16.mxu0 %v4737
  %4965 = vmatpush2.bf16.msra.mxu0 %v4736
  %4966 = vmatprep.subr.bf16.mxu0 %v4733
  %4967 = vmatpush2.bf16.msra.mxu0 %v4732
  %4968 = vmatprep.subr.bf16.mxu0 %v4729
  %4969 = vmatpush2.bf16.msra.mxu0 %v4728
  %4970 = vmatprep.subr.bf16.mxu0 %v4725
  %4971 = vmatpush2.bf16.msra.mxu0 %v4724
  %4972 = vmatprep.subr.bf16.mxu0 %v4721
  %4973 = vmatpush2.bf16.msra.mxu0 %v4720
  %4974 = vmatprep.mubr.bf16.mxu0 %v4461
  %4975 = vmatmul.mubr.bf16.gmra.mxu0 %v4460
  %v4976 = vpop.f32.mrf.mxu0
  %v4977 = vadd.f32 0.0, %v4976
  %v4978 = vpop.f32.mrf.mxu0
  %v4979 = vadd.f32 0.0, %v4978
  %v4980 = vpop.f32.mrf.mxu0
  %v4981 = vadd.f32 0.0, %v4980
  %v4982 = vpop.f32.mrf.mxu0
  %v4983 = vadd.f32 0.0, %v4982
  %4984 = vmatprep.mubr.bf16.mxu0 %v4464
  %4985 = vmatmul.mubr.bf16.gmra.mxu0 %v4463
  %v4986 = vpop.f32.mrf.mxu0
  %v4987 = vadd.f32 0.0, %v4986
  %v4988 = vpop.f32.mrf.mxu0
  %v4989 = vadd.f32 0.0, %v4988
  %v4990 = vpop.f32.mrf.mxu0
  %v4991 = vadd.f32 0.0, %v4990
  %v4992 = vpop.f32.mrf.mxu0
  %v4993 = vadd.f32 0.0, %v4992
  %4994 = vdwg.mxu0
  %4995 = vmatprep.subr.bf16.mxu0 0
  %4996 = vmatpush1.bf16.msra.mxu0 0
  %4997 = vmatprep.subr.bf16.mxu0 0
  %4998 = vmatpush1.bf16.msra.mxu0 0
  %4999 = vmatprep.subr.bf16.mxu0 0
  %5000 = vmatpush1.bf16.msra.mxu0 0
  %5001 = vmatprep.subr.bf16.mxu0 0
  %5002 = vmatpush1.bf16.msra.mxu0 0
  %5003 = vmatprep.subr.bf16.mxu0 0
  %5004 = vmatpush1.bf16.msra.mxu0 0
  %5005 = vmatprep.subr.bf16.mxu0 0
  %5006 = vmatpush1.bf16.msra.mxu0 0
  %5007 = vmatprep.subr.bf16.mxu0 %v4757
  %5008 = vmatpush1.bf16.msra.mxu0 %v4756
  %5009 = vmatprep.subr.bf16.mxu0 %v4753
  %5010 = vmatpush1.bf16.msra.mxu0 %v4752
  %5011 = vmatprep.subr.bf16.mxu0 0
  %5012 = vmatpush2.bf16.msra.mxu0 0
  %5013 = vmatprep.subr.bf16.mxu0 0
  %5014 = vmatpush2.bf16.msra.mxu0 0
  %5015 = vmatprep.subr.bf16.mxu0 0
  %5016 = vmatpush2.bf16.msra.mxu0 0
  %5017 = vmatprep.subr.bf16.mxu0 0
  %5018 = vmatpush2.bf16.msra.mxu0 0
  %5019 = vmatprep.subr.bf16.mxu0 0
  %5020 = vmatpush2.bf16.msra.mxu0 0
  %5021 = vmatprep.subr.bf16.mxu0 0
  %5022 = vmatpush2.bf16.msra.mxu0 0
  %5023 = vmatprep.subr.bf16.mxu0 0
  %5024 = vmatpush2.bf16.msra.mxu0 0
  %5025 = vmatprep.subr.bf16.mxu0 0
  %5026 = vmatpush2.bf16.msra.mxu0 0
  %5027 = vmatprep.mubr.bf16.mxu0 0
  %5028 = vmatmul.mubr.bf16.gmra.mxu0 %v4831
  %v5029 = vpop.f32.mrf.mxu0
  %v5030 = vadd.f32 %v4977, %v5029
  %v5031 = vpop.f32.mrf.mxu0
  %v5032 = vadd.f32 %v4979, %v5031
  %v5033 = vpop.f32.mrf.mxu0
  %v5034 = vadd.f32 %v4981, %v5033
  %v5035 = vpop.f32.mrf.mxu0
  %v5036 = vadd.f32 %v4983, %v5035
  %5037 = vmatprep.mubr.bf16.mxu0 0
  %5038 = vmatmul.mubr.bf16.gmra.mxu0 %v4834
  %v5039 = vpop.f32.mrf.mxu0
  %v5040 = vadd.f32 %v4987, %v5039
  %v5041 = vpop.f32.mrf.mxu0
  %v5042 = vadd.f32 %v4989, %v5041
  %v5043 = vpop.f32.mrf.mxu0
  %v5044 = vadd.f32 %v4991, %v5043
  %v5045 = vpop.f32.mrf.mxu0
  %v5046 = vadd.f32 %v4993, %v5045
  %5047 = vdwg.mxu0
  %s5048 = scalar_lea.vmem %s4, 192
  %v5049 = vld [vmem:[%s5048] sm:$0xff]
  %v5050 = vld [vmem:[%s5048 + $0x8] sm:$0xff]
  %v5051 = vld [vmem:[%s5048 + $0x10] sm:$0xff]
  %v5052 = vld [vmem:[%s5048 + $0x18] sm:$0xff]
  %s5053 = scalar_lea.vmem %s4, 224
  %v5054 = vld [vmem:[%s5053] sm:$0xff]
  %v5055 = vld [vmem:[%s5053 + $0x8] sm:$0xff]
  %v5056 = vld [vmem:[%s5053 + $0x10] sm:$0xff]
  %v5057 = vld [vmem:[%s5053 + $0x18] sm:$0xff]
  %v5058 = vmul.f32 %v4924, %v309
  %v5059 = vmul.f32 %v4926, %v313
  %v5060 = vmul.f32 %v5030, %v317
  %v5061 = vmul.f32 %v5032, %v321
  %v5062 = vmul.f32 %v4928, %v309
  %v5063 = vmul.f32 %v4930, %v313
  %v5064 = vmul.f32 %v5034, %v317
  %v5065 = vmul.f32 %v5036, %v321
  %v5066 = vmul.f32 %v4934, %v309
  %v5067 = vmul.f32 %v4936, %v313
  %v5068 = vmul.f32 %v5040, %v317
  %v5069 = vmul.f32 %v5042, %v321
  %v5070 = vmul.f32 %v4938, %v309
  %v5071 = vmul.f32 %v4940, %v313
  %v5072 = vmul.f32 %v5044, %v317
  %v5073 = vmul.f32 %v5046, %v321
  %v5074 = vadd.f32 %v5058, %v5059
  %v5075 = vadd.f32 %v5074, %v5060
  %v5076 = vsel %vm344, %v5061, 0.0
  %v5077 = vadd.f32 %v5075, %v5076
  %5078 = vadd.xlane.f32.xlu0 %v5077
  %v5079 = vpop.xlane.xlu0 %5078
  %v5080 = vadd.f32 %v5062, %v5063
  %v5081 = vadd.f32 %v5080, %v5064
  %v5082 = vsel %vm344, %v5065, 0.0
  %v5083 = vadd.f32 %v5081, %v5082
  %5084 = vadd.xlane.f32.xlu0 %v5083
  %v5085 = vpop.xlane.xlu0 %5084
  %v5086 = vadd.f32 %v5066, %v5067
  %v5087 = vadd.f32 %v5086, %v5068
  %v5088 = vsel %vm344, %v5069, 0.0
  %v5089 = vadd.f32 %v5087, %v5088
  %5090 = vadd.xlane.f32.xlu0 %v5089
  %v5091 = vpop.xlane.xlu0 %5090
  %v5092 = vadd.f32 %v5070, %v5071
  %v5093 = vadd.f32 %v5092, %v5072
  %v5094 = vsel %vm344, %v5073, 0.0
  %v5095 = vadd.f32 %v5093, %v5094
  %5096 = vadd.xlane.f32.xlu0 %v5095
  %v5097 = vpop.xlane.xlu0 %5096
  %v5098 = vmul.f32 %v5079, 0.0030864198
  %v5099 = vmul.f32 %v5085, 0.0030864198
  %v5100 = vmul.f32 %v5091, 0.0030864198
  %v5101 = vmul.f32 %v5097, 0.0030864198
  %v5102 = vmul.f32 %v5058, %v4924
  %v5103 = vmul.f32 %v5059, %v4926
  %v5104 = vmul.f32 %v5060, %v5030
  %v5105 = vmul.f32 %v5061, %v5032
  %v5106 = vmul.f32 %v5062, %v4928
  %v5107 = vmul.f32 %v5063, %v4930
  %v5108 = vmul.f32 %v5064, %v5034
  %v5109 = vmul.f32 %v5065, %v5036
  %v5110 = vmul.f32 %v5066, %v4934
  %v5111 = vmul.f32 %v5067, %v4936
  %v5112 = vmul.f32 %v5068, %v5040
  %v5113 = vmul.f32 %v5069, %v5042
  %v5114 = vmul.f32 %v5070, %v4938
  %v5115 = vmul.f32 %v5071, %v4940
  %v5116 = vmul.f32 %v5072, %v5044
  %v5117 = vmul.f32 %v5073, %v5046
  %v5118 = vadd.f32 %v5102, %v5103
  %v5119 = vadd.f32 %v5118, %v5104
  %v5120 = vsel %vm344, %v5105, 0.0
  %v5121 = vadd.f32 %v5119, %v5120
  %5122 = vadd.xlane.f32.xlu0 %v5121
  %v5123 = vpop.xlane.xlu0 %5122
  %v5124 = vadd.f32 %v5106, %v5107
  %v5125 = vadd.f32 %v5124, %v5108
  %v5126 = vsel %vm344, %v5109, 0.0
  %v5127 = vadd.f32 %v5125, %v5126
  %5128 = vadd.xlane.f32.xlu0 %v5127
  %v5129 = vpop.xlane.xlu0 %5128
  %v5130 = vadd.f32 %v5110, %v5111
  %v5131 = vadd.f32 %v5130, %v5112
  %v5132 = vsel %vm344, %v5113, 0.0
  %v5133 = vadd.f32 %v5131, %v5132
  %5134 = vadd.xlane.f32.xlu0 %v5133
  %v5135 = vpop.xlane.xlu0 %5134
  %v5136 = vadd.f32 %v5114, %v5115
  %v5137 = vadd.f32 %v5136, %v5116
  %v5138 = vsel %vm344, %v5117, 0.0
  %v5139 = vadd.f32 %v5137, %v5138
  %5140 = vadd.xlane.f32.xlu0 %v5139
  %v5141 = vpop.xlane.xlu0 %5140
  %v5142 = vmul.f32 %v5123, 0.0030864198
  %v5143 = vmul.f32 %v5129, 0.0030864198
  %v5144 = vmul.f32 %v5135, 0.0030864198
  %v5145 = vmul.f32 %v5141, 0.0030864198
  %v5146 = vmul.f32 %v5098, %v5098
  %v5147 = vmul.f32 %v5099, %v5099
  %v5148 = vmul.f32 %v5100, %v5100
  %v5149 = vmul.f32 %v5101, %v5101
  %v5150 = vsub.f32 %v5142, %v5146
  %v5151 = vsub.f32 %v5143, %v5147
  %v5152 = vsub.f32 %v5144, %v5148
  %v5153 = vsub.f32 %v5145, %v5149
  %v5154 = vadd.f32 %v5150, 1e-05
  %v5155 = vadd.f32 %v5151, 1e-05
  %v5156 = vadd.f32 %v5152, 1e-05
  %v5157 = vadd.f32 %v5153, 1e-05
  %v5158 = vrsqrt.pop %v5154
  %v5159 = vrsqrt.pop %v5155
  %v5160 = vrsqrt.pop %v5156
  %v5161 = vrsqrt.pop %v5157
  %v5162 = vmul.f32 %v5049, %v5158
  %v5163 = vmul.f32 %v5050, %v5159
  %v5164 = vmul.f32 %v5051, %v5160
  %v5165 = vmul.f32 %v5052, %v5161
  %v5166 = vmul.f32 %v5098, %v5162
  %v5167 = vmul.f32 %v5099, %v5163
  %v5168 = vmul.f32 %v5100, %v5164
  %v5169 = vmul.f32 %v5101, %v5165
  %v5170 = vsub.f32 %v5054, %v5166
  %v5171 = vsub.f32 %v5055, %v5167
  %v5172 = vsub.f32 %v5056, %v5168
  %v5173 = vsub.f32 %v5057, %v5169
  %5175 = vset.pattern.permute.xlu0 0
  %5176 = vperm.xlu0 %5175, %v5162
  %v5177 = vpop.permute.xlu0 %5176
  %5180 = vset.pattern.permute.xlu0 0
  %5181 = vperm.xlu0 %5180, %v5163
  %v5182 = vpop.permute.xlu0 %5181
  %5185 = vset.pattern.permute.xlu0 0
  %5186 = vperm.xlu0 %5185, %v5164
  %v5187 = vpop.permute.xlu0 %5186
  %5190 = vset.pattern.permute.xlu0 0
  %5191 = vperm.xlu0 %5190, %v5165
  %v5192 = vpop.permute.xlu0 %5191
  %v5194 = vmul.f32 %v4924, %v5177
  %v5195 = vmul.f32 %v4926, %v5177
  %v5196 = vmul.f32 %v5030, %v5177
  %v5197 = vmul.f32 %v5032, %v5177
  %v5198 = vmul.f32 %v4928, %v5182
  %v5199 = vmul.f32 %v4930, %v5182
  %v5200 = vmul.f32 %v5034, %v5182
  %v5201 = vmul.f32 %v5036, %v5182
  %v5202 = vmul.f32 %v4934, %v5187
  %v5203 = vmul.f32 %v4936, %v5187
  %v5204 = vmul.f32 %v5040, %v5187
  %v5205 = vmul.f32 %v5042, %v5187
  %v5206 = vmul.f32 %v4938, %v5192
  %v5207 = vmul.f32 %v4940, %v5192
  %v5208 = vmul.f32 %v5044, %v5192
  %v5209 = vmul.f32 %v5046, %v5192
  %5211 = vset.pattern.permute.xlu0 0
  %5212 = vperm.xlu0 %5211, %v5170
  %v5213 = vpop.permute.xlu0 %5212
  %5216 = vset.pattern.permute.xlu0 0
  %5217 = vperm.xlu0 %5216, %v5171
  %v5218 = vpop.permute.xlu0 %5217
  %5221 = vset.pattern.permute.xlu0 0
  %5222 = vperm.xlu0 %5221, %v5172
  %v5223 = vpop.permute.xlu0 %5222
  %5226 = vset.pattern.permute.xlu0 0
  %5227 = vperm.xlu0 %5226, %v5173
  %v5228 = vpop.permute.xlu0 %5227
  %v5230 = vadd.f32 %v5194, %v5213
  %v5231 = vadd.f32 %v5195, %v5213
  %v5232 = vadd.f32 %v5196, %v5213
  %v5233 = vadd.f32 %v5197, %v5213
  %v5234 = vadd.f32 %v5198, %v5218
  %v5235 = vadd.f32 %v5199, %v5218
  %v5236 = vadd.f32 %v5200, %v5218
  %v5237 = vadd.f32 %v5201, %v5218
  %v5238 = vadd.f32 %v5202, %v5223
  %v5239 = vadd.f32 %v5203, %v5223
  %v5240 = vadd.f32 %v5204, %v5223
  %v5241 = vadd.f32 %v5205, %v5223
  %v5242 = vadd.f32 %v5206, %v5228
  %v5243 = vadd.f32 %v5207, %v5228
  %v5244 = vadd.f32 %v5208, %v5228
  %v5245 = vadd.f32 %v5209, %v5228
  %v5246 = vmax.f32 %v5230, 0.0
  %v5247 = vmax.f32 %v5231, 0.0
  %v5248 = vmax.f32 %v5232, 0.0
  %v5249 = vmax.f32 %v5233, 0.0
  %v5250 = vmax.f32 %v5234, 0.0
  %v5251 = vmax.f32 %v5235, 0.0
  %v5252 = vmax.f32 %v5236, 0.0
  %v5253 = vmax.f32 %v5237, 0.0
  %v5254 = vmax.f32 %v5238, 0.0
  %v5255 = vmax.f32 %v5239, 0.0
  %v5256 = vmax.f32 %v5240, 0.0
  %v5257 = vmax.f32 %v5241, 0.0
  %v5258 = vmax.f32 %v5242, 0.0
  %v5259 = vmax.f32 %v5243, 0.0
  %v5260 = vmax.f32 %v5244, 0.0
  %v5261 = vmax.f32 %v5245, 0.0
  %v5262 = vmul.f32 %v5246, %v309
  %v5263 = vmul.f32 %v5247, %v313
  %v5264 = vmul.f32 %v5248, %v317
  %v5265 = vmul.f32 %v5249, %v321
  %v5266 = vmul.f32 %v5250, %v309
  %v5267 = vmul.f32 %v5251, %v313
  %v5268 = vmul.f32 %v5252, %v317
  %v5269 = vmul.f32 %v5253, %v321
  %v5270 = vmul.f32 %v5254, %v309
  %v5271 = vmul.f32 %v5255, %v313
  %v5272 = vmul.f32 %v5256, %v317
  %v5273 = vmul.f32 %v5257, %v321
  %v5274 = vmul.f32 %v5258, %v309
  %v5275 = vmul.f32 %v5259, %v313
  %v5276 = vmul.f32 %v5260, %v317
  %v5277 = vmul.f32 %v5261, %v321
  %v5278 = vpack.c.bf16 %v5266, %v5262
  %v5279 = vpack.c.bf16 %v5267, %v5263
  %v5280 = vpack.c.bf16 %v5268, %v5264
  %v5281 = vpack.c.bf16 %v5269, %v5265
  %v5282 = vpack.c.bf16 %v5274, %v5270
  %v5283 = vpack.c.bf16 %v5275, %v5271
  %v5284 = vpack.c.bf16 %v5276, %v5272
  %v5285 = vpack.c.bf16 %v5277, %v5273
  %v5294 = vunpack.c.l.b16 %v5278
  %v5295 = vunpack.c.l.b16 %v5279
  %v5296 = vunpack.c.l.b16 %v5280
  %v5297 = vunpack.c.l.b16 %v5281
  %v5298 = vunpack.c.h.b16 %v5278
  %v5299 = vunpack.c.h.b16 %v5279
  %v5300 = vunpack.c.h.b16 %v5280
  %v5301 = vunpack.c.h.b16 %v5281
  %v5302 = vunpack.c.l.b16 %v5282
  %v5303 = vunpack.c.l.b16 %v5283
  %v5304 = vunpack.c.l.b16 %v5284
  %v5305 = vunpack.c.l.b16 %v5285
  %v5306 = vunpack.c.h.b16 %v5282
  %v5307 = vunpack.c.h.b16 %v5283
  %v5308 = vunpack.c.h.b16 %v5284
  %v5309 = vunpack.c.h.b16 %v5285
  %v5310 = vpack.c.b16 %v5295, %v5294
  %v5311 = vpack.c.b16 %v5297, %v5296
  %v5312 = vpack.c.b16 %v5299, %v5298
  %v5313 = vpack.c.b16 %v5301, %v5300
  %v5314 = vpack.c.b16 %v5303, %v5302
  %v5315 = vpack.c.b16 %v5305, %v5304
  %v5316 = vpack.c.b16 %v5307, %v5306
  %v5317 = vpack.c.b16 %v5309, %v5308
  %5318 = vrot.lane.b32.xlu0 %v5310, 21
  %v5319 = vpop.permute.xlu0 %5318
  %5320 = vrot.lane.b32.xlu0 %v5311, 21
  %v5321 = vpop.permute.xlu0 %5320
  %5322 = vrot.lane.b32.xlu0 %v5312, 21
  %v5323 = vpop.permute.xlu0 %5322
  %5324 = vrot.lane.b32.xlu0 %v5313, 21
  %v5325 = vpop.permute.xlu0 %5324
  %5326 = vrot.lane.b32.xlu0 %v5314, 21
  %v5327 = vpop.permute.xlu0 %5326
  %5328 = vrot.lane.b32.xlu0 %v5315, 21
  %v5329 = vpop.permute.xlu0 %5328
  %5330 = vrot.lane.b32.xlu0 %v5316, 21
  %v5331 = vpop.permute.xlu0 %5330
  %5332 = vrot.lane.b32.xlu0 %v5317, 21
  %v5333 = vpop.permute.xlu0 %5332
  %v5334 = vrot.slane %v5319, 4
  %v5335 = vrot.slane %v5321, 4
  %v5336 = vrot.slane %v5323, 4
  %v5337 = vrot.slane %v5325, 4
  %v5338 = vrot.slane %v5327, 4
  %v5339 = vrot.slane %v5329, 4
  %v5340 = vrot.slane %v5331, 4
  %v5341 = vrot.slane %v5333, 4
  %v5342 = vsel %vm611, %v5334, %v5319
  %v5343 = vsel %vm613, %v5334, %v5335
  %v5344 = vsel %vm611, %v5343, %v5321
  %v5345 = vsel %vm611, %v5336, %v5323
  %v5346 = vsel %vm613, %v5336, %v5337
  %v5347 = vsel %vm611, %v5346, %v5325
  %v5348 = vsel %vm611, %v5338, %v5327
  %v5349 = vsel %vm613, %v5338, %v5339
  %v5350 = vsel %vm611, %v5349, %v5329
  %v5351 = vsel %vm611, %v5340, %v5331
  %v5352 = vsel %vm613, %v5340, %v5341
  %v5353 = vsel %vm611, %v5352, %v5333
  %5362 = vst.msk [vmem:[#allocation3] sm:$0xff] %vm635, %v5342
  %5363 = vst.msk [vmem:[#allocation3 + $0x8] sm:$0xff] %vm639, %v5344
  %5364 = vst.msk [vmem:[#allocation3 + $0x10] sm:$0xff] %vm635, %v5345
  %5365 = vst.msk [vmem:[#allocation3 + $0x18] sm:$0xff] %vm639, %v5347
  %5366 = vst.msk [vmem:[#allocation3 + $0x20] sm:$0xff] %vm635, %v5348
  %5367 = vst.msk [vmem:[#allocation3 + $0x28] sm:$0xff] %vm639, %v5350
  %5368 = vst.msk [vmem:[#allocation3 + $0x30] sm:$0xff] %vm635, %v5351
  %5369 = vst.msk [vmem:[#allocation3 + $0x38] sm:$0xff] %vm639, %v5353
  %v5370 = vld [vmem:[#allocation3] sm:$0xff]
  %v5371 = vld [vmem:[#allocation3 + $0x8] sm:$0xff]
  %v5372 = vld [vmem:[#allocation3 + $0x10] sm:$0xff]
  %v5373 = vld [vmem:[#allocation3 + $0x18] sm:$0xff]
  %v5374 = vld [vmem:[#allocation3 + $0x20] sm:$0xff]
  %v5375 = vld [vmem:[#allocation3 + $0x28] sm:$0xff]
  %v5376 = vld [vmem:[#allocation3 + $0x30] sm:$0xff]
  %v5377 = vld [vmem:[#allocation3 + $0x38] sm:$0xff]
  %5378 = vst [vmem:[#allocation4] sm:$0xff] %v5370
  %5379 = vst.msk [vmem:[#allocation4 + $0x8] sm:$0xff] %vm657, %v5371
  %5380 = vst [vmem:[#allocation4 + $0x10] sm:$0xff] %v5372
  %5381 = vst.msk [vmem:[#allocation4 + $0x18] sm:$0xff] %vm657, %v5373
  %5382 = vst [vmem:[#allocation4 + $0x20] sm:$0xff] %v5374
  %5383 = vst.msk [vmem:[#allocation4 + $0x28] sm:$0xff] %vm657, %v5375
  %5384 = vst [vmem:[#allocation4 + $0x30] sm:$0xff] %v5376
  %5385 = vst.msk [vmem:[#allocation4 + $0x38] sm:$0xff] %vm657, %v5377
  %v5386 = vld [vmem:[#allocation3] sm:$0xff]
  %v5387 = vld [vmem:[#allocation3 + $0x8] sm:$0xff]
  %v5388 = vld [vmem:[#allocation3 + $0x10] sm:$0xff]
  %v5389 = vld [vmem:[#allocation3 + $0x18] sm:$0xff]
  %v5390 = vld [vmem:[#allocation3 + $0x20] sm:$0xff]
  %v5391 = vld [vmem:[#allocation3 + $0x28] sm:$0xff]
  %v5392 = vld [vmem:[#allocation3 + $0x30] sm:$0xff]
  %v5393 = vld [vmem:[#allocation3 + $0x38] sm:$0xff]
  %5402 = vrot.lane.b32.xlu0 %v5386, 127
  %v5403 = vpop.permute.xlu0 %5402
  %5404 = vrot.lane.b32.xlu0 %v5387, 127
  %v5405 = vpop.permute.xlu0 %5404
  %5406 = vrot.lane.b32.xlu0 %v5388, 127
  %v5407 = vpop.permute.xlu0 %5406
  %5408 = vrot.lane.b32.xlu0 %v5389, 127
  %v5409 = vpop.permute.xlu0 %5408
  %5410 = vrot.lane.b32.xlu0 %v5390, 127
  %v5411 = vpop.permute.xlu0 %5410
  %5412 = vrot.lane.b32.xlu0 %v5391, 127
  %v5413 = vpop.permute.xlu0 %5412
  %5414 = vrot.lane.b32.xlu0 %v5392, 127
  %v5415 = vpop.permute.xlu0 %5414
  %5416 = vrot.lane.b32.xlu0 %v5393, 127
  %v5417 = vpop.permute.xlu0 %5416
  %v5418 = vrot.slane %v5403, 4
  %v5419 = vrot.slane %v5405, 4
  %v5420 = vrot.slane %v5407, 4
  %v5421 = vrot.slane %v5409, 4
  %v5422 = vrot.slane %v5411, 4
  %v5423 = vrot.slane %v5413, 4
  %v5424 = vrot.slane %v5415, 4
  %v5425 = vrot.slane %v5417, 4
  %v5426 = vsel %vm613, %v5418, %v5419
  %v5427 = vsel %vm706, %v5403, %v5426
  %v5428 = vsel %vm706, %v5405, %v5419
  %v5429 = vsel %vm613, %v5420, %v5421
  %v5430 = vsel %vm706, %v5407, %v5429
  %v5431 = vsel %vm706, %v5409, %v5421
  %v5432 = vsel %vm613, %v5422, %v5423
  %v5433 = vsel %vm706, %v5411, %v5432
  %v5434 = vsel %vm706, %v5413, %v5423
  %v5435 = vsel %vm613, %v5424, %v5425
  %v5436 = vsel %vm706, %v5415, %v5435
  %v5437 = vsel %vm706, %v5417, %v5425
  %5446 = vst [vmem:[#allocation4 + $0x40] sm:$0xff] %v5427
  %5447 = vst.msk [vmem:[#allocation4 + $0x48] sm:$0xff] %vm657, %v5428
  %5448 = vst [vmem:[#allocation4 + $0x50] sm:$0xff] %v5430
  %5449 = vst.msk [vmem:[#allocation4 + $0x58] sm:$0xff] %vm657, %v5431
  %5450 = vst [vmem:[#allocation4 + $0x60] sm:$0xff] %v5433
  %5451 = vst.msk [vmem:[#allocation4 + $0x68] sm:$0xff] %vm657, %v5434
  %5452 = vst [vmem:[#allocation4 + $0x70] sm:$0xff] %v5436
  %5453 = vst.msk [vmem:[#allocation4 + $0x78] sm:$0xff] %vm657, %v5437
  %v5454 = vld [vmem:[#allocation3] sm:$0xff]
  %v5455 = vld [vmem:[#allocation3 + $0x8] sm:$0xff]
  %v5456 = vld [vmem:[#allocation3 + $0x10] sm:$0xff]
  %v5457 = vld [vmem:[#allocation3 + $0x18] sm:$0xff]
  %v5458 = vld [vmem:[#allocation3 + $0x20] sm:$0xff]
  %v5459 = vld [vmem:[#allocation3 + $0x28] sm:$0xff]
  %v5460 = vld [vmem:[#allocation3 + $0x30] sm:$0xff]
  %v5461 = vld [vmem:[#allocation3 + $0x38] sm:$0xff]
  %5470 = vrot.lane.b32.xlu0 %v5454, 126
  %v5471 = vpop.permute.xlu0 %5470
  %5472 = vrot.lane.b32.xlu0 %v5455, 126
  %v5473 = vpop.permute.xlu0 %5472
  %5474 = vrot.lane.b32.xlu0 %v5456, 126
  %v5475 = vpop.permute.xlu0 %5474
  %5476 = vrot.lane.b32.xlu0 %v5457, 126
  %v5477 = vpop.permute.xlu0 %5476
  %5478 = vrot.lane.b32.xlu0 %v5458, 126
  %v5479 = vpop.permute.xlu0 %5478
  %5480 = vrot.lane.b32.xlu0 %v5459, 126
  %v5481 = vpop.permute.xlu0 %5480
  %5482 = vrot.lane.b32.xlu0 %v5460, 126
  %v5483 = vpop.permute.xlu0 %5482
  %5484 = vrot.lane.b32.xlu0 %v5461, 126
  %v5485 = vpop.permute.xlu0 %5484
  %v5486 = vrot.slane %v5471, 4
  %v5487 = vrot.slane %v5473, 4
  %v5488 = vrot.slane %v5475, 4
  %v5489 = vrot.slane %v5477, 4
  %v5490 = vrot.slane %v5479, 4
  %v5491 = vrot.slane %v5481, 4
  %v5492 = vrot.slane %v5483, 4
  %v5493 = vrot.slane %v5485, 4
  %v5494 = vsel %vm613, %v5486, %v5487
  %v5495 = vsel %vm775, %v5471, %v5494
  %v5496 = vsel %vm775, %v5473, %v5487
  %v5497 = vsel %vm613, %v5488, %v5489
  %v5498 = vsel %vm775, %v5475, %v5497
  %v5499 = vsel %vm775, %v5477, %v5489
  %v5500 = vsel %vm613, %v5490, %v5491
  %v5501 = vsel %vm775, %v5479, %v5500
  %v5502 = vsel %vm775, %v5481, %v5491
  %v5503 = vsel %vm613, %v5492, %v5493
  %v5504 = vsel %vm775, %v5483, %v5503
  %v5505 = vsel %vm775, %v5485, %v5493
  %5514 = vst [vmem:[#allocation4 + $0x80] sm:$0xff] %v5495
  %5515 = vst.msk [vmem:[#allocation4 + $0x88] sm:$0xff] %vm657, %v5496
  %5516 = vst [vmem:[#allocation4 + $0x90] sm:$0xff] %v5498
  %5517 = vst.msk [vmem:[#allocation4 + $0x98] sm:$0xff] %vm657, %v5499
  %5518 = vst [vmem:[#allocation4 + $0xa0] sm:$0xff] %v5501
  %5519 = vst.msk [vmem:[#allocation4 + $0xa8] sm:$0xff] %vm657, %v5502
  %5520 = vst [vmem:[#allocation4 + $0xb0] sm:$0xff] %v5504
  %5521 = vst.msk [vmem:[#allocation4 + $0xb8] sm:$0xff] %vm657, %v5505
  %v5522 = vld [vmem:[#allocation3] sm:$0xff]
  %v5523 = vld [vmem:[#allocation3 + $0x8] sm:$0xff]
  %v5524 = vld [vmem:[#allocation3 + $0x10] sm:$0xff]
  %v5525 = vld [vmem:[#allocation3 + $0x18] sm:$0xff]
  %v5526 = vld [vmem:[#allocation3 + $0x20] sm:$0xff]
  %v5527 = vld [vmem:[#allocation3 + $0x28] sm:$0xff]
  %v5528 = vld [vmem:[#allocation3 + $0x30] sm:$0xff]
  %v5529 = vld [vmem:[#allocation3 + $0x38] sm:$0xff]
  %5538 = vrot.lane.b32.xlu0 %v5522, 108
  %v5539 = vpop.permute.xlu0 %5538
  %5540 = vrot.lane.b32.xlu0 %v5523, 108
  %v5541 = vpop.permute.xlu0 %5540
  %5542 = vrot.lane.b32.xlu0 %v5524, 108
  %v5543 = vpop.permute.xlu0 %5542
  %5544 = vrot.lane.b32.xlu0 %v5525, 108
  %v5545 = vpop.permute.xlu0 %5544
  %5546 = vrot.lane.b32.xlu0 %v5526, 108
  %v5547 = vpop.permute.xlu0 %5546
  %5548 = vrot.lane.b32.xlu0 %v5527, 108
  %v5549 = vpop.permute.xlu0 %5548
  %5550 = vrot.lane.b32.xlu0 %v5528, 108
  %v5551 = vpop.permute.xlu0 %5550
  %5552 = vrot.lane.b32.xlu0 %v5529, 108
  %v5553 = vpop.permute.xlu0 %5552
  %v5554 = vrot.slane %v5539, 4
  %v5555 = vrot.slane %v5541, 4
  %v5556 = vrot.slane %v5543, 4
  %v5557 = vrot.slane %v5545, 4
  %v5558 = vrot.slane %v5547, 4
  %v5559 = vrot.slane %v5549, 4
  %v5560 = vrot.slane %v5551, 4
  %v5561 = vrot.slane %v5553, 4
  %v5562 = vsel %vm613, %v5554, %v5555
  %v5563 = vsel %vm844, %v5539, %v5562
  %v5564 = vsel %vm844, %v5541, %v5555
  %v5565 = vsel %vm613, %v5556, %v5557
  %v5566 = vsel %vm844, %v5543, %v5565
  %v5567 = vsel %vm844, %v5545, %v5557
  %v5568 = vsel %vm613, %v5558, %v5559
  %v5569 = vsel %vm844, %v5547, %v5568
  %v5570 = vsel %vm844, %v5549, %v5559
  %v5571 = vsel %vm613, %v5560, %v5561
  %v5572 = vsel %vm844, %v5551, %v5571
  %v5573 = vsel %vm844, %v5553, %v5561
  %5582 = vst [vmem:[#allocation4 + $0xc0] sm:$0xff] %v5563
  %5583 = vst.msk [vmem:[#allocation4 + $0xc8] sm:$0xff] %vm657, %v5564
  %5584 = vst [vmem:[#allocation4 + $0xd0] sm:$0xff] %v5566
  %5585 = vst.msk [vmem:[#allocation4 + $0xd8] sm:$0xff] %vm657, %v5567
  %5586 = vst [vmem:[#allocation4 + $0xe0] sm:$0xff] %v5569
  %5587 = vst.msk [vmem:[#allocation4 + $0xe8] sm:$0xff] %vm657, %v5570
  %5588 = vst [vmem:[#allocation4 + $0xf0] sm:$0xff] %v5572
  %5589 = vst.msk [vmem:[#allocation4 + $0xf8] sm:$0xff] %vm657, %v5573
  %v5590 = vld [vmem:[#allocation3] sm:$0xff]
  %v5591 = vld [vmem:[#allocation3 + $0x8] sm:$0xff]
  %v5592 = vld [vmem:[#allocation3 + $0x10] sm:$0xff]
  %v5593 = vld [vmem:[#allocation3 + $0x18] sm:$0xff]
  %v5594 = vld [vmem:[#allocation3 + $0x20] sm:$0xff]
  %v5595 = vld [vmem:[#allocation3 + $0x28] sm:$0xff]
  %v5596 = vld [vmem:[#allocation3 + $0x30] sm:$0xff]
  %v5597 = vld [vmem:[#allocation3 + $0x38] sm:$0xff]
  %5606 = vrot.lane.b32.xlu0 %v5590, 107
  %v5607 = vpop.permute.xlu0 %5606
  %5608 = vrot.lane.b32.xlu0 %v5591, 107
  %v5609 = vpop.permute.xlu0 %5608
  %5610 = vrot.lane.b32.xlu0 %v5592, 107
  %v5611 = vpop.permute.xlu0 %5610
  %5612 = vrot.lane.b32.xlu0 %v5593, 107
  %v5613 = vpop.permute.xlu0 %5612
  %5614 = vrot.lane.b32.xlu0 %v5594, 107
  %v5615 = vpop.permute.xlu0 %5614
  %5616 = vrot.lane.b32.xlu0 %v5595, 107
  %v5617 = vpop.permute.xlu0 %5616
  %5618 = vrot.lane.b32.xlu0 %v5596, 107
  %v5619 = vpop.permute.xlu0 %5618
  %5620 = vrot.lane.b32.xlu0 %v5597, 107
  %v5621 = vpop.permute.xlu0 %5620
  %v5622 = vrot.slane %v5607, 4
  %v5623 = vrot.slane %v5609, 4
  %v5624 = vrot.slane %v5611, 4
  %v5625 = vrot.slane %v5613, 4
  %v5626 = vrot.slane %v5615, 4
  %v5627 = vrot.slane %v5617, 4
  %v5628 = vrot.slane %v5619, 4
  %v5629 = vrot.slane %v5621, 4
  %v5630 = vsel %vm613, %v5622, %v5623
  %v5631 = vsel %vm913, %v5607, %v5630
  %v5632 = vsel %vm913, %v5609, %v5623
  %v5633 = vsel %vm613, %v5624, %v5625
  %v5634 = vsel %vm913, %v5611, %v5633
  %v5635 = vsel %vm913, %v5613, %v5625
  %v5636 = vsel %vm613, %v5626, %v5627
  %v5637 = vsel %vm913, %v5615, %v5636
  %v5638 = vsel %vm913, %v5617, %v5627
  %v5639 = vsel %vm613, %v5628, %v5629
  %v5640 = vsel %vm913, %v5619, %v5639
  %v5641 = vsel %vm913, %v5621, %v5629
  %5650 = vst [vmem:[#allocation4 + $0x100] sm:$0xff] %v5631
  %5651 = vst.msk [vmem:[#allocation4 + $0x108] sm:$0xff] %vm657, %v5632
  %5652 = vst [vmem:[#allocation4 + $0x110] sm:$0xff] %v5634
  %5653 = vst.msk [vmem:[#allocation4 + $0x118] sm:$0xff] %vm657, %v5635
  %5654 = vst [vmem:[#allocation4 + $0x120] sm:$0xff] %v5637
  %5655 = vst.msk [vmem:[#allocation4 + $0x128] sm:$0xff] %vm657, %v5638
  %5656 = vst [vmem:[#allocation4 + $0x130] sm:$0xff] %v5640
  %5657 = vst.msk [vmem:[#allocation4 + $0x138] sm:$0xff] %vm657, %v5641
  %v5658 = vld [vmem:[#allocation3] sm:$0xff]
  %v5659 = vld [vmem:[#allocation3 + $0x8] sm:$0xff]
  %v5660 = vld [vmem:[#allocation3 + $0x10] sm:$0xff]
  %v5661 = vld [vmem:[#allocation3 + $0x18] sm:$0xff]
  %v5662 = vld [vmem:[#allocation3 + $0x20] sm:$0xff]
  %v5663 = vld [vmem:[#allocation3 + $0x28] sm:$0xff]
  %v5664 = vld [vmem:[#allocation3 + $0x30] sm:$0xff]
  %v5665 = vld [vmem:[#allocation3 + $0x38] sm:$0xff]
  %5674 = vrot.lane.b32.xlu0 %v5658, 106
  %v5675 = vpop.permute.xlu0 %5674
  %5676 = vrot.lane.b32.xlu0 %v5659, 106
  %v5677 = vpop.permute.xlu0 %5676
  %5678 = vrot.lane.b32.xlu0 %v5660, 106
  %v5679 = vpop.permute.xlu0 %5678
  %5680 = vrot.lane.b32.xlu0 %v5661, 106
  %v5681 = vpop.permute.xlu0 %5680
  %5682 = vrot.lane.b32.xlu0 %v5662, 106
  %v5683 = vpop.permute.xlu0 %5682
  %5684 = vrot.lane.b32.xlu0 %v5663, 106
  %v5685 = vpop.permute.xlu0 %5684
  %5686 = vrot.lane.b32.xlu0 %v5664, 106
  %v5687 = vpop.permute.xlu0 %5686
  %5688 = vrot.lane.b32.xlu0 %v5665, 106
  %v5689 = vpop.permute.xlu0 %5688
  %v5690 = vrot.slane %v5675, 4
  %v5691 = vrot.slane %v5677, 4
  %v5692 = vrot.slane %v5679, 4
  %v5693 = vrot.slane %v5681, 4
  %v5694 = vrot.slane %v5683, 4
  %v5695 = vrot.slane %v5685, 4
  %v5696 = vrot.slane %v5687, 4
  %v5697 = vrot.slane %v5689, 4
  %v5698 = vsel %vm613, %v5690, %v5691
  %v5699 = vsel %vm982, %v5675, %v5698
  %v5700 = vsel %vm982, %v5677, %v5691
  %v5701 = vsel %vm613, %v5692, %v5693
  %v5702 = vsel %vm982, %v5679, %v5701
  %v5703 = vsel %vm982, %v5681, %v5693
  %v5704 = vsel %vm613, %v5694, %v5695
  %v5705 = vsel %vm982, %v5683, %v5704
  %v5706 = vsel %vm982, %v5685, %v5695
  %v5707 = vsel %vm613, %v5696, %v5697
  %v5708 = vsel %vm982, %v5687, %v5707
  %v5709 = vsel %vm982, %v5689, %v5697
  %5718 = vst [vmem:[#allocation4 + $0x140] sm:$0xff] %v5699
  %5719 = vst.msk [vmem:[#allocation4 + $0x148] sm:$0xff] %vm657, %v5700
  %5720 = vst [vmem:[#allocation4 + $0x150] sm:$0xff] %v5702
  %5721 = vst.msk [vmem:[#allocation4 + $0x158] sm:$0xff] %vm657, %v5703
  %5722 = vst [vmem:[#allocation4 + $0x160] sm:$0xff] %v5705
  %5723 = vst.msk [vmem:[#allocation4 + $0x168] sm:$0xff] %vm657, %v5706
  %5724 = vst [vmem:[#allocation4 + $0x170] sm:$0xff] %v5708
  %5725 = vst.msk [vmem:[#allocation4 + $0x178] sm:$0xff] %vm657, %v5709
  %v5726 = vld [vmem:[#allocation3] sm:$0xff]
  %v5727 = vld [vmem:[#allocation3 + $0x8] sm:$0xff]
  %v5728 = vld [vmem:[#allocation3 + $0x10] sm:$0xff]
  %v5729 = vld [vmem:[#allocation3 + $0x18] sm:$0xff]
  %v5730 = vld [vmem:[#allocation3 + $0x20] sm:$0xff]
  %v5731 = vld [vmem:[#allocation3 + $0x28] sm:$0xff]
  %v5732 = vld [vmem:[#allocation3 + $0x30] sm:$0xff]
  %v5733 = vld [vmem:[#allocation3 + $0x38] sm:$0xff]
  %5742 = vrot.lane.b32.xlu0 %v5726, 88
  %v5743 = vpop.permute.xlu0 %5742
  %5744 = vrot.lane.b32.xlu0 %v5727, 88
  %v5745 = vpop.permute.xlu0 %5744
  %5746 = vrot.lane.b32.xlu0 %v5728, 88
  %v5747 = vpop.permute.xlu0 %5746
  %5748 = vrot.lane.b32.xlu0 %v5729, 88
  %v5749 = vpop.permute.xlu0 %5748
  %5750 = vrot.lane.b32.xlu0 %v5730, 88
  %v5751 = vpop.permute.xlu0 %5750
  %5752 = vrot.lane.b32.xlu0 %v5731, 88
  %v5753 = vpop.permute.xlu0 %5752
  %5754 = vrot.lane.b32.xlu0 %v5732, 88
  %v5755 = vpop.permute.xlu0 %5754
  %5756 = vrot.lane.b32.xlu0 %v5733, 88
  %v5757 = vpop.permute.xlu0 %5756
  %v5758 = vrot.slane %v5743, 4
  %v5759 = vrot.slane %v5745, 4
  %v5760 = vrot.slane %v5747, 4
  %v5761 = vrot.slane %v5749, 4
  %v5762 = vrot.slane %v5751, 4
  %v5763 = vrot.slane %v5753, 4
  %v5764 = vrot.slane %v5755, 4
  %v5765 = vrot.slane %v5757, 4
  %v5766 = vsel %vm613, %v5758, %v5759
  %v5767 = vsel %vm1051, %v5743, %v5766
  %v5768 = vsel %vm1051, %v5745, %v5759
  %v5769 = vsel %vm613, %v5760, %v5761
  %v5770 = vsel %vm1051, %v5747, %v5769
  %v5771 = vsel %vm1051, %v5749, %v5761
  %v5772 = vsel %vm613, %v5762, %v5763
  %v5773 = vsel %vm1051, %v5751, %v5772
  %v5774 = vsel %vm1051, %v5753, %v5763
  %v5775 = vsel %vm613, %v5764, %v5765
  %v5776 = vsel %vm1051, %v5755, %v5775
  %v5777 = vsel %vm1051, %v5757, %v5765
  %5786 = vst [vmem:[#allocation4 + $0x180] sm:$0xff] %v5767
  %5787 = vst.msk [vmem:[#allocation4 + $0x188] sm:$0xff] %vm657, %v5768
  %5788 = vst [vmem:[#allocation4 + $0x190] sm:$0xff] %v5770
  %5789 = vst.msk [vmem:[#allocation4 + $0x198] sm:$0xff] %vm657, %v5771
  %5790 = vst [vmem:[#allocation4 + $0x1a0] sm:$0xff] %v5773
  %5791 = vst.msk [vmem:[#allocation4 + $0x1a8] sm:$0xff] %vm657, %v5774
  %5792 = vst [vmem:[#allocation4 + $0x1b0] sm:$0xff] %v5776
  %5793 = vst.msk [vmem:[#allocation4 + $0x1b8] sm:$0xff] %vm657, %v5777
  %v5794 = vld [vmem:[#allocation3] sm:$0xff]
  %v5795 = vld [vmem:[#allocation3 + $0x8] sm:$0xff]
  %v5796 = vld [vmem:[#allocation3 + $0x10] sm:$0xff]
  %v5797 = vld [vmem:[#allocation3 + $0x18] sm:$0xff]
  %v5798 = vld [vmem:[#allocation3 + $0x20] sm:$0xff]
  %v5799 = vld [vmem:[#allocation3 + $0x28] sm:$0xff]
  %v5800 = vld [vmem:[#allocation3 + $0x30] sm:$0xff]
  %v5801 = vld [vmem:[#allocation3 + $0x38] sm:$0xff]
  %5810 = vrot.lane.b32.xlu0 %v5794, 87
  %v5811 = vpop.permute.xlu0 %5810
  %5812 = vrot.lane.b32.xlu0 %v5795, 87
  %v5813 = vpop.permute.xlu0 %5812
  %5814 = vrot.lane.b32.xlu0 %v5796, 87
  %v5815 = vpop.permute.xlu0 %5814
  %5816 = vrot.lane.b32.xlu0 %v5797, 87
  %v5817 = vpop.permute.xlu0 %5816
  %5818 = vrot.lane.b32.xlu0 %v5798, 87
  %v5819 = vpop.permute.xlu0 %5818
  %5820 = vrot.lane.b32.xlu0 %v5799, 87
  %v5821 = vpop.permute.xlu0 %5820
  %5822 = vrot.lane.b32.xlu0 %v5800, 87
  %v5823 = vpop.permute.xlu0 %5822
  %5824 = vrot.lane.b32.xlu0 %v5801, 87
  %v5825 = vpop.permute.xlu0 %5824
  %v5826 = vrot.slane %v5811, 4
  %v5827 = vrot.slane %v5813, 4
  %v5828 = vrot.slane %v5815, 4
  %v5829 = vrot.slane %v5817, 4
  %v5830 = vrot.slane %v5819, 4
  %v5831 = vrot.slane %v5821, 4
  %v5832 = vrot.slane %v5823, 4
  %v5833 = vrot.slane %v5825, 4
  %v5834 = vsel %vm613, %v5826, %v5827
  %v5835 = vsel %vm1120, %v5811, %v5834
  %v5836 = vsel %vm1120, %v5813, %v5827
  %v5837 = vsel %vm613, %v5828, %v5829
  %v5838 = vsel %vm1120, %v5815, %v5837
  %v5839 = vsel %vm1120, %v5817, %v5829
  %v5840 = vsel %vm613, %v5830, %v5831
  %v5841 = vsel %vm1120, %v5819, %v5840
  %v5842 = vsel %vm1120, %v5821, %v5831
  %v5843 = vsel %vm613, %v5832, %v5833
  %v5844 = vsel %vm1120, %v5823, %v5843
  %v5845 = vsel %vm1120, %v5825, %v5833
  %5854 = vst [vmem:[#allocation4 + $0x1c0] sm:$0xff] %v5835
  %5855 = vst.msk [vmem:[#allocation4 + $0x1c8] sm:$0xff] %vm657, %v5836
  %5856 = vst [vmem:[#allocation4 + $0x1d0] sm:$0xff] %v5838
  %5857 = vst.msk [vmem:[#allocation4 + $0x1d8] sm:$0xff] %vm657, %v5839
  %5858 = vst [vmem:[#allocation4 + $0x1e0] sm:$0xff] %v5841
  %5859 = vst.msk [vmem:[#allocation4 + $0x1e8] sm:$0xff] %vm657, %v5842
  %5860 = vst [vmem:[#allocation4 + $0x1f0] sm:$0xff] %v5844
  %5861 = vst.msk [vmem:[#allocation4 + $0x1f8] sm:$0xff] %vm657, %v5845
  %v5862 = vld [vmem:[#allocation3] sm:$0xff]
  %v5863 = vld [vmem:[#allocation3 + $0x8] sm:$0xff]
  %v5864 = vld [vmem:[#allocation3 + $0x10] sm:$0xff]
  %v5865 = vld [vmem:[#allocation3 + $0x18] sm:$0xff]
  %v5866 = vld [vmem:[#allocation3 + $0x20] sm:$0xff]
  %v5867 = vld [vmem:[#allocation3 + $0x28] sm:$0xff]
  %v5868 = vld [vmem:[#allocation3 + $0x30] sm:$0xff]
  %v5869 = vld [vmem:[#allocation3 + $0x38] sm:$0xff]
  %5878 = vrot.lane.b32.xlu0 %v5862, 86
  %v5879 = vpop.permute.xlu0 %5878
  %5880 = vrot.lane.b32.xlu0 %v5863, 86
  %v5881 = vpop.permute.xlu0 %5880
  %5882 = vrot.lane.b32.xlu0 %v5864, 86
  %v5883 = vpop.permute.xlu0 %5882
  %5884 = vrot.lane.b32.xlu0 %v5865, 86
  %v5885 = vpop.permute.xlu0 %5884
  %5886 = vrot.lane.b32.xlu0 %v5866, 86
  %v5887 = vpop.permute.xlu0 %5886
  %5888 = vrot.lane.b32.xlu0 %v5867, 86
  %v5889 = vpop.permute.xlu0 %5888
  %5890 = vrot.lane.b32.xlu0 %v5868, 86
  %v5891 = vpop.permute.xlu0 %5890
  %5892 = vrot.lane.b32.xlu0 %v5869, 86
  %v5893 = vpop.permute.xlu0 %5892
  %v5894 = vrot.slane %v5879, 4
  %v5895 = vrot.slane %v5881, 4
  %v5896 = vrot.slane %v5883, 4
  %v5897 = vrot.slane %v5885, 4
  %v5898 = vrot.slane %v5887, 4
  %v5899 = vrot.slane %v5889, 4
  %v5900 = vrot.slane %v5891, 4
  %v5901 = vrot.slane %v5893, 4
  %v5902 = vsel %vm613, %v5894, %v5895
  %v5903 = vsel %vm1189, %v5879, %v5902
  %v5904 = vsel %vm1189, %v5881, %v5895
  %v5905 = vsel %vm613, %v5896, %v5897
  %v5906 = vsel %vm1189, %v5883, %v5905
  %v5907 = vsel %vm1189, %v5885, %v5897
  %v5908 = vsel %vm613, %v5898, %v5899
  %v5909 = vsel %vm1189, %v5887, %v5908
  %v5910 = vsel %vm1189, %v5889, %v5899
  %v5911 = vsel %vm613, %v5900, %v5901
  %v5912 = vsel %vm1189, %v5891, %v5911
  %v5913 = vsel %vm1189, %v5893, %v5901
  %5922 = vst [vmem:[#allocation4 + $0x200] sm:$0xff] %v5903
  %5923 = vst.msk [vmem:[#allocation4 + $0x208] sm:$0xff] %vm657, %v5904
  %5924 = vst [vmem:[#allocation4 + $0x210] sm:$0xff] %v5906
  %5925 = vst.msk [vmem:[#allocation4 + $0x218] sm:$0xff] %vm657, %v5907
  %5926 = vst [vmem:[#allocation4 + $0x220] sm:$0xff] %v5909
  %5927 = vst.msk [vmem:[#allocation4 + $0x228] sm:$0xff] %vm657, %v5910
  %5928 = vst [vmem:[#allocation4 + $0x230] sm:$0xff] %v5912
  %5929 = vst.msk [vmem:[#allocation4 + $0x238] sm:$0xff] %vm657, %v5913
  %s5930 = scalar_lea.vmem %s2, 144
  %v5931 = vld [vmem:[%s5930] sm:$0xff]
  %v5932 = vld [vmem:[%s5930 + $0x8] sm:$0xf]
  %v5933 = vld [vmem:[%s5930 + $0xc] sm:$0xff]
  %v5934 = vld [vmem:[%s5930 + $0x14] sm:$0xf]
  %v5935 = vld [vmem:[%s5930 + $0x18] sm:$0xff]
  %v5936 = vld [vmem:[%s5930 + $0x20] sm:$0xf]
  %v5937 = vld [vmem:[%s5930 + $0x24] sm:$0xff]
  %v5938 = vld [vmem:[%s5930 + $0x2c] sm:$0xf]
  %v5939 = vld [vmem:[#allocation4] sm:$0xff]
  %v5940 = vld [vmem:[#allocation4 + $0x8] sm:$0xff]
  %v5941 = vld [vmem:[#allocation4 + $0x10] sm:$0xff]
  %v5942 = vld [vmem:[#allocation4 + $0x18] sm:$0xff]
  %v5943 = vld [vmem:[#allocation4 + $0x20] sm:$0xff]
  %v5944 = vld [vmem:[#allocation4 + $0x28] sm:$0xff]
  %v5945 = vld [vmem:[#allocation4 + $0x30] sm:$0xff]
  %v5946 = vld [vmem:[#allocation4 + $0x38] sm:$0xff]
  %v5947 = vld [vmem:[#allocation4 + $0x40] sm:$0xff]
  %v5948 = vld [vmem:[#allocation4 + $0x48] sm:$0xff]
  %v5949 = vld [vmem:[#allocation4 + $0x50] sm:$0xff]
  %v5950 = vld [vmem:[#allocation4 + $0x58] sm:$0xff]
  %v5951 = vld [vmem:[#allocation4 + $0x60] sm:$0xff]
  %v5952 = vld [vmem:[#allocation4 + $0x68] sm:$0xff]
  %v5953 = vld [vmem:[#allocation4 + $0x70] sm:$0xff]
  %v5954 = vld [vmem:[#allocation4 + $0x78] sm:$0xff]
  %v5955 = vld [vmem:[#allocation4 + $0x80] sm:$0xff]
  %v5956 = vld [vmem:[#allocation4 + $0x88] sm:$0xff]
  %v5957 = vld [vmem:[#allocation4 + $0x90] sm:$0xff]
  %v5958 = vld [vmem:[#allocation4 + $0x98] sm:$0xff]
  %v5959 = vld [vmem:[#allocation4 + $0xa0] sm:$0xff]
  %v5960 = vld [vmem:[#allocation4 + $0xa8] sm:$0xff]
  %v5961 = vld [vmem:[#allocation4 + $0xb0] sm:$0xff]
  %v5962 = vld [vmem:[#allocation4 + $0xb8] sm:$0xff]
  %v5963 = vld [vmem:[#allocation4 + $0xc0] sm:$0xff]
  %v5964 = vld [vmem:[#allocation4 + $0xc8] sm:$0xff]
  %v5965 = vld [vmem:[#allocation4 + $0xd0] sm:$0xff]
  %v5966 = vld [vmem:[#allocation4 + $0xd8] sm:$0xff]
  %v5967 = vld [vmem:[#allocation4 + $0xe0] sm:$0xff]
  %v5968 = vld [vmem:[#allocation4 + $0xe8] sm:$0xff]
  %v5969 = vld [vmem:[#allocation4 + $0xf0] sm:$0xff]
  %v5970 = vld [vmem:[#allocation4 + $0xf8] sm:$0xff]
  %v5971 = vld [vmem:[#allocation4 + $0x100] sm:$0xff]
  %v5972 = vld [vmem:[#allocation4 + $0x108] sm:$0xff]
  %v5973 = vld [vmem:[#allocation4 + $0x110] sm:$0xff]
  %v5974 = vld [vmem:[#allocation4 + $0x118] sm:$0xff]
  %v5975 = vld [vmem:[#allocation4 + $0x120] sm:$0xff]
  %v5976 = vld [vmem:[#allocation4 + $0x128] sm:$0xff]
  %v5977 = vld [vmem:[#allocation4 + $0x130] sm:$0xff]
  %v5978 = vld [vmem:[#allocation4 + $0x138] sm:$0xff]
  %v5979 = vld [vmem:[#allocation4 + $0x140] sm:$0xff]
  %v5980 = vld [vmem:[#allocation4 + $0x148] sm:$0xff]
  %v5981 = vld [vmem:[#allocation4 + $0x150] sm:$0xff]
  %v5982 = vld [vmem:[#allocation4 + $0x158] sm:$0xff]
  %v5983 = vld [vmem:[#allocation4 + $0x160] sm:$0xff]
  %v5984 = vld [vmem:[#allocation4 + $0x168] sm:$0xff]
  %v5985 = vld [vmem:[#allocation4 + $0x170] sm:$0xff]
  %v5986 = vld [vmem:[#allocation4 + $0x178] sm:$0xff]
  %v5987 = vld [vmem:[#allocation4 + $0x180] sm:$0xff]
  %v5988 = vld [vmem:[#allocation4 + $0x188] sm:$0xff]
  %v5989 = vld [vmem:[#allocation4 + $0x190] sm:$0xff]
  %v5990 = vld [vmem:[#allocation4 + $0x198] sm:$0xff]
  %v5991 = vld [vmem:[#allocation4 + $0x1a0] sm:$0xff]
  %v5992 = vld [vmem:[#allocation4 + $0x1a8] sm:$0xff]
  %v5993 = vld [vmem:[#allocation4 + $0x1b0] sm:$0xff]
  %v5994 = vld [vmem:[#allocation4 + $0x1b8] sm:$0xff]
  %v5995 = vld [vmem:[#allocation4 + $0x1c0] sm:$0xff]
  %v5996 = vld [vmem:[#allocation4 + $0x1c8] sm:$0xff]
  %v5997 = vld [vmem:[#allocation4 + $0x1d0] sm:$0xff]
  %v5998 = vld [vmem:[#allocation4 + $0x1d8] sm:$0xff]
  %v5999 = vld [vmem:[#allocation4 + $0x1e0] sm:$0xff]
  %v6000 = vld [vmem:[#allocation4 + $0x1e8] sm:$0xff]
  %v6001 = vld [vmem:[#allocation4 + $0x1f0] sm:$0xff]
  %v6002 = vld [vmem:[#allocation4 + $0x1f8] sm:$0xff]
  %v6003 = vld [vmem:[#allocation4 + $0x200] sm:$0xff]
  %v6004 = vld [vmem:[#allocation4 + $0x208] sm:$0xff]
  %v6005 = vld [vmem:[#allocation4 + $0x210] sm:$0xff]
  %v6006 = vld [vmem:[#allocation4 + $0x218] sm:$0xff]
  %v6007 = vld [vmem:[#allocation4 + $0x220] sm:$0xff]
  %v6008 = vld [vmem:[#allocation4 + $0x228] sm:$0xff]
  %v6009 = vld [vmem:[#allocation4 + $0x230] sm:$0xff]
  %v6010 = vld [vmem:[#allocation4 + $0x238] sm:$0xff]
  %v6019 = vunpack.c.l.b16 %v5931
  %v6020 = vunpack.c.h.b16 %v5931
  %v6021 = vunpack.c.l.b16 %v5932
  %v6022 = vunpack.c.l.b16 %v5933
  %v6023 = vunpack.c.h.b16 %v5933
  %v6024 = vunpack.c.l.b16 %v5934
  %v6025 = vunpack.c.l.b16 %v5935
  %v6026 = vunpack.c.h.b16 %v5935
  %v6027 = vunpack.c.l.b16 %v5936
  %v6028 = vunpack.c.l.b16 %v5937
  %v6029 = vunpack.c.h.b16 %v5937
  %v6030 = vunpack.c.l.b16 %v5938
  %v6031 = vpack.c.b16 %v6022, %v6019
  %v6032 = vpack.c.b16 %v6023, %v6020
  %v6033 = vpack.c.b16 %v6024, %v6021
  %v6034 = vpack.c.b16 %v6028, %v6025
  %v6035 = vpack.c.b16 %v6029, %v6026
  %v6036 = vpack.c.b16 %v6030, %v6027
  %v6113 = vunpack.c.l.b16 %v5939
  %v6114 = vunpack.c.h.b16 %v5939
  %v6115 = vunpack.c.l.b16 %v5940
  %v6116 = vunpack.c.h.b16 %v5940
  %v6117 = vunpack.c.l.b16 %v5941
  %v6118 = vunpack.c.h.b16 %v5941
  %v6119 = vunpack.c.l.b16 %v5942
  %v6120 = vunpack.c.h.b16 %v5942
  %v6121 = vunpack.c.l.b16 %v5943
  %v6122 = vunpack.c.h.b16 %v5943
  %v6123 = vunpack.c.l.b16 %v5944
  %v6124 = vunpack.c.h.b16 %v5944
  %v6125 = vunpack.c.l.b16 %v5945
  %v6126 = vunpack.c.h.b16 %v5945
  %v6127 = vunpack.c.l.b16 %v5946
  %v6128 = vunpack.c.h.b16 %v5946
  %v6129 = vunpack.c.l.b16 %v5947
  %v6130 = vunpack.c.h.b16 %v5947
  %v6131 = vunpack.c.l.b16 %v5948
  %v6132 = vunpack.c.h.b16 %v5948
  %v6133 = vunpack.c.l.b16 %v5949
  %v6134 = vunpack.c.h.b16 %v5949
  %v6135 = vunpack.c.l.b16 %v5950
  %v6136 = vunpack.c.h.b16 %v5950
  %v6137 = vunpack.c.l.b16 %v5951
  %v6138 = vunpack.c.h.b16 %v5951
  %v6139 = vunpack.c.l.b16 %v5952
  %v6140 = vunpack.c.h.b16 %v5952
  %v6141 = vunpack.c.l.b16 %v5953
  %v6142 = vunpack.c.h.b16 %v5953
  %v6143 = vunpack.c.l.b16 %v5954
  %v6144 = vunpack.c.h.b16 %v5954
  %v6145 = vunpack.c.l.b16 %v5955
  %v6146 = vunpack.c.h.b16 %v5955
  %v6147 = vunpack.c.l.b16 %v5956
  %v6148 = vunpack.c.h.b16 %v5956
  %v6149 = vunpack.c.l.b16 %v5957
  %v6150 = vunpack.c.h.b16 %v5957
  %v6151 = vunpack.c.l.b16 %v5958
  %v6152 = vunpack.c.h.b16 %v5958
  %v6153 = vunpack.c.l.b16 %v5959
  %v6154 = vunpack.c.h.b16 %v5959
  %v6155 = vunpack.c.l.b16 %v5960
  %v6156 = vunpack.c.h.b16 %v5960
  %v6157 = vunpack.c.l.b16 %v5961
  %v6158 = vunpack.c.h.b16 %v5961
  %v6159 = vunpack.c.l.b16 %v5962
  %v6160 = vunpack.c.h.b16 %v5962
  %v6161 = vunpack.c.l.b16 %v5963
  %v6162 = vunpack.c.h.b16 %v5963
  %v6163 = vunpack.c.l.b16 %v5964
  %v6164 = vunpack.c.h.b16 %v5964
  %v6165 = vunpack.c.l.b16 %v5965
  %v6166 = vunpack.c.h.b16 %v5965
  %v6167 = vunpack.c.l.b16 %v5966
  %v6168 = vunpack.c.h.b16 %v5966
  %v6169 = vunpack.c.l.b16 %v5967
  %v6170 = vunpack.c.h.b16 %v5967
  %v6171 = vunpack.c.l.b16 %v5968
  %v6172 = vunpack.c.h.b16 %v5968
  %v6173 = vunpack.c.l.b16 %v5969
  %v6174 = vunpack.c.h.b16 %v5969
  %v6175 = vunpack.c.l.b16 %v5970
  %v6176 = vunpack.c.h.b16 %v5970
  %v6177 = vunpack.c.l.b16 %v5971
  %v6178 = vunpack.c.h.b16 %v5971
  %v6179 = vunpack.c.l.b16 %v5972
  %v6180 = vunpack.c.h.b16 %v5972
  %v6181 = vunpack.c.l.b16 %v5973
  %v6182 = vunpack.c.h.b16 %v5973
  %v6183 = vunpack.c.l.b16 %v5974
  %v6184 = vunpack.c.h.b16 %v5974
  %v6185 = vunpack.c.l.b16 %v5975
  %v6186 = vunpack.c.h.b16 %v5975
  %v6187 = vunpack.c.l.b16 %v5976
  %v6188 = vunpack.c.h.b16 %v5976
  %v6189 = vunpack.c.l.b16 %v5977
  %v6190 = vunpack.c.h.b16 %v5977
  %v6191 = vunpack.c.l.b16 %v5978
  %v6192 = vunpack.c.h.b16 %v5978
  %v6193 = vunpack.c.l.b16 %v5979
  %v6194 = vunpack.c.h.b16 %v5979
  %v6195 = vunpack.c.l.b16 %v5980
  %v6196 = vunpack.c.h.b16 %v5980
  %v6197 = vunpack.c.l.b16 %v5981
  %v6198 = vunpack.c.h.b16 %v5981
  %v6199 = vunpack.c.l.b16 %v5982
  %v6200 = vunpack.c.h.b16 %v5982
  %v6201 = vunpack.c.l.b16 %v5983
  %v6202 = vunpack.c.h.b16 %v5983
  %v6203 = vunpack.c.l.b16 %v5984
  %v6204 = vunpack.c.h.b16 %v5984
  %v6205 = vunpack.c.l.b16 %v5985
  %v6206 = vunpack.c.h.b16 %v5985
  %v6207 = vunpack.c.l.b16 %v5986
  %v6208 = vunpack.c.h.b16 %v5986
  %v6209 = vunpack.c.l.b16 %v5987
  %v6210 = vunpack.c.h.b16 %v5987
  %v6211 = vunpack.c.l.b16 %v5988
  %v6212 = vunpack.c.h.b16 %v5988
  %v6213 = vunpack.c.l.b16 %v5989
  %v6214 = vunpack.c.h.b16 %v5989
  %v6215 = vunpack.c.l.b16 %v5990
  %v6216 = vunpack.c.h.b16 %v5990
  %v6217 = vunpack.c.l.b16 %v5991
  %v6218 = vunpack.c.h.b16 %v5991
  %v6219 = vunpack.c.l.b16 %v5992
  %v6220 = vunpack.c.h.b16 %v5992
  %v6221 = vunpack.c.l.b16 %v5993
  %v6222 = vunpack.c.h.b16 %v5993
  %v6223 = vunpack.c.l.b16 %v5994
  %v6224 = vunpack.c.h.b16 %v5994
  %v6225 = vunpack.c.l.b16 %v5995
  %v6226 = vunpack.c.h.b16 %v5995
  %v6227 = vunpack.c.l.b16 %v5996
  %v6228 = vunpack.c.h.b16 %v5996
  %v6229 = vunpack.c.l.b16 %v5997
  %v6230 = vunpack.c.h.b16 %v5997
  %v6231 = vunpack.c.l.b16 %v5998
  %v6232 = vunpack.c.h.b16 %v5998
  %v6233 = vunpack.c.l.b16 %v5999
  %v6234 = vunpack.c.h.b16 %v5999
  %v6235 = vunpack.c.l.b16 %v6000
  %v6236 = vunpack.c.h.b16 %v6000
  %v6237 = vunpack.c.l.b16 %v6001
  %v6238 = vunpack.c.h.b16 %v6001
  %v6239 = vunpack.c.l.b16 %v6002
  %v6240 = vunpack.c.h.b16 %v6002
  %v6241 = vunpack.c.l.b16 %v6003
  %v6242 = vunpack.c.h.b16 %v6003
  %v6243 = vunpack.c.l.b16 %v6004
  %v6244 = vunpack.c.h.b16 %v6004
  %v6245 = vunpack.c.l.b16 %v6005
  %v6246 = vunpack.c.h.b16 %v6005
  %v6247 = vunpack.c.l.b16 %v6006
  %v6248 = vunpack.c.h.b16 %v6006
  %v6249 = vunpack.c.l.b16 %v6007
  %v6250 = vunpack.c.h.b16 %v6007
  %v6251 = vunpack.c.l.b16 %v6008
  %v6252 = vunpack.c.h.b16 %v6008
  %v6253 = vunpack.c.l.b16 %v6009
  %v6254 = vunpack.c.h.b16 %v6009
  %v6255 = vunpack.c.l.b16 %v6010
  %v6256 = vunpack.c.h.b16 %v6010
  %v6257 = vpack.c.b16 %v6117, %v6113
  %v6258 = vpack.c.b16 %v6118, %v6114
  %v6259 = vpack.c.b16 %v6119, %v6115
  %v6260 = vpack.c.b16 %v6120, %v6116
  %v6261 = vpack.c.b16 %v6125, %v6121
  %v6262 = vpack.c.b16 %v6126, %v6122
  %v6263 = vpack.c.b16 %v6127, %v6123
  %v6264 = vpack.c.b16 %v6128, %v6124
  %v6265 = vpack.c.b16 %v6133, %v6129
  %v6266 = vpack.c.b16 %v6134, %v6130
  %v6267 = vpack.c.b16 %v6135, %v6131
  %v6268 = vpack.c.b16 %v6136, %v6132
  %v6269 = vpack.c.b16 %v6141, %v6137
  %v6270 = vpack.c.b16 %v6142, %v6138
  %v6271 = vpack.c.b16 %v6143, %v6139
  %v6272 = vpack.c.b16 %v6144, %v6140
  %v6273 = vpack.c.b16 %v6149, %v6145
  %v6274 = vpack.c.b16 %v6150, %v6146
  %v6275 = vpack.c.b16 %v6151, %v6147
  %v6276 = vpack.c.b16 %v6152, %v6148
  %v6277 = vpack.c.b16 %v6157, %v6153
  %v6278 = vpack.c.b16 %v6158, %v6154
  %v6279 = vpack.c.b16 %v6159, %v6155
  %v6280 = vpack.c.b16 %v6160, %v6156
  %v6281 = vpack.c.b16 %v6165, %v6161
  %v6282 = vpack.c.b16 %v6166, %v6162
  %v6283 = vpack.c.b16 %v6167, %v6163
  %v6284 = vpack.c.b16 %v6168, %v6164
  %v6285 = vpack.c.b16 %v6173, %v6169
  %v6286 = vpack.c.b16 %v6174, %v6170
  %v6287 = vpack.c.b16 %v6175, %v6171
  %v6288 = vpack.c.b16 %v6176, %v6172
  %v6289 = vpack.c.b16 %v6181, %v6177
  %v6290 = vpack.c.b16 %v6182, %v6178
  %v6291 = vpack.c.b16 %v6183, %v6179
  %v6292 = vpack.c.b16 %v6184, %v6180
  %v6293 = vpack.c.b16 %v6189, %v6185
  %v6294 = vpack.c.b16 %v6190, %v6186
  %v6295 = vpack.c.b16 %v6191, %v6187
  %v6296 = vpack.c.b16 %v6192, %v6188
  %v6297 = vpack.c.b16 %v6197, %v6193
  %v6298 = vpack.c.b16 %v6198, %v6194
  %v6299 = vpack.c.b16 %v6199, %v6195
  %v6300 = vpack.c.b16 %v6200, %v6196
  %v6301 = vpack.c.b16 %v6205, %v6201
  %v6302 = vpack.c.b16 %v6206, %v6202
  %v6303 = vpack.c.b16 %v6207, %v6203
  %v6304 = vpack.c.b16 %v6208, %v6204
  %v6305 = vpack.c.b16 %v6213, %v6209
  %v6306 = vpack.c.b16 %v6214, %v6210
  %v6307 = vpack.c.b16 %v6215, %v6211
  %v6308 = vpack.c.b16 %v6216, %v6212
  %v6309 = vpack.c.b16 %v6221, %v6217
  %v6310 = vpack.c.b16 %v6222, %v6218
  %v6311 = vpack.c.b16 %v6223, %v6219
  %v6312 = vpack.c.b16 %v6224, %v6220
  %v6313 = vpack.c.b16 %v6229, %v6225
  %v6314 = vpack.c.b16 %v6230, %v6226
  %v6315 = vpack.c.b16 %v6231, %v6227
  %v6316 = vpack.c.b16 %v6232, %v6228
  %v6317 = vpack.c.b16 %v6237, %v6233
  %v6318 = vpack.c.b16 %v6238, %v6234
  %v6319 = vpack.c.b16 %v6239, %v6235
  %v6320 = vpack.c.b16 %v6240, %v6236
  %v6321 = vpack.c.b16 %v6245, %v6241
  %v6322 = vpack.c.b16 %v6246, %v6242
  %v6323 = vpack.c.b16 %v6247, %v6243
  %v6324 = vpack.c.b16 %v6248, %v6244
  %v6325 = vpack.c.b16 %v6253, %v6249
  %v6326 = vpack.c.b16 %v6254, %v6250
  %v6327 = vpack.c.b16 %v6255, %v6251
  %v6328 = vpack.c.b16 %v6256, %v6252
  %v6402 = vsel %vm1687, %v6033, 0
  %v6405 = vsel %vm1687, %v6036, 0
  %6407 = vmatprep.subr.bf16.mxu0 %v6286
  %6408 = vmatpush1.bf16.msra.mxu0 %v6285
  %6409 = vmatprep.subr.bf16.mxu0 %v6282
  %6410 = vmatpush1.bf16.msra.mxu0 %v6281
  %6411 = vmatprep.subr.bf16.mxu0 %v6278
  %6412 = vmatpush1.bf16.msra.mxu0 %v6277
  %6413 = vmatprep.subr.bf16.mxu0 %v6274
  %6414 = vmatpush1.bf16.msra.mxu0 %v6273
  %6415 = vmatprep.subr.bf16.mxu0 %v6270
  %6416 = vmatpush1.bf16.msra.mxu0 %v6269
  %6417 = vmatprep.subr.bf16.mxu0 %v6266
  %6418 = vmatpush1.bf16.msra.mxu0 %v6265
  %6419 = vmatprep.subr.bf16.mxu0 %v6262
  %6420 = vmatpush1.bf16.msra.mxu0 %v6261
  %6421 = vmatprep.subr.bf16.mxu0 %v6258
  %6422 = vmatpush1.bf16.msra.mxu0 %v6257
  %6423 = vmatprep.subr.bf16.mxu0 %v6318
  %6424 = vmatpush2.bf16.msra.mxu0 %v6317
  %6425 = vmatprep.subr.bf16.mxu0 %v6314
  %6426 = vmatpush2.bf16.msra.mxu0 %v6313
  %6427 = vmatprep.subr.bf16.mxu0 %v6310
  %6428 = vmatpush2.bf16.msra.mxu0 %v6309
  %6429 = vmatprep.subr.bf16.mxu0 %v6306
  %6430 = vmatpush2.bf16.msra.mxu0 %v6305
  %6431 = vmatprep.subr.bf16.mxu0 %v6302
  %6432 = vmatpush2.bf16.msra.mxu0 %v6301
  %6433 = vmatprep.subr.bf16.mxu0 %v6298
  %6434 = vmatpush2.bf16.msra.mxu0 %v6297
  %6435 = vmatprep.subr.bf16.mxu0 %v6294
  %6436 = vmatpush2.bf16.msra.mxu0 %v6293
  %6437 = vmatprep.subr.bf16.mxu0 %v6290
  %6438 = vmatpush2.bf16.msra.mxu0 %v6289
  %6439 = vmatprep.mubr.bf16.mxu0 %v6032
  %6440 = vmatmul.mubr.bf16.gmra.mxu0 %v6031
  %v6441 = vpop.f32.mrf.mxu0
  %v6442 = vadd.f32 0.0, %v6441
  %v6443 = vpop.f32.mrf.mxu0
  %v6444 = vadd.f32 0.0, %v6443
  %v6445 = vpop.f32.mrf.mxu0
  %v6446 = vadd.f32 0.0, %v6445
  %v6447 = vpop.f32.mrf.mxu0
  %v6448 = vadd.f32 0.0, %v6447
  %6449 = vmatprep.mubr.bf16.mxu0 %v6035
  %6450 = vmatmul.mubr.bf16.gmra.mxu0 %v6034
  %v6451 = vpop.f32.mrf.mxu0
  %v6452 = vadd.f32 0.0, %v6451
  %v6453 = vpop.f32.mrf.mxu0
  %v6454 = vadd.f32 0.0, %v6453
  %v6455 = vpop.f32.mrf.mxu0
  %v6456 = vadd.f32 0.0, %v6455
  %v6457 = vpop.f32.mrf.mxu0
  %v6458 = vadd.f32 0.0, %v6457
  %6459 = vdwg.mxu0
  %6460 = vmatprep.subr.bf16.mxu0 0
  %6461 = vmatpush1.bf16.msra.mxu0 0
  %6462 = vmatprep.subr.bf16.mxu0 0
  %6463 = vmatpush1.bf16.msra.mxu0 0
  %6464 = vmatprep.subr.bf16.mxu0 0
  %6465 = vmatpush1.bf16.msra.mxu0 0
  %6466 = vmatprep.subr.bf16.mxu0 0
  %6467 = vmatpush1.bf16.msra.mxu0 0
  %6468 = vmatprep.subr.bf16.mxu0 0
  %6469 = vmatpush1.bf16.msra.mxu0 0
  %6470 = vmatprep.subr.bf16.mxu0 0
  %6471 = vmatpush1.bf16.msra.mxu0 0
  %6472 = vmatprep.subr.bf16.mxu0 %v6326
  %6473 = vmatpush1.bf16.msra.mxu0 %v6325
  %6474 = vmatprep.subr.bf16.mxu0 %v6322
  %6475 = vmatpush1.bf16.msra.mxu0 %v6321
  %6476 = vmatprep.subr.bf16.mxu0 0
  %6477 = vmatpush2.bf16.msra.mxu0 0
  %6478 = vmatprep.subr.bf16.mxu0 0
  %6479 = vmatpush2.bf16.msra.mxu0 0
  %6480 = vmatprep.subr.bf16.mxu0 0
  %6481 = vmatpush2.bf16.msra.mxu0 0
  %6482 = vmatprep.subr.bf16.mxu0 0
  %6483 = vmatpush2.bf16.msra.mxu0 0
  %6484 = vmatprep.subr.bf16.mxu0 0
  %6485 = vmatpush2.bf16.msra.mxu0 0
  %6486 = vmatprep.subr.bf16.mxu0 0
  %6487 = vmatpush2.bf16.msra.mxu0 0
  %6488 = vmatprep.subr.bf16.mxu0 0
  %6489 = vmatpush2.bf16.msra.mxu0 0
  %6490 = vmatprep.subr.bf16.mxu0 0
  %6491 = vmatpush2.bf16.msra.mxu0 0
  %6492 = vmatprep.mubr.bf16.mxu0 0
  %6493 = vmatmul.mubr.bf16.gmra.mxu0 %v6402
  %v6494 = vpop.f32.mrf.mxu0
  %v6495 = vadd.f32 %v6442, %v6494
  %v6496 = vpop.f32.mrf.mxu0
  %v6497 = vadd.f32 %v6444, %v6496
  %v6498 = vpop.f32.mrf.mxu0
  %v6499 = vadd.f32 %v6446, %v6498
  %v6500 = vpop.f32.mrf.mxu0
  %v6501 = vadd.f32 %v6448, %v6500
  %6502 = vmatprep.mubr.bf16.mxu0 0
  %6503 = vmatmul.mubr.bf16.gmra.mxu0 %v6405
  %v6504 = vpop.f32.mrf.mxu0
  %v6505 = vadd.f32 %v6452, %v6504
  %v6506 = vpop.f32.mrf.mxu0
  %v6507 = vadd.f32 %v6454, %v6506
  %v6508 = vpop.f32.mrf.mxu0
  %v6509 = vadd.f32 %v6456, %v6508
  %v6510 = vpop.f32.mrf.mxu0
  %v6511 = vadd.f32 %v6458, %v6510
  %6512 = vdwg.mxu0
  %6513 = vmatprep.subr.bf16.mxu0 %v6288
  %6514 = vmatpush1.bf16.msra.mxu0 %v6287
  %6515 = vmatprep.subr.bf16.mxu0 %v6284
  %6516 = vmatpush1.bf16.msra.mxu0 %v6283
  %6517 = vmatprep.subr.bf16.mxu0 %v6280
  %6518 = vmatpush1.bf16.msra.mxu0 %v6279
  %6519 = vmatprep.subr.bf16.mxu0 %v6276
  %6520 = vmatpush1.bf16.msra.mxu0 %v6275
  %6521 = vmatprep.subr.bf16.mxu0 %v6272
  %6522 = vmatpush1.bf16.msra.mxu0 %v6271
  %6523 = vmatprep.subr.bf16.mxu0 %v6268
  %6524 = vmatpush1.bf16.msra.mxu0 %v6267
  %6525 = vmatprep.subr.bf16.mxu0 %v6264
  %6526 = vmatpush1.bf16.msra.mxu0 %v6263
  %6527 = vmatprep.subr.bf16.mxu0 %v6260
  %6528 = vmatpush1.bf16.msra.mxu0 %v6259
  %6529 = vmatprep.subr.bf16.mxu0 %v6320
  %6530 = vmatpush2.bf16.msra.mxu0 %v6319
  %6531 = vmatprep.subr.bf16.mxu0 %v6316
  %6532 = vmatpush2.bf16.msra.mxu0 %v6315
  %6533 = vmatprep.subr.bf16.mxu0 %v6312
  %6534 = vmatpush2.bf16.msra.mxu0 %v6311
  %6535 = vmatprep.subr.bf16.mxu0 %v6308
  %6536 = vmatpush2.bf16.msra.mxu0 %v6307
  %6537 = vmatprep.subr.bf16.mxu0 %v6304
  %6538 = vmatpush2.bf16.msra.mxu0 %v6303
  %6539 = vmatprep.subr.bf16.mxu0 %v6300
  %6540 = vmatpush2.bf16.msra.mxu0 %v6299
  %6541 = vmatprep.subr.bf16.mxu0 %v6296
  %6542 = vmatpush2.bf16.msra.mxu0 %v6295
  %6543 = vmatprep.subr.bf16.mxu0 %v6292
  %6544 = vmatpush2.bf16.msra.mxu0 %v6291
  %6545 = vmatprep.mubr.bf16.mxu0 %v6032
  %6546 = vmatmul.mubr.bf16.gmra.mxu0 %v6031
  %v6547 = vpop.f32.mrf.mxu0
  %v6548 = vadd.f32 0.0, %v6547
  %v6549 = vpop.f32.mrf.mxu0
  %v6550 = vadd.f32 0.0, %v6549
  %v6551 = vpop.f32.mrf.mxu0
  %v6552 = vadd.f32 0.0, %v6551
  %v6553 = vpop.f32.mrf.mxu0
  %v6554 = vadd.f32 0.0, %v6553
  %6555 = vmatprep.mubr.bf16.mxu0 %v6035
  %6556 = vmatmul.mubr.bf16.gmra.mxu0 %v6034
  %v6557 = vpop.f32.mrf.mxu0
  %v6558 = vadd.f32 0.0, %v6557
  %v6559 = vpop.f32.mrf.mxu0
  %v6560 = vadd.f32 0.0, %v6559
  %v6561 = vpop.f32.mrf.mxu0
  %v6562 = vadd.f32 0.0, %v6561
  %v6563 = vpop.f32.mrf.mxu0
  %v6564 = vadd.f32 0.0, %v6563
  %6565 = vdwg.mxu0
  %6566 = vmatprep.subr.bf16.mxu0 0
  %6567 = vmatpush1.bf16.msra.mxu0 0
  %6568 = vmatprep.subr.bf16.mxu0 0
  %6569 = vmatpush1.bf16.msra.mxu0 0
  %6570 = vmatprep.subr.bf16.mxu0 0
  %6571 = vmatpush1.bf16.msra.mxu0 0
  %6572 = vmatprep.subr.bf16.mxu0 0
  %6573 = vmatpush1.bf16.msra.mxu0 0
  %6574 = vmatprep.subr.bf16.mxu0 0
  %6575 = vmatpush1.bf16.msra.mxu0 0
  %6576 = vmatprep.subr.bf16.mxu0 0
  %6577 = vmatpush1.bf16.msra.mxu0 0
  %6578 = vmatprep.subr.bf16.mxu0 %v6328
  %6579 = vmatpush1.bf16.msra.mxu0 %v6327
  %6580 = vmatprep.subr.bf16.mxu0 %v6324
  %6581 = vmatpush1.bf16.msra.mxu0 %v6323
  %6582 = vmatprep.subr.bf16.mxu0 0
  %6583 = vmatpush2.bf16.msra.mxu0 0
  %6584 = vmatprep.subr.bf16.mxu0 0
  %6585 = vmatpush2.bf16.msra.mxu0 0
  %6586 = vmatprep.subr.bf16.mxu0 0
  %6587 = vmatpush2.bf16.msra.mxu0 0
  %6588 = vmatprep.subr.bf16.mxu0 0
  %6589 = vmatpush2.bf16.msra.mxu0 0
  %6590 = vmatprep.subr.bf16.mxu0 0
  %6591 = vmatpush2.bf16.msra.mxu0 0
  %6592 = vmatprep.subr.bf16.mxu0 0
  %6593 = vmatpush2.bf16.msra.mxu0 0
  %6594 = vmatprep.subr.bf16.mxu0 0
  %6595 = vmatpush2.bf16.msra.mxu0 0
  %6596 = vmatprep.subr.bf16.mxu0 0
  %6597 = vmatpush2.bf16.msra.mxu0 0
  %6598 = vmatprep.mubr.bf16.mxu0 0
  %6599 = vmatmul.mubr.bf16.gmra.mxu0 %v6402
  %v6600 = vpop.f32.mrf.mxu0
  %v6601 = vadd.f32 %v6548, %v6600
  %v6602 = vpop.f32.mrf.mxu0
  %v6603 = vadd.f32 %v6550, %v6602
  %v6604 = vpop.f32.mrf.mxu0
  %v6605 = vadd.f32 %v6552, %v6604
  %v6606 = vpop.f32.mrf.mxu0
  %v6607 = vadd.f32 %v6554, %v6606
  %6608 = vmatprep.mubr.bf16.mxu0 0
  %6609 = vmatmul.mubr.bf16.gmra.mxu0 %v6405
  %v6610 = vpop.f32.mrf.mxu0
  %v6611 = vadd.f32 %v6558, %v6610
  %v6612 = vpop.f32.mrf.mxu0
  %v6613 = vadd.f32 %v6560, %v6612
  %v6614 = vpop.f32.mrf.mxu0
  %v6615 = vadd.f32 %v6562, %v6614
  %v6616 = vpop.f32.mrf.mxu0
  %v6617 = vadd.f32 %v6564, %v6616
  %6618 = vdwg.mxu0
  %s6619 = scalar_lea.vmem %s4, 256
  %v6620 = vld [vmem:[%s6619] sm:$0xff]
  %v6621 = vld [vmem:[%s6619 + $0x8] sm:$0xff]
  %v6622 = vld [vmem:[%s6619 + $0x10] sm:$0xff]
  %v6623 = vld [vmem:[%s6619 + $0x18] sm:$0xff]
  %s6624 = scalar_lea.vmem %s4, 288
  %v6625 = vld [vmem:[%s6624] sm:$0xff]
  %v6626 = vld [vmem:[%s6624 + $0x8] sm:$0xff]
  %v6627 = vld [vmem:[%s6624 + $0x10] sm:$0xff]
  %v6628 = vld [vmem:[%s6624 + $0x18] sm:$0xff]
  %v6629 = vmul.f32 %v6495, %v309
  %v6630 = vmul.f32 %v6497, %v313
  %v6631 = vmul.f32 %v6601, %v317
  %v6632 = vmul.f32 %v6603, %v321
  %v6633 = vmul.f32 %v6499, %v309
  %v6634 = vmul.f32 %v6501, %v313
  %v6635 = vmul.f32 %v6605, %v317
  %v6636 = vmul.f32 %v6607, %v321
  %v6637 = vmul.f32 %v6505, %v309
  %v6638 = vmul.f32 %v6507, %v313
  %v6639 = vmul.f32 %v6611, %v317
  %v6640 = vmul.f32 %v6613, %v321
  %v6641 = vmul.f32 %v6509, %v309
  %v6642 = vmul.f32 %v6511, %v313
  %v6643 = vmul.f32 %v6615, %v317
  %v6644 = vmul.f32 %v6617, %v321
  %v6645 = vadd.f32 %v6629, %v6630
  %v6646 = vadd.f32 %v6645, %v6631
  %v6647 = vsel %vm344, %v6632, 0.0
  %v6648 = vadd.f32 %v6646, %v6647
  %6649 = vadd.xlane.f32.xlu0 %v6648
  %v6650 = vpop.xlane.xlu0 %6649
  %v6651 = vadd.f32 %v6633, %v6634
  %v6652 = vadd.f32 %v6651, %v6635
  %v6653 = vsel %vm344, %v6636, 0.0
  %v6654 = vadd.f32 %v6652, %v6653
  %6655 = vadd.xlane.f32.xlu0 %v6654
  %v6656 = vpop.xlane.xlu0 %6655
  %v6657 = vadd.f32 %v6637, %v6638
  %v6658 = vadd.f32 %v6657, %v6639
  %v6659 = vsel %vm344, %v6640, 0.0
  %v6660 = vadd.f32 %v6658, %v6659
  %6661 = vadd.xlane.f32.xlu0 %v6660
  %v6662 = vpop.xlane.xlu0 %6661
  %v6663 = vadd.f32 %v6641, %v6642
  %v6664 = vadd.f32 %v6663, %v6643
  %v6665 = vsel %vm344, %v6644, 0.0
  %v6666 = vadd.f32 %v6664, %v6665
  %6667 = vadd.xlane.f32.xlu0 %v6666
  %v6668 = vpop.xlane.xlu0 %6667
  %v6669 = vmul.f32 %v6650, 0.0030864198
  %v6670 = vmul.f32 %v6656, 0.0030864198
  %v6671 = vmul.f32 %v6662, 0.0030864198
  %v6672 = vmul.f32 %v6668, 0.0030864198
  %v6673 = vmul.f32 %v6629, %v6495
  %v6674 = vmul.f32 %v6630, %v6497
  %v6675 = vmul.f32 %v6631, %v6601
  %v6676 = vmul.f32 %v6632, %v6603
  %v6677 = vmul.f32 %v6633, %v6499
  %v6678 = vmul.f32 %v6634, %v6501
  %v6679 = vmul.f32 %v6635, %v6605
  %v6680 = vmul.f32 %v6636, %v6607
  %v6681 = vmul.f32 %v6637, %v6505
  %v6682 = vmul.f32 %v6638, %v6507
  %v6683 = vmul.f32 %v6639, %v6611
  %v6684 = vmul.f32 %v6640, %v6613
  %v6685 = vmul.f32 %v6641, %v6509
  %v6686 = vmul.f32 %v6642, %v6511
  %v6687 = vmul.f32 %v6643, %v6615
  %v6688 = vmul.f32 %v6644, %v6617
  %v6689 = vadd.f32 %v6673, %v6674
  %v6690 = vadd.f32 %v6689, %v6675
  %v6691 = vsel %vm344, %v6676, 0.0
  %v6692 = vadd.f32 %v6690, %v6691
  %6693 = vadd.xlane.f32.xlu0 %v6692
  %v6694 = vpop.xlane.xlu0 %6693
  %v6695 = vadd.f32 %v6677, %v6678
  %v6696 = vadd.f32 %v6695, %v6679
  %v6697 = vsel %vm344, %v6680, 0.0
  %v6698 = vadd.f32 %v6696, %v6697
  %6699 = vadd.xlane.f32.xlu0 %v6698
  %v6700 = vpop.xlane.xlu0 %6699
  %v6701 = vadd.f32 %v6681, %v6682
  %v6702 = vadd.f32 %v6701, %v6683
  %v6703 = vsel %vm344, %v6684, 0.0
  %v6704 = vadd.f32 %v6702, %v6703
  %6705 = vadd.xlane.f32.xlu0 %v6704
  %v6706 = vpop.xlane.xlu0 %6705
  %v6707 = vadd.f32 %v6685, %v6686
  %v6708 = vadd.f32 %v6707, %v6687
  %v6709 = vsel %vm344, %v6688, 0.0
  %v6710 = vadd.f32 %v6708, %v6709
  %6711 = vadd.xlane.f32.xlu0 %v6710
  %v6712 = vpop.xlane.xlu0 %6711
  %v6713 = vmul.f32 %v6694, 0.0030864198
  %v6714 = vmul.f32 %v6700, 0.0030864198
  %v6715 = vmul.f32 %v6706, 0.0030864198
  %v6716 = vmul.f32 %v6712, 0.0030864198
  %v6717 = vmul.f32 %v6669, %v6669
  %v6718 = vmul.f32 %v6670, %v6670
  %v6719 = vmul.f32 %v6671, %v6671
  %v6720 = vmul.f32 %v6672, %v6672
  %v6721 = vsub.f32 %v6713, %v6717
  %v6722 = vsub.f32 %v6714, %v6718
  %v6723 = vsub.f32 %v6715, %v6719
  %v6724 = vsub.f32 %v6716, %v6720
  %v6725 = vadd.f32 %v6721, 1e-05
  %v6726 = vadd.f32 %v6722, 1e-05
  %v6727 = vadd.f32 %v6723, 1e-05
  %v6728 = vadd.f32 %v6724, 1e-05
  %v6729 = vrsqrt.pop %v6725
  %v6730 = vrsqrt.pop %v6726
  %v6731 = vrsqrt.pop %v6727
  %v6732 = vrsqrt.pop %v6728
  %v6733 = vmul.f32 %v6620, %v6729
  %v6734 = vmul.f32 %v6621, %v6730
  %v6735 = vmul.f32 %v6622, %v6731
  %v6736 = vmul.f32 %v6623, %v6732
  %v6737 = vmul.f32 %v6669, %v6733
  %v6738 = vmul.f32 %v6670, %v6734
  %v6739 = vmul.f32 %v6671, %v6735
  %v6740 = vmul.f32 %v6672, %v6736
  %v6741 = vsub.f32 %v6625, %v6737
  %v6742 = vsub.f32 %v6626, %v6738
  %v6743 = vsub.f32 %v6627, %v6739
  %v6744 = vsub.f32 %v6628, %v6740
  %6746 = vset.pattern.permute.xlu0 0
  %6747 = vperm.xlu0 %6746, %v6733
  %v6748 = vpop.permute.xlu0 %6747
  %6751 = vset.pattern.permute.xlu0 0
  %6752 = vperm.xlu0 %6751, %v6734
  %v6753 = vpop.permute.xlu0 %6752
  %6756 = vset.pattern.permute.xlu0 0
  %6757 = vperm.xlu0 %6756, %v6735
  %v6758 = vpop.permute.xlu0 %6757
  %6761 = vset.pattern.permute.xlu0 0
  %6762 = vperm.xlu0 %6761, %v6736
  %v6763 = vpop.permute.xlu0 %6762
  %v6765 = vmul.f32 %v6495, %v6748
  %v6766 = vmul.f32 %v6497, %v6748
  %v6767 = vmul.f32 %v6601, %v6748
  %v6768 = vmul.f32 %v6603, %v6748
  %v6769 = vmul.f32 %v6499, %v6753
  %v6770 = vmul.f32 %v6501, %v6753
  %v6771 = vmul.f32 %v6605, %v6753
  %v6772 = vmul.f32 %v6607, %v6753
  %v6773 = vmul.f32 %v6505, %v6758
  %v6774 = vmul.f32 %v6507, %v6758
  %v6775 = vmul.f32 %v6611, %v6758
  %v6776 = vmul.f32 %v6613, %v6758
  %v6777 = vmul.f32 %v6509, %v6763
  %v6778 = vmul.f32 %v6511, %v6763
  %v6779 = vmul.f32 %v6615, %v6763
  %v6780 = vmul.f32 %v6617, %v6763
  %6782 = vset.pattern.permute.xlu0 0
  %6783 = vperm.xlu0 %6782, %v6741
  %v6784 = vpop.permute.xlu0 %6783
  %6787 = vset.pattern.permute.xlu0 0
  %6788 = vperm.xlu0 %6787, %v6742
  %v6789 = vpop.permute.xlu0 %6788
  %6792 = vset.pattern.permute.xlu0 0
  %6793 = vperm.xlu0 %6792, %v6743
  %v6794 = vpop.permute.xlu0 %6793
  %6797 = vset.pattern.permute.xlu0 0
  %6798 = vperm.xlu0 %6797, %v6744
  %v6799 = vpop.permute.xlu0 %6798
  %v6801 = vadd.f32 %v6765, %v6784
  %v6802 = vadd.f32 %v6766, %v6784
  %v6803 = vadd.f32 %v6767, %v6784
  %v6804 = vadd.f32 %v6768, %v6784
  %v6805 = vadd.f32 %v6769, %v6789
  %v6806 = vadd.f32 %v6770, %v6789
  %v6807 = vadd.f32 %v6771, %v6789
  %v6808 = vadd.f32 %v6772, %v6789
  %v6809 = vadd.f32 %v6773, %v6794
  %v6810 = vadd.f32 %v6774, %v6794
  %v6811 = vadd.f32 %v6775, %v6794
  %v6812 = vadd.f32 %v6776, %v6794
  %v6813 = vadd.f32 %v6777, %v6799
  %v6814 = vadd.f32 %v6778, %v6799
  %v6815 = vadd.f32 %v6779, %v6799
  %v6816 = vadd.f32 %v6780, %v6799
  %v6817 = vmax.f32 %v6801, 0.0
  %v6818 = vmax.f32 %v6802, 0.0
  %v6819 = vmax.f32 %v6803, 0.0
  %v6820 = vmax.f32 %v6804, 0.0
  %v6821 = vmax.f32 %v6805, 0.0
  %v6822 = vmax.f32 %v6806, 0.0
  %v6823 = vmax.f32 %v6807, 0.0
  %v6824 = vmax.f32 %v6808, 0.0
  %v6825 = vmax.f32 %v6809, 0.0
  %v6826 = vmax.f32 %v6810, 0.0
  %v6827 = vmax.f32 %v6811, 0.0
  %v6828 = vmax.f32 %v6812, 0.0
  %v6829 = vmax.f32 %v6813, 0.0
  %v6830 = vmax.f32 %v6814, 0.0
  %v6831 = vmax.f32 %v6815, 0.0
  %v6832 = vmax.f32 %v6816, 0.0
  %v6833 = vmul.f32 %v6817, %v309
  %v6834 = vmul.f32 %v6818, %v313
  %v6835 = vmul.f32 %v6819, %v317
  %v6836 = vmul.f32 %v6820, %v321
  %v6837 = vmul.f32 %v6821, %v309
  %v6838 = vmul.f32 %v6822, %v313
  %v6839 = vmul.f32 %v6823, %v317
  %v6840 = vmul.f32 %v6824, %v321
  %v6841 = vmul.f32 %v6825, %v309
  %v6842 = vmul.f32 %v6826, %v313
  %v6843 = vmul.f32 %v6827, %v317
  %v6844 = vmul.f32 %v6828, %v321
  %v6845 = vmul.f32 %v6829, %v309
  %v6846 = vmul.f32 %v6830, %v313
  %v6847 = vmul.f32 %v6831, %v317
  %v6848 = vmul.f32 %v6832, %v321
  %v6849 = vpack.c.bf16 %v6837, %v6833
  %v6850 = vpack.c.bf16 %v6838, %v6834
  %v6851 = vpack.c.bf16 %v6839, %v6835
  %v6852 = vpack.c.bf16 %v6840, %v6836
  %v6853 = vpack.c.bf16 %v6845, %v6841
  %v6854 = vpack.c.bf16 %v6846, %v6842
  %v6855 = vpack.c.bf16 %v6847, %v6843
  %v6856 = vpack.c.bf16 %v6848, %v6844
  %v6865 = vunpack.c.l.b16 %v6849
  %v6866 = vunpack.c.l.b16 %v6850
  %v6867 = vunpack.c.l.b16 %v6851
  %v6868 = vunpack.c.l.b16 %v6852
  %v6869 = vunpack.c.h.b16 %v6849
  %v6870 = vunpack.c.h.b16 %v6850
  %v6871 = vunpack.c.h.b16 %v6851
  %v6872 = vunpack.c.h.b16 %v6852
  %v6873 = vunpack.c.l.b16 %v6853
  %v6874 = vunpack.c.l.b16 %v6854
  %v6875 = vunpack.c.l.b16 %v6855
  %v6876 = vunpack.c.l.b16 %v6856
  %v6877 = vunpack.c.h.b16 %v6853
  %v6878 = vunpack.c.h.b16 %v6854
  %v6879 = vunpack.c.h.b16 %v6855
  %v6880 = vunpack.c.h.b16 %v6856
  %v6881 = vpack.c.b16 %v6866, %v6865
  %v6882 = vpack.c.b16 %v6868, %v6867
  %v6883 = vpack.c.b16 %v6870, %v6869
  %v6884 = vpack.c.b16 %v6872, %v6871
  %v6885 = vpack.c.b16 %v6874, %v6873
  %v6886 = vpack.c.b16 %v6876, %v6875
  %v6887 = vpack.c.b16 %v6878, %v6877
  %v6888 = vpack.c.b16 %v6880, %v6879
  %6889 = vrot.lane.b32.xlu0 %v6881, 21
  %v6890 = vpop.permute.xlu0 %6889
  %6891 = vrot.lane.b32.xlu0 %v6882, 21
  %v6892 = vpop.permute.xlu0 %6891
  %6893 = vrot.lane.b32.xlu0 %v6883, 21
  %v6894 = vpop.permute.xlu0 %6893
  %6895 = vrot.lane.b32.xlu0 %v6884, 21
  %v6896 = vpop.permute.xlu0 %6895
  %6897 = vrot.lane.b32.xlu0 %v6885, 21
  %v6898 = vpop.permute.xlu0 %6897
  %6899 = vrot.lane.b32.xlu0 %v6886, 21
  %v6900 = vpop.permute.xlu0 %6899
  %6901 = vrot.lane.b32.xlu0 %v6887, 21
  %v6902 = vpop.permute.xlu0 %6901
  %6903 = vrot.lane.b32.xlu0 %v6888, 21
  %v6904 = vpop.permute.xlu0 %6903
  %v6905 = vrot.slane %v6890, 4
  %v6906 = vrot.slane %v6892, 4
  %v6907 = vrot.slane %v6894, 4
  %v6908 = vrot.slane %v6896, 4
  %v6909 = vrot.slane %v6898, 4
  %v6910 = vrot.slane %v6900, 4
  %v6911 = vrot.slane %v6902, 4
  %v6912 = vrot.slane %v6904, 4
  %v6913 = vsel %vm611, %v6905, %v6890
  %v6914 = vsel %vm613, %v6905, %v6906
  %v6915 = vsel %vm611, %v6914, %v6892
  %v6916 = vsel %vm611, %v6907, %v6894
  %v6917 = vsel %vm613, %v6907, %v6908
  %v6918 = vsel %vm611, %v6917, %v6896
  %v6919 = vsel %vm611, %v6909, %v6898
  %v6920 = vsel %vm613, %v6909, %v6910
  %v6921 = vsel %vm611, %v6920, %v6900
  %v6922 = vsel %vm611, %v6911, %v6902
  %v6923 = vsel %vm613, %v6911, %v6912
  %v6924 = vsel %vm611, %v6923, %v6904
  %6933 = vst.msk [vmem:[#allocation2] sm:$0xff] %vm635, %v6913
  %6934 = vst.msk [vmem:[#allocation2 + $0x8] sm:$0xff] %vm639, %v6915
  %6935 = vst.msk [vmem:[#allocation2 + $0x10] sm:$0xff] %vm635, %v6916
  %6936 = vst.msk [vmem:[#allocation2 + $0x18] sm:$0xff] %vm639, %v6918
  %6937 = vst.msk [vmem:[#allocation2 + $0x20] sm:$0xff] %vm635, %v6919
  %6938 = vst.msk [vmem:[#allocation2 + $0x28] sm:$0xff] %vm639, %v6921
  %6939 = vst.msk [vmem:[#allocation2 + $0x30] sm:$0xff] %vm635, %v6922
  %6940 = vst.msk [vmem:[#allocation2 + $0x38] sm:$0xff] %vm639, %v6924
  %v6941 = vld [vmem:[#allocation2] sm:$0xff]
  %v6942 = vld [vmem:[#allocation2 + $0x8] sm:$0xff]
  %v6943 = vld [vmem:[#allocation2 + $0x10] sm:$0xff]
  %v6944 = vld [vmem:[#allocation2 + $0x18] sm:$0xff]
  %v6945 = vld [vmem:[#allocation2 + $0x20] sm:$0xff]
  %v6946 = vld [vmem:[#allocation2 + $0x28] sm:$0xff]
  %v6947 = vld [vmem:[#allocation2 + $0x30] sm:$0xff]
  %v6948 = vld [vmem:[#allocation2 + $0x38] sm:$0xff]
  %v6949 = vld [vmem:[%s3] sm:$0xf]
  %v6950 = vld [vmem:[%s3 + $0x4] sm:$0x1]
  %v6953 = vunpack.c.l.b16 %v6949
  %v6954 = vunpack.c.l.b16 %v6950
  %v6955 = vpack.c.b16 %v6954, %v6953
  %v6964 = vunpack.c.l.b16 %v6941
  %v6965 = vunpack.c.h.b16 %v6941
  %v6966 = vunpack.c.l.b16 %v6942
  %v6967 = vunpack.c.h.b16 %v6942
  %v6968 = vunpack.c.l.b16 %v6943
  %v6969 = vunpack.c.h.b16 %v6943
  %v6970 = vunpack.c.l.b16 %v6944
  %v6971 = vunpack.c.h.b16 %v6944
  %v6972 = vunpack.c.l.b16 %v6945
  %v6973 = vunpack.c.h.b16 %v6945
  %v6974 = vunpack.c.l.b16 %v6946
  %v6975 = vunpack.c.h.b16 %v6946
  %v6976 = vunpack.c.l.b16 %v6947
  %v6977 = vunpack.c.h.b16 %v6947
  %v6978 = vunpack.c.l.b16 %v6948
  %v6979 = vunpack.c.h.b16 %v6948
  %v6980 = vpack.c.b16 %v6968, %v6964
  %v6981 = vpack.c.b16 %v6969, %v6965
  %v6982 = vpack.c.b16 %v6970, %v6966
  %v6983 = vpack.c.b16 %v6971, %v6967
  %v6984 = vpack.c.b16 %v6976, %v6972
  %v6985 = vpack.c.b16 %v6977, %v6973
  %v6986 = vpack.c.b16 %v6978, %v6974
  %v6987 = vpack.c.b16 %v6979, %v6975
  %6988 = vrot.lane.b32.xlu0 %v6980, 107
  %v6989 = vpop.permute.xlu0 %6988
  %6990 = vrot.lane.b32.xlu0 %v6981, 107
  %v6991 = vpop.permute.xlu0 %6990
  %6992 = vrot.lane.b32.xlu0 %v6982, 107
  %v6993 = vpop.permute.xlu0 %6992
  %6994 = vrot.lane.b32.xlu0 %v6983, 107
  %v6995 = vpop.permute.xlu0 %6994
  %6996 = vrot.lane.b32.xlu0 %v6984, 107
  %v6997 = vpop.permute.xlu0 %6996
  %6998 = vrot.lane.b32.xlu0 %v6985, 107
  %v6999 = vpop.permute.xlu0 %6998
  %7000 = vrot.lane.b32.xlu0 %v6986, 107
  %v7001 = vpop.permute.xlu0 %7000
  %7002 = vrot.lane.b32.xlu0 %v6987, 107
  %v7003 = vpop.permute.xlu0 %7002
  %v7004 = vsel %vm913, %v6989, %v6991
  %v7005 = vsel %vm913, %v6991, %v6993
  %v7006 = vsel %vm913, %v6993, %v6995
  %v7007 = vsel %vm913, %v6997, %v6999
  %v7008 = vsel %vm913, %v6999, %v7001
  %v7009 = vsel %vm913, %v7001, %v7003
  %v7019 = vsel %vm1687, %v6955, 0
  %7021 = vmatprep.subr.bf16.mxu0 0
  %7022 = vmatpush1.bf16.msra.mxu0 0
  %7023 = vmatprep.subr.bf16.mxu0 0
  %7024 = vmatpush1.bf16.msra.mxu0 0
  %7025 = vmatprep.subr.bf16.mxu0 0
  %7026 = vmatpush1.bf16.msra.mxu0 0
  %7027 = vmatprep.subr.bf16.mxu0 0
  %7028 = vmatpush1.bf16.msra.mxu0 0
  %7029 = vmatprep.subr.bf16.mxu0 0
  %7030 = vmatpush1.bf16.msra.mxu0 0
  %7031 = vmatprep.subr.bf16.mxu0 0
  %7032 = vmatpush1.bf16.msra.mxu0 0
  %7033 = vmatprep.subr.bf16.mxu0 %v7008
  %7034 = vmatpush1.bf16.msra.mxu0 %v7007
  %7035 = vmatprep.subr.bf16.mxu0 %v7005
  %7036 = vmatpush1.bf16.msra.mxu0 %v7004
  %7037 = vmatprep.subr.bf16.mxu0 0
  %7038 = vmatpush2.bf16.msra.mxu0 0
  %7039 = vmatprep.subr.bf16.mxu0 0
  %7040 = vmatpush2.bf16.msra.mxu0 0
  %7041 = vmatprep.subr.bf16.mxu0 0
  %7042 = vmatpush2.bf16.msra.mxu0 0
  %7043 = vmatprep.subr.bf16.mxu0 0
  %7044 = vmatpush2.bf16.msra.mxu0 0
  %7045 = vmatprep.subr.bf16.mxu0 0
  %7046 = vmatpush2.bf16.msra.mxu0 0
  %7047 = vmatprep.subr.bf16.mxu0 0
  %7048 = vmatpush2.bf16.msra.mxu0 0
  %7049 = vmatprep.subr.bf16.mxu0 0
  %7050 = vmatpush2.bf16.msra.mxu0 0
  %7051 = vmatprep.subr.bf16.mxu0 0
  %7052 = vmatpush2.bf16.msra.mxu0 0
  %7053 = vmatprep.mubr.bf16.mxu0 0
  %7054 = vmatmul.mubr.bf16.gmra.mxu0 %v7019
  %v7055 = vpop.f32.mrf.mxu0
  %v7056 = vadd.f32 0.0, %v7055
  %v7057 = vpop.f32.mrf.mxu0
  %v7058 = vadd.f32 0.0, %v7057
  %v7059 = vpop.f32.mrf.mxu0
  %v7060 = vadd.f32 0.0, %v7059
  %v7061 = vpop.f32.mrf.mxu0
  %v7062 = vadd.f32 0.0, %v7061
  %7063 = vdwg.mxu0
  %7064 = vmatprep.subr.bf16.mxu0 0
  %7065 = vmatpush1.bf16.msra.mxu0 0
  %7066 = vmatprep.subr.bf16.mxu0 0
  %7067 = vmatpush1.bf16.msra.mxu0 0
  %7068 = vmatprep.subr.bf16.mxu0 0
  %7069 = vmatpush1.bf16.msra.mxu0 0
  %7070 = vmatprep.subr.bf16.mxu0 0
  %7071 = vmatpush1.bf16.msra.mxu0 0
  %7072 = vmatprep.subr.bf16.mxu0 0
  %7073 = vmatpush1.bf16.msra.mxu0 0
  %7074 = vmatprep.subr.bf16.mxu0 0
  %7075 = vmatpush1.bf16.msra.mxu0 0
  %7076 = vmatprep.subr.bf16.mxu0 %v7003
  %7077 = vmatpush1.bf16.msra.mxu0 %v7009
  %7078 = vmatprep.subr.bf16.mxu0 %v6995
  %7079 = vmatpush1.bf16.msra.mxu0 %v7006
  %7080 = vmatprep.subr.bf16.mxu0 0
  %7081 = vmatpush2.bf16.msra.mxu0 0
  %7082 = vmatprep.subr.bf16.mxu0 0
  %7083 = vmatpush2.bf16.msra.mxu0 0
  %7084 = vmatprep.subr.bf16.mxu0 0
  %7085 = vmatpush2.bf16.msra.mxu0 0
  %7086 = vmatprep.subr.bf16.mxu0 0
  %7087 = vmatpush2.bf16.msra.mxu0 0
  %7088 = vmatprep.subr.bf16.mxu0 0
  %7089 = vmatpush2.bf16.msra.mxu0 0
  %7090 = vmatprep.subr.bf16.mxu0 0
  %7091 = vmatpush2.bf16.msra.mxu0 0
  %7092 = vmatprep.subr.bf16.mxu0 0
  %7093 = vmatpush2.bf16.msra.mxu0 0
  %7094 = vmatprep.subr.bf16.mxu0 0
  %7095 = vmatpush2.bf16.msra.mxu0 0
  %7096 = vmatprep.mubr.bf16.mxu0 0
  %7097 = vmatmul.mubr.bf16.gmra.mxu0 %v7019
  %v7098 = vpop.f32.mrf.mxu0
  %v7099 = vadd.f32 0.0, %v7098
  %v7100 = vpop.f32.mrf.mxu0
  %v7101 = vadd.f32 0.0, %v7100
  %v7102 = vpop.f32.mrf.mxu0
  %v7103 = vadd.f32 0.0, %v7102
  %v7104 = vpop.f32.mrf.mxu0
  %v7105 = vadd.f32 0.0, %v7104
  %7106 = vdwg.mxu0
  %v7108 = vlaneseq
  %v7109 = vshrl.u32 %v7108, 7
  %v7110 = vsub.s32 0, %v7109
  %v7111 = vrot.slane %v29, %v7110
  %v7112 = vlaneseq
  %v7113 = vshrl.u32 %v7112, 7
  %v7114 = vsub.s32 1, %v7113
  %v7115 = vrot.slane %v29, %v7114
  %v7116 = vlaneseq
  %v7117 = vshrl.u32 %v7116, 7
  %v7118 = vsub.s32 2, %v7117
  %v7119 = vrot.slane %v29, %v7118
  %v7120 = vlaneseq
  %v7121 = vshrl.u32 %v7120, 7
  %v7122 = vsub.s32 3, %v7121
  %v7123 = vrot.slane %v29, %v7122
  %v7128 = vmul.f32 %v7056, %v7111
  %v7129 = vmul.f32 %v7058, %v7115
  %v7130 = vmul.f32 %v7099, %v7119
  %v7131 = vmul.f32 %v7101, %v7123
  %v7132 = vmul.f32 %v7060, %v7111
  %v7133 = vmul.f32 %v7062, %v7115
  %v7134 = vmul.f32 %v7103, %v7119
  %v7135 = vmul.f32 %v7105, %v7123
  %v7136 = vadd.f32 %v7128, %v7129
  %v7137 = vadd.f32 %v7136, %v7130
  %v7138 = vsel %vm344, %v7131, 0.0
  %v7139 = vadd.f32 %v7137, %v7138
  %7140 = vadd.xlane.f32.xlu0 %v7139
  %v7141 = vpop.xlane.xlu0 %7140
  %vm7142 = vcmask 1041408
  %v7143 = vsel %vm7142, %v7132, 0.0
  %v7144 = vsel %vm7142, %v7133, 0.0
  %v7145 = vadd.f32 %v7143, %v7144
  %v7146 = vsel %vm7142, %v7134, 0.0
  %v7147 = vadd.f32 %v7145, %v7146
  %vm7148 = vcmask 123904
  %v7149 = vsel %vm7148, %v7135, 0.0
  %v7150 = vadd.f32 %v7147, %v7149
  %7151 = vadd.xlane.f32.xlu0 %v7150
  %v7152 = vpop.xlane.xlu0 %7151
  %v7153 = vmul.f32 %v7141, 0.01
  %v7154 = vmul.f32 %v7152, 0.01
  %v7155 = vld [vmem:[%s5] sm:$0xff]
  %v7156 = vld [vmem:[%s5 + $0x8] sm:$0x3]
  %v7157 = vadd.f32 %v7153, %v7155
  %v7158 = vadd.f32 %v7154, %v7156
  %vm7159 = vcmask 7168
  %7160 = vst.msk [vmem:[%s7] sm:$0xff] %vm7159, %v7157
  %vm7161 = vcmask 1024
  %7162 = vst.msk [vmem:[%s7 + $0x8] sm:$0x3] %vm7161, %v7158
  // Predicated region
  $region30: #{model_forward.1} parent=0 // pred_check
    _
  $region31: #{model_forward.1} parent=0 // pred_check_branch
    %7164 = sbr.rel (0) target = $region33
  $region32: #{model_forward.1} parent=0 // pred_region
    _
  $region33: #{model_forward.1} parent=0 // pred_fallthru
    _
  // Predicated region
  $region34: #{model_forward.1} parent=0 // pred_check
    _
  $region35: #{model_forward.1} parent=0 // pred_check_branch
    %7166 = sbr.rel (0) target = $region37
  $region36: #{model_forward.1} parent=0 // pred_region
    _
  $region37: #{model_forward.1} parent=0 // pred_fallthru
    _

</llo_original>
